<compile_context>
chip_gen: v6e
topology: v6e:2x2x1
jax: 0.10.0
libtpu: 0.0.40
codegen_flags: <defaults>
</compile_context>

<pallas_src>
import functools

import jax
import jax.numpy as jnp
import numpy as np
from jax.experimental import pallas as pl
from jax.experimental.pallas import tpu as pltpu

EDGE_CONSTANT = 100.0
LOSS_WEIGHT = 1.0
EPS = 0.001          # robust_l1 epsilon
_MAX_TILE_H = 512    # row-tile cap
_MAX_MXU_W = 1024    # above this the (W,W) constant matrices get too big -> roll path


def _round_up(x, m):
    return (x + m - 1) // m * m


def _vmem_capacity_bytes():
    try:
        info = pltpu.get_tpu_info()
        return int(getattr(info, "vmem_capacity_bytes", 64 << 20))
    except Exception:
        return 64 << 20  # conservative default (v7x per-core physical VMEM)


def _tile_footprint_bytes(th, W, C, Cf, in_isz, out_isz, use_mxu):
    """Approximate per-grid-step VMEM footprint (double-buffered blocks + temps)."""
    io = 2 * (C + Cf) * th * W * in_isz          # image+flow blocks, double-buffered
    io += 2 * 2 * (C + Cf) * W * in_isz          # halo block, double-buffered
    io += 2 * th * W * out_isz                   # output block, double-buffered
    tmp = 12 * th * W * 4                        # live f32 temporaries
    consts = (2 * W * W * 4) if use_mxu else 0   # DX / SX banded matrices
    return io + tmp + consts


def _pick_tile_h(H, W, C, Cf, in_isz, out_isz, budget, use_mxu):
    """Row tile: prefer multiples of 8 that divide H so no wrapper-side padding."""
    def fits(th):
        return _tile_footprint_bytes(th, W, C, Cf, in_isz, out_isz, use_mxu) <= budget

    if H % 8 == 0:
        cands = [t for t in range(8, min(H, _MAX_TILE_H) + 1, 8) if H % t == 0]
        for t in sorted(cands, reverse=True):
            if fits(t):
                return t, H
        return 8, H
    if H <= _MAX_TILE_H and fits(H):     # single full-height tile works for any H
        return H, H
    # Rare fallback: large H not divisible by 8 -> edge-pad rows (extra HBM copy).
    H_pad = _round_up(H, 8)
    cands = [t for t in range(8, min(H_pad, _MAX_TILE_H) + 1, 8) if H_pad % t == 0]
    for t in sorted(cands, reverse=True):
        if fits(t):
            return t, H_pad
    return 8, H_pad


def _sobel_col_matrices(W):
    """Banded (W, W) matrices implementing the horizontal Sobel pass on the MXU.

    gx[:, j] = v[:, j+1] - v[:, j-1]             (replicate column boundary)
    gy[:, j] = d[:, j-1] + 2*d[:, j] + d[:, j+1]
    """
    j = np.arange(W)
    up = np.minimum(j + 1, W - 1)
    dn = np.maximum(j - 1, 0)
    dxm = np.zeros((W, W), np.float32)
    sxm = np.zeros((W, W), np.float32)
    dxm[up, j] += 1.0
    dxm[dn, j] -= 1.0
    sxm[dn, j] += 1.0
    sxm[j, j] += 2.0
    sxm[up, j] += 1.0
    return jnp.asarray(dxm), jnp.asarray(sxm)


def _edge_aware_smoothness_kernel(*refs, use_mxu):
    if use_mxu:
        image_ref, flow_ref, halo_ref, dxm_ref, sxm_ref, out_ref = refs
        dxm = dxm_ref[...]
        sxm = sxm_ref[...]
    else:
        image_ref, flow_ref, halo_ref, out_ref = refs
        dxm = sxm = None

    _, C, TH, W = image_ref.shape
    Cf = flow_ref.shape[1]

    # Skinny boundary masks; jnp.where broadcasts them (no full-tile mask temps).
    rows = jax.lax.broadcasted_iota(jnp.int32, (TH, 1), 0)
    row_first = rows == 0
    row_last = rows == TH - 1
    if not use_mxu:
        cols = jax.lax.broadcasted_iota(jnp.int32, (1, W), 1)
        col_first = cols == 0
        col_last = cols == W - 1

    def hrow(k):   # replicate-clamped halo row k: (1, W) f32
        return halo_ref[0, 0, k:k + 1, :].astype(jnp.float32)

    def sobel(x, above, below):
        # x: (TH, W) f32; above/below: (1, W) replicate-clamped neighbour rows.
        xu = jnp.where(row_first, above, pltpu.roll(x, 1, axis=0))       # x[r-1]
        xd = jnp.where(row_last, below, pltpu.roll(x, TH - 1, axis=0))   # x[r+1]
        v = xu + 2.0 * x + xd     # vertical (1,2,1) smoothing  -> feeds gx
        d = xd - xu               # vertical central difference -> feeds gy
        if use_mxu:
            # Horizontal pass on the MXU; replicate column boundary is baked into
            # the banded constants. HIGHEST precision keeps full f32 accuracy.
            gx = jnp.dot(v, dxm, preferred_element_type=jnp.float32,
                         precision=jax.lax.Precision.HIGHEST)
            gy = jnp.dot(d, sxm, preferred_element_type=jnp.float32,
                         precision=jax.lax.Precision.HIGHEST)
        else:
            gx = (jnp.where(col_last, v, pltpu.roll(v, W - 1, axis=1))     # v[:, j+1]
                  - jnp.where(col_first, v, pltpu.roll(v, 1, axis=1)))     # v[:, j-1]
            gy = (jnp.where(col_first, d, pltpu.roll(d, 1, axis=1))
                  + 2.0 * d
                  + jnp.where(col_last, d, pltpu.roll(d, W - 1, axis=1)))
        return gx, gy

    # Edge weights from image gradients: exp(-(lambda/C) * sum_c |grad|).
    wx_acc = jnp.zeros((TH, W), jnp.float32)
    wy_acc = jnp.zeros((TH, W), jnp.float32)
    for c in range(C):
        gx, gy = sobel(image_ref[0, c].astype(jnp.float32), hrow(c), hrow(C + c))
        wx_acc += jnp.abs(gx)
        wy_acc += jnp.abs(gy)
    wx = jnp.exp(wx_acc * (-EDGE_CONSTANT / C))
    wy = jnp.exp(wy_acc * (-EDGE_CONSTANT / C))

    # Flow-gradient robust-L1, summed over flow channels (weights factored out).
    sx_acc = jnp.zeros((TH, W), jnp.float32)
    sy_acc = jnp.zeros((TH, W), jnp.float32)
    o = 2 * C
    for f in range(Cf):
        gx, gy = sobel(flow_ref[0, f].astype(jnp.float32),
                       hrow(o + f), hrow(o + Cf + f))
        sx_acc += jnp.sqrt(gx * gx + EPS * EPS)
        sy_acc += jnp.sqrt(gy * gy + EPS * EPS)

    out = (wx * sx_acc + wy * sy_acc) * (LOSS_WEIGHT * 0.5 / Cf)
    out_ref[0] = out.astype(out_ref.dtype)


def edge_aware_smoothness(image, flow):
    """image: (B,C,H,W), flow: (B,Cf,H,W) -> (B,H,W) edge-aware smoothness map."""
    B, C, H, W = image.shape
    Bf, Cf, Hf, Wf = flow.shape
    assert B == Bf and (H, W) == (Hf, Wf)
    out_dtype = image.dtype  # loss dtype follows the inputs (documented choice)

    # Lane alignment: keep the last dim a multiple of 128 so output stores are
    # lane-dense. Replicate column padding preserves the Sobel replicate boundary
    # at the true column W-1; padded columns are sliced off afterwards.
    W_pad = max(128, _round_up(W, 128))
    if W_pad != W:
        cpad = ((0, 0), (0, 0), (0, 0), (0, W_pad - W))
        image = jnp.pad(image, cpad, mode="edge")
        flow = jnp.pad(flow, cpad, mode="edge")

    use_mxu = W_pad <= _MAX_MXU_W
    in_isz = max(jnp.dtype(image.dtype).itemsize, jnp.dtype(flow.dtype).itemsize)
    out_isz = jnp.dtype(out_dtype).itemsize

    vmem_cap = _vmem_capacity_bytes()
    budget = max(8 << 20, vmem_cap // 8)   # ~16 MiB on 128 MiB parts, 8 MiB on v7x
    TH, H_pad = _pick_tile_h(H, W_pad, C, Cf, in_isz, out_isz, budget, use_mxu)
    if H_pad != H:
        rpad = ((0, 0), (0, 0), (0, H_pad - H), (0, 0))
        image = jnp.pad(image, rpad, mode="edge")
        flow = jnp.pad(flow, rpad, mode="edge")
    nH = H_pad // TH

    # +/-1-row replicate-clamped halo rows for every tile (tiny gather, native dtype).
    starts = np.arange(nH) * TH
    idx_above = np.maximum(starts - 1, 0)
    idx_below = np.minimum(starts + TH, H_pad - 1)

    def rows_of(x, idx):                     # (B, c, H_pad, Wp) -> (B, nH, c, Wp)
        return jnp.transpose(x[:, :, idx, :], (0, 2, 1, 3))

    halo = jnp.concatenate(
        [rows_of(image, idx_above), rows_of(image, idx_below),
         rows_of(flow, idx_above), rows_of(flow, idx_below)],
        axis=2)                              # (B, nH, 2*(C+Cf), W_pad)
    K = 2 * (C + Cf)

    in_specs = [
        pl.BlockSpec((1, C, TH, W_pad), lambda b, i: (b, 0, i, 0)),
        pl.BlockSpec((1, Cf, TH, W_pad), lambda b, i: (b, 0, i, 0)),
        pl.BlockSpec((1, 1, K, W_pad), lambda b, i: (b, i, 0, 0)),
    ]
    args = [image, flow, halo]
    if use_mxu:
        dxm, sxm = _sobel_col_matrices(W_pad)
        const_spec = pl.BlockSpec((W_pad, W_pad), lambda b, i: (0, 0))
        in_specs += [const_spec, const_spec]
        args += [dxm, sxm]

    footprint = _tile_footprint_bytes(TH, W_pad, C, Cf, in_isz, out_isz, use_mxu)
    vmem_limit = int(min(vmem_cap // 2, max(3 * footprint, 16 << 20)))

    out = pl.pallas_call(
        functools.partial(_edge_aware_smoothness_kernel, use_mxu=use_mxu),
        out_shape=jax.ShapeDtypeStruct((B, H_pad, W_pad), out_dtype),
        grid=(B, nH),
        in_specs=in_specs,
        out_specs=pl.BlockSpec((1, TH, W_pad), lambda b, i: (b, i, 0)),
        compiler_params=pltpu.CompilerParams(
            dimension_semantics=("parallel", "parallel"),
            vmem_limit_bytes=vmem_limit,
        ),
    )(*args)

    if H_pad != H or W_pad != W:
        out = out[:, :H, :W]
    return out


def _reference(image, flow, edge_constant=EDGE_CONSTANT):
    """Independent pure-JAX reference (explicit replicate-padded correlation)."""
    kx = jnp.array([[-1., 0., 1.], [-2., 0., 2.], [-1., 0., 1.]], jnp.float32)
    ky = kx.T

    def sobel(x):  # (B, C, H, W)
        H, W = x.shape[-2:]
        xp = jnp.pad(x, ((0, 0), (0, 0), (1, 1), (1, 1)), mode="edge")
        gx = jnp.zeros_like(x)
        gy = jnp.zeros_like(x)
        for u in range(3):
            for v in range(3):
                win = xp[..., u:u + H, v:v + W]
                gx = gx + kx[u, v] * win
                gy = gy + ky[u, v] * win
        return gx, gy

    igx, igy = sobel(image)
    wx = jnp.exp(-jnp.mean(jnp.abs(edge_constant * igx), axis=1, keepdims=True))
    wy = jnp.exp(-jnp.mean(jnp.abs(edge_constant * igy), axis=1, keepdims=True))
    fgx, fgy = sobel(flow)
    sx = jnp.mean(wx * jnp.sqrt(fgx ** 2 + EPS ** 2), axis=1)
    sy = jnp.mean(wy * jnp.sqrt(fgy ** 2 + EPS ** 2), axis=1)
    return LOSS_WEIGHT * 0.5 * (sx + sy)


if __name__ == "__main__":
    key = jax.random.PRNGKey(0)
    k_img, k_flow = jax.random.split(key)
    # W=128 keeps the output lane-dense (128-lane vregs).
    B, C, H, W = 2, 4, 16, 128
    image = jax.random.uniform(k_img, (B, C, H, W), dtype=jnp.float32)
    flow = jax.random.normal(k_flow, (B, 2, H, W), dtype=jnp.float32)

    out = jax.block_until_ready(edge_aware_smoothness(image, flow))
    ref = jax.block_until_ready(_reference(image, flow))
    np.testing.assert_allclose(np.asarray(out), np.asarray(ref), rtol=1e-5, atol=1e-5)

    # TODO(synk): weighted_loss extras (weight/avg_factor/reduction_override) are
    # trivial post-reductions handled outside the kernel; module default is 'none'.
    print("KERNEL_OK")
</pallas_src>

<mosaic_0001>
module attributes {stable_mosaic.version = 11 : i64} {
  func.func @_edge_aware_smoothness_kernel(%arg0: i32, %arg1: i32, %arg2: memref<1x4x16x128xf32, #tpu.memory_space<vmem>>, %arg3: memref<1x2x16x128xf32, #tpu.memory_space<vmem>>, %arg4: memref<1x1x12x128xf32, #tpu.memory_space<vmem>>, %arg5: memref<128x128xf32, #tpu.memory_space<vmem>>, %arg6: memref<128x128xf32, #tpu.memory_space<vmem>>, %arg7: memref<1x16x128xf32, #tpu.memory_space<vmem>>) attributes {dimension_semantics = [#tpu.dimension_semantics<parallel>, #tpu.dimension_semantics<parallel>], iteration_bounds = array<i64: 2, 1>, scalar_prefetch = 0 : i64, scratch_operands = 0 : i64, tpu.core_type = #tpu.core_type<tc>, window_params = [{transform_indices = @transform_0, window_bounds = array<i64: 1, 4, 16, 128>}, {transform_indices = @transform_1, window_bounds = array<i64: 1, 2, 16, 128>}, {transform_indices = @transform_2, window_bounds = array<i64: 1, 1, 12, 128>}, {pipeline_mode = #tpu.pipeline_mode<synchronous>, transform_indices = @transform_3, window_bounds = array<i64: 128, 128>}, {pipeline_mode = #tpu.pipeline_mode<synchronous>, transform_indices = @transform_4, window_bounds = array<i64: 128, 128>}, {transform_indices = @transform_5, window_bounds = array<i64: 1, 16, 128>}]} {
    %c0 = arith.constant 0 : index
    %c0_0 = arith.constant 0 : index
    %0 = vector.load %arg5[%c0, %c0_0] : memref<128x128xf32, #tpu.memory_space<vmem>>, vector<128x128xf32>
    %c0_1 = arith.constant 0 : index
    %c0_2 = arith.constant 0 : index
    %1 = vector.load %arg6[%c0_1, %c0_2] : memref<128x128xf32, #tpu.memory_space<vmem>>, vector<128x128xf32>
    %2 = tpu.iota {dimensions = array<i32: 0>} : vector<16x1xi32>
    %c0_i32 = arith.constant 0 : i32
    %3 = vector.broadcast %c0_i32 : i32 to vector<16x1xi32>
    %4 = arith.cmpi eq, %2, %3 : vector<16x1xi32>
    %c15_i32 = arith.constant 15 : i32
    %5 = vector.broadcast %c15_i32 : i32 to vector<16x1xi32>
    %6 = arith.cmpi eq, %2, %5 : vector<16x1xi32>
    %cst = arith.constant 0.000000e+00 : f32
    %7 = vector.broadcast %cst : f32 to vector<16x128xf32>
    %cst_3 = arith.constant 0.000000e+00 : f32
    %8 = vector.broadcast %cst_3 : f32 to vector<16x128xf32>
    %c0_4 = arith.constant 0 : index
    %c0_5 = arith.constant 0 : index
    %c0_6 = arith.constant 0 : index
    %c0_7 = arith.constant 0 : index
    %9 = vector.load %arg2[%c0_4, %c0_5, %c0_6, %c0_7] : memref<1x4x16x128xf32, #tpu.memory_space<vmem>>, vector<1x1x16x128xf32>
    %10 = vector.shape_cast %9 : vector<1x1x16x128xf32> to vector<16x128xf32>
    %c0_8 = arith.constant 0 : index
    %c0_9 = arith.constant 0 : index
    %c0_10 = arith.constant 0 : index
    %c0_11 = arith.constant 0 : index
    %11 = vector.load %arg4[%c0_8, %c0_9, %c0_10, %c0_11] : memref<1x1x12x128xf32, #tpu.memory_space<vmem>>, vector<1x1x1x128xf32>
    %12 = vector.shape_cast %11 : vector<1x1x1x128xf32> to vector<1x128xf32>
    %c0_12 = arith.constant 0 : index
    %c0_13 = arith.constant 0 : index
    %c4 = arith.constant 4 : index
    %c0_14 = arith.constant 0 : index
    %13 = vector.load %arg4[%c0_12, %c0_13, %c4, %c0_14] : memref<1x1x12x128xf32, #tpu.memory_space<vmem>>, vector<1x1x1x128xf32>
    %14 = vector.shape_cast %13 : vector<1x1x1x128xf32> to vector<1x128xf32>
    %c1_i32 = arith.constant 1 : i32
    %15 = tpu.dynamic_rotate %10 by %c1_i32 dim 0 : vector<16x128xf32>, i32 -> vector<16x128xf32>
    %16 = vector.shape_cast %4 : vector<16x1xi1> to vector<16x1xi1>
    %17 = vector.broadcast %16 : vector<16x1xi1> to vector<16x128xi1>
    %18 = vector.shape_cast %12 : vector<1x128xf32> to vector<1x128xf32>
    %19 = vector.broadcast %18 : vector<1x128xf32> to vector<16x128xf32>
    %20 = arith.select %17, %19, %15 : vector<16x128xi1>, vector<16x128xf32>
    %c15_i32_15 = arith.constant 15 : i32
    %21 = tpu.dynamic_rotate %10 by %c15_i32_15 dim 0 : vector<16x128xf32>, i32 -> vector<16x128xf32>
    %22 = vector.shape_cast %6 : vector<16x1xi1> to vector<16x1xi1>
    %23 = vector.broadcast %22 : vector<16x1xi1> to vector<16x128xi1>
    %24 = vector.shape_cast %14 : vector<1x128xf32> to vector<1x128xf32>
    %25 = vector.broadcast %24 : vector<1x128xf32> to vector<16x128xf32>
    %26 = arith.select %23, %25, %21 : vector<16x128xi1>, vector<16x128xf32>
    %cst_16 = arith.constant 2.000000e+00 : f32
    %27 = vector.broadcast %cst_16 : f32 to vector<16x128xf32>
    %28 = arith.mulf %27, %10 : vector<16x128xf32>
    %29 = arith.addf %20, %28 : vector<16x128xf32>
    %30 = arith.addf %29, %26 : vector<16x128xf32>
    %31 = arith.subf %26, %20 : vector<16x128xf32>
    %cst_17 = arith.constant dense<0.000000e+00> : vector<16x128xf32>
    %32 = tpu.matmul %30, %0, %cst_17 {dimension_numbers = #tpu.dot_dimension_numbers<[1], [0], [0], [1], [0, 0, 1, 1], [], []>, precision = #tpu.contract_precision<fp32>} : vector<16x128xf32>, vector<128x128xf32>, vector<16x128xf32> -> vector<16x128xf32>
    %cst_18 = arith.constant dense<0.000000e+00> : vector<16x128xf32>
    %33 = tpu.matmul %31, %1, %cst_18 {dimension_numbers = #tpu.dot_dimension_numbers<[1], [0], [0], [1], [0, 0, 1, 1], [], []>, precision = #tpu.contract_precision<fp32>} : vector<16x128xf32>, vector<128x128xf32>, vector<16x128xf32> -> vector<16x128xf32>
    %34 = math.absf %32 : vector<16x128xf32>
    %35 = arith.addf %7, %34 : vector<16x128xf32>
    %36 = math.absf %33 : vector<16x128xf32>
    %37 = arith.addf %8, %36 : vector<16x128xf32>
    %c0_19 = arith.constant 0 : index
    %c1 = arith.constant 1 : index
    %c0_20 = arith.constant 0 : index
    %c0_21 = arith.constant 0 : index
    %38 = vector.load %arg2[%c0_19, %c1, %c0_20, %c0_21] : memref<1x4x16x128xf32, #tpu.memory_space<vmem>>, vector<1x1x16x128xf32>
    %39 = vector.shape_cast %38 : vector<1x1x16x128xf32> to vector<16x128xf32>
    %c0_22 = arith.constant 0 : index
    %c0_23 = arith.constant 0 : index
    %c1_24 = arith.constant 1 : index
    %c0_25 = arith.constant 0 : index
    %40 = vector.load %arg4[%c0_22, %c0_23, %c1_24, %c0_25] : memref<1x1x12x128xf32, #tpu.memory_space<vmem>>, vector<1x1x1x128xf32>
    %41 = vector.shape_cast %40 : vector<1x1x1x128xf32> to vector<1x128xf32>
    %c0_26 = arith.constant 0 : index
    %c0_27 = arith.constant 0 : index
    %c5 = arith.constant 5 : index
    %c0_28 = arith.constant 0 : index
    %42 = vector.load %arg4[%c0_26, %c0_27, %c5, %c0_28] : memref<1x1x12x128xf32, #tpu.memory_space<vmem>>, vector<1x1x1x128xf32>
    %43 = vector.shape_cast %42 : vector<1x1x1x128xf32> to vector<1x128xf32>
    %c1_i32_29 = arith.constant 1 : i32
    %44 = tpu.dynamic_rotate %39 by %c1_i32_29 dim 0 : vector<16x128xf32>, i32 -> vector<16x128xf32>
    %45 = vector.shape_cast %4 : vector<16x1xi1> to vector<16x1xi1>
    %46 = vector.broadcast %45 : vector<16x1xi1> to vector<16x128xi1>
    %47 = vector.shape_cast %41 : vector<1x128xf32> to vector<1x128xf32>
    %48 = vector.broadcast %47 : vector<1x128xf32> to vector<16x128xf32>
    %49 = arith.select %46, %48, %44 : vector<16x128xi1>, vector<16x128xf32>
    %c15_i32_30 = arith.constant 15 : i32
    %50 = tpu.dynamic_rotate %39 by %c15_i32_30 dim 0 : vector<16x128xf32>, i32 -> vector<16x128xf32>
    %51 = vector.shape_cast %6 : vector<16x1xi1> to vector<16x1xi1>
    %52 = vector.broadcast %51 : vector<16x1xi1> to vector<16x128xi1>
    %53 = vector.shape_cast %43 : vector<1x128xf32> to vector<1x128xf32>
    %54 = vector.broadcast %53 : vector<1x128xf32> to vector<16x128xf32>
    %55 = arith.select %52, %54, %50 : vector<16x128xi1>, vector<16x128xf32>
    %cst_31 = arith.constant 2.000000e+00 : f32
    %56 = vector.broadcast %cst_31 : f32 to vector<16x128xf32>
    %57 = arith.mulf %56, %39 : vector<16x128xf32>
    %58 = arith.addf %49, %57 : vector<16x128xf32>
    %59 = arith.addf %58, %55 : vector<16x128xf32>
    %60 = arith.subf %55, %49 : vector<16x128xf32>
    %cst_32 = arith.constant dense<0.000000e+00> : vector<16x128xf32>
    %61 = tpu.matmul %59, %0, %cst_32 {dimension_numbers = #tpu.dot_dimension_numbers<[1], [0], [0], [1], [0, 0, 1, 1], [], []>, precision = #tpu.contract_precision<fp32>} : vector<16x128xf32>, vector<128x128xf32>, vector<16x128xf32> -> vector<16x128xf32>
    %cst_33 = arith.constant dense<0.000000e+00> : vector<16x128xf32>
    %62 = tpu.matmul %60, %1, %cst_33 {dimension_numbers = #tpu.dot_dimension_numbers<[1], [0], [0], [1], [0, 0, 1, 1], [], []>, precision = #tpu.contract_precision<fp32>} : vector<16x128xf32>, vector<128x128xf32>, vector<16x128xf32> -> vector<16x128xf32>
    %63 = math.absf %61 : vector<16x128xf32>
    %64 = arith.addf %35, %63 : vector<16x128xf32>
    %65 = math.absf %62 : vector<16x128xf32>
    %66 = arith.addf %37, %65 : vector<16x128xf32>
    %c0_34 = arith.constant 0 : index
    %c2 = arith.constant 2 : index
    %c0_35 = arith.constant 0 : index
    %c0_36 = arith.constant 0 : index
    %67 = vector.load %arg2[%c0_34, %c2, %c0_35, %c0_36] : memref<1x4x16x128xf32, #tpu.memory_space<vmem>>, vector<1x1x16x128xf32>
    %68 = vector.shape_cast %67 : vector<1x1x16x128xf32> to vector<16x128xf32>
    %c0_37 = arith.constant 0 : index
    %c0_38 = arith.constant 0 : index
    %c2_39 = arith.constant 2 : index
    %c0_40 = arith.constant 0 : index
    %69 = vector.load %arg4[%c0_37, %c0_38, %c2_39, %c0_40] : memref<1x1x12x128xf32, #tpu.memory_space<vmem>>, vector<1x1x1x128xf32>
    %70 = vector.shape_cast %69 : vector<1x1x1x128xf32> to vector<1x128xf32>
    %c0_41 = arith.constant 0 : index
    %c0_42 = arith.constant 0 : index
    %c6 = arith.constant 6 : index
    %c0_43 = arith.constant 0 : index
    %71 = vector.load %arg4[%c0_41, %c0_42, %c6, %c0_43] : memref<1x1x12x128xf32, #tpu.memory_space<vmem>>, vector<1x1x1x128xf32>
    %72 = vector.shape_cast %71 : vector<1x1x1x128xf32> to vector<1x128xf32>
    %c1_i32_44 = arith.constant 1 : i32
    %73 = tpu.dynamic_rotate %68 by %c1_i32_44 dim 0 : vector<16x128xf32>, i32 -> vector<16x128xf32>
    %74 = vector.shape_cast %4 : vector<16x1xi1> to vector<16x1xi1>
    %75 = vector.broadcast %74 : vector<16x1xi1> to vector<16x128xi1>
    %76 = vector.shape_cast %70 : vector<1x128xf32> to vector<1x128xf32>
    %77 = vector.broadcast %76 : vector<1x128xf32> to vector<16x128xf32>
    %78 = arith.select %75, %77, %73 : vector<16x128xi1>, vector<16x128xf32>
    %c15_i32_45 = arith.constant 15 : i32
    %79 = tpu.dynamic_rotate %68 by %c15_i32_45 dim 0 : vector<16x128xf32>, i32 -> vector<16x128xf32>
    %80 = vector.shape_cast %6 : vector<16x1xi1> to vector<16x1xi1>
    %81 = vector.broadcast %80 : vector<16x1xi1> to vector<16x128xi1>
    %82 = vector.shape_cast %72 : vector<1x128xf32> to vector<1x128xf32>
    %83 = vector.broadcast %82 : vector<1x128xf32> to vector<16x128xf32>
    %84 = arith.select %81, %83, %79 : vector<16x128xi1>, vector<16x128xf32>
    %cst_46 = arith.constant 2.000000e+00 : f32
    %85 = vector.broadcast %cst_46 : f32 to vector<16x128xf32>
    %86 = arith.mulf %85, %68 : vector<16x128xf32>
    %87 = arith.addf %78, %86 : vector<16x128xf32>
    %88 = arith.addf %87, %84 : vector<16x128xf32>
    %89 = arith.subf %84, %78 : vector<16x128xf32>
    %cst_47 = arith.constant dense<0.000000e+00> : vector<16x128xf32>
    %90 = tpu.matmul %88, %0, %cst_47 {dimension_numbers = #tpu.dot_dimension_numbers<[1], [0], [0], [1], [0, 0, 1, 1], [], []>, precision = #tpu.contract_precision<fp32>} : vector<16x128xf32>, vector<128x128xf32>, vector<16x128xf32> -> vector<16x128xf32>
    %cst_48 = arith.constant dense<0.000000e+00> : vector<16x128xf32>
    %91 = tpu.matmul %89, %1, %cst_48 {dimension_numbers = #tpu.dot_dimension_numbers<[1], [0], [0], [1], [0, 0, 1, 1], [], []>, precision = #tpu.contract_precision<fp32>} : vector<16x128xf32>, vector<128x128xf32>, vector<16x128xf32> -> vector<16x128xf32>
    %92 = math.absf %90 : vector<16x128xf32>
    %93 = arith.addf %64, %92 : vector<16x128xf32>
    %94 = math.absf %91 : vector<16x128xf32>
    %95 = arith.addf %66, %94 : vector<16x128xf32>
    %c0_49 = arith.constant 0 : index
    %c3 = arith.constant 3 : index
    %c0_50 = arith.constant 0 : index
    %c0_51 = arith.constant 0 : index
    %96 = vector.load %arg2[%c0_49, %c3, %c0_50, %c0_51] : memref<1x4x16x128xf32, #tpu.memory_space<vmem>>, vector<1x1x16x128xf32>
    %97 = vector.shape_cast %96 : vector<1x1x16x128xf32> to vector<16x128xf32>
    %c0_52 = arith.constant 0 : index
    %c0_53 = arith.constant 0 : index
    %c3_54 = arith.constant 3 : index
    %c0_55 = arith.constant 0 : index
    %98 = vector.load %arg4[%c0_52, %c0_53, %c3_54, %c0_55] : memref<1x1x12x128xf32, #tpu.memory_space<vmem>>, vector<1x1x1x128xf32>
    %99 = vector.shape_cast %98 : vector<1x1x1x128xf32> to vector<1x128xf32>
    %c0_56 = arith.constant 0 : index
    %c0_57 = arith.constant 0 : index
    %c7 = arith.constant 7 : index
    %c0_58 = arith.constant 0 : index
    %100 = vector.load %arg4[%c0_56, %c0_57, %c7, %c0_58] : memref<1x1x12x128xf32, #tpu.memory_space<vmem>>, vector<1x1x1x128xf32>
    %101 = vector.shape_cast %100 : vector<1x1x1x128xf32> to vector<1x128xf32>
    %c1_i32_59 = arith.constant 1 : i32
    %102 = tpu.dynamic_rotate %97 by %c1_i32_59 dim 0 : vector<16x128xf32>, i32 -> vector<16x128xf32>
    %103 = vector.shape_cast %4 : vector<16x1xi1> to vector<16x1xi1>
    %104 = vector.broadcast %103 : vector<16x1xi1> to vector<16x128xi1>
    %105 = vector.shape_cast %99 : vector<1x128xf32> to vector<1x128xf32>
    %106 = vector.broadcast %105 : vector<1x128xf32> to vector<16x128xf32>
    %107 = arith.select %104, %106, %102 : vector<16x128xi1>, vector<16x128xf32>
    %c15_i32_60 = arith.constant 15 : i32
    %108 = tpu.dynamic_rotate %97 by %c15_i32_60 dim 0 : vector<16x128xf32>, i32 -> vector<16x128xf32>
    %109 = vector.shape_cast %6 : vector<16x1xi1> to vector<16x1xi1>
    %110 = vector.broadcast %109 : vector<16x1xi1> to vector<16x128xi1>
    %111 = vector.shape_cast %101 : vector<1x128xf32> to vector<1x128xf32>
    %112 = vector.broadcast %111 : vector<1x128xf32> to vector<16x128xf32>
    %113 = arith.select %110, %112, %108 : vector<16x128xi1>, vector<16x128xf32>
    %cst_61 = arith.constant 2.000000e+00 : f32
    %114 = vector.broadcast %cst_61 : f32 to vector<16x128xf32>
    %115 = arith.mulf %114, %97 : vector<16x128xf32>
    %116 = arith.addf %107, %115 : vector<16x128xf32>
    %117 = arith.addf %116, %113 : vector<16x128xf32>
    %118 = arith.subf %113, %107 : vector<16x128xf32>
    %cst_62 = arith.constant dense<0.000000e+00> : vector<16x128xf32>
    %119 = tpu.matmul %117, %0, %cst_62 {dimension_numbers = #tpu.dot_dimension_numbers<[1], [0], [0], [1], [0, 0, 1, 1], [], []>, precision = #tpu.contract_precision<fp32>} : vector<16x128xf32>, vector<128x128xf32>, vector<16x128xf32> -> vector<16x128xf32>
    %cst_63 = arith.constant dense<0.000000e+00> : vector<16x128xf32>
    %120 = tpu.matmul %118, %1, %cst_63 {dimension_numbers = #tpu.dot_dimension_numbers<[1], [0], [0], [1], [0, 0, 1, 1], [], []>, precision = #tpu.contract_precision<fp32>} : vector<16x128xf32>, vector<128x128xf32>, vector<16x128xf32> -> vector<16x128xf32>
    %121 = math.absf %119 : vector<16x128xf32>
    %122 = arith.addf %93, %121 : vector<16x128xf32>
    %123 = math.absf %120 : vector<16x128xf32>
    %124 = arith.addf %95, %123 : vector<16x128xf32>
    %cst_64 = arith.constant -2.500000e+01 : f32
    %125 = vector.broadcast %cst_64 : f32 to vector<16x128xf32>
    %126 = arith.mulf %122, %125 : vector<16x128xf32>
    %127 = math.exp %126 : vector<16x128xf32>
    %cst_65 = arith.constant -2.500000e+01 : f32
    %128 = vector.broadcast %cst_65 : f32 to vector<16x128xf32>
    %129 = arith.mulf %124, %128 : vector<16x128xf32>
    %130 = math.exp %129 : vector<16x128xf32>
    %cst_66 = arith.constant 0.000000e+00 : f32
    %131 = vector.broadcast %cst_66 : f32 to vector<16x128xf32>
    %cst_67 = arith.constant 0.000000e+00 : f32
    %132 = vector.broadcast %cst_67 : f32 to vector<16x128xf32>
    %c0_68 = arith.constant 0 : index
    %c0_69 = arith.constant 0 : index
    %c0_70 = arith.constant 0 : index
    %c0_71 = arith.constant 0 : index
    %133 = vector.load %arg3[%c0_68, %c0_69, %c0_70, %c0_71] : memref<1x2x16x128xf32, #tpu.memory_space<vmem>>, vector<1x1x16x128xf32>
    %134 = vector.shape_cast %133 : vector<1x1x16x128xf32> to vector<16x128xf32>
    %c0_72 = arith.constant 0 : index
    %c0_73 = arith.constant 0 : index
    %c8 = arith.constant 8 : index
    %c0_74 = arith.constant 0 : index
    %135 = vector.load %arg4[%c0_72, %c0_73, %c8, %c0_74] : memref<1x1x12x128xf32, #tpu.memory_space<vmem>>, vector<1x1x1x128xf32>
    %136 = vector.shape_cast %135 : vector<1x1x1x128xf32> to vector<1x128xf32>
    %c0_75 = arith.constant 0 : index
    %c0_76 = arith.constant 0 : index
    %c10 = arith.constant 10 : index
    %c0_77 = arith.constant 0 : index
    %137 = vector.load %arg4[%c0_75, %c0_76, %c10, %c0_77] : memref<1x1x12x128xf32, #tpu.memory_space<vmem>>, vector<1x1x1x128xf32>
    %138 = vector.shape_cast %137 : vector<1x1x1x128xf32> to vector<1x128xf32>
    %c1_i32_78 = arith.constant 1 : i32
    %139 = tpu.dynamic_rotate %134 by %c1_i32_78 dim 0 : vector<16x128xf32>, i32 -> vector<16x128xf32>
    %140 = vector.shape_cast %4 : vector<16x1xi1> to vector<16x1xi1>
    %141 = vector.broadcast %140 : vector<16x1xi1> to vector<16x128xi1>
    %142 = vector.shape_cast %136 : vector<1x128xf32> to vector<1x128xf32>
    %143 = vector.broadcast %142 : vector<1x128xf32> to vector<16x128xf32>
    %144 = arith.select %141, %143, %139 : vector<16x128xi1>, vector<16x128xf32>
    %c15_i32_79 = arith.constant 15 : i32
    %145 = tpu.dynamic_rotate %134 by %c15_i32_79 dim 0 : vector<16x128xf32>, i32 -> vector<16x128xf32>
    %146 = vector.shape_cast %6 : vector<16x1xi1> to vector<16x1xi1>
    %147 = vector.broadcast %146 : vector<16x1xi1> to vector<16x128xi1>
    %148 = vector.shape_cast %138 : vector<1x128xf32> to vector<1x128xf32>
    %149 = vector.broadcast %148 : vector<1x128xf32> to vector<16x128xf32>
    %150 = arith.select %147, %149, %145 : vector<16x128xi1>, vector<16x128xf32>
    %cst_80 = arith.constant 2.000000e+00 : f32
    %151 = vector.broadcast %cst_80 : f32 to vector<16x128xf32>
    %152 = arith.mulf %151, %134 : vector<16x128xf32>
    %153 = arith.addf %144, %152 : vector<16x128xf32>
    %154 = arith.addf %153, %150 : vector<16x128xf32>
    %155 = arith.subf %150, %144 : vector<16x128xf32>
    %cst_81 = arith.constant dense<0.000000e+00> : vector<16x128xf32>
    %156 = tpu.matmul %154, %0, %cst_81 {dimension_numbers = #tpu.dot_dimension_numbers<[1], [0], [0], [1], [0, 0, 1, 1], [], []>, precision = #tpu.contract_precision<fp32>} : vector<16x128xf32>, vector<128x128xf32>, vector<16x128xf32> -> vector<16x128xf32>
    %cst_82 = arith.constant dense<0.000000e+00> : vector<16x128xf32>
    %157 = tpu.matmul %155, %1, %cst_82 {dimension_numbers = #tpu.dot_dimension_numbers<[1], [0], [0], [1], [0, 0, 1, 1], [], []>, precision = #tpu.contract_precision<fp32>} : vector<16x128xf32>, vector<128x128xf32>, vector<16x128xf32> -> vector<16x128xf32>
    %158 = arith.mulf %156, %156 : vector<16x128xf32>
    %cst_83 = arith.constant 9.99999997E-7 : f32
    %159 = vector.broadcast %cst_83 : f32 to vector<16x128xf32>
    %160 = arith.addf %158, %159 : vector<16x128xf32>
    %161 = math.sqrt %160 : vector<16x128xf32>
    %162 = arith.addf %131, %161 : vector<16x128xf32>
    %163 = arith.mulf %157, %157 : vector<16x128xf32>
    %cst_84 = arith.constant 9.99999997E-7 : f32
    %164 = vector.broadcast %cst_84 : f32 to vector<16x128xf32>
    %165 = arith.addf %163, %164 : vector<16x128xf32>
    %166 = math.sqrt %165 : vector<16x128xf32>
    %167 = arith.addf %132, %166 : vector<16x128xf32>
    %c0_85 = arith.constant 0 : index
    %c1_86 = arith.constant 1 : index
    %c0_87 = arith.constant 0 : index
    %c0_88 = arith.constant 0 : index
    %168 = vector.load %arg3[%c0_85, %c1_86, %c0_87, %c0_88] : memref<1x2x16x128xf32, #tpu.memory_space<vmem>>, vector<1x1x16x128xf32>
    %169 = vector.shape_cast %168 : vector<1x1x16x128xf32> to vector<16x128xf32>
    %c0_89 = arith.constant 0 : index
    %c0_90 = arith.constant 0 : index
    %c9 = arith.constant 9 : index
    %c0_91 = arith.constant 0 : index
    %170 = vector.load %arg4[%c0_89, %c0_90, %c9, %c0_91] : memref<1x1x12x128xf32, #tpu.memory_space<vmem>>, vector<1x1x1x128xf32>
    %171 = vector.shape_cast %170 : vector<1x1x1x128xf32> to vector<1x128xf32>
    %c0_92 = arith.constant 0 : index
    %c0_93 = arith.constant 0 : index
    %c11 = arith.constant 11 : index
    %c0_94 = arith.constant 0 : index
    %172 = vector.load %arg4[%c0_92, %c0_93, %c11, %c0_94] : memref<1x1x12x128xf32, #tpu.memory_space<vmem>>, vector<1x1x1x128xf32>
    %173 = vector.shape_cast %172 : vector<1x1x1x128xf32> to vector<1x128xf32>
    %c1_i32_95 = arith.constant 1 : i32
    %174 = tpu.dynamic_rotate %169 by %c1_i32_95 dim 0 : vector<16x128xf32>, i32 -> vector<16x128xf32>
    %175 = vector.shape_cast %4 : vector<16x1xi1> to vector<16x1xi1>
    %176 = vector.broadcast %175 : vector<16x1xi1> to vector<16x128xi1>
    %177 = vector.shape_cast %171 : vector<1x128xf32> to vector<1x128xf32>
    %178 = vector.broadcast %177 : vector<1x128xf32> to vector<16x128xf32>
    %179 = arith.select %176, %178, %174 : vector<16x128xi1>, vector<16x128xf32>
    %c15_i32_96 = arith.constant 15 : i32
    %180 = tpu.dynamic_rotate %169 by %c15_i32_96 dim 0 : vector<16x128xf32>, i32 -> vector<16x128xf32>
    %181 = vector.shape_cast %6 : vector<16x1xi1> to vector<16x1xi1>
    %182 = vector.broadcast %181 : vector<16x1xi1> to vector<16x128xi1>
    %183 = vector.shape_cast %173 : vector<1x128xf32> to vector<1x128xf32>
    %184 = vector.broadcast %183 : vector<1x128xf32> to vector<16x128xf32>
    %185 = arith.select %182, %184, %180 : vector<16x128xi1>, vector<16x128xf32>
    %cst_97 = arith.constant 2.000000e+00 : f32
    %186 = vector.broadcast %cst_97 : f32 to vector<16x128xf32>
    %187 = arith.mulf %186, %169 : vector<16x128xf32>
    %188 = arith.addf %179, %187 : vector<16x128xf32>
    %189 = arith.addf %188, %185 : vector<16x128xf32>
    %190 = arith.subf %185, %179 : vector<16x128xf32>
    %cst_98 = arith.constant dense<0.000000e+00> : vector<16x128xf32>
    %191 = tpu.matmul %189, %0, %cst_98 {dimension_numbers = #tpu.dot_dimension_numbers<[1], [0], [0], [1], [0, 0, 1, 1], [], []>, precision = #tpu.contract_precision<fp32>} : vector<16x128xf32>, vector<128x128xf32>, vector<16x128xf32> -> vector<16x128xf32>
    %cst_99 = arith.constant dense<0.000000e+00> : vector<16x128xf32>
    %192 = tpu.matmul %190, %1, %cst_99 {dimension_numbers = #tpu.dot_dimension_numbers<[1], [0], [0], [1], [0, 0, 1, 1], [], []>, precision = #tpu.contract_precision<fp32>} : vector<16x128xf32>, vector<128x128xf32>, vector<16x128xf32> -> vector<16x128xf32>
    %193 = arith.mulf %191, %191 : vector<16x128xf32>
    %cst_100 = arith.constant 9.99999997E-7 : f32
    %194 = vector.broadcast %cst_100 : f32 to vector<16x128xf32>
    %195 = arith.addf %193, %194 : vector<16x128xf32>
    %196 = math.sqrt %195 : vector<16x128xf32>
    %197 = arith.addf %162, %196 : vector<16x128xf32>
    %198 = arith.mulf %192, %192 : vector<16x128xf32>
    %cst_101 = arith.constant 9.99999997E-7 : f32
    %199 = vector.broadcast %cst_101 : f32 to vector<16x128xf32>
    %200 = arith.addf %198, %199 : vector<16x128xf32>
    %201 = math.sqrt %200 : vector<16x128xf32>
    %202 = arith.addf %167, %201 : vector<16x128xf32>
    %203 = arith.mulf %127, %197 : vector<16x128xf32>
    %204 = arith.mulf %130, %202 : vector<16x128xf32>
    %205 = arith.addf %203, %204 : vector<16x128xf32>
    %cst_102 = arith.constant 2.500000e-01 : f32
    %206 = vector.broadcast %cst_102 : f32 to vector<16x128xf32>
    %207 = arith.mulf %205, %206 : vector<16x128xf32>
    %c0_103 = arith.constant 0 : index
    %c0_104 = arith.constant 0 : index
    %c0_105 = arith.constant 0 : index
    %208 = vector.load %arg7[%c0_103, %c0_104, %c0_105] : memref<1x16x128xf32, #tpu.memory_space<vmem>>, vector<1x16x128xf32>
    %209 = vector.shape_cast %208 : vector<1x16x128xf32> to vector<16x128xf32>
    %210 = vector.shape_cast %207 : vector<16x128xf32> to vector<1x16x128xf32>
    tpu.vector_store %arg7[%c0_103, %c0_104, %c0_105], %210 {strides = array<i32>} : memref<1x16x128xf32, #tpu.memory_space<vmem>>, vector<1x16x128xf32>,
    return
  }
  func.func @transform_0(%arg0: i32, %arg1: i32) -> (i32, i32, i32, i32) {
    %c0_i32 = arith.constant 0 : i32
    %c0_i32_0 = arith.constant 0 : i32
    %c0_i32_1 = arith.constant 0 : i32
    return %arg0, %c0_i32, %arg1, %c0_i32_0 : i32, i32, i32, i32
  }
  func.func @transform_1(%arg0: i32, %arg1: i32) -> (i32, i32, i32, i32) {
    %c0_i32 = arith.constant 0 : i32
    %c0_i32_0 = arith.constant 0 : i32
    %c0_i32_1 = arith.constant 0 : i32
    return %arg0, %c0_i32, %arg1, %c0_i32_0 : i32, i32, i32, i32
  }
  func.func @transform_2(%arg0: i32, %arg1: i32) -> (i32, i32, i32, i32) {
    %c0_i32 = arith.constant 0 : i32
    %c0_i32_0 = arith.constant 0 : i32
    %c0_i32_1 = arith.constant 0 : i32
    return %arg0, %arg1, %c0_i32, %c0_i32_0 : i32, i32, i32, i32
  }
  func.func @transform_3(%arg0: i32, %arg1: i32) -> (i32, i32) {
    %c0_i32 = arith.constant 0 : i32
    %c0_i32_0 = arith.constant 0 : i32
    %c0_i32_1 = arith.constant 0 : i32
    return %c0_i32, %c0_i32_0 : i32, i32
  }
  func.func @transform_4(%arg0: i32, %arg1: i32) -> (i32, i32) {
    %c0_i32 = arith.constant 0 : i32
    %c0_i32_0 = arith.constant 0 : i32
    %c0_i32_1 = arith.constant 0 : i32
    return %c0_i32, %c0_i32_0 : i32, i32
  }
  func.func @transform_5(%arg0: i32, %arg1: i32) -> (i32, i32, i32) {
    %c0_i32 = arith.constant 0 : i32
    %c0_i32_0 = arith.constant 0 : i32
    return %arg0, %arg1, %c0_i32 : i32, i32, i32
  }
}

</mosaic_0001>

<llo_original>
// kernel: tpu_custom_call.1
$region0: #{tpu_custom_call.1}
  #allocation0 [shape = 'u32[]', space=smem, size = 0x4, offset = 0x4, fixed_abs, tag = 'smem constant byte address 0x4 - core index']
  #allocation1 [shape = 'u32[144,128]{1,0:T(1,128)}', space=vmem, size = 0x12000, scoped, tag = 'internal scratch']
  %s0 = inlined_call_operand.hbm [shape: f32[2,4,16,128], index: 0, kind: input, shape index: {}]
  %s1 = inlined_call_operand.hbm [shape: f32[2,2,16,128], index: 1, kind: input, shape index: {}]
  %s2 = inlined_call_operand.vmem [shape: f32[2,1,12,128], index: 2, kind: input, shape index: {}]
  %s3 = inlined_call_operand.hbm [shape: f32[128,128], index: 3, kind: input, shape index: {}]
  %s4 = inlined_call_operand.hbm [shape: f32[128,128], index: 4, kind: input, shape index: {}]
  %s5 = inlined_call_operand.hbm [shape: f32[2,16,128], index: 5, kind: output, shape index: {}]
  %s6 = sld [smem:[#allocation0]]
  $region69: #{tpu_custom_call.1} parent=0
    _
  %s8 = ssub.s32 1, %s6
  %s9 = scalar_select 0, %s8, %s6
  $region1: #{tpu_custom_call.1} parent=0
    #allocation2 [shape = 'u8[65536]{0}', space=vmem, size = 0x10000, scoped, tag = 'input window, operand 0']
    #allocation3 [shape = 's32[2]{0}', space=sflag, size = 0x8, scoped, tag = 'scoped memory for tpu_custom_call.1']
    #allocation4 [shape = 's32[2]{0}', space=sflag, size = 0x8, scoped, tag = 'scoped memory for tpu_custom_call.1']
    #allocation5 [shape = 'u8[32768]{0}', space=vmem, size = 0x8000, scoped, tag = 'input window, operand 1']
    #allocation6 [shape = 's32[2]{0}', space=sflag, size = 0x8, scoped, tag = 'scoped memory for tpu_custom_call.1']
    #allocation7 [shape = 'u8[65536]{0}', space=vmem, size = 0x10000, scoped, tag = 'input window, operand 3, single buffered']
    #allocation8 [shape = 'u8[65536]{0}', space=vmem, size = 0x10000, scoped, tag = 'input window, operand 4, single buffered']
    #allocation9 [shape = 's32[1]{0}', space=sflag, size = 0x4, scoped, tag = 'scoped memory for tpu_custom_call.1']
    #allocation10 [shape = 'u8[16384]{0}', space=vmem, size = 0x4000, scoped, tag = 'output window, operand 0']
    %10 = vsyncpa [#allocation3], 0
    %s11 = scalar_lea.sflag [#allocation3], 1
    %12 = vsyncpa %s11, 0
    %13 = vsyncpa [#allocation6], 0
    %s14 = scalar_lea.sflag [#allocation6], 1
    %15 = vsyncpa %s14, 0
    %16 = vsyncpa [#allocation9], 0
    %17 = vsyncpa [#allocation4], 0
    %s18 = scalar_lea.sflag [#allocation4], 1
    %19 = vsyncpa %s18, 0
    loop: start=0, step=1, limit=4
    $region2: #{tpu_custom_call.1} parent=1 // loop_pre_header
      _
    $region3: #{tpu_custom_call.1} parent=1 // loop_header
      %s21 = sphi 0, %s25
      %p22 = scmp.ge.s32.totalorder %s21, 4
      %s28 = sphi 0, %s40
      %s29 = sphi 0, %s36
      %s30 = sphi 0, %s28
      %s31 = sphi 0, %s29
      %s32 = sphi 0, %s30
      %s33 = sphi 0, %s31
      %s45 = sphi 0, %s47
      %s48 = sphi 0, %s45
      %s49 = sphi 0, %s48
      %s65 = sphi 0, %s49
      %s73 = sphi 0, %s75
      %s76 = sphi 0, %s73
      %s77 = sphi 0, %s76
      %s93 = sphi 0, %s77
      %s101 = sphi 0, %s103
      %s104 = sphi 0, %s101
      %s105 = sphi 0, %s104
      %s121 = sphi 0, %s105
      %s125 = sphi 0, %s125
      %s127 = sphi 0, %s125
      %s128 = sphi 0, %s127
      %s142 = sphi 0, %s128
      %s146 = sphi 0, %s146
      %s148 = sphi 0, %s146
      %s149 = sphi 0, %s148
      %s163 = sphi 0, %s149
      %s171 = sphi 0, %s173
      %s174 = sphi 0, %s171
      %s175 = sphi 0, %s174
      %s191 = sphi 0, %s175
    $region4: #{tpu_custom_call.1} parent=1 // loop_header_branch
      %24 = sbr.rel (%p22) target = $region8
    $region5: #{tpu_custom_call.1} parent=1 // loop_body
      %s26 = ssub.s32 %s21, 1
      %s27 = ssub.s32 %s21, 2
      %s34 = sadd.s32 1, %s29
      %p35 = scmp.ge.s32.totalorder %s34, 1
      %s36 = scalar_select %p35, 0, %s34
      %s37 = sadd.s32 1, %s28
      %s38 = scalar_select %p35, %s37, %s28
      %p39 = scmp.ge.s32.totalorder %s38, 2
      %s40 = scalar_select %p39, 0, %s38
      %s41 = ssub.s32 %s28, %s40
      %s42 = ssub.s32 %s29, %s36
      %s43 = sor.u32 %s41, %s42
      %p44 = scmp.eq.s32.totalorder %s43, 0
      %s46 = sadd.s32 %s45, 1
      %s47 = scalar_select %p44, %s45, %s46
      %p50 = pneg %p44
      %p51 = scmp.eq.s32.totalorder %s21, 1
      %p52 = por %p50, %p51
      %p53 = scmp.ne.s32.totalorder %s45, %s48
      %p54 = scmp.eq.s32.totalorder %s21, 0
      %p55 = por %p53, %p54
      %p56 = scmp.ne.s32.totalorder %s45, %s48
      %p57 = scmp.eq.s32.totalorder %s26, 1
      %p58 = por %p56, %p57
      %p59 = scmp.ne.s32.totalorder %s48, %s49
      %p60 = scmp.eq.s32.totalorder %s26, 0
      %p61 = por %p59, %p60
      %p62 = scmp.ne.s32.totalorder %s48, %s49
      %p63 = scmp.eq.s32.totalorder %s27, 1
      %p64 = por %p62, %p63
      %p66 = scmp.ne.s32.totalorder %s49, %s65
      %p67 = scmp.eq.s32.totalorder %s27, 0
      %p68 = por %p66, %p67
      %s69 = ssub.s32 %s28, %s40
      %s70 = ssub.s32 %s29, %s36
      %s71 = sor.u32 %s69, %s70
      %p72 = scmp.eq.s32.totalorder %s71, 0
      %s74 = sadd.s32 %s73, 1
      %s75 = scalar_select %p72, %s73, %s74
      %p78 = pneg %p72
      %p79 = scmp.eq.s32.totalorder %s21, 1
      %p80 = por %p78, %p79
      %p81 = scmp.ne.s32.totalorder %s73, %s76
      %p82 = scmp.eq.s32.totalorder %s21, 0
      %p83 = por %p81, %p82
      %p84 = scmp.ne.s32.totalorder %s73, %s76
      %p85 = scmp.eq.s32.totalorder %s26, 1
      %p86 = por %p84, %p85
      %p87 = scmp.ne.s32.totalorder %s76, %s77
      %p88 = scmp.eq.s32.totalorder %s26, 0
      %p89 = por %p87, %p88
      %p90 = scmp.ne.s32.totalorder %s76, %s77
      %p91 = scmp.eq.s32.totalorder %s27, 1
      %p92 = por %p90, %p91
      %p94 = scmp.ne.s32.totalorder %s77, %s93
      %p95 = scmp.eq.s32.totalorder %s27, 0
      %p96 = por %p94, %p95
      %s97 = ssub.s32 %s28, %s40
      %s98 = ssub.s32 %s29, %s36
      %s99 = sor.u32 %s97, %s98
      %p100 = scmp.eq.s32.totalorder %s99, 0
      %s102 = sadd.s32 %s101, 1
      %s103 = scalar_select %p100, %s101, %s102
      %p106 = pneg %p100
      %p107 = scmp.eq.s32.totalorder %s21, 1
      %p108 = por %p106, %p107
      %p109 = scmp.ne.s32.totalorder %s101, %s104
      %p110 = scmp.eq.s32.totalorder %s21, 0
      %p111 = por %p109, %p110
      %p112 = scmp.ne.s32.totalorder %s101, %s104
      %p113 = scmp.eq.s32.totalorder %s26, 1
      %p114 = por %p112, %p113
      %p115 = scmp.ne.s32.totalorder %s104, %s105
      %p116 = scmp.eq.s32.totalorder %s26, 0
      %p117 = por %p115, %p116
      %p118 = scmp.ne.s32.totalorder %s104, %s105
      %p119 = scmp.eq.s32.totalorder %s27, 1
      %p120 = por %p118, %p119
      %p122 = scmp.ne.s32.totalorder %s105, %s121
      %p123 = scmp.eq.s32.totalorder %s27, 0
      %p124 = por %p122, %p123
      %s126 = sadd.s32 %s125, 1
      %p129 = scmp.eq.s32.totalorder %s21, 1
      %p130 = scmp.ne.s32.totalorder %s125, %s127
      %p131 = scmp.eq.s32.totalorder %s21, 0
      %p132 = por %p130, %p131
      %p133 = scmp.ne.s32.totalorder %s125, %s127
      %p134 = scmp.eq.s32.totalorder %s26, 1
      %p135 = por %p133, %p134
      %p136 = scmp.ne.s32.totalorder %s127, %s128
      %p137 = scmp.eq.s32.totalorder %s26, 0
      %p138 = por %p136, %p137
      %p139 = scmp.ne.s32.totalorder %s127, %s128
      %p140 = scmp.eq.s32.totalorder %s27, 1
      %p141 = por %p139, %p140
      %p143 = scmp.ne.s32.totalorder %s128, %s142
      %p144 = scmp.eq.s32.totalorder %s27, 0
      %p145 = por %p143, %p144
      %s147 = sadd.s32 %s146, 1
      %p150 = scmp.eq.s32.totalorder %s21, 1
      %p151 = scmp.ne.s32.totalorder %s146, %s148
      %p152 = scmp.eq.s32.totalorder %s21, 0
      %p153 = por %p151, %p152
      %p154 = scmp.ne.s32.totalorder %s146, %s148
      %p155 = scmp.eq.s32.totalorder %s26, 1
      %p156 = por %p154, %p155
      %p157 = scmp.ne.s32.totalorder %s148, %s149
      %p158 = scmp.eq.s32.totalorder %s26, 0
      %p159 = por %p157, %p158
      %p160 = scmp.ne.s32.totalorder %s148, %s149
      %p161 = scmp.eq.s32.totalorder %s27, 1
      %p162 = por %p160, %p161
      %p164 = scmp.ne.s32.totalorder %s149, %s163
      %p165 = scmp.eq.s32.totalorder %s27, 0
      %p166 = por %p164, %p165
      %s167 = ssub.s32 %s28, %s40
      %s168 = ssub.s32 %s29, %s36
      %s169 = sor.u32 %s167, %s168
      %p170 = scmp.eq.s32.totalorder %s169, 0
      %s172 = sadd.s32 %s171, 1
      %s173 = scalar_select %p170, %s171, %s172
      %p176 = pneg %p170
      %p177 = scmp.eq.s32.totalorder %s21, 1
      %p178 = por %p176, %p177
      %p179 = scmp.ne.s32.totalorder %s171, %s174
      %p180 = scmp.eq.s32.totalorder %s21, 0
      %p181 = por %p179, %p180
      %p182 = scmp.ne.s32.totalorder %s171, %s174
      %p183 = scmp.eq.s32.totalorder %s26, 1
      %p184 = por %p182, %p183
      %p185 = scmp.ne.s32.totalorder %s174, %s175
      %p186 = scmp.eq.s32.totalorder %s26, 0
      %p187 = por %p185, %p186
      %p188 = scmp.ne.s32.totalorder %s174, %s175
      %p189 = scmp.eq.s32.totalorder %s27, 1
      %p190 = por %p188, %p189
      %p192 = scmp.ne.s32.totalorder %s175, %s191
      %p193 = scmp.eq.s32.totalorder %s27, 0
      %p194 = por %p192, %p193
      %p195 = scmp.le.s32.totalorder 1, %s21
      %p196 = scmp.lt.s32.totalorder %s21, 3
      %p197 = pnand %p195, %p196
      %p198 = pneg %p197
      // Predicated region
      $region9: #{tpu_custom_call.1} parent=5 // pred_check
        _
      $region10: #{tpu_custom_call.1} parent=5 // pred_check_branch
        %200 = sbr.rel (%p197) target = $region12
      $region11: #{tpu_custom_call.1} parent=5 // pred_region
        %s201 = ssub.s32 %s21, 1
        // Predicated region
        $region13: #{tpu_custom_call.1} parent=11 // pred_check
          %p202 = pneg %p138
        $region14: #{tpu_custom_call.1} parent=11 // pred_check_branch
          %204 = sbr.rel (%p202) target = $region16
        $region15: #{tpu_custom_call.1} parent=11 // pred_region
          %s206 = ssub.s32 2048, 2048
          %207 = vsyncadd [#allocation6], %s206
          %s208 = sshll.u32 [#allocation7], 4
          %s209 = int_to_ptr.vmem [resolvable:$true] %s208
          %214 = dma.hbm_to_vmem [thread:$0]  %s3, 2048, %s209, [#allocation6], 128, 128, 8
        $region16: #{tpu_custom_call.1} parent=11 // pred_fallthru
          _
        // Predicated region
        $region17: #{tpu_custom_call.1} parent=11 // pred_check
          %p215 = pneg %p159
        $region18: #{tpu_custom_call.1} parent=11 // pred_check_branch
          %217 = sbr.rel (%p215) target = $region20
        $region19: #{tpu_custom_call.1} parent=11 // pred_region
          %s219 = ssub.s32 2048, 2048
          %220 = vsyncadd [#allocation9], %s219
          %s221 = sshll.u32 [#allocation8], 4
          %s222 = int_to_ptr.vmem [resolvable:$true] %s221
          %227 = dma.hbm_to_vmem [thread:$0]  %s4, 2048, %s222, [#allocation9], 128, 128, 8
        $region20: #{tpu_custom_call.1} parent=11 // pred_fallthru
          _
      $region12: #{tpu_custom_call.1} parent=5 // pred_fallthru
        _
      %p228 = scmp.lt.s32.totalorder %s21, 2
      // Predicated region
      $region21: #{tpu_custom_call.1} parent=5 // pred_check
        %p229 = pneg %p228
      $region22: #{tpu_custom_call.1} parent=5 // pred_check_branch
        %231 = sbr.rel (%p229) target = $region24
      $region23: #{tpu_custom_call.1} parent=5 // pred_region
        // Predicated region
        $region25: #{tpu_custom_call.1} parent=23 // pred_check
          %p232 = pneg %p55
        $region26: #{tpu_custom_call.1} parent=23 // pred_check_branch
          %234 = sbr.rel (%p232) target = $region28
        $region27: #{tpu_custom_call.1} parent=23 // pred_region
          %s235 = sand.u32 %s45, 1
          %s236 = scalar_lea.sflag [#allocation3], %s235
          %s237 = sand.u32 %s45, 1
          %s238 = smul.addr %s237, 64
          %s239 = scalar_lea.vmem [#allocation2], %s238
          %s240 = smul.u32 2, %s29
          %s242 = ssub.s32 1024, 1024
          %243 = vsyncadd %s236, %s242
          %s244 = smul.addr %s28, 8
          %s245 = sadd.s32 %s240, %s244
          %s246 = smul.addr %s245, 128
          %s247 = scalar_lea.hbm %s0, %s246
          %s248 = sshll.u32 %s239, 4
          %s249 = int_to_ptr.vmem [resolvable:$true] %s248
          %254 = dma.hbm_to_vmem [thread:$0]  %s247, 1024, %s249, %s236, 128, 128, 8
        $region28: #{tpu_custom_call.1} parent=23 // pred_fallthru
          _
        // Predicated region
        $region29: #{tpu_custom_call.1} parent=23 // pred_check
          %p255 = pneg %p83
        $region30: #{tpu_custom_call.1} parent=23 // pred_check_branch
          %257 = sbr.rel (%p255) target = $region32
        $region31: #{tpu_custom_call.1} parent=23 // pred_region
          %s258 = sand.u32 %s21, 1
          %s259 = scalar_lea.sflag [#allocation6], %s258
          %s260 = sand.u32 %s73, 1
          %s261 = smul.addr %s260, 32
          %s262 = scalar_lea.vmem [#allocation5], %s261
          %s263 = smul.u32 2, %s29
          %s265 = ssub.s32 512, 512
          %266 = vsyncadd %s259, %s265
          %s267 = smul.addr %s28, 4
          %s268 = sadd.s32 %s263, %s267
          %s269 = smul.addr %s268, 128
          %s270 = scalar_lea.hbm %s1, %s269
          %s271 = sshll.u32 %s262, 4
          %s272 = int_to_ptr.vmem [resolvable:$true] %s271
          %277 = dma.hbm_to_vmem [thread:$0]  %s270, 512, %s272, %s259, 128, 128, 8
        $region32: #{tpu_custom_call.1} parent=23 // pred_fallthru
          _
        // Predicated region
        $region33: #{tpu_custom_call.1} parent=23 // pred_check
          %p278 = pneg %p111
        $region34: #{tpu_custom_call.1} parent=23 // pred_check_branch
          %280 = sbr.rel (%p278) target = $region36
        $region35: #{tpu_custom_call.1} parent=23 // pred_region
          %p281 = scmp.lt.s32.totalorder %s28, 1
          %s282 = scalar_select %p281, %s28, 1
          %p283 = scmp.lt.s32.totalorder %s29, 0
          %s284 = scalar_select %p283, %s29, 0
          %s285 = smul.addr %s284, 2
          %s286 = smul.addr %s282, 2
          %s287 = sadd.s32 %s285, %s286
          %s288 = smul.addr %s287, 8
          %s289 = scalar_lea.vmem %s2, %s288
        $region36: #{tpu_custom_call.1} parent=23 // pred_fallthru
          _
      $region24: #{tpu_custom_call.1} parent=5 // pred_fallthru
        _
      %p290 = scmp.le.s32.totalorder 1, %s21
      %p291 = scmp.lt.s32.totalorder %s21, 3
      %p292 = pnand %p290, %p291
      %p293 = pneg %p292
      // Predicated region
      $region37: #{tpu_custom_call.1} parent=5 // pred_check
        _
      $region38: #{tpu_custom_call.1} parent=5 // pred_check_branch
        %295 = sbr.rel (%p292) target = $region40
      $region39: #{tpu_custom_call.1} parent=5 // pred_region
        %s296 = ssub.s32 %s21, 1
        %s297 = sand.u32 %s48, 1
        %s298 = scalar_lea.sflag [#allocation3], %s297
        %s299 = sand.u32 %s48, 1
        %s300 = smul.addr %s299, 64
        %s301 = scalar_lea.vmem [#allocation2], %s300
        // Predicated region
        $region41: #{tpu_custom_call.1} parent=39 // pred_check
          %p302 = pneg %p61
        $region42: #{tpu_custom_call.1} parent=39 // pred_check_branch
          %304 = sbr.rel (%p302) target = $region44
        $region43: #{tpu_custom_call.1} parent=39 // pred_region
          %305 = dma.done %s298, 1024
        $region44: #{tpu_custom_call.1} parent=39 // pred_fallthru
          _
        %s306 = sand.u32 %s26, 1
        %s307 = scalar_lea.sflag [#allocation6], %s306
        %s308 = sand.u32 %s76, 1
        %s309 = smul.addr %s308, 32
        %s310 = scalar_lea.vmem [#allocation5], %s309
        // Predicated region
        $region45: #{tpu_custom_call.1} parent=39 // pred_check
          %p311 = pneg %p89
        $region46: #{tpu_custom_call.1} parent=39 // pred_check_branch
          %313 = sbr.rel (%p311) target = $region48
        $region47: #{tpu_custom_call.1} parent=39 // pred_region
          %314 = dma.done %s307, 512
        $region48: #{tpu_custom_call.1} parent=39 // pred_fallthru
          _
        // Predicated region
        $region49: #{tpu_custom_call.1} parent=39 // pred_check
          %p315 = pneg %p138
        $region50: #{tpu_custom_call.1} parent=39 // pred_check_branch
          %317 = sbr.rel (%p315) target = $region52
        $region51: #{tpu_custom_call.1} parent=39 // pred_region
          %318 = dma.done [#allocation6], 2048
        $region52: #{tpu_custom_call.1} parent=39 // pred_fallthru
          _
        // Predicated region
        $region53: #{tpu_custom_call.1} parent=39 // pred_check
          %p319 = pneg %p159
        $region54: #{tpu_custom_call.1} parent=39 // pred_check_branch
          %321 = sbr.rel (%p319) target = $region56
        $region55: #{tpu_custom_call.1} parent=39 // pred_region
          %322 = dma.done [#allocation9], 2048
        $region56: #{tpu_custom_call.1} parent=39 // pred_fallthru
          _
        %s323 = sand.u32 %s48, 1
        %s324 = scalar_lea.sflag [#allocation3], %s323
        %s325 = sand.u32 %s48, 1
        %s326 = smul.addr %s325, 64
        %s327 = scalar_lea.vmem [#allocation2], %s326
        %p328 = pneg %p61
        %p329 = pneg %p58
        %s330 = sand.u32 %s26, 1
        %s331 = scalar_lea.sflag [#allocation6], %s330
        %s332 = sand.u32 %s76, 1
        %s333 = smul.addr %s332, 32
        %s334 = scalar_lea.vmem [#allocation5], %s333
        %p335 = pneg %p89
        %p336 = pneg %p86
        %p337 = scmp.lt.s32.totalorder %s30, 1
        %s338 = scalar_select %p337, %s30, 1
        %p339 = scmp.lt.s32.totalorder %s31, 0
        %s340 = scalar_select %p339, %s31, 0
        %s341 = smul.addr %s340, 2
        %s342 = smul.addr %s338, 2
        %s343 = sadd.s32 %s341, %s342
        %s344 = smul.addr %s343, 8
        %s345 = scalar_lea.vmem %s2, %s344
        %p346 = pneg %p117
        %p347 = pneg %p114
        %p348 = pneg %p138
        %p349 = pneg %p135
        %p350 = pneg %p159
        %p351 = pneg %p156
        %p352 = pneg %p187
        %p353 = pneg %p184
        %s354 = sand.u32 %s174, 1
        %s355 = scalar_lea.sflag [#allocation4], %s354
        %s356 = sand.u32 %s174, 1
        %s357 = smul.addr %s356, 16
        %s358 = scalar_lea.vmem [#allocation10], %s357
        %s359 = smul.u32 2, %s31
        %s360 = smul.u32 2, %s31
        %p361 = scmp.lt.s32.totalorder %s30, 1
        %s362 = scalar_select %p361, %s30, 1
        %p363 = scmp.lt.s32.totalorder %s31, 0
        %s364 = scalar_select %p363, %s31, 0
        %s365 = smul.addr %s364, 2
        %s366 = smul.addr %s362, 2
        %s367 = sadd.s32 %s365, %s366
        %s368 = smul.addr %s367, 8
        %s369 = scalar_lea.vmem %s2, %s368
        %s370 = smul.u32 2, %s31
        %v371 = vld [vmem:[#allocation7] sm:$0xff]
        %v372 = vld [vmem:[#allocation7 + $0x8] sm:$0xff]
        %v373 = vld [vmem:[#allocation7 + $0x10] sm:$0xff]
        %v374 = vld [vmem:[#allocation7 + $0x18] sm:$0xff]
        %v375 = vld [vmem:[#allocation7 + $0x20] sm:$0xff]
        %v376 = vld [vmem:[#allocation7 + $0x28] sm:$0xff]
        %v377 = vld [vmem:[#allocation7 + $0x30] sm:$0xff]
        %v378 = vld [vmem:[#allocation7 + $0x38] sm:$0xff]
        %v379 = vld [vmem:[#allocation7 + $0x40] sm:$0xff]
        %v380 = vld [vmem:[#allocation7 + $0x48] sm:$0xff]
        %v381 = vld [vmem:[#allocation7 + $0x50] sm:$0xff]
        %v382 = vld [vmem:[#allocation7 + $0x58] sm:$0xff]
        %v383 = vld [vmem:[#allocation7 + $0x60] sm:$0xff]
        %v384 = vld [vmem:[#allocation7 + $0x68] sm:$0xff]
        %v385 = vld [vmem:[#allocation7 + $0x70] sm:$0xff]
        %v386 = vld [vmem:[#allocation7 + $0x78] sm:$0xff]
        %v387 = vld [vmem:[#allocation8] sm:$0xff]
        %v388 = vld [vmem:[#allocation8 + $0x8] sm:$0xff]
        %v389 = vld [vmem:[#allocation8 + $0x10] sm:$0xff]
        %v390 = vld [vmem:[#allocation8 + $0x18] sm:$0xff]
        %v391 = vld [vmem:[#allocation8 + $0x20] sm:$0xff]
        %v392 = vld [vmem:[#allocation8 + $0x28] sm:$0xff]
        %v393 = vld [vmem:[#allocation8 + $0x30] sm:$0xff]
        %v394 = vld [vmem:[#allocation8 + $0x38] sm:$0xff]
        %v395 = vld [vmem:[#allocation8 + $0x40] sm:$0xff]
        %v396 = vld [vmem:[#allocation8 + $0x48] sm:$0xff]
        %v397 = vld [vmem:[#allocation8 + $0x50] sm:$0xff]
        %v398 = vld [vmem:[#allocation8 + $0x58] sm:$0xff]
        %v399 = vld [vmem:[#allocation8 + $0x60] sm:$0xff]
        %v400 = vld [vmem:[#allocation8 + $0x68] sm:$0xff]
        %v401 = vld [vmem:[#allocation8 + $0x70] sm:$0xff]
        %v402 = vld [vmem:[#allocation8 + $0x78] sm:$0xff]
        %v403 = vlaneseq
        %v404 = vshrl.u32 %v403, 7
        %v405 = vadd.s32 %v404, 8
        %vm406 = vcmp.eq.s32.totalorder %v404, 0
        %vm407 = vcmp.eq.s32.totalorder %v405, 0
        %vm408 = vcmp.eq.s32.totalorder %v404, 15
        %vm409 = vcmp.eq.s32.totalorder %v405, 15
        %v410 = vld [vmem:[%s301] sm:$0xff]
        %v411 = vld [vmem:[%s301 + $0x8] sm:$0xff]
        %v412 = vld [vmem:[%s369] sm:$0x1]
        %v413 = vld [vmem:[%s369 + $0x4] sm:$0x1]
        %v414 = vrot.slane %v410, 7
        %v415 = vrot.slane %v411, 7
        %vm416 = vcmp.lt.s32.totalorder %v404, 1
        %v417 = vsel %vm416, %v414, %v415
        %v418 = vsel %vm416, %v415, %v414
        %v419 = vsel %vm406, 1, 0
        %v420 = vsel %vm407, 1, 0
        %vm421 = vcmp.eq.s32.totalorder %v419, 1
        %vm422 = vcmp.eq.s32.totalorder %v420, 1
        %v423 = vlaneseq
        %v424 = vshrl.u32 %v423, 7
        %v425 = vsub.s32 0, %v424
        %v426 = vrot.slane %v412, %v425
        %v427 = vsel %vm421, %v426, %v418
        %v428 = vsel %vm422, %v426, %v417
        %v429 = vrot.slane %v410, 1
        %v430 = vrot.slane %v411, 1
        %vm431 = vcmp.lt.s32.totalorder %v404, 7
        %v432 = vsel %vm431, %v429, %v430
        %v433 = vsel %vm431, %v430, %v429
        %v434 = vsel %vm408, 1, 0
        %v435 = vsel %vm409, 1, 0
        %vm436 = vcmp.eq.s32.totalorder %v434, 1
        %vm437 = vcmp.eq.s32.totalorder %v435, 1
        %v438 = vlaneseq
        %v439 = vshrl.u32 %v438, 7
        %v440 = vsub.s32 0, %v439
        %v441 = vrot.slane %v413, %v440
        %v442 = vsel %vm436, %v441, %v432
        %v443 = vsel %vm437, %v441, %v433
        %v444 = vmul.f32 %v410, 2.0
        %v445 = vmul.f32 %v411, 2.0
        %v446 = vadd.f32 %v427, %v444
        %v447 = vadd.f32 %v428, %v445
        %v448 = vadd.f32 %v446, %v442
        %v449 = vadd.f32 %v447, %v443
        %v450 = vsub.f32 %v442, %v427
        %v451 = vsub.f32 %v443, %v428
        %452 = vmatprep.subr.mxu0 0.0
        %v453 = vand.u32 %v386, 4294901760
        %454 = vmatpush1.msra.mxu0 %v453
        %455 = vmatprep.subr.mxu0 0.0
        %v456 = vand.u32 %v385, 4294901760
        %457 = vmatpush1.msra.mxu0 %v456
        %458 = vmatprep.subr.mxu0 0.0
        %v459 = vand.u32 %v384, 4294901760
        %460 = vmatpush1.msra.mxu0 %v459
        %461 = vmatprep.subr.mxu0 0.0
        %v462 = vand.u32 %v383, 4294901760
        %463 = vmatpush1.msra.mxu0 %v462
        %464 = vmatprep.subr.mxu0 0.0
        %v465 = vand.u32 %v382, 4294901760
        %466 = vmatpush1.msra.mxu0 %v465
        %467 = vmatprep.subr.mxu0 0.0
        %v468 = vand.u32 %v381, 4294901760
        %469 = vmatpush1.msra.mxu0 %v468
        %470 = vmatprep.subr.mxu0 0.0
        %v471 = vand.u32 %v380, 4294901760
        %472 = vmatpush1.msra.mxu0 %v471
        %473 = vmatprep.subr.mxu0 0.0
        %v474 = vand.u32 %v379, 4294901760
        %475 = vmatpush1.msra.mxu0 %v474
        %476 = vmatprep.subr.mxu0 0.0
        %v477 = vand.u32 %v378, 4294901760
        %478 = vmatpush1.msra.mxu0 %v477
        %479 = vmatprep.subr.mxu0 0.0
        %v480 = vand.u32 %v377, 4294901760
        %481 = vmatpush1.msra.mxu0 %v480
        %482 = vmatprep.subr.mxu0 0.0
        %v483 = vand.u32 %v376, 4294901760
        %484 = vmatpush1.msra.mxu0 %v483
        %485 = vmatprep.subr.mxu0 0.0
        %v486 = vand.u32 %v375, 4294901760
        %487 = vmatpush1.msra.mxu0 %v486
        %488 = vmatprep.subr.mxu0 0.0
        %v489 = vand.u32 %v374, 4294901760
        %490 = vmatpush1.msra.mxu0 %v489
        %491 = vmatprep.subr.mxu0 0.0
        %v492 = vand.u32 %v373, 4294901760
        %493 = vmatpush1.msra.mxu0 %v492
        %494 = vmatprep.subr.mxu0 0.0
        %v495 = vand.u32 %v372, 4294901760
        %496 = vmatpush1.msra.mxu0 %v495
        %497 = vmatprep.subr.mxu0 0.0
        %v498 = vand.u32 %v371, 4294901760
        %499 = vmatpush1.msra.mxu0 %v498
        %500 = vmatprep.subr.mxu0 0.0
        %501 = vmatpush2.msra.mxu0 0.0
        %502 = vmatprep.subr.mxu0 0.0
        %503 = vmatpush2.msra.mxu0 0.0
        %504 = vmatprep.subr.mxu0 0.0
        %505 = vmatpush2.msra.mxu0 0.0
        %506 = vmatprep.subr.mxu0 0.0
        %507 = vmatpush2.msra.mxu0 0.0
        %508 = vmatprep.subr.mxu0 0.0
        %509 = vmatpush2.msra.mxu0 0.0
        %510 = vmatprep.subr.mxu0 0.0
        %511 = vmatpush2.msra.mxu0 0.0
        %512 = vmatprep.subr.mxu0 0.0
        %513 = vmatpush2.msra.mxu0 0.0
        %514 = vmatprep.subr.mxu0 0.0
        %515 = vmatpush2.msra.mxu0 0.0
        %516 = vmatprep.subr.mxu0 0.0
        %517 = vmatpush2.msra.mxu0 0.0
        %518 = vmatprep.subr.mxu0 0.0
        %519 = vmatpush2.msra.mxu0 0.0
        %520 = vmatprep.subr.mxu0 0.0
        %521 = vmatpush2.msra.mxu0 0.0
        %522 = vmatprep.subr.mxu0 0.0
        %523 = vmatpush2.msra.mxu0 0.0
        %524 = vmatprep.subr.mxu0 0.0
        %525 = vmatpush2.msra.mxu0 0.0
        %526 = vmatprep.subr.mxu0 0.0
        %527 = vmatpush2.msra.mxu0 0.0
        %528 = vmatprep.subr.mxu0 0.0
        %529 = vmatpush2.msra.mxu0 0.0
        %530 = vmatprep.subr.mxu0 0.0
        %531 = vmatpush2.msra.mxu0 0.0
        %532 = vmatprep.mubr.f32.mxu0 0.0
        %v533 = vand.u32 %v448, 4294901760
        %v534 = vsub.f32 %v448, %v533
        %v535 = vand.u32 %v534, 4294901760
        %v536 = vsub.f32 %v534, %v535
        %v537 = vand.u32 %v536, 4294901760
        %538 = vmatmul.mubr.f32.gmra.mxu0 %v537
        %v539 = vpop.f32.mrf.mxu0
        %v540 = vadd.f32 0.0, %v539
        %v541 = vpop.f32.mrf.mxu0
        %542 = vmatprep.mubr.f32.mxu0 0.0
        %v543 = vand.u32 %v449, 4294901760
        %v544 = vsub.f32 %v449, %v543
        %v545 = vand.u32 %v544, 4294901760
        %v546 = vsub.f32 %v544, %v545
        %v547 = vand.u32 %v546, 4294901760
        %548 = vmatmul.mubr.f32.gmra.mxu0 %v547
        %v549 = vpop.f32.mrf.mxu0
        %v550 = vadd.f32 0.0, %v549
        %v551 = vpop.f32.mrf.mxu0
        %552 = vdwg.mxu0
        %553 = vmatprep.subr.mxu0 0.0
        %v554 = vand.u32 %v386, 4294901760
        %v555 = vsub.f32 %v386, %v554
        %v556 = vand.u32 %v555, 4294901760
        %v557 = vsub.f32 %v555, %v556
        %v558 = vand.u32 %v557, 4294901760
        %559 = vmatpush1.msra.mxu0 %v558
        %560 = vmatprep.subr.mxu0 0.0
        %v561 = vand.u32 %v385, 4294901760
        %v562 = vsub.f32 %v385, %v561
        %v563 = vand.u32 %v562, 4294901760
        %v564 = vsub.f32 %v562, %v563
        %v565 = vand.u32 %v564, 4294901760
        %566 = vmatpush1.msra.mxu0 %v565
        %567 = vmatprep.subr.mxu0 0.0
        %v568 = vand.u32 %v384, 4294901760
        %v569 = vsub.f32 %v384, %v568
        %v570 = vand.u32 %v569, 4294901760
        %v571 = vsub.f32 %v569, %v570
        %v572 = vand.u32 %v571, 4294901760
        %573 = vmatpush1.msra.mxu0 %v572
        %574 = vmatprep.subr.mxu0 0.0
        %v575 = vand.u32 %v383, 4294901760
        %v576 = vsub.f32 %v383, %v575
        %v577 = vand.u32 %v576, 4294901760
        %v578 = vsub.f32 %v576, %v577
        %v579 = vand.u32 %v578, 4294901760
        %580 = vmatpush1.msra.mxu0 %v579
        %581 = vmatprep.subr.mxu0 0.0
        %v582 = vand.u32 %v382, 4294901760
        %v583 = vsub.f32 %v382, %v582
        %v584 = vand.u32 %v583, 4294901760
        %v585 = vsub.f32 %v583, %v584
        %v586 = vand.u32 %v585, 4294901760
        %587 = vmatpush1.msra.mxu0 %v586
        %588 = vmatprep.subr.mxu0 0.0
        %v589 = vand.u32 %v381, 4294901760
        %v590 = vsub.f32 %v381, %v589
        %v591 = vand.u32 %v590, 4294901760
        %v592 = vsub.f32 %v590, %v591
        %v593 = vand.u32 %v592, 4294901760
        %594 = vmatpush1.msra.mxu0 %v593
        %595 = vmatprep.subr.mxu0 0.0
        %v596 = vand.u32 %v380, 4294901760
        %v597 = vsub.f32 %v380, %v596
        %v598 = vand.u32 %v597, 4294901760
        %v599 = vsub.f32 %v597, %v598
        %v600 = vand.u32 %v599, 4294901760
        %601 = vmatpush1.msra.mxu0 %v600
        %602 = vmatprep.subr.mxu0 0.0
        %v603 = vand.u32 %v379, 4294901760
        %v604 = vsub.f32 %v379, %v603
        %v605 = vand.u32 %v604, 4294901760
        %v606 = vsub.f32 %v604, %v605
        %v607 = vand.u32 %v606, 4294901760
        %608 = vmatpush1.msra.mxu0 %v607
        %609 = vmatprep.subr.mxu0 0.0
        %v610 = vand.u32 %v378, 4294901760
        %v611 = vsub.f32 %v378, %v610
        %v612 = vand.u32 %v611, 4294901760
        %v613 = vsub.f32 %v611, %v612
        %v614 = vand.u32 %v613, 4294901760
        %615 = vmatpush1.msra.mxu0 %v614
        %616 = vmatprep.subr.mxu0 0.0
        %v617 = vand.u32 %v377, 4294901760
        %v618 = vsub.f32 %v377, %v617
        %v619 = vand.u32 %v618, 4294901760
        %v620 = vsub.f32 %v618, %v619
        %v621 = vand.u32 %v620, 4294901760
        %622 = vmatpush1.msra.mxu0 %v621
        %623 = vmatprep.subr.mxu0 0.0
        %v624 = vand.u32 %v376, 4294901760
        %v625 = vsub.f32 %v376, %v624
        %v626 = vand.u32 %v625, 4294901760
        %v627 = vsub.f32 %v625, %v626
        %v628 = vand.u32 %v627, 4294901760
        %629 = vmatpush1.msra.mxu0 %v628
        %630 = vmatprep.subr.mxu0 0.0
        %v631 = vand.u32 %v375, 4294901760
        %v632 = vsub.f32 %v375, %v631
        %v633 = vand.u32 %v632, 4294901760
        %v634 = vsub.f32 %v632, %v633
        %v635 = vand.u32 %v634, 4294901760
        %636 = vmatpush1.msra.mxu0 %v635
        %637 = vmatprep.subr.mxu0 0.0
        %v638 = vand.u32 %v374, 4294901760
        %v639 = vsub.f32 %v374, %v638
        %v640 = vand.u32 %v639, 4294901760
        %v641 = vsub.f32 %v639, %v640
        %v642 = vand.u32 %v641, 4294901760
        %643 = vmatpush1.msra.mxu0 %v642
        %644 = vmatprep.subr.mxu0 0.0
        %v645 = vand.u32 %v373, 4294901760
        %v646 = vsub.f32 %v373, %v645
        %v647 = vand.u32 %v646, 4294901760
        %v648 = vsub.f32 %v646, %v647
        %v649 = vand.u32 %v648, 4294901760
        %650 = vmatpush1.msra.mxu0 %v649
        %651 = vmatprep.subr.mxu0 0.0
        %v652 = vand.u32 %v372, 4294901760
        %v653 = vsub.f32 %v372, %v652
        %v654 = vand.u32 %v653, 4294901760
        %v655 = vsub.f32 %v653, %v654
        %v656 = vand.u32 %v655, 4294901760
        %657 = vmatpush1.msra.mxu0 %v656
        %658 = vmatprep.subr.mxu0 0.0
        %v659 = vand.u32 %v371, 4294901760
        %v660 = vsub.f32 %v371, %v659
        %v661 = vand.u32 %v660, 4294901760
        %v662 = vsub.f32 %v660, %v661
        %v663 = vand.u32 %v662, 4294901760
        %664 = vmatpush1.msra.mxu0 %v663
        %665 = vmatprep.subr.mxu0 0.0
        %666 = vmatpush2.msra.mxu0 0.0
        %667 = vmatprep.subr.mxu0 0.0
        %668 = vmatpush2.msra.mxu0 0.0
        %669 = vmatprep.subr.mxu0 0.0
        %670 = vmatpush2.msra.mxu0 0.0
        %671 = vmatprep.subr.mxu0 0.0
        %672 = vmatpush2.msra.mxu0 0.0
        %673 = vmatprep.subr.mxu0 0.0
        %674 = vmatpush2.msra.mxu0 0.0
        %675 = vmatprep.subr.mxu0 0.0
        %676 = vmatpush2.msra.mxu0 0.0
        %677 = vmatprep.subr.mxu0 0.0
        %678 = vmatpush2.msra.mxu0 0.0
        %679 = vmatprep.subr.mxu0 0.0
        %680 = vmatpush2.msra.mxu0 0.0
        %681 = vmatprep.subr.mxu0 0.0
        %682 = vmatpush2.msra.mxu0 0.0
        %683 = vmatprep.subr.mxu0 0.0
        %684 = vmatpush2.msra.mxu0 0.0
        %685 = vmatprep.subr.mxu0 0.0
        %686 = vmatpush2.msra.mxu0 0.0
        %687 = vmatprep.subr.mxu0 0.0
        %688 = vmatpush2.msra.mxu0 0.0
        %689 = vmatprep.subr.mxu0 0.0
        %690 = vmatpush2.msra.mxu0 0.0
        %691 = vmatprep.subr.mxu0 0.0
        %692 = vmatpush2.msra.mxu0 0.0
        %693 = vmatprep.subr.mxu0 0.0
        %694 = vmatpush2.msra.mxu0 0.0
        %695 = vmatprep.subr.mxu0 0.0
        %696 = vmatpush2.msra.mxu0 0.0
        %697 = vmatprep.mubr.f32.mxu0 0.0
        %v698 = vand.u32 %v448, 4294901760
        %699 = vmatmul.mubr.f32.gmra.mxu0 %v698
        %v700 = vpop.f32.mrf.mxu0
        %v701 = vadd.f32 %v540, %v700
        %v702 = vpop.f32.mrf.mxu0
        %703 = vmatprep.mubr.f32.mxu0 0.0
        %v704 = vand.u32 %v449, 4294901760
        %705 = vmatmul.mubr.f32.gmra.mxu0 %v704
        %v706 = vpop.f32.mrf.mxu0
        %v707 = vadd.f32 %v550, %v706
        %v708 = vpop.f32.mrf.mxu0
        %709 = vdwg.mxu0
        %710 = vmatprep.subr.mxu0 0.0
        %v711 = vand.u32 %v386, 4294901760
        %v712 = vsub.f32 %v386, %v711
        %713 = vmatpush1.msra.mxu0 %v712
        %714 = vmatprep.subr.mxu0 0.0
        %v715 = vand.u32 %v385, 4294901760
        %v716 = vsub.f32 %v385, %v715
        %717 = vmatpush1.msra.mxu0 %v716
        %718 = vmatprep.subr.mxu0 0.0
        %v719 = vand.u32 %v384, 4294901760
        %v720 = vsub.f32 %v384, %v719
        %721 = vmatpush1.msra.mxu0 %v720
        %722 = vmatprep.subr.mxu0 0.0
        %v723 = vand.u32 %v383, 4294901760
        %v724 = vsub.f32 %v383, %v723
        %725 = vmatpush1.msra.mxu0 %v724
        %726 = vmatprep.subr.mxu0 0.0
        %v727 = vand.u32 %v382, 4294901760
        %v728 = vsub.f32 %v382, %v727
        %729 = vmatpush1.msra.mxu0 %v728
        %730 = vmatprep.subr.mxu0 0.0
        %v731 = vand.u32 %v381, 4294901760
        %v732 = vsub.f32 %v381, %v731
        %733 = vmatpush1.msra.mxu0 %v732
        %734 = vmatprep.subr.mxu0 0.0
        %v735 = vand.u32 %v380, 4294901760
        %v736 = vsub.f32 %v380, %v735
        %737 = vmatpush1.msra.mxu0 %v736
        %738 = vmatprep.subr.mxu0 0.0
        %v739 = vand.u32 %v379, 4294901760
        %v740 = vsub.f32 %v379, %v739
        %741 = vmatpush1.msra.mxu0 %v740
        %742 = vmatprep.subr.mxu0 0.0
        %v743 = vand.u32 %v378, 4294901760
        %v744 = vsub.f32 %v378, %v743
        %745 = vmatpush1.msra.mxu0 %v744
        %746 = vmatprep.subr.mxu0 0.0
        %v747 = vand.u32 %v377, 4294901760
        %v748 = vsub.f32 %v377, %v747
        %749 = vmatpush1.msra.mxu0 %v748
        %750 = vmatprep.subr.mxu0 0.0
        %v751 = vand.u32 %v376, 4294901760
        %v752 = vsub.f32 %v376, %v751
        %753 = vmatpush1.msra.mxu0 %v752
        %754 = vmatprep.subr.mxu0 0.0
        %v755 = vand.u32 %v375, 4294901760
        %v756 = vsub.f32 %v375, %v755
        %757 = vmatpush1.msra.mxu0 %v756
        %758 = vmatprep.subr.mxu0 0.0
        %v759 = vand.u32 %v374, 4294901760
        %v760 = vsub.f32 %v374, %v759
        %761 = vmatpush1.msra.mxu0 %v760
        %762 = vmatprep.subr.mxu0 0.0
        %v763 = vand.u32 %v373, 4294901760
        %v764 = vsub.f32 %v373, %v763
        %765 = vmatpush1.msra.mxu0 %v764
        %766 = vmatprep.subr.mxu0 0.0
        %v767 = vand.u32 %v372, 4294901760
        %v768 = vsub.f32 %v372, %v767
        %769 = vmatpush1.msra.mxu0 %v768
        %770 = vmatprep.subr.mxu0 0.0
        %v771 = vand.u32 %v371, 4294901760
        %v772 = vsub.f32 %v371, %v771
        %773 = vmatpush1.msra.mxu0 %v772
        %774 = vmatprep.subr.mxu0 0.0
        %775 = vmatpush2.msra.mxu0 0.0
        %776 = vmatprep.subr.mxu0 0.0
        %777 = vmatpush2.msra.mxu0 0.0
        %778 = vmatprep.subr.mxu0 0.0
        %779 = vmatpush2.msra.mxu0 0.0
        %780 = vmatprep.subr.mxu0 0.0
        %781 = vmatpush2.msra.mxu0 0.0
        %782 = vmatprep.subr.mxu0 0.0
        %783 = vmatpush2.msra.mxu0 0.0
        %784 = vmatprep.subr.mxu0 0.0
        %785 = vmatpush2.msra.mxu0 0.0
        %786 = vmatprep.subr.mxu0 0.0
        %787 = vmatpush2.msra.mxu0 0.0
        %788 = vmatprep.subr.mxu0 0.0
        %789 = vmatpush2.msra.mxu0 0.0
        %790 = vmatprep.subr.mxu0 0.0
        %791 = vmatpush2.msra.mxu0 0.0
        %792 = vmatprep.subr.mxu0 0.0
        %793 = vmatpush2.msra.mxu0 0.0
        %794 = vmatprep.subr.mxu0 0.0
        %795 = vmatpush2.msra.mxu0 0.0
        %796 = vmatprep.subr.mxu0 0.0
        %797 = vmatpush2.msra.mxu0 0.0
        %798 = vmatprep.subr.mxu0 0.0
        %799 = vmatpush2.msra.mxu0 0.0
        %800 = vmatprep.subr.mxu0 0.0
        %801 = vmatpush2.msra.mxu0 0.0
        %802 = vmatprep.subr.mxu0 0.0
        %803 = vmatpush2.msra.mxu0 0.0
        %804 = vmatprep.subr.mxu0 0.0
        %805 = vmatpush2.msra.mxu0 0.0
        %806 = vmatprep.mubr.f32.mxu0 0.0
        %v807 = vand.u32 %v448, 4294901760
        %v808 = vsub.f32 %v448, %v807
        %809 = vmatmul.mubr.f32.gmra.mxu0 %v808
        %v810 = vpop.f32.mrf.mxu0
        %v811 = vadd.f32 %v701, %v810
        %v812 = vpop.f32.mrf.mxu0
        %813 = vmatprep.mubr.f32.mxu0 0.0
        %v814 = vand.u32 %v449, 4294901760
        %v815 = vsub.f32 %v449, %v814
        %816 = vmatmul.mubr.f32.gmra.mxu0 %v815
        %v817 = vpop.f32.mrf.mxu0
        %v818 = vadd.f32 %v707, %v817
        %v819 = vpop.f32.mrf.mxu0
        %820 = vdwg.mxu0
        %821 = vmatprep.subr.mxu0 0.0
        %v822 = vand.u32 %v386, 4294901760
        %823 = vmatpush1.msra.mxu0 %v822
        %824 = vmatprep.subr.mxu0 0.0
        %v825 = vand.u32 %v385, 4294901760
        %826 = vmatpush1.msra.mxu0 %v825
        %827 = vmatprep.subr.mxu0 0.0
        %v828 = vand.u32 %v384, 4294901760
        %829 = vmatpush1.msra.mxu0 %v828
        %830 = vmatprep.subr.mxu0 0.0
        %v831 = vand.u32 %v383, 4294901760
        %832 = vmatpush1.msra.mxu0 %v831
        %833 = vmatprep.subr.mxu0 0.0
        %v834 = vand.u32 %v382, 4294901760
        %835 = vmatpush1.msra.mxu0 %v834
        %836 = vmatprep.subr.mxu0 0.0
        %v837 = vand.u32 %v381, 4294901760
        %838 = vmatpush1.msra.mxu0 %v837
        %839 = vmatprep.subr.mxu0 0.0
        %v840 = vand.u32 %v380, 4294901760
        %841 = vmatpush1.msra.mxu0 %v840
        %842 = vmatprep.subr.mxu0 0.0
        %v843 = vand.u32 %v379, 4294901760
        %844 = vmatpush1.msra.mxu0 %v843
        %845 = vmatprep.subr.mxu0 0.0
        %v846 = vand.u32 %v378, 4294901760
        %847 = vmatpush1.msra.mxu0 %v846
        %848 = vmatprep.subr.mxu0 0.0
        %v849 = vand.u32 %v377, 4294901760
        %850 = vmatpush1.msra.mxu0 %v849
        %851 = vmatprep.subr.mxu0 0.0
        %v852 = vand.u32 %v376, 4294901760
        %853 = vmatpush1.msra.mxu0 %v852
        %854 = vmatprep.subr.mxu0 0.0
        %v855 = vand.u32 %v375, 4294901760
        %856 = vmatpush1.msra.mxu0 %v855
        %857 = vmatprep.subr.mxu0 0.0
        %v858 = vand.u32 %v374, 4294901760
        %859 = vmatpush1.msra.mxu0 %v858
        %860 = vmatprep.subr.mxu0 0.0
        %v861 = vand.u32 %v373, 4294901760
        %862 = vmatpush1.msra.mxu0 %v861
        %863 = vmatprep.subr.mxu0 0.0
        %v864 = vand.u32 %v372, 4294901760
        %865 = vmatpush1.msra.mxu0 %v864
        %866 = vmatprep.subr.mxu0 0.0
        %v867 = vand.u32 %v371, 4294901760
        %868 = vmatpush1.msra.mxu0 %v867
        %869 = vmatprep.subr.mxu0 0.0
        %870 = vmatpush2.msra.mxu0 0.0
        %871 = vmatprep.subr.mxu0 0.0
        %872 = vmatpush2.msra.mxu0 0.0
        %873 = vmatprep.subr.mxu0 0.0
        %874 = vmatpush2.msra.mxu0 0.0
        %875 = vmatprep.subr.mxu0 0.0
        %876 = vmatpush2.msra.mxu0 0.0
        %877 = vmatprep.subr.mxu0 0.0
        %878 = vmatpush2.msra.mxu0 0.0
        %879 = vmatprep.subr.mxu0 0.0
        %880 = vmatpush2.msra.mxu0 0.0
        %881 = vmatprep.subr.mxu0 0.0
        %882 = vmatpush2.msra.mxu0 0.0
        %883 = vmatprep.subr.mxu0 0.0
        %884 = vmatpush2.msra.mxu0 0.0
        %885 = vmatprep.subr.mxu0 0.0
        %886 = vmatpush2.msra.mxu0 0.0
        %887 = vmatprep.subr.mxu0 0.0
        %888 = vmatpush2.msra.mxu0 0.0
        %889 = vmatprep.subr.mxu0 0.0
        %890 = vmatpush2.msra.mxu0 0.0
        %891 = vmatprep.subr.mxu0 0.0
        %892 = vmatpush2.msra.mxu0 0.0
        %893 = vmatprep.subr.mxu0 0.0
        %894 = vmatpush2.msra.mxu0 0.0
        %895 = vmatprep.subr.mxu0 0.0
        %896 = vmatpush2.msra.mxu0 0.0
        %897 = vmatprep.subr.mxu0 0.0
        %898 = vmatpush2.msra.mxu0 0.0
        %899 = vmatprep.subr.mxu0 0.0
        %900 = vmatpush2.msra.mxu0 0.0
        %901 = vmatprep.mubr.f32.mxu0 0.0
        %v902 = vand.u32 %v448, 4294901760
        %v903 = vsub.f32 %v448, %v902
        %v904 = vand.u32 %v903, 4294901760
        %905 = vmatmul.mubr.f32.gmra.mxu0 %v904
        %v906 = vpop.f32.mrf.mxu0
        %v907 = vadd.f32 %v811, %v906
        %v908 = vpop.f32.mrf.mxu0
        %909 = vmatprep.mubr.f32.mxu0 0.0
        %v910 = vand.u32 %v449, 4294901760
        %v911 = vsub.f32 %v449, %v910
        %v912 = vand.u32 %v911, 4294901760
        %913 = vmatmul.mubr.f32.gmra.mxu0 %v912
        %v914 = vpop.f32.mrf.mxu0
        %v915 = vadd.f32 %v818, %v914
        %v916 = vpop.f32.mrf.mxu0
        %917 = vdwg.mxu0
        %918 = vmatprep.subr.mxu0 0.0
        %v919 = vand.u32 %v386, 4294901760
        %v920 = vsub.f32 %v386, %v919
        %v921 = vand.u32 %v920, 4294901760
        %922 = vmatpush1.msra.mxu0 %v921
        %923 = vmatprep.subr.mxu0 0.0
        %v924 = vand.u32 %v385, 4294901760
        %v925 = vsub.f32 %v385, %v924
        %v926 = vand.u32 %v925, 4294901760
        %927 = vmatpush1.msra.mxu0 %v926
        %928 = vmatprep.subr.mxu0 0.0
        %v929 = vand.u32 %v384, 4294901760
        %v930 = vsub.f32 %v384, %v929
        %v931 = vand.u32 %v930, 4294901760
        %932 = vmatpush1.msra.mxu0 %v931
        %933 = vmatprep.subr.mxu0 0.0
        %v934 = vand.u32 %v383, 4294901760
        %v935 = vsub.f32 %v383, %v934
        %v936 = vand.u32 %v935, 4294901760
        %937 = vmatpush1.msra.mxu0 %v936
        %938 = vmatprep.subr.mxu0 0.0
        %v939 = vand.u32 %v382, 4294901760
        %v940 = vsub.f32 %v382, %v939
        %v941 = vand.u32 %v940, 4294901760
        %942 = vmatpush1.msra.mxu0 %v941
        %943 = vmatprep.subr.mxu0 0.0
        %v944 = vand.u32 %v381, 4294901760
        %v945 = vsub.f32 %v381, %v944
        %v946 = vand.u32 %v945, 4294901760
        %947 = vmatpush1.msra.mxu0 %v946
        %948 = vmatprep.subr.mxu0 0.0
        %v949 = vand.u32 %v380, 4294901760
        %v950 = vsub.f32 %v380, %v949
        %v951 = vand.u32 %v950, 4294901760
        %952 = vmatpush1.msra.mxu0 %v951
        %953 = vmatprep.subr.mxu0 0.0
        %v954 = vand.u32 %v379, 4294901760
        %v955 = vsub.f32 %v379, %v954
        %v956 = vand.u32 %v955, 4294901760
        %957 = vmatpush1.msra.mxu0 %v956
        %958 = vmatprep.subr.mxu0 0.0
        %v959 = vand.u32 %v378, 4294901760
        %v960 = vsub.f32 %v378, %v959
        %v961 = vand.u32 %v960, 4294901760
        %962 = vmatpush1.msra.mxu0 %v961
        %963 = vmatprep.subr.mxu0 0.0
        %v964 = vand.u32 %v377, 4294901760
        %v965 = vsub.f32 %v377, %v964
        %v966 = vand.u32 %v965, 4294901760
        %967 = vmatpush1.msra.mxu0 %v966
        %968 = vmatprep.subr.mxu0 0.0
        %v969 = vand.u32 %v376, 4294901760
        %v970 = vsub.f32 %v376, %v969
        %v971 = vand.u32 %v970, 4294901760
        %972 = vmatpush1.msra.mxu0 %v971
        %973 = vmatprep.subr.mxu0 0.0
        %v974 = vand.u32 %v375, 4294901760
        %v975 = vsub.f32 %v375, %v974
        %v976 = vand.u32 %v975, 4294901760
        %977 = vmatpush1.msra.mxu0 %v976
        %978 = vmatprep.subr.mxu0 0.0
        %v979 = vand.u32 %v374, 4294901760
        %v980 = vsub.f32 %v374, %v979
        %v981 = vand.u32 %v980, 4294901760
        %982 = vmatpush1.msra.mxu0 %v981
        %983 = vmatprep.subr.mxu0 0.0
        %v984 = vand.u32 %v373, 4294901760
        %v985 = vsub.f32 %v373, %v984
        %v986 = vand.u32 %v985, 4294901760
        %987 = vmatpush1.msra.mxu0 %v986
        %988 = vmatprep.subr.mxu0 0.0
        %v989 = vand.u32 %v372, 4294901760
        %v990 = vsub.f32 %v372, %v989
        %v991 = vand.u32 %v990, 4294901760
        %992 = vmatpush1.msra.mxu0 %v991
        %993 = vmatprep.subr.mxu0 0.0
        %v994 = vand.u32 %v371, 4294901760
        %v995 = vsub.f32 %v371, %v994
        %v996 = vand.u32 %v995, 4294901760
        %997 = vmatpush1.msra.mxu0 %v996
        %998 = vmatprep.subr.mxu0 0.0
        %999 = vmatpush2.msra.mxu0 0.0
        %1000 = vmatprep.subr.mxu0 0.0
        %1001 = vmatpush2.msra.mxu0 0.0
        %1002 = vmatprep.subr.mxu0 0.0
        %1003 = vmatpush2.msra.mxu0 0.0
        %1004 = vmatprep.subr.mxu0 0.0
        %1005 = vmatpush2.msra.mxu0 0.0
        %1006 = vmatprep.subr.mxu0 0.0
        %1007 = vmatpush2.msra.mxu0 0.0
        %1008 = vmatprep.subr.mxu0 0.0
        %1009 = vmatpush2.msra.mxu0 0.0
        %1010 = vmatprep.subr.mxu0 0.0
        %1011 = vmatpush2.msra.mxu0 0.0
        %1012 = vmatprep.subr.mxu0 0.0
        %1013 = vmatpush2.msra.mxu0 0.0
        %1014 = vmatprep.subr.mxu0 0.0
        %1015 = vmatpush2.msra.mxu0 0.0
        %1016 = vmatprep.subr.mxu0 0.0
        %1017 = vmatpush2.msra.mxu0 0.0
        %1018 = vmatprep.subr.mxu0 0.0
        %1019 = vmatpush2.msra.mxu0 0.0
        %1020 = vmatprep.subr.mxu0 0.0
        %1021 = vmatpush2.msra.mxu0 0.0
        %1022 = vmatprep.subr.mxu0 0.0
        %1023 = vmatpush2.msra.mxu0 0.0
        %1024 = vmatprep.subr.mxu0 0.0
        %1025 = vmatpush2.msra.mxu0 0.0
        %1026 = vmatprep.subr.mxu0 0.0
        %1027 = vmatpush2.msra.mxu0 0.0
        %1028 = vmatprep.subr.mxu0 0.0
        %1029 = vmatpush2.msra.mxu0 0.0
        %1030 = vmatprep.mubr.f32.mxu0 0.0
        %v1031 = vand.u32 %v448, 4294901760
        %1032 = vmatmul.mubr.f32.gmra.mxu0 %v1031
        %v1033 = vpop.f32.mrf.mxu0
        %v1034 = vadd.f32 %v907, %v1033
        %v1035 = vpop.f32.mrf.mxu0
        %1036 = vmatprep.mubr.f32.mxu0 0.0
        %v1037 = vand.u32 %v449, 4294901760
        %1038 = vmatmul.mubr.f32.gmra.mxu0 %v1037
        %v1039 = vpop.f32.mrf.mxu0
        %v1040 = vadd.f32 %v915, %v1039
        %v1041 = vpop.f32.mrf.mxu0
        %1042 = vdwg.mxu0
        %1043 = vmatprep.subr.mxu0 0.0
        %v1044 = vand.u32 %v386, 4294901760
        %1045 = vmatpush1.msra.mxu0 %v1044
        %1046 = vmatprep.subr.mxu0 0.0
        %v1047 = vand.u32 %v385, 4294901760
        %1048 = vmatpush1.msra.mxu0 %v1047
        %1049 = vmatprep.subr.mxu0 0.0
        %v1050 = vand.u32 %v384, 4294901760
        %1051 = vmatpush1.msra.mxu0 %v1050
        %1052 = vmatprep.subr.mxu0 0.0
        %v1053 = vand.u32 %v383, 4294901760
        %1054 = vmatpush1.msra.mxu0 %v1053
        %1055 = vmatprep.subr.mxu0 0.0
        %v1056 = vand.u32 %v382, 4294901760
        %1057 = vmatpush1.msra.mxu0 %v1056
        %1058 = vmatprep.subr.mxu0 0.0
        %v1059 = vand.u32 %v381, 4294901760
        %1060 = vmatpush1.msra.mxu0 %v1059
        %1061 = vmatprep.subr.mxu0 0.0
        %v1062 = vand.u32 %v380, 4294901760
        %1063 = vmatpush1.msra.mxu0 %v1062
        %1064 = vmatprep.subr.mxu0 0.0
        %v1065 = vand.u32 %v379, 4294901760
        %1066 = vmatpush1.msra.mxu0 %v1065
        %1067 = vmatprep.subr.mxu0 0.0
        %v1068 = vand.u32 %v378, 4294901760
        %1069 = vmatpush1.msra.mxu0 %v1068
        %1070 = vmatprep.subr.mxu0 0.0
        %v1071 = vand.u32 %v377, 4294901760
        %1072 = vmatpush1.msra.mxu0 %v1071
        %1073 = vmatprep.subr.mxu0 0.0
        %v1074 = vand.u32 %v376, 4294901760
        %1075 = vmatpush1.msra.mxu0 %v1074
        %1076 = vmatprep.subr.mxu0 0.0
        %v1077 = vand.u32 %v375, 4294901760
        %1078 = vmatpush1.msra.mxu0 %v1077
        %1079 = vmatprep.subr.mxu0 0.0
        %v1080 = vand.u32 %v374, 4294901760
        %1081 = vmatpush1.msra.mxu0 %v1080
        %1082 = vmatprep.subr.mxu0 0.0
        %v1083 = vand.u32 %v373, 4294901760
        %1084 = vmatpush1.msra.mxu0 %v1083
        %1085 = vmatprep.subr.mxu0 0.0
        %v1086 = vand.u32 %v372, 4294901760
        %1087 = vmatpush1.msra.mxu0 %v1086
        %1088 = vmatprep.subr.mxu0 0.0
        %v1089 = vand.u32 %v371, 4294901760
        %1090 = vmatpush1.msra.mxu0 %v1089
        %1091 = vmatprep.subr.mxu0 0.0
        %1092 = vmatpush2.msra.mxu0 0.0
        %1093 = vmatprep.subr.mxu0 0.0
        %1094 = vmatpush2.msra.mxu0 0.0
        %1095 = vmatprep.subr.mxu0 0.0
        %1096 = vmatpush2.msra.mxu0 0.0
        %1097 = vmatprep.subr.mxu0 0.0
        %1098 = vmatpush2.msra.mxu0 0.0
        %1099 = vmatprep.subr.mxu0 0.0
        %1100 = vmatpush2.msra.mxu0 0.0
        %1101 = vmatprep.subr.mxu0 0.0
        %1102 = vmatpush2.msra.mxu0 0.0
        %1103 = vmatprep.subr.mxu0 0.0
        %1104 = vmatpush2.msra.mxu0 0.0
        %1105 = vmatprep.subr.mxu0 0.0
        %1106 = vmatpush2.msra.mxu0 0.0
        %1107 = vmatprep.subr.mxu0 0.0
        %1108 = vmatpush2.msra.mxu0 0.0
        %1109 = vmatprep.subr.mxu0 0.0
        %1110 = vmatpush2.msra.mxu0 0.0
        %1111 = vmatprep.subr.mxu0 0.0
        %1112 = vmatpush2.msra.mxu0 0.0
        %1113 = vmatprep.subr.mxu0 0.0
        %1114 = vmatpush2.msra.mxu0 0.0
        %1115 = vmatprep.subr.mxu0 0.0
        %1116 = vmatpush2.msra.mxu0 0.0
        %1117 = vmatprep.subr.mxu0 0.0
        %1118 = vmatpush2.msra.mxu0 0.0
        %1119 = vmatprep.subr.mxu0 0.0
        %1120 = vmatpush2.msra.mxu0 0.0
        %1121 = vmatprep.subr.mxu0 0.0
        %1122 = vmatpush2.msra.mxu0 0.0
        %1123 = vmatprep.mubr.f32.mxu0 0.0
        %v1124 = vand.u32 %v448, 4294901760
        %1125 = vmatmul.mubr.f32.gmra.mxu0 %v1124
        %v1126 = vpop.f32.mrf.mxu0
        %v1127 = vadd.f32 %v1034, %v1126
        %v1128 = vpop.f32.mrf.mxu0
        %1129 = vmatprep.mubr.f32.mxu0 0.0
        %v1130 = vand.u32 %v449, 4294901760
        %1131 = vmatmul.mubr.f32.gmra.mxu0 %v1130
        %v1132 = vpop.f32.mrf.mxu0
        %v1133 = vadd.f32 %v1040, %v1132
        %v1134 = vpop.f32.mrf.mxu0
        %1135 = vdwg.mxu0
        %1136 = vmatprep.subr.mxu0 0.0
        %v1137 = vand.u32 %v402, 4294901760
        %1138 = vmatpush1.msra.mxu0 %v1137
        %1139 = vmatprep.subr.mxu0 0.0
        %v1140 = vand.u32 %v401, 4294901760
        %1141 = vmatpush1.msra.mxu0 %v1140
        %1142 = vmatprep.subr.mxu0 0.0
        %v1143 = vand.u32 %v400, 4294901760
        %1144 = vmatpush1.msra.mxu0 %v1143
        %1145 = vmatprep.subr.mxu0 0.0
        %v1146 = vand.u32 %v399, 4294901760
        %1147 = vmatpush1.msra.mxu0 %v1146
        %1148 = vmatprep.subr.mxu0 0.0
        %v1149 = vand.u32 %v398, 4294901760
        %1150 = vmatpush1.msra.mxu0 %v1149
        %1151 = vmatprep.subr.mxu0 0.0
        %v1152 = vand.u32 %v397, 4294901760
        %1153 = vmatpush1.msra.mxu0 %v1152
        %1154 = vmatprep.subr.mxu0 0.0
        %v1155 = vand.u32 %v396, 4294901760
        %1156 = vmatpush1.msra.mxu0 %v1155
        %1157 = vmatprep.subr.mxu0 0.0
        %v1158 = vand.u32 %v395, 4294901760
        %1159 = vmatpush1.msra.mxu0 %v1158
        %1160 = vmatprep.subr.mxu0 0.0
        %v1161 = vand.u32 %v394, 4294901760
        %1162 = vmatpush1.msra.mxu0 %v1161
        %1163 = vmatprep.subr.mxu0 0.0
        %v1164 = vand.u32 %v393, 4294901760
        %1165 = vmatpush1.msra.mxu0 %v1164
        %1166 = vmatprep.subr.mxu0 0.0
        %v1167 = vand.u32 %v392, 4294901760
        %1168 = vmatpush1.msra.mxu0 %v1167
        %1169 = vmatprep.subr.mxu0 0.0
        %v1170 = vand.u32 %v391, 4294901760
        %1171 = vmatpush1.msra.mxu0 %v1170
        %1172 = vmatprep.subr.mxu0 0.0
        %v1173 = vand.u32 %v390, 4294901760
        %1174 = vmatpush1.msra.mxu0 %v1173
        %1175 = vmatprep.subr.mxu0 0.0
        %v1176 = vand.u32 %v389, 4294901760
        %1177 = vmatpush1.msra.mxu0 %v1176
        %1178 = vmatprep.subr.mxu0 0.0
        %v1179 = vand.u32 %v388, 4294901760
        %1180 = vmatpush1.msra.mxu0 %v1179
        %1181 = vmatprep.subr.mxu0 0.0
        %v1182 = vand.u32 %v387, 4294901760
        %1183 = vmatpush1.msra.mxu0 %v1182
        %1184 = vmatprep.subr.mxu0 0.0
        %1185 = vmatpush2.msra.mxu0 0.0
        %1186 = vmatprep.subr.mxu0 0.0
        %1187 = vmatpush2.msra.mxu0 0.0
        %1188 = vmatprep.subr.mxu0 0.0
        %1189 = vmatpush2.msra.mxu0 0.0
        %1190 = vmatprep.subr.mxu0 0.0
        %1191 = vmatpush2.msra.mxu0 0.0
        %1192 = vmatprep.subr.mxu0 0.0
        %1193 = vmatpush2.msra.mxu0 0.0
        %1194 = vmatprep.subr.mxu0 0.0
        %1195 = vmatpush2.msra.mxu0 0.0
        %1196 = vmatprep.subr.mxu0 0.0
        %1197 = vmatpush2.msra.mxu0 0.0
        %1198 = vmatprep.subr.mxu0 0.0
        %1199 = vmatpush2.msra.mxu0 0.0
        %1200 = vmatprep.subr.mxu0 0.0
        %1201 = vmatpush2.msra.mxu0 0.0
        %1202 = vmatprep.subr.mxu0 0.0
        %1203 = vmatpush2.msra.mxu0 0.0
        %1204 = vmatprep.subr.mxu0 0.0
        %1205 = vmatpush2.msra.mxu0 0.0
        %1206 = vmatprep.subr.mxu0 0.0
        %1207 = vmatpush2.msra.mxu0 0.0
        %1208 = vmatprep.subr.mxu0 0.0
        %1209 = vmatpush2.msra.mxu0 0.0
        %1210 = vmatprep.subr.mxu0 0.0
        %1211 = vmatpush2.msra.mxu0 0.0
        %1212 = vmatprep.subr.mxu0 0.0
        %1213 = vmatpush2.msra.mxu0 0.0
        %1214 = vmatprep.subr.mxu0 0.0
        %1215 = vmatpush2.msra.mxu0 0.0
        %1216 = vmatprep.mubr.f32.mxu0 0.0
        %v1217 = vand.u32 %v450, 4294901760
        %v1218 = vsub.f32 %v450, %v1217
        %v1219 = vand.u32 %v1218, 4294901760
        %v1220 = vsub.f32 %v1218, %v1219
        %v1221 = vand.u32 %v1220, 4294901760
        %1222 = vmatmul.mubr.f32.gmra.mxu0 %v1221
        %v1223 = vpop.f32.mrf.mxu0
        %v1224 = vadd.f32 0.0, %v1223
        %v1225 = vpop.f32.mrf.mxu0
        %1226 = vmatprep.mubr.f32.mxu0 0.0
        %v1227 = vand.u32 %v451, 4294901760
        %v1228 = vsub.f32 %v451, %v1227
        %v1229 = vand.u32 %v1228, 4294901760
        %v1230 = vsub.f32 %v1228, %v1229
        %v1231 = vand.u32 %v1230, 4294901760
        %1232 = vmatmul.mubr.f32.gmra.mxu0 %v1231
        %v1233 = vpop.f32.mrf.mxu0
        %v1234 = vadd.f32 0.0, %v1233
        %v1235 = vpop.f32.mrf.mxu0
        %1236 = vdwg.mxu0
        %1237 = vmatprep.subr.mxu0 0.0
        %v1238 = vand.u32 %v402, 4294901760
        %v1239 = vsub.f32 %v402, %v1238
        %v1240 = vand.u32 %v1239, 4294901760
        %v1241 = vsub.f32 %v1239, %v1240
        %v1242 = vand.u32 %v1241, 4294901760
        %1243 = vmatpush1.msra.mxu0 %v1242
        %1244 = vmatprep.subr.mxu0 0.0
        %v1245 = vand.u32 %v401, 4294901760
        %v1246 = vsub.f32 %v401, %v1245
        %v1247 = vand.u32 %v1246, 4294901760
        %v1248 = vsub.f32 %v1246, %v1247
        %v1249 = vand.u32 %v1248, 4294901760
        %1250 = vmatpush1.msra.mxu0 %v1249
        %1251 = vmatprep.subr.mxu0 0.0
        %v1252 = vand.u32 %v400, 4294901760
        %v1253 = vsub.f32 %v400, %v1252
        %v1254 = vand.u32 %v1253, 4294901760
        %v1255 = vsub.f32 %v1253, %v1254
        %v1256 = vand.u32 %v1255, 4294901760
        %1257 = vmatpush1.msra.mxu0 %v1256
        %1258 = vmatprep.subr.mxu0 0.0
        %v1259 = vand.u32 %v399, 4294901760
        %v1260 = vsub.f32 %v399, %v1259
        %v1261 = vand.u32 %v1260, 4294901760
        %v1262 = vsub.f32 %v1260, %v1261
        %v1263 = vand.u32 %v1262, 4294901760
        %1264 = vmatpush1.msra.mxu0 %v1263
        %1265 = vmatprep.subr.mxu0 0.0
        %v1266 = vand.u32 %v398, 4294901760
        %v1267 = vsub.f32 %v398, %v1266
        %v1268 = vand.u32 %v1267, 4294901760
        %v1269 = vsub.f32 %v1267, %v1268
        %v1270 = vand.u32 %v1269, 4294901760
        %1271 = vmatpush1.msra.mxu0 %v1270
        %1272 = vmatprep.subr.mxu0 0.0
        %v1273 = vand.u32 %v397, 4294901760
        %v1274 = vsub.f32 %v397, %v1273
        %v1275 = vand.u32 %v1274, 4294901760
        %v1276 = vsub.f32 %v1274, %v1275
        %v1277 = vand.u32 %v1276, 4294901760
        %1278 = vmatpush1.msra.mxu0 %v1277
        %1279 = vmatprep.subr.mxu0 0.0
        %v1280 = vand.u32 %v396, 4294901760
        %v1281 = vsub.f32 %v396, %v1280
        %v1282 = vand.u32 %v1281, 4294901760
        %v1283 = vsub.f32 %v1281, %v1282
        %v1284 = vand.u32 %v1283, 4294901760
        %1285 = vmatpush1.msra.mxu0 %v1284
        %1286 = vmatprep.subr.mxu0 0.0
        %v1287 = vand.u32 %v395, 4294901760
        %v1288 = vsub.f32 %v395, %v1287
        %v1289 = vand.u32 %v1288, 4294901760
        %v1290 = vsub.f32 %v1288, %v1289
        %v1291 = vand.u32 %v1290, 4294901760
        %1292 = vmatpush1.msra.mxu0 %v1291
        %1293 = vmatprep.subr.mxu0 0.0
        %v1294 = vand.u32 %v394, 4294901760
        %v1295 = vsub.f32 %v394, %v1294
        %v1296 = vand.u32 %v1295, 4294901760
        %v1297 = vsub.f32 %v1295, %v1296
        %v1298 = vand.u32 %v1297, 4294901760
        %1299 = vmatpush1.msra.mxu0 %v1298
        %1300 = vmatprep.subr.mxu0 0.0
        %v1301 = vand.u32 %v393, 4294901760
        %v1302 = vsub.f32 %v393, %v1301
        %v1303 = vand.u32 %v1302, 4294901760
        %v1304 = vsub.f32 %v1302, %v1303
        %v1305 = vand.u32 %v1304, 4294901760
        %1306 = vmatpush1.msra.mxu0 %v1305
        %1307 = vmatprep.subr.mxu0 0.0
        %v1308 = vand.u32 %v392, 4294901760
        %v1309 = vsub.f32 %v392, %v1308
        %v1310 = vand.u32 %v1309, 4294901760
        %v1311 = vsub.f32 %v1309, %v1310
        %v1312 = vand.u32 %v1311, 4294901760
        %1313 = vmatpush1.msra.mxu0 %v1312
        %1314 = vmatprep.subr.mxu0 0.0
        %v1315 = vand.u32 %v391, 4294901760
        %v1316 = vsub.f32 %v391, %v1315
        %v1317 = vand.u32 %v1316, 4294901760
        %v1318 = vsub.f32 %v1316, %v1317
        %v1319 = vand.u32 %v1318, 4294901760
        %1320 = vmatpush1.msra.mxu0 %v1319
        %1321 = vmatprep.subr.mxu0 0.0
        %v1322 = vand.u32 %v390, 4294901760
        %v1323 = vsub.f32 %v390, %v1322
        %v1324 = vand.u32 %v1323, 4294901760
        %v1325 = vsub.f32 %v1323, %v1324
        %v1326 = vand.u32 %v1325, 4294901760
        %1327 = vmatpush1.msra.mxu0 %v1326
        %1328 = vmatprep.subr.mxu0 0.0
        %v1329 = vand.u32 %v389, 4294901760
        %v1330 = vsub.f32 %v389, %v1329
        %v1331 = vand.u32 %v1330, 4294901760
        %v1332 = vsub.f32 %v1330, %v1331
        %v1333 = vand.u32 %v1332, 4294901760
        %1334 = vmatpush1.msra.mxu0 %v1333
        %1335 = vmatprep.subr.mxu0 0.0
        %v1336 = vand.u32 %v388, 4294901760
        %v1337 = vsub.f32 %v388, %v1336
        %v1338 = vand.u32 %v1337, 4294901760
        %v1339 = vsub.f32 %v1337, %v1338
        %v1340 = vand.u32 %v1339, 4294901760
        %1341 = vmatpush1.msra.mxu0 %v1340
        %1342 = vmatprep.subr.mxu0 0.0
        %v1343 = vand.u32 %v387, 4294901760
        %v1344 = vsub.f32 %v387, %v1343
        %v1345 = vand.u32 %v1344, 4294901760
        %v1346 = vsub.f32 %v1344, %v1345
        %v1347 = vand.u32 %v1346, 4294901760
        %1348 = vmatpush1.msra.mxu0 %v1347
        %1349 = vmatprep.subr.mxu0 0.0
        %1350 = vmatpush2.msra.mxu0 0.0
        %1351 = vmatprep.subr.mxu0 0.0
        %1352 = vmatpush2.msra.mxu0 0.0
        %1353 = vmatprep.subr.mxu0 0.0
        %1354 = vmatpush2.msra.mxu0 0.0
        %1355 = vmatprep.subr.mxu0 0.0
        %1356 = vmatpush2.msra.mxu0 0.0
        %1357 = vmatprep.subr.mxu0 0.0
        %1358 = vmatpush2.msra.mxu0 0.0
        %1359 = vmatprep.subr.mxu0 0.0
        %1360 = vmatpush2.msra.mxu0 0.0
        %1361 = vmatprep.subr.mxu0 0.0
        %1362 = vmatpush2.msra.mxu0 0.0
        %1363 = vmatprep.subr.mxu0 0.0
        %1364 = vmatpush2.msra.mxu0 0.0
        %1365 = vmatprep.subr.mxu0 0.0
        %1366 = vmatpush2.msra.mxu0 0.0
        %1367 = vmatprep.subr.mxu0 0.0
        %1368 = vmatpush2.msra.mxu0 0.0
        %1369 = vmatprep.subr.mxu0 0.0
        %1370 = vmatpush2.msra.mxu0 0.0
        %1371 = vmatprep.subr.mxu0 0.0
        %1372 = vmatpush2.msra.mxu0 0.0
        %1373 = vmatprep.subr.mxu0 0.0
        %1374 = vmatpush2.msra.mxu0 0.0
        %1375 = vmatprep.subr.mxu0 0.0
        %1376 = vmatpush2.msra.mxu0 0.0
        %1377 = vmatprep.subr.mxu0 0.0
        %1378 = vmatpush2.msra.mxu0 0.0
        %1379 = vmatprep.subr.mxu0 0.0
        %1380 = vmatpush2.msra.mxu0 0.0
        %1381 = vmatprep.mubr.f32.mxu0 0.0
        %v1382 = vand.u32 %v450, 4294901760
        %1383 = vmatmul.mubr.f32.gmra.mxu0 %v1382
        %v1384 = vpop.f32.mrf.mxu0
        %v1385 = vadd.f32 %v1224, %v1384
        %v1386 = vpop.f32.mrf.mxu0
        %1387 = vmatprep.mubr.f32.mxu0 0.0
        %v1388 = vand.u32 %v451, 4294901760
        %1389 = vmatmul.mubr.f32.gmra.mxu0 %v1388
        %v1390 = vpop.f32.mrf.mxu0
        %v1391 = vadd.f32 %v1234, %v1390
        %v1392 = vpop.f32.mrf.mxu0
        %1393 = vdwg.mxu0
        %1394 = vmatprep.subr.mxu0 0.0
        %v1395 = vand.u32 %v402, 4294901760
        %v1396 = vsub.f32 %v402, %v1395
        %1397 = vmatpush1.msra.mxu0 %v1396
        %1398 = vmatprep.subr.mxu0 0.0
        %v1399 = vand.u32 %v401, 4294901760
        %v1400 = vsub.f32 %v401, %v1399
        %1401 = vmatpush1.msra.mxu0 %v1400
        %1402 = vmatprep.subr.mxu0 0.0
        %v1403 = vand.u32 %v400, 4294901760
        %v1404 = vsub.f32 %v400, %v1403
        %1405 = vmatpush1.msra.mxu0 %v1404
        %1406 = vmatprep.subr.mxu0 0.0
        %v1407 = vand.u32 %v399, 4294901760
        %v1408 = vsub.f32 %v399, %v1407
        %1409 = vmatpush1.msra.mxu0 %v1408
        %1410 = vmatprep.subr.mxu0 0.0
        %v1411 = vand.u32 %v398, 4294901760
        %v1412 = vsub.f32 %v398, %v1411
        %1413 = vmatpush1.msra.mxu0 %v1412
        %1414 = vmatprep.subr.mxu0 0.0
        %v1415 = vand.u32 %v397, 4294901760
        %v1416 = vsub.f32 %v397, %v1415
        %1417 = vmatpush1.msra.mxu0 %v1416
        %1418 = vmatprep.subr.mxu0 0.0
        %v1419 = vand.u32 %v396, 4294901760
        %v1420 = vsub.f32 %v396, %v1419
        %1421 = vmatpush1.msra.mxu0 %v1420
        %1422 = vmatprep.subr.mxu0 0.0
        %v1423 = vand.u32 %v395, 4294901760
        %v1424 = vsub.f32 %v395, %v1423
        %1425 = vmatpush1.msra.mxu0 %v1424
        %1426 = vmatprep.subr.mxu0 0.0
        %v1427 = vand.u32 %v394, 4294901760
        %v1428 = vsub.f32 %v394, %v1427
        %1429 = vmatpush1.msra.mxu0 %v1428
        %1430 = vmatprep.subr.mxu0 0.0
        %v1431 = vand.u32 %v393, 4294901760
        %v1432 = vsub.f32 %v393, %v1431
        %1433 = vmatpush1.msra.mxu0 %v1432
        %1434 = vmatprep.subr.mxu0 0.0
        %v1435 = vand.u32 %v392, 4294901760
        %v1436 = vsub.f32 %v392, %v1435
        %1437 = vmatpush1.msra.mxu0 %v1436
        %1438 = vmatprep.subr.mxu0 0.0
        %v1439 = vand.u32 %v391, 4294901760
        %v1440 = vsub.f32 %v391, %v1439
        %1441 = vmatpush1.msra.mxu0 %v1440
        %1442 = vmatprep.subr.mxu0 0.0
        %v1443 = vand.u32 %v390, 4294901760
        %v1444 = vsub.f32 %v390, %v1443
        %1445 = vmatpush1.msra.mxu0 %v1444
        %1446 = vmatprep.subr.mxu0 0.0
        %v1447 = vand.u32 %v389, 4294901760
        %v1448 = vsub.f32 %v389, %v1447
        %1449 = vmatpush1.msra.mxu0 %v1448
        %1450 = vmatprep.subr.mxu0 0.0
        %v1451 = vand.u32 %v388, 4294901760
        %v1452 = vsub.f32 %v388, %v1451
        %1453 = vmatpush1.msra.mxu0 %v1452
        %1454 = vmatprep.subr.mxu0 0.0
        %v1455 = vand.u32 %v387, 4294901760
        %v1456 = vsub.f32 %v387, %v1455
        %1457 = vmatpush1.msra.mxu0 %v1456
        %1458 = vmatprep.subr.mxu0 0.0
        %1459 = vmatpush2.msra.mxu0 0.0
        %1460 = vmatprep.subr.mxu0 0.0
        %1461 = vmatpush2.msra.mxu0 0.0
        %1462 = vmatprep.subr.mxu0 0.0
        %1463 = vmatpush2.msra.mxu0 0.0
        %1464 = vmatprep.subr.mxu0 0.0
        %1465 = vmatpush2.msra.mxu0 0.0
        %1466 = vmatprep.subr.mxu0 0.0
        %1467 = vmatpush2.msra.mxu0 0.0
        %1468 = vmatprep.subr.mxu0 0.0
        %1469 = vmatpush2.msra.mxu0 0.0
        %1470 = vmatprep.subr.mxu0 0.0
        %1471 = vmatpush2.msra.mxu0 0.0
        %1472 = vmatprep.subr.mxu0 0.0
        %1473 = vmatpush2.msra.mxu0 0.0
        %1474 = vmatprep.subr.mxu0 0.0
        %1475 = vmatpush2.msra.mxu0 0.0
        %1476 = vmatprep.subr.mxu0 0.0
        %1477 = vmatpush2.msra.mxu0 0.0
        %1478 = vmatprep.subr.mxu0 0.0
        %1479 = vmatpush2.msra.mxu0 0.0
        %1480 = vmatprep.subr.mxu0 0.0
        %1481 = vmatpush2.msra.mxu0 0.0
        %1482 = vmatprep.subr.mxu0 0.0
        %1483 = vmatpush2.msra.mxu0 0.0
        %1484 = vmatprep.subr.mxu0 0.0
        %1485 = vmatpush2.msra.mxu0 0.0
        %1486 = vmatprep.subr.mxu0 0.0
        %1487 = vmatpush2.msra.mxu0 0.0
        %1488 = vmatprep.subr.mxu0 0.0
        %1489 = vmatpush2.msra.mxu0 0.0
        %1490 = vmatprep.mubr.f32.mxu0 0.0
        %v1491 = vand.u32 %v450, 4294901760
        %v1492 = vsub.f32 %v450, %v1491
        %1493 = vmatmul.mubr.f32.gmra.mxu0 %v1492
        %v1494 = vpop.f32.mrf.mxu0
        %v1495 = vadd.f32 %v1385, %v1494
        %v1496 = vpop.f32.mrf.mxu0
        %1497 = vmatprep.mubr.f32.mxu0 0.0
        %v1498 = vand.u32 %v451, 4294901760
        %v1499 = vsub.f32 %v451, %v1498
        %1500 = vmatmul.mubr.f32.gmra.mxu0 %v1499
        %v1501 = vpop.f32.mrf.mxu0
        %v1502 = vadd.f32 %v1391, %v1501
        %v1503 = vpop.f32.mrf.mxu0
        %1504 = vdwg.mxu0
        %1505 = vmatprep.subr.mxu0 0.0
        %v1506 = vand.u32 %v402, 4294901760
        %1507 = vmatpush1.msra.mxu0 %v1506
        %1508 = vmatprep.subr.mxu0 0.0
        %v1509 = vand.u32 %v401, 4294901760
        %1510 = vmatpush1.msra.mxu0 %v1509
        %1511 = vmatprep.subr.mxu0 0.0
        %v1512 = vand.u32 %v400, 4294901760
        %1513 = vmatpush1.msra.mxu0 %v1512
        %1514 = vmatprep.subr.mxu0 0.0
        %v1515 = vand.u32 %v399, 4294901760
        %1516 = vmatpush1.msra.mxu0 %v1515
        %1517 = vmatprep.subr.mxu0 0.0
        %v1518 = vand.u32 %v398, 4294901760
        %1519 = vmatpush1.msra.mxu0 %v1518
        %1520 = vmatprep.subr.mxu0 0.0
        %v1521 = vand.u32 %v397, 4294901760
        %1522 = vmatpush1.msra.mxu0 %v1521
        %1523 = vmatprep.subr.mxu0 0.0
        %v1524 = vand.u32 %v396, 4294901760
        %1525 = vmatpush1.msra.mxu0 %v1524
        %1526 = vmatprep.subr.mxu0 0.0
        %v1527 = vand.u32 %v395, 4294901760
        %1528 = vmatpush1.msra.mxu0 %v1527
        %1529 = vmatprep.subr.mxu0 0.0
        %v1530 = vand.u32 %v394, 4294901760
        %1531 = vmatpush1.msra.mxu0 %v1530
        %1532 = vmatprep.subr.mxu0 0.0
        %v1533 = vand.u32 %v393, 4294901760
        %1534 = vmatpush1.msra.mxu0 %v1533
        %1535 = vmatprep.subr.mxu0 0.0
        %v1536 = vand.u32 %v392, 4294901760
        %1537 = vmatpush1.msra.mxu0 %v1536
        %1538 = vmatprep.subr.mxu0 0.0
        %v1539 = vand.u32 %v391, 4294901760
        %1540 = vmatpush1.msra.mxu0 %v1539
        %1541 = vmatprep.subr.mxu0 0.0
        %v1542 = vand.u32 %v390, 4294901760
        %1543 = vmatpush1.msra.mxu0 %v1542
        %1544 = vmatprep.subr.mxu0 0.0
        %v1545 = vand.u32 %v389, 4294901760
        %1546 = vmatpush1.msra.mxu0 %v1545
        %1547 = vmatprep.subr.mxu0 0.0
        %v1548 = vand.u32 %v388, 4294901760
        %1549 = vmatpush1.msra.mxu0 %v1548
        %1550 = vmatprep.subr.mxu0 0.0
        %v1551 = vand.u32 %v387, 4294901760
        %1552 = vmatpush1.msra.mxu0 %v1551
        %1553 = vmatprep.subr.mxu0 0.0
        %1554 = vmatpush2.msra.mxu0 0.0
        %1555 = vmatprep.subr.mxu0 0.0
        %1556 = vmatpush2.msra.mxu0 0.0
        %1557 = vmatprep.subr.mxu0 0.0
        %1558 = vmatpush2.msra.mxu0 0.0
        %1559 = vmatprep.subr.mxu0 0.0
        %1560 = vmatpush2.msra.mxu0 0.0
        %1561 = vmatprep.subr.mxu0 0.0
        %1562 = vmatpush2.msra.mxu0 0.0
        %1563 = vmatprep.subr.mxu0 0.0
        %1564 = vmatpush2.msra.mxu0 0.0
        %1565 = vmatprep.subr.mxu0 0.0
        %1566 = vmatpush2.msra.mxu0 0.0
        %1567 = vmatprep.subr.mxu0 0.0
        %1568 = vmatpush2.msra.mxu0 0.0
        %1569 = vmatprep.subr.mxu0 0.0
        %1570 = vmatpush2.msra.mxu0 0.0
        %1571 = vmatprep.subr.mxu0 0.0
        %1572 = vmatpush2.msra.mxu0 0.0
        %1573 = vmatprep.subr.mxu0 0.0
        %1574 = vmatpush2.msra.mxu0 0.0
        %1575 = vmatprep.subr.mxu0 0.0
        %1576 = vmatpush2.msra.mxu0 0.0
        %1577 = vmatprep.subr.mxu0 0.0
        %1578 = vmatpush2.msra.mxu0 0.0
        %1579 = vmatprep.subr.mxu0 0.0
        %1580 = vmatpush2.msra.mxu0 0.0
        %1581 = vmatprep.subr.mxu0 0.0
        %1582 = vmatpush2.msra.mxu0 0.0
        %1583 = vmatprep.subr.mxu0 0.0
        %1584 = vmatpush2.msra.mxu0 0.0
        %1585 = vmatprep.mubr.f32.mxu0 0.0
        %v1586 = vand.u32 %v450, 4294901760
        %v1587 = vsub.f32 %v450, %v1586
        %v1588 = vand.u32 %v1587, 4294901760
        %1589 = vmatmul.mubr.f32.gmra.mxu0 %v1588
        %v1590 = vpop.f32.mrf.mxu0
        %v1591 = vadd.f32 %v1495, %v1590
        %v1592 = vpop.f32.mrf.mxu0
        %1593 = vmatprep.mubr.f32.mxu0 0.0
        %v1594 = vand.u32 %v451, 4294901760
        %v1595 = vsub.f32 %v451, %v1594
        %v1596 = vand.u32 %v1595, 4294901760
        %1597 = vmatmul.mubr.f32.gmra.mxu0 %v1596
        %v1598 = vpop.f32.mrf.mxu0
        %v1599 = vadd.f32 %v1502, %v1598
        %v1600 = vpop.f32.mrf.mxu0
        %1601 = vdwg.mxu0
        %1602 = vmatprep.subr.mxu0 0.0
        %v1603 = vand.u32 %v402, 4294901760
        %v1604 = vsub.f32 %v402, %v1603
        %v1605 = vand.u32 %v1604, 4294901760
        %1606 = vmatpush1.msra.mxu0 %v1605
        %1607 = vmatprep.subr.mxu0 0.0
        %v1608 = vand.u32 %v401, 4294901760
        %v1609 = vsub.f32 %v401, %v1608
        %v1610 = vand.u32 %v1609, 4294901760
        %1611 = vmatpush1.msra.mxu0 %v1610
        %1612 = vmatprep.subr.mxu0 0.0
        %v1613 = vand.u32 %v400, 4294901760
        %v1614 = vsub.f32 %v400, %v1613
        %v1615 = vand.u32 %v1614, 4294901760
        %1616 = vmatpush1.msra.mxu0 %v1615
        %1617 = vmatprep.subr.mxu0 0.0
        %v1618 = vand.u32 %v399, 4294901760
        %v1619 = vsub.f32 %v399, %v1618
        %v1620 = vand.u32 %v1619, 4294901760
        %1621 = vmatpush1.msra.mxu0 %v1620
        %1622 = vmatprep.subr.mxu0 0.0
        %v1623 = vand.u32 %v398, 4294901760
        %v1624 = vsub.f32 %v398, %v1623
        %v1625 = vand.u32 %v1624, 4294901760
        %1626 = vmatpush1.msra.mxu0 %v1625
        %1627 = vmatprep.subr.mxu0 0.0
        %v1628 = vand.u32 %v397, 4294901760
        %v1629 = vsub.f32 %v397, %v1628
        %v1630 = vand.u32 %v1629, 4294901760
        %1631 = vmatpush1.msra.mxu0 %v1630
        %1632 = vmatprep.subr.mxu0 0.0
        %v1633 = vand.u32 %v396, 4294901760
        %v1634 = vsub.f32 %v396, %v1633
        %v1635 = vand.u32 %v1634, 4294901760
        %1636 = vmatpush1.msra.mxu0 %v1635
        %1637 = vmatprep.subr.mxu0 0.0
        %v1638 = vand.u32 %v395, 4294901760
        %v1639 = vsub.f32 %v395, %v1638
        %v1640 = vand.u32 %v1639, 4294901760
        %1641 = vmatpush1.msra.mxu0 %v1640
        %1642 = vmatprep.subr.mxu0 0.0
        %v1643 = vand.u32 %v394, 4294901760
        %v1644 = vsub.f32 %v394, %v1643
        %v1645 = vand.u32 %v1644, 4294901760
        %1646 = vmatpush1.msra.mxu0 %v1645
        %1647 = vmatprep.subr.mxu0 0.0
        %v1648 = vand.u32 %v393, 4294901760
        %v1649 = vsub.f32 %v393, %v1648
        %v1650 = vand.u32 %v1649, 4294901760
        %1651 = vmatpush1.msra.mxu0 %v1650
        %1652 = vmatprep.subr.mxu0 0.0
        %v1653 = vand.u32 %v392, 4294901760
        %v1654 = vsub.f32 %v392, %v1653
        %v1655 = vand.u32 %v1654, 4294901760
        %1656 = vmatpush1.msra.mxu0 %v1655
        %1657 = vmatprep.subr.mxu0 0.0
        %v1658 = vand.u32 %v391, 4294901760
        %v1659 = vsub.f32 %v391, %v1658
        %v1660 = vand.u32 %v1659, 4294901760
        %1661 = vmatpush1.msra.mxu0 %v1660
        %1662 = vmatprep.subr.mxu0 0.0
        %v1663 = vand.u32 %v390, 4294901760
        %v1664 = vsub.f32 %v390, %v1663
        %v1665 = vand.u32 %v1664, 4294901760
        %1666 = vmatpush1.msra.mxu0 %v1665
        %1667 = vmatprep.subr.mxu0 0.0
        %v1668 = vand.u32 %v389, 4294901760
        %v1669 = vsub.f32 %v389, %v1668
        %v1670 = vand.u32 %v1669, 4294901760
        %1671 = vmatpush1.msra.mxu0 %v1670
        %1672 = vmatprep.subr.mxu0 0.0
        %v1673 = vand.u32 %v388, 4294901760
        %v1674 = vsub.f32 %v388, %v1673
        %v1675 = vand.u32 %v1674, 4294901760
        %1676 = vmatpush1.msra.mxu0 %v1675
        %1677 = vmatprep.subr.mxu0 0.0
        %v1678 = vand.u32 %v387, 4294901760
        %v1679 = vsub.f32 %v387, %v1678
        %v1680 = vand.u32 %v1679, 4294901760
        %1681 = vmatpush1.msra.mxu0 %v1680
        %1682 = vmatprep.subr.mxu0 0.0
        %1683 = vmatpush2.msra.mxu0 0.0
        %1684 = vmatprep.subr.mxu0 0.0
        %1685 = vmatpush2.msra.mxu0 0.0
        %1686 = vmatprep.subr.mxu0 0.0
        %1687 = vmatpush2.msra.mxu0 0.0
        %1688 = vmatprep.subr.mxu0 0.0
        %1689 = vmatpush2.msra.mxu0 0.0
        %1690 = vmatprep.subr.mxu0 0.0
        %1691 = vmatpush2.msra.mxu0 0.0
        %1692 = vmatprep.subr.mxu0 0.0
        %1693 = vmatpush2.msra.mxu0 0.0
        %1694 = vmatprep.subr.mxu0 0.0
        %1695 = vmatpush2.msra.mxu0 0.0
        %1696 = vmatprep.subr.mxu0 0.0
        %1697 = vmatpush2.msra.mxu0 0.0
        %1698 = vmatprep.subr.mxu0 0.0
        %1699 = vmatpush2.msra.mxu0 0.0
        %1700 = vmatprep.subr.mxu0 0.0
        %1701 = vmatpush2.msra.mxu0 0.0
        %1702 = vmatprep.subr.mxu0 0.0
        %1703 = vmatpush2.msra.mxu0 0.0
        %1704 = vmatprep.subr.mxu0 0.0
        %1705 = vmatpush2.msra.mxu0 0.0
        %1706 = vmatprep.subr.mxu0 0.0
        %1707 = vmatpush2.msra.mxu0 0.0
        %1708 = vmatprep.subr.mxu0 0.0
        %1709 = vmatpush2.msra.mxu0 0.0
        %1710 = vmatprep.subr.mxu0 0.0
        %1711 = vmatpush2.msra.mxu0 0.0
        %1712 = vmatprep.subr.mxu0 0.0
        %1713 = vmatpush2.msra.mxu0 0.0
        %1714 = vmatprep.mubr.f32.mxu0 0.0
        %v1715 = vand.u32 %v450, 4294901760
        %1716 = vmatmul.mubr.f32.gmra.mxu0 %v1715
        %v1717 = vpop.f32.mrf.mxu0
        %v1718 = vadd.f32 %v1591, %v1717
        %v1719 = vpop.f32.mrf.mxu0
        %1720 = vmatprep.mubr.f32.mxu0 0.0
        %v1721 = vand.u32 %v451, 4294901760
        %1722 = vmatmul.mubr.f32.gmra.mxu0 %v1721
        %v1723 = vpop.f32.mrf.mxu0
        %v1724 = vadd.f32 %v1599, %v1723
        %v1725 = vpop.f32.mrf.mxu0
        %1726 = vdwg.mxu0
        %1727 = vmatprep.subr.mxu0 0.0
        %v1728 = vand.u32 %v402, 4294901760
        %1729 = vmatpush1.msra.mxu0 %v1728
        %1730 = vmatprep.subr.mxu0 0.0
        %v1731 = vand.u32 %v401, 4294901760
        %1732 = vmatpush1.msra.mxu0 %v1731
        %1733 = vmatprep.subr.mxu0 0.0
        %v1734 = vand.u32 %v400, 4294901760
        %1735 = vmatpush1.msra.mxu0 %v1734
        %1736 = vmatprep.subr.mxu0 0.0
        %v1737 = vand.u32 %v399, 4294901760
        %1738 = vmatpush1.msra.mxu0 %v1737
        %1739 = vmatprep.subr.mxu0 0.0
        %v1740 = vand.u32 %v398, 4294901760
        %1741 = vmatpush1.msra.mxu0 %v1740
        %1742 = vmatprep.subr.mxu0 0.0
        %v1743 = vand.u32 %v397, 4294901760
        %1744 = vmatpush1.msra.mxu0 %v1743
        %1745 = vmatprep.subr.mxu0 0.0
        %v1746 = vand.u32 %v396, 4294901760
        %1747 = vmatpush1.msra.mxu0 %v1746
        %1748 = vmatprep.subr.mxu0 0.0
        %v1749 = vand.u32 %v395, 4294901760
        %1750 = vmatpush1.msra.mxu0 %v1749
        %1751 = vmatprep.subr.mxu0 0.0
        %v1752 = vand.u32 %v394, 4294901760
        %1753 = vmatpush1.msra.mxu0 %v1752
        %1754 = vmatprep.subr.mxu0 0.0
        %v1755 = vand.u32 %v393, 4294901760
        %1756 = vmatpush1.msra.mxu0 %v1755
        %1757 = vmatprep.subr.mxu0 0.0
        %v1758 = vand.u32 %v392, 4294901760
        %1759 = vmatpush1.msra.mxu0 %v1758
        %1760 = vmatprep.subr.mxu0 0.0
        %v1761 = vand.u32 %v391, 4294901760
        %1762 = vmatpush1.msra.mxu0 %v1761
        %1763 = vmatprep.subr.mxu0 0.0
        %v1764 = vand.u32 %v390, 4294901760
        %1765 = vmatpush1.msra.mxu0 %v1764
        %1766 = vmatprep.subr.mxu0 0.0
        %v1767 = vand.u32 %v389, 4294901760
        %1768 = vmatpush1.msra.mxu0 %v1767
        %1769 = vmatprep.subr.mxu0 0.0
        %v1770 = vand.u32 %v388, 4294901760
        %1771 = vmatpush1.msra.mxu0 %v1770
        %1772 = vmatprep.subr.mxu0 0.0
        %v1773 = vand.u32 %v387, 4294901760
        %1774 = vmatpush1.msra.mxu0 %v1773
        %1775 = vmatprep.subr.mxu0 0.0
        %1776 = vmatpush2.msra.mxu0 0.0
        %1777 = vmatprep.subr.mxu0 0.0
        %1778 = vmatpush2.msra.mxu0 0.0
        %1779 = vmatprep.subr.mxu0 0.0
        %1780 = vmatpush2.msra.mxu0 0.0
        %1781 = vmatprep.subr.mxu0 0.0
        %1782 = vmatpush2.msra.mxu0 0.0
        %1783 = vmatprep.subr.mxu0 0.0
        %1784 = vmatpush2.msra.mxu0 0.0
        %1785 = vmatprep.subr.mxu0 0.0
        %1786 = vmatpush2.msra.mxu0 0.0
        %1787 = vmatprep.subr.mxu0 0.0
        %1788 = vmatpush2.msra.mxu0 0.0
        %1789 = vmatprep.subr.mxu0 0.0
        %1790 = vmatpush2.msra.mxu0 0.0
        %1791 = vmatprep.subr.mxu0 0.0
        %1792 = vmatpush2.msra.mxu0 0.0
        %1793 = vmatprep.subr.mxu0 0.0
        %1794 = vmatpush2.msra.mxu0 0.0
        %1795 = vmatprep.subr.mxu0 0.0
        %1796 = vmatpush2.msra.mxu0 0.0
        %1797 = vmatprep.subr.mxu0 0.0
        %1798 = vmatpush2.msra.mxu0 0.0
        %1799 = vmatprep.subr.mxu0 0.0
        %1800 = vmatpush2.msra.mxu0 0.0
        %1801 = vmatprep.subr.mxu0 0.0
        %1802 = vmatpush2.msra.mxu0 0.0
        %1803 = vmatprep.subr.mxu0 0.0
        %1804 = vmatpush2.msra.mxu0 0.0
        %1805 = vmatprep.subr.mxu0 0.0
        %1806 = vmatpush2.msra.mxu0 0.0
        %1807 = vmatprep.mubr.f32.mxu0 0.0
        %v1808 = vand.u32 %v450, 4294901760
        %1809 = vmatmul.mubr.f32.gmra.mxu0 %v1808
        %v1810 = vpop.f32.mrf.mxu0
        %v1811 = vadd.f32 %v1718, %v1810
        %v1812 = vpop.f32.mrf.mxu0
        %1813 = vmatprep.mubr.f32.mxu0 0.0
        %v1814 = vand.u32 %v451, 4294901760
        %1815 = vmatmul.mubr.f32.gmra.mxu0 %v1814
        %v1816 = vpop.f32.mrf.mxu0
        %v1817 = vadd.f32 %v1724, %v1816
        %v1818 = vpop.f32.mrf.mxu0
        %1819 = vdwg.mxu0
        %v1820 = vand.u32 2147483647, %v1127
        %v1821 = vand.u32 2147483647, %v1133
        %v1822 = vadd.f32 %v1820, 0.0
        %v1823 = vadd.f32 %v1821, 0.0
        %v1824 = vand.u32 2147483647, %v1811
        %v1825 = vand.u32 2147483647, %v1817
        %v1826 = vadd.f32 %v1824, 0.0
        %v1827 = vadd.f32 %v1825, 0.0
        %s1828 = scalar_lea.vmem %s301, 16 [#allocation2]
        %v1829 = vld [vmem:[%s1828] sm:$0xff]
        %v1830 = vld [vmem:[%s1828 + $0x8] sm:$0xff]
        %v1831 = vld [vmem:[%s369 + $0x1] sm:$0x1]
        %v1832 = vld [vmem:[%s369 + $0x5] sm:$0x1]
        %v1833 = vrot.slane %v1829, 7
        %v1834 = vrot.slane %v1830, 7
        %v1835 = vsel %vm416, %v1833, %v1834
        %v1836 = vsel %vm416, %v1834, %v1833
        %v1837 = vlaneseq
        %v1838 = vshrl.u32 %v1837, 7
        %v1839 = vsub.s32 0, %v1838
        %v1840 = vrot.slane %v1831, %v1839
        %v1841 = vsel %vm421, %v1840, %v1836
        %v1842 = vsel %vm422, %v1840, %v1835
        %v1843 = vrot.slane %v1829, 1
        %v1844 = vrot.slane %v1830, 1
        %v1845 = vsel %vm431, %v1843, %v1844
        %v1846 = vsel %vm431, %v1844, %v1843
        %v1847 = vlaneseq
        %v1848 = vshrl.u32 %v1847, 7
        %v1849 = vsub.s32 0, %v1848
        %v1850 = vrot.slane %v1832, %v1849
        %v1851 = vsel %vm436, %v1850, %v1845
        %v1852 = vsel %vm437, %v1850, %v1846
        %v1853 = vmul.f32 %v1829, 2.0
        %v1854 = vmul.f32 %v1830, 2.0
        %v1855 = vadd.f32 %v1841, %v1853
        %v1856 = vadd.f32 %v1842, %v1854
        %v1857 = vadd.f32 %v1855, %v1851
        %v1858 = vadd.f32 %v1856, %v1852
        %v1859 = vsub.f32 %v1851, %v1841
        %v1860 = vsub.f32 %v1852, %v1842
        %1861 = vmatprep.subr.mxu0 0.0
        %v1862 = vand.u32 %v386, 4294901760
        %1863 = vmatpush1.msra.mxu0 %v1862
        %1864 = vmatprep.subr.mxu0 0.0
        %v1865 = vand.u32 %v385, 4294901760
        %1866 = vmatpush1.msra.mxu0 %v1865
        %1867 = vmatprep.subr.mxu0 0.0
        %v1868 = vand.u32 %v384, 4294901760
        %1869 = vmatpush1.msra.mxu0 %v1868
        %1870 = vmatprep.subr.mxu0 0.0
        %v1871 = vand.u32 %v383, 4294901760
        %1872 = vmatpush1.msra.mxu0 %v1871
        %1873 = vmatprep.subr.mxu0 0.0
        %v1874 = vand.u32 %v382, 4294901760
        %1875 = vmatpush1.msra.mxu0 %v1874
        %1876 = vmatprep.subr.mxu0 0.0
        %v1877 = vand.u32 %v381, 4294901760
        %1878 = vmatpush1.msra.mxu0 %v1877
        %1879 = vmatprep.subr.mxu0 0.0
        %v1880 = vand.u32 %v380, 4294901760
        %1881 = vmatpush1.msra.mxu0 %v1880
        %1882 = vmatprep.subr.mxu0 0.0
        %v1883 = vand.u32 %v379, 4294901760
        %1884 = vmatpush1.msra.mxu0 %v1883
        %1885 = vmatprep.subr.mxu0 0.0
        %v1886 = vand.u32 %v378, 4294901760
        %1887 = vmatpush1.msra.mxu0 %v1886
        %1888 = vmatprep.subr.mxu0 0.0
        %v1889 = vand.u32 %v377, 4294901760
        %1890 = vmatpush1.msra.mxu0 %v1889
        %1891 = vmatprep.subr.mxu0 0.0
        %v1892 = vand.u32 %v376, 4294901760
        %1893 = vmatpush1.msra.mxu0 %v1892
        %1894 = vmatprep.subr.mxu0 0.0
        %v1895 = vand.u32 %v375, 4294901760
        %1896 = vmatpush1.msra.mxu0 %v1895
        %1897 = vmatprep.subr.mxu0 0.0
        %v1898 = vand.u32 %v374, 4294901760
        %1899 = vmatpush1.msra.mxu0 %v1898
        %1900 = vmatprep.subr.mxu0 0.0
        %v1901 = vand.u32 %v373, 4294901760
        %1902 = vmatpush1.msra.mxu0 %v1901
        %1903 = vmatprep.subr.mxu0 0.0
        %v1904 = vand.u32 %v372, 4294901760
        %1905 = vmatpush1.msra.mxu0 %v1904
        %1906 = vmatprep.subr.mxu0 0.0
        %v1907 = vand.u32 %v371, 4294901760
        %1908 = vmatpush1.msra.mxu0 %v1907
        %1909 = vmatprep.subr.mxu0 0.0
        %1910 = vmatpush2.msra.mxu0 0.0
        %1911 = vmatprep.subr.mxu0 0.0
        %1912 = vmatpush2.msra.mxu0 0.0
        %1913 = vmatprep.subr.mxu0 0.0
        %1914 = vmatpush2.msra.mxu0 0.0
        %1915 = vmatprep.subr.mxu0 0.0
        %1916 = vmatpush2.msra.mxu0 0.0
        %1917 = vmatprep.subr.mxu0 0.0
        %1918 = vmatpush2.msra.mxu0 0.0
        %1919 = vmatprep.subr.mxu0 0.0
        %1920 = vmatpush2.msra.mxu0 0.0
        %1921 = vmatprep.subr.mxu0 0.0
        %1922 = vmatpush2.msra.mxu0 0.0
        %1923 = vmatprep.subr.mxu0 0.0
        %1924 = vmatpush2.msra.mxu0 0.0
        %1925 = vmatprep.subr.mxu0 0.0
        %1926 = vmatpush2.msra.mxu0 0.0
        %1927 = vmatprep.subr.mxu0 0.0
        %1928 = vmatpush2.msra.mxu0 0.0
        %1929 = vmatprep.subr.mxu0 0.0
        %1930 = vmatpush2.msra.mxu0 0.0
        %1931 = vmatprep.subr.mxu0 0.0
        %1932 = vmatpush2.msra.mxu0 0.0
        %1933 = vmatprep.subr.mxu0 0.0
        %1934 = vmatpush2.msra.mxu0 0.0
        %1935 = vmatprep.subr.mxu0 0.0
        %1936 = vmatpush2.msra.mxu0 0.0
        %1937 = vmatprep.subr.mxu0 0.0
        %1938 = vmatpush2.msra.mxu0 0.0
        %1939 = vmatprep.subr.mxu0 0.0
        %1940 = vmatpush2.msra.mxu0 0.0
        %1941 = vmatprep.mubr.f32.mxu0 0.0
        %v1942 = vand.u32 %v1857, 4294901760
        %v1943 = vsub.f32 %v1857, %v1942
        %v1944 = vand.u32 %v1943, 4294901760
        %v1945 = vsub.f32 %v1943, %v1944
        %v1946 = vand.u32 %v1945, 4294901760
        %1947 = vmatmul.mubr.f32.gmra.mxu0 %v1946
        %v1948 = vpop.f32.mrf.mxu0
        %v1949 = vadd.f32 0.0, %v1948
        %v1950 = vpop.f32.mrf.mxu0
        %1951 = vmatprep.mubr.f32.mxu0 0.0
        %v1952 = vand.u32 %v1858, 4294901760
        %v1953 = vsub.f32 %v1858, %v1952
        %v1954 = vand.u32 %v1953, 4294901760
        %v1955 = vsub.f32 %v1953, %v1954
        %v1956 = vand.u32 %v1955, 4294901760
        %1957 = vmatmul.mubr.f32.gmra.mxu0 %v1956
        %v1958 = vpop.f32.mrf.mxu0
        %v1959 = vadd.f32 0.0, %v1958
        %v1960 = vpop.f32.mrf.mxu0
        %1961 = vdwg.mxu0
        %1962 = vmatprep.subr.mxu0 0.0
        %v1963 = vand.u32 %v386, 4294901760
        %v1964 = vsub.f32 %v386, %v1963
        %v1965 = vand.u32 %v1964, 4294901760
        %v1966 = vsub.f32 %v1964, %v1965
        %v1967 = vand.u32 %v1966, 4294901760
        %1968 = vmatpush1.msra.mxu0 %v1967
        %1969 = vmatprep.subr.mxu0 0.0
        %v1970 = vand.u32 %v385, 4294901760
        %v1971 = vsub.f32 %v385, %v1970
        %v1972 = vand.u32 %v1971, 4294901760
        %v1973 = vsub.f32 %v1971, %v1972
        %v1974 = vand.u32 %v1973, 4294901760
        %1975 = vmatpush1.msra.mxu0 %v1974
        %1976 = vmatprep.subr.mxu0 0.0
        %v1977 = vand.u32 %v384, 4294901760
        %v1978 = vsub.f32 %v384, %v1977
        %v1979 = vand.u32 %v1978, 4294901760
        %v1980 = vsub.f32 %v1978, %v1979
        %v1981 = vand.u32 %v1980, 4294901760
        %1982 = vmatpush1.msra.mxu0 %v1981
        %1983 = vmatprep.subr.mxu0 0.0
        %v1984 = vand.u32 %v383, 4294901760
        %v1985 = vsub.f32 %v383, %v1984
        %v1986 = vand.u32 %v1985, 4294901760
        %v1987 = vsub.f32 %v1985, %v1986
        %v1988 = vand.u32 %v1987, 4294901760
        %1989 = vmatpush1.msra.mxu0 %v1988
        %1990 = vmatprep.subr.mxu0 0.0
        %v1991 = vand.u32 %v382, 4294901760
        %v1992 = vsub.f32 %v382, %v1991
        %v1993 = vand.u32 %v1992, 4294901760
        %v1994 = vsub.f32 %v1992, %v1993
        %v1995 = vand.u32 %v1994, 4294901760
        %1996 = vmatpush1.msra.mxu0 %v1995
        %1997 = vmatprep.subr.mxu0 0.0
        %v1998 = vand.u32 %v381, 4294901760
        %v1999 = vsub.f32 %v381, %v1998
        %v2000 = vand.u32 %v1999, 4294901760
        %v2001 = vsub.f32 %v1999, %v2000
        %v2002 = vand.u32 %v2001, 4294901760
        %2003 = vmatpush1.msra.mxu0 %v2002
        %2004 = vmatprep.subr.mxu0 0.0
        %v2005 = vand.u32 %v380, 4294901760
        %v2006 = vsub.f32 %v380, %v2005
        %v2007 = vand.u32 %v2006, 4294901760
        %v2008 = vsub.f32 %v2006, %v2007
        %v2009 = vand.u32 %v2008, 4294901760
        %2010 = vmatpush1.msra.mxu0 %v2009
        %2011 = vmatprep.subr.mxu0 0.0
        %v2012 = vand.u32 %v379, 4294901760
        %v2013 = vsub.f32 %v379, %v2012
        %v2014 = vand.u32 %v2013, 4294901760
        %v2015 = vsub.f32 %v2013, %v2014
        %v2016 = vand.u32 %v2015, 4294901760
        %2017 = vmatpush1.msra.mxu0 %v2016
        %2018 = vmatprep.subr.mxu0 0.0
        %v2019 = vand.u32 %v378, 4294901760
        %v2020 = vsub.f32 %v378, %v2019
        %v2021 = vand.u32 %v2020, 4294901760
        %v2022 = vsub.f32 %v2020, %v2021
        %v2023 = vand.u32 %v2022, 4294901760
        %2024 = vmatpush1.msra.mxu0 %v2023
        %2025 = vmatprep.subr.mxu0 0.0
        %v2026 = vand.u32 %v377, 4294901760
        %v2027 = vsub.f32 %v377, %v2026
        %v2028 = vand.u32 %v2027, 4294901760
        %v2029 = vsub.f32 %v2027, %v2028
        %v2030 = vand.u32 %v2029, 4294901760
        %2031 = vmatpush1.msra.mxu0 %v2030
        %2032 = vmatprep.subr.mxu0 0.0
        %v2033 = vand.u32 %v376, 4294901760
        %v2034 = vsub.f32 %v376, %v2033
        %v2035 = vand.u32 %v2034, 4294901760
        %v2036 = vsub.f32 %v2034, %v2035
        %v2037 = vand.u32 %v2036, 4294901760
        %2038 = vmatpush1.msra.mxu0 %v2037
        %2039 = vmatprep.subr.mxu0 0.0
        %v2040 = vand.u32 %v375, 4294901760
        %v2041 = vsub.f32 %v375, %v2040
        %v2042 = vand.u32 %v2041, 4294901760
        %v2043 = vsub.f32 %v2041, %v2042
        %v2044 = vand.u32 %v2043, 4294901760
        %2045 = vmatpush1.msra.mxu0 %v2044
        %2046 = vmatprep.subr.mxu0 0.0
        %v2047 = vand.u32 %v374, 4294901760
        %v2048 = vsub.f32 %v374, %v2047
        %v2049 = vand.u32 %v2048, 4294901760
        %v2050 = vsub.f32 %v2048, %v2049
        %v2051 = vand.u32 %v2050, 4294901760
        %2052 = vmatpush1.msra.mxu0 %v2051
        %2053 = vmatprep.subr.mxu0 0.0
        %v2054 = vand.u32 %v373, 4294901760
        %v2055 = vsub.f32 %v373, %v2054
        %v2056 = vand.u32 %v2055, 4294901760
        %v2057 = vsub.f32 %v2055, %v2056
        %v2058 = vand.u32 %v2057, 4294901760
        %2059 = vmatpush1.msra.mxu0 %v2058
        %2060 = vmatprep.subr.mxu0 0.0
        %v2061 = vand.u32 %v372, 4294901760
        %v2062 = vsub.f32 %v372, %v2061
        %v2063 = vand.u32 %v2062, 4294901760
        %v2064 = vsub.f32 %v2062, %v2063
        %v2065 = vand.u32 %v2064, 4294901760
        %2066 = vmatpush1.msra.mxu0 %v2065
        %2067 = vmatprep.subr.mxu0 0.0
        %v2068 = vand.u32 %v371, 4294901760
        %v2069 = vsub.f32 %v371, %v2068
        %v2070 = vand.u32 %v2069, 4294901760
        %v2071 = vsub.f32 %v2069, %v2070
        %v2072 = vand.u32 %v2071, 4294901760
        %2073 = vmatpush1.msra.mxu0 %v2072
        %2074 = vmatprep.subr.mxu0 0.0
        %2075 = vmatpush2.msra.mxu0 0.0
        %2076 = vmatprep.subr.mxu0 0.0
        %2077 = vmatpush2.msra.mxu0 0.0
        %2078 = vmatprep.subr.mxu0 0.0
        %2079 = vmatpush2.msra.mxu0 0.0
        %2080 = vmatprep.subr.mxu0 0.0
        %2081 = vmatpush2.msra.mxu0 0.0
        %2082 = vmatprep.subr.mxu0 0.0
        %2083 = vmatpush2.msra.mxu0 0.0
        %2084 = vmatprep.subr.mxu0 0.0
        %2085 = vmatpush2.msra.mxu0 0.0
        %2086 = vmatprep.subr.mxu0 0.0
        %2087 = vmatpush2.msra.mxu0 0.0
        %2088 = vmatprep.subr.mxu0 0.0
        %2089 = vmatpush2.msra.mxu0 0.0
        %2090 = vmatprep.subr.mxu0 0.0
        %2091 = vmatpush2.msra.mxu0 0.0
        %2092 = vmatprep.subr.mxu0 0.0
        %2093 = vmatpush2.msra.mxu0 0.0
        %2094 = vmatprep.subr.mxu0 0.0
        %2095 = vmatpush2.msra.mxu0 0.0
        %2096 = vmatprep.subr.mxu0 0.0
        %2097 = vmatpush2.msra.mxu0 0.0
        %2098 = vmatprep.subr.mxu0 0.0
        %2099 = vmatpush2.msra.mxu0 0.0
        %2100 = vmatprep.subr.mxu0 0.0
        %2101 = vmatpush2.msra.mxu0 0.0
        %2102 = vmatprep.subr.mxu0 0.0
        %2103 = vmatpush2.msra.mxu0 0.0
        %2104 = vmatprep.subr.mxu0 0.0
        %2105 = vmatpush2.msra.mxu0 0.0
        %2106 = vmatprep.mubr.f32.mxu0 0.0
        %v2107 = vand.u32 %v1857, 4294901760
        %2108 = vmatmul.mubr.f32.gmra.mxu0 %v2107
        %v2109 = vpop.f32.mrf.mxu0
        %v2110 = vadd.f32 %v1949, %v2109
        %v2111 = vpop.f32.mrf.mxu0
        %2112 = vmatprep.mubr.f32.mxu0 0.0
        %v2113 = vand.u32 %v1858, 4294901760
        %2114 = vmatmul.mubr.f32.gmra.mxu0 %v2113
        %v2115 = vpop.f32.mrf.mxu0
        %v2116 = vadd.f32 %v1959, %v2115
        %v2117 = vpop.f32.mrf.mxu0
        %2118 = vdwg.mxu0
        %2119 = vmatprep.subr.mxu0 0.0
        %v2120 = vand.u32 %v386, 4294901760
        %v2121 = vsub.f32 %v386, %v2120
        %2122 = vmatpush1.msra.mxu0 %v2121
        %2123 = vmatprep.subr.mxu0 0.0
        %v2124 = vand.u32 %v385, 4294901760
        %v2125 = vsub.f32 %v385, %v2124
        %2126 = vmatpush1.msra.mxu0 %v2125
        %2127 = vmatprep.subr.mxu0 0.0
        %v2128 = vand.u32 %v384, 4294901760
        %v2129 = vsub.f32 %v384, %v2128
        %2130 = vmatpush1.msra.mxu0 %v2129
        %2131 = vmatprep.subr.mxu0 0.0
        %v2132 = vand.u32 %v383, 4294901760
        %v2133 = vsub.f32 %v383, %v2132
        %2134 = vmatpush1.msra.mxu0 %v2133
        %2135 = vmatprep.subr.mxu0 0.0
        %v2136 = vand.u32 %v382, 4294901760
        %v2137 = vsub.f32 %v382, %v2136
        %2138 = vmatpush1.msra.mxu0 %v2137
        %2139 = vmatprep.subr.mxu0 0.0
        %v2140 = vand.u32 %v381, 4294901760
        %v2141 = vsub.f32 %v381, %v2140
        %2142 = vmatpush1.msra.mxu0 %v2141
        %2143 = vmatprep.subr.mxu0 0.0
        %v2144 = vand.u32 %v380, 4294901760
        %v2145 = vsub.f32 %v380, %v2144
        %2146 = vmatpush1.msra.mxu0 %v2145
        %2147 = vmatprep.subr.mxu0 0.0
        %v2148 = vand.u32 %v379, 4294901760
        %v2149 = vsub.f32 %v379, %v2148
        %2150 = vmatpush1.msra.mxu0 %v2149
        %2151 = vmatprep.subr.mxu0 0.0
        %v2152 = vand.u32 %v378, 4294901760
        %v2153 = vsub.f32 %v378, %v2152
        %2154 = vmatpush1.msra.mxu0 %v2153
        %2155 = vmatprep.subr.mxu0 0.0
        %v2156 = vand.u32 %v377, 4294901760
        %v2157 = vsub.f32 %v377, %v2156
        %2158 = vmatpush1.msra.mxu0 %v2157
        %2159 = vmatprep.subr.mxu0 0.0
        %v2160 = vand.u32 %v376, 4294901760
        %v2161 = vsub.f32 %v376, %v2160
        %2162 = vmatpush1.msra.mxu0 %v2161
        %2163 = vmatprep.subr.mxu0 0.0
        %v2164 = vand.u32 %v375, 4294901760
        %v2165 = vsub.f32 %v375, %v2164
        %2166 = vmatpush1.msra.mxu0 %v2165
        %2167 = vmatprep.subr.mxu0 0.0
        %v2168 = vand.u32 %v374, 4294901760
        %v2169 = vsub.f32 %v374, %v2168
        %2170 = vmatpush1.msra.mxu0 %v2169
        %2171 = vmatprep.subr.mxu0 0.0
        %v2172 = vand.u32 %v373, 4294901760
        %v2173 = vsub.f32 %v373, %v2172
        %2174 = vmatpush1.msra.mxu0 %v2173
        %2175 = vmatprep.subr.mxu0 0.0
        %v2176 = vand.u32 %v372, 4294901760
        %v2177 = vsub.f32 %v372, %v2176
        %2178 = vmatpush1.msra.mxu0 %v2177
        %2179 = vmatprep.subr.mxu0 0.0
        %v2180 = vand.u32 %v371, 4294901760
        %v2181 = vsub.f32 %v371, %v2180
        %2182 = vmatpush1.msra.mxu0 %v2181
        %2183 = vmatprep.subr.mxu0 0.0
        %2184 = vmatpush2.msra.mxu0 0.0
        %2185 = vmatprep.subr.mxu0 0.0
        %2186 = vmatpush2.msra.mxu0 0.0
        %2187 = vmatprep.subr.mxu0 0.0
        %2188 = vmatpush2.msra.mxu0 0.0
        %2189 = vmatprep.subr.mxu0 0.0
        %2190 = vmatpush2.msra.mxu0 0.0
        %2191 = vmatprep.subr.mxu0 0.0
        %2192 = vmatpush2.msra.mxu0 0.0
        %2193 = vmatprep.subr.mxu0 0.0
        %2194 = vmatpush2.msra.mxu0 0.0
        %2195 = vmatprep.subr.mxu0 0.0
        %2196 = vmatpush2.msra.mxu0 0.0
        %2197 = vmatprep.subr.mxu0 0.0
        %2198 = vmatpush2.msra.mxu0 0.0
        %2199 = vmatprep.subr.mxu0 0.0
        %2200 = vmatpush2.msra.mxu0 0.0
        %2201 = vmatprep.subr.mxu0 0.0
        %2202 = vmatpush2.msra.mxu0 0.0
        %2203 = vmatprep.subr.mxu0 0.0
        %2204 = vmatpush2.msra.mxu0 0.0
        %2205 = vmatprep.subr.mxu0 0.0
        %2206 = vmatpush2.msra.mxu0 0.0
        %2207 = vmatprep.subr.mxu0 0.0
        %2208 = vmatpush2.msra.mxu0 0.0
        %2209 = vmatprep.subr.mxu0 0.0
        %2210 = vmatpush2.msra.mxu0 0.0
        %2211 = vmatprep.subr.mxu0 0.0
        %2212 = vmatpush2.msra.mxu0 0.0
        %2213 = vmatprep.subr.mxu0 0.0
        %2214 = vmatpush2.msra.mxu0 0.0
        %2215 = vmatprep.mubr.f32.mxu0 0.0
        %v2216 = vand.u32 %v1857, 4294901760
        %v2217 = vsub.f32 %v1857, %v2216
        %2218 = vmatmul.mubr.f32.gmra.mxu0 %v2217
        %v2219 = vpop.f32.mrf.mxu0
        %v2220 = vadd.f32 %v2110, %v2219
        %v2221 = vpop.f32.mrf.mxu0
        %2222 = vmatprep.mubr.f32.mxu0 0.0
        %v2223 = vand.u32 %v1858, 4294901760
        %v2224 = vsub.f32 %v1858, %v2223
        %2225 = vmatmul.mubr.f32.gmra.mxu0 %v2224
        %v2226 = vpop.f32.mrf.mxu0
        %v2227 = vadd.f32 %v2116, %v2226
        %v2228 = vpop.f32.mrf.mxu0
        %2229 = vdwg.mxu0
        %2230 = vmatprep.subr.mxu0 0.0
        %v2231 = vand.u32 %v386, 4294901760
        %2232 = vmatpush1.msra.mxu0 %v2231
        %2233 = vmatprep.subr.mxu0 0.0
        %v2234 = vand.u32 %v385, 4294901760
        %2235 = vmatpush1.msra.mxu0 %v2234
        %2236 = vmatprep.subr.mxu0 0.0
        %v2237 = vand.u32 %v384, 4294901760
        %2238 = vmatpush1.msra.mxu0 %v2237
        %2239 = vmatprep.subr.mxu0 0.0
        %v2240 = vand.u32 %v383, 4294901760
        %2241 = vmatpush1.msra.mxu0 %v2240
        %2242 = vmatprep.subr.mxu0 0.0
        %v2243 = vand.u32 %v382, 4294901760
        %2244 = vmatpush1.msra.mxu0 %v2243
        %2245 = vmatprep.subr.mxu0 0.0
        %v2246 = vand.u32 %v381, 4294901760
        %2247 = vmatpush1.msra.mxu0 %v2246
        %2248 = vmatprep.subr.mxu0 0.0
        %v2249 = vand.u32 %v380, 4294901760
        %2250 = vmatpush1.msra.mxu0 %v2249
        %2251 = vmatprep.subr.mxu0 0.0
        %v2252 = vand.u32 %v379, 4294901760
        %2253 = vmatpush1.msra.mxu0 %v2252
        %2254 = vmatprep.subr.mxu0 0.0
        %v2255 = vand.u32 %v378, 4294901760
        %2256 = vmatpush1.msra.mxu0 %v2255
        %2257 = vmatprep.subr.mxu0 0.0
        %v2258 = vand.u32 %v377, 4294901760
        %2259 = vmatpush1.msra.mxu0 %v2258
        %2260 = vmatprep.subr.mxu0 0.0
        %v2261 = vand.u32 %v376, 4294901760
        %2262 = vmatpush1.msra.mxu0 %v2261
        %2263 = vmatprep.subr.mxu0 0.0
        %v2264 = vand.u32 %v375, 4294901760
        %2265 = vmatpush1.msra.mxu0 %v2264
        %2266 = vmatprep.subr.mxu0 0.0
        %v2267 = vand.u32 %v374, 4294901760
        %2268 = vmatpush1.msra.mxu0 %v2267
        %2269 = vmatprep.subr.mxu0 0.0
        %v2270 = vand.u32 %v373, 4294901760
        %2271 = vmatpush1.msra.mxu0 %v2270
        %2272 = vmatprep.subr.mxu0 0.0
        %v2273 = vand.u32 %v372, 4294901760
        %2274 = vmatpush1.msra.mxu0 %v2273
        %2275 = vmatprep.subr.mxu0 0.0
        %v2276 = vand.u32 %v371, 4294901760
        %2277 = vmatpush1.msra.mxu0 %v2276
        %2278 = vmatprep.subr.mxu0 0.0
        %2279 = vmatpush2.msra.mxu0 0.0
        %2280 = vmatprep.subr.mxu0 0.0
        %2281 = vmatpush2.msra.mxu0 0.0
        %2282 = vmatprep.subr.mxu0 0.0
        %2283 = vmatpush2.msra.mxu0 0.0
        %2284 = vmatprep.subr.mxu0 0.0
        %2285 = vmatpush2.msra.mxu0 0.0
        %2286 = vmatprep.subr.mxu0 0.0
        %2287 = vmatpush2.msra.mxu0 0.0
        %2288 = vmatprep.subr.mxu0 0.0
        %2289 = vmatpush2.msra.mxu0 0.0
        %2290 = vmatprep.subr.mxu0 0.0
        %2291 = vmatpush2.msra.mxu0 0.0
        %2292 = vmatprep.subr.mxu0 0.0
        %2293 = vmatpush2.msra.mxu0 0.0
        %2294 = vmatprep.subr.mxu0 0.0
        %2295 = vmatpush2.msra.mxu0 0.0
        %2296 = vmatprep.subr.mxu0 0.0
        %2297 = vmatpush2.msra.mxu0 0.0
        %2298 = vmatprep.subr.mxu0 0.0
        %2299 = vmatpush2.msra.mxu0 0.0
        %2300 = vmatprep.subr.mxu0 0.0
        %2301 = vmatpush2.msra.mxu0 0.0
        %2302 = vmatprep.subr.mxu0 0.0
        %2303 = vmatpush2.msra.mxu0 0.0
        %2304 = vmatprep.subr.mxu0 0.0
        %2305 = vmatpush2.msra.mxu0 0.0
        %2306 = vmatprep.subr.mxu0 0.0
        %2307 = vmatpush2.msra.mxu0 0.0
        %2308 = vmatprep.subr.mxu0 0.0
        %2309 = vmatpush2.msra.mxu0 0.0
        %2310 = vmatprep.mubr.f32.mxu0 0.0
        %v2311 = vand.u32 %v1857, 4294901760
        %v2312 = vsub.f32 %v1857, %v2311
        %v2313 = vand.u32 %v2312, 4294901760
        %2314 = vmatmul.mubr.f32.gmra.mxu0 %v2313
        %v2315 = vpop.f32.mrf.mxu0
        %v2316 = vadd.f32 %v2220, %v2315
        %v2317 = vpop.f32.mrf.mxu0
        %2318 = vmatprep.mubr.f32.mxu0 0.0
        %v2319 = vand.u32 %v1858, 4294901760
        %v2320 = vsub.f32 %v1858, %v2319
        %v2321 = vand.u32 %v2320, 4294901760
        %2322 = vmatmul.mubr.f32.gmra.mxu0 %v2321
        %v2323 = vpop.f32.mrf.mxu0
        %v2324 = vadd.f32 %v2227, %v2323
        %v2325 = vpop.f32.mrf.mxu0
        %2326 = vdwg.mxu0
        %2327 = vmatprep.subr.mxu0 0.0
        %v2328 = vand.u32 %v386, 4294901760
        %v2329 = vsub.f32 %v386, %v2328
        %v2330 = vand.u32 %v2329, 4294901760
        %2331 = vmatpush1.msra.mxu0 %v2330
        %2332 = vmatprep.subr.mxu0 0.0
        %v2333 = vand.u32 %v385, 4294901760
        %v2334 = vsub.f32 %v385, %v2333
        %v2335 = vand.u32 %v2334, 4294901760
        %2336 = vmatpush1.msra.mxu0 %v2335
        %2337 = vmatprep.subr.mxu0 0.0
        %v2338 = vand.u32 %v384, 4294901760
        %v2339 = vsub.f32 %v384, %v2338
        %v2340 = vand.u32 %v2339, 4294901760
        %2341 = vmatpush1.msra.mxu0 %v2340
        %2342 = vmatprep.subr.mxu0 0.0
        %v2343 = vand.u32 %v383, 4294901760
        %v2344 = vsub.f32 %v383, %v2343
        %v2345 = vand.u32 %v2344, 4294901760
        %2346 = vmatpush1.msra.mxu0 %v2345
        %2347 = vmatprep.subr.mxu0 0.0
        %v2348 = vand.u32 %v382, 4294901760
        %v2349 = vsub.f32 %v382, %v2348
        %v2350 = vand.u32 %v2349, 4294901760
        %2351 = vmatpush1.msra.mxu0 %v2350
        %2352 = vmatprep.subr.mxu0 0.0
        %v2353 = vand.u32 %v381, 4294901760
        %v2354 = vsub.f32 %v381, %v2353
        %v2355 = vand.u32 %v2354, 4294901760
        %2356 = vmatpush1.msra.mxu0 %v2355
        %2357 = vmatprep.subr.mxu0 0.0
        %v2358 = vand.u32 %v380, 4294901760
        %v2359 = vsub.f32 %v380, %v2358
        %v2360 = vand.u32 %v2359, 4294901760
        %2361 = vmatpush1.msra.mxu0 %v2360
        %2362 = vmatprep.subr.mxu0 0.0
        %v2363 = vand.u32 %v379, 4294901760
        %v2364 = vsub.f32 %v379, %v2363
        %v2365 = vand.u32 %v2364, 4294901760
        %2366 = vmatpush1.msra.mxu0 %v2365
        %2367 = vmatprep.subr.mxu0 0.0
        %v2368 = vand.u32 %v378, 4294901760
        %v2369 = vsub.f32 %v378, %v2368
        %v2370 = vand.u32 %v2369, 4294901760
        %2371 = vmatpush1.msra.mxu0 %v2370
        %2372 = vmatprep.subr.mxu0 0.0
        %v2373 = vand.u32 %v377, 4294901760
        %v2374 = vsub.f32 %v377, %v2373
        %v2375 = vand.u32 %v2374, 4294901760
        %2376 = vmatpush1.msra.mxu0 %v2375
        %2377 = vmatprep.subr.mxu0 0.0
        %v2378 = vand.u32 %v376, 4294901760
        %v2379 = vsub.f32 %v376, %v2378
        %v2380 = vand.u32 %v2379, 4294901760
        %2381 = vmatpush1.msra.mxu0 %v2380
        %2382 = vmatprep.subr.mxu0 0.0
        %v2383 = vand.u32 %v375, 4294901760
        %v2384 = vsub.f32 %v375, %v2383
        %v2385 = vand.u32 %v2384, 4294901760
        %2386 = vmatpush1.msra.mxu0 %v2385
        %2387 = vmatprep.subr.mxu0 0.0
        %v2388 = vand.u32 %v374, 4294901760
        %v2389 = vsub.f32 %v374, %v2388
        %v2390 = vand.u32 %v2389, 4294901760
        %2391 = vmatpush1.msra.mxu0 %v2390
        %2392 = vmatprep.subr.mxu0 0.0
        %v2393 = vand.u32 %v373, 4294901760
        %v2394 = vsub.f32 %v373, %v2393
        %v2395 = vand.u32 %v2394, 4294901760
        %2396 = vmatpush1.msra.mxu0 %v2395
        %2397 = vmatprep.subr.mxu0 0.0
        %v2398 = vand.u32 %v372, 4294901760
        %v2399 = vsub.f32 %v372, %v2398
        %v2400 = vand.u32 %v2399, 4294901760
        %2401 = vmatpush1.msra.mxu0 %v2400
        %2402 = vmatprep.subr.mxu0 0.0
        %v2403 = vand.u32 %v371, 4294901760
        %v2404 = vsub.f32 %v371, %v2403
        %v2405 = vand.u32 %v2404, 4294901760
        %2406 = vmatpush1.msra.mxu0 %v2405
        %2407 = vmatprep.subr.mxu0 0.0
        %2408 = vmatpush2.msra.mxu0 0.0
        %2409 = vmatprep.subr.mxu0 0.0
        %2410 = vmatpush2.msra.mxu0 0.0
        %2411 = vmatprep.subr.mxu0 0.0
        %2412 = vmatpush2.msra.mxu0 0.0
        %2413 = vmatprep.subr.mxu0 0.0
        %2414 = vmatpush2.msra.mxu0 0.0
        %2415 = vmatprep.subr.mxu0 0.0
        %2416 = vmatpush2.msra.mxu0 0.0
        %2417 = vmatprep.subr.mxu0 0.0
        %2418 = vmatpush2.msra.mxu0 0.0
        %2419 = vmatprep.subr.mxu0 0.0
        %2420 = vmatpush2.msra.mxu0 0.0
        %2421 = vmatprep.subr.mxu0 0.0
        %2422 = vmatpush2.msra.mxu0 0.0
        %2423 = vmatprep.subr.mxu0 0.0
        %2424 = vmatpush2.msra.mxu0 0.0
        %2425 = vmatprep.subr.mxu0 0.0
        %2426 = vmatpush2.msra.mxu0 0.0
        %2427 = vmatprep.subr.mxu0 0.0
        %2428 = vmatpush2.msra.mxu0 0.0
        %2429 = vmatprep.subr.mxu0 0.0
        %2430 = vmatpush2.msra.mxu0 0.0
        %2431 = vmatprep.subr.mxu0 0.0
        %2432 = vmatpush2.msra.mxu0 0.0
        %2433 = vmatprep.subr.mxu0 0.0
        %2434 = vmatpush2.msra.mxu0 0.0
        %2435 = vmatprep.subr.mxu0 0.0
        %2436 = vmatpush2.msra.mxu0 0.0
        %2437 = vmatprep.subr.mxu0 0.0
        %2438 = vmatpush2.msra.mxu0 0.0
        %2439 = vmatprep.mubr.f32.mxu0 0.0
        %v2440 = vand.u32 %v1857, 4294901760
        %2441 = vmatmul.mubr.f32.gmra.mxu0 %v2440
        %v2442 = vpop.f32.mrf.mxu0
        %v2443 = vadd.f32 %v2316, %v2442
        %v2444 = vpop.f32.mrf.mxu0
        %2445 = vmatprep.mubr.f32.mxu0 0.0
        %v2446 = vand.u32 %v1858, 4294901760
        %2447 = vmatmul.mubr.f32.gmra.mxu0 %v2446
        %v2448 = vpop.f32.mrf.mxu0
        %v2449 = vadd.f32 %v2324, %v2448
        %v2450 = vpop.f32.mrf.mxu0
        %2451 = vdwg.mxu0
        %2452 = vmatprep.subr.mxu0 0.0
        %v2453 = vand.u32 %v386, 4294901760
        %2454 = vmatpush1.msra.mxu0 %v2453
        %2455 = vmatprep.subr.mxu0 0.0
        %v2456 = vand.u32 %v385, 4294901760
        %2457 = vmatpush1.msra.mxu0 %v2456
        %2458 = vmatprep.subr.mxu0 0.0
        %v2459 = vand.u32 %v384, 4294901760
        %2460 = vmatpush1.msra.mxu0 %v2459
        %2461 = vmatprep.subr.mxu0 0.0
        %v2462 = vand.u32 %v383, 4294901760
        %2463 = vmatpush1.msra.mxu0 %v2462
        %2464 = vmatprep.subr.mxu0 0.0
        %v2465 = vand.u32 %v382, 4294901760
        %2466 = vmatpush1.msra.mxu0 %v2465
        %2467 = vmatprep.subr.mxu0 0.0
        %v2468 = vand.u32 %v381, 4294901760
        %2469 = vmatpush1.msra.mxu0 %v2468
        %2470 = vmatprep.subr.mxu0 0.0
        %v2471 = vand.u32 %v380, 4294901760
        %2472 = vmatpush1.msra.mxu0 %v2471
        %2473 = vmatprep.subr.mxu0 0.0
        %v2474 = vand.u32 %v379, 4294901760
        %2475 = vmatpush1.msra.mxu0 %v2474
        %2476 = vmatprep.subr.mxu0 0.0
        %v2477 = vand.u32 %v378, 4294901760
        %2478 = vmatpush1.msra.mxu0 %v2477
        %2479 = vmatprep.subr.mxu0 0.0
        %v2480 = vand.u32 %v377, 4294901760
        %2481 = vmatpush1.msra.mxu0 %v2480
        %2482 = vmatprep.subr.mxu0 0.0
        %v2483 = vand.u32 %v376, 4294901760
        %2484 = vmatpush1.msra.mxu0 %v2483
        %2485 = vmatprep.subr.mxu0 0.0
        %v2486 = vand.u32 %v375, 4294901760
        %2487 = vmatpush1.msra.mxu0 %v2486
        %2488 = vmatprep.subr.mxu0 0.0
        %v2489 = vand.u32 %v374, 4294901760
        %2490 = vmatpush1.msra.mxu0 %v2489
        %2491 = vmatprep.subr.mxu0 0.0
        %v2492 = vand.u32 %v373, 4294901760
        %2493 = vmatpush1.msra.mxu0 %v2492
        %2494 = vmatprep.subr.mxu0 0.0
        %v2495 = vand.u32 %v372, 4294901760
        %2496 = vmatpush1.msra.mxu0 %v2495
        %2497 = vmatprep.subr.mxu0 0.0
        %v2498 = vand.u32 %v371, 4294901760
        %2499 = vmatpush1.msra.mxu0 %v2498
        %2500 = vmatprep.subr.mxu0 0.0
        %2501 = vmatpush2.msra.mxu0 0.0
        %2502 = vmatprep.subr.mxu0 0.0
        %2503 = vmatpush2.msra.mxu0 0.0
        %2504 = vmatprep.subr.mxu0 0.0
        %2505 = vmatpush2.msra.mxu0 0.0
        %2506 = vmatprep.subr.mxu0 0.0
        %2507 = vmatpush2.msra.mxu0 0.0
        %2508 = vmatprep.subr.mxu0 0.0
        %2509 = vmatpush2.msra.mxu0 0.0
        %2510 = vmatprep.subr.mxu0 0.0
        %2511 = vmatpush2.msra.mxu0 0.0
        %2512 = vmatprep.subr.mxu0 0.0
        %2513 = vmatpush2.msra.mxu0 0.0
        %2514 = vmatprep.subr.mxu0 0.0
        %2515 = vmatpush2.msra.mxu0 0.0
        %2516 = vmatprep.subr.mxu0 0.0
        %2517 = vmatpush2.msra.mxu0 0.0
        %2518 = vmatprep.subr.mxu0 0.0
        %2519 = vmatpush2.msra.mxu0 0.0
        %2520 = vmatprep.subr.mxu0 0.0
        %2521 = vmatpush2.msra.mxu0 0.0
        %2522 = vmatprep.subr.mxu0 0.0
        %2523 = vmatpush2.msra.mxu0 0.0
        %2524 = vmatprep.subr.mxu0 0.0
        %2525 = vmatpush2.msra.mxu0 0.0
        %2526 = vmatprep.subr.mxu0 0.0
        %2527 = vmatpush2.msra.mxu0 0.0
        %2528 = vmatprep.subr.mxu0 0.0
        %2529 = vmatpush2.msra.mxu0 0.0
        %2530 = vmatprep.subr.mxu0 0.0
        %2531 = vmatpush2.msra.mxu0 0.0
        %2532 = vmatprep.mubr.f32.mxu0 0.0
        %v2533 = vand.u32 %v1857, 4294901760
        %2534 = vmatmul.mubr.f32.gmra.mxu0 %v2533
        %v2535 = vpop.f32.mrf.mxu0
        %v2536 = vadd.f32 %v2443, %v2535
        %v2537 = vpop.f32.mrf.mxu0
        %2538 = vmatprep.mubr.f32.mxu0 0.0
        %v2539 = vand.u32 %v1858, 4294901760
        %2540 = vmatmul.mubr.f32.gmra.mxu0 %v2539
        %v2541 = vpop.f32.mrf.mxu0
        %v2542 = vadd.f32 %v2449, %v2541
        %v2543 = vpop.f32.mrf.mxu0
        %2544 = vdwg.mxu0
        %2545 = vmatprep.subr.mxu0 0.0
        %v2546 = vand.u32 %v402, 4294901760
        %2547 = vmatpush1.msra.mxu0 %v2546
        %2548 = vmatprep.subr.mxu0 0.0
        %v2549 = vand.u32 %v401, 4294901760
        %2550 = vmatpush1.msra.mxu0 %v2549
        %2551 = vmatprep.subr.mxu0 0.0
        %v2552 = vand.u32 %v400, 4294901760
        %2553 = vmatpush1.msra.mxu0 %v2552
        %2554 = vmatprep.subr.mxu0 0.0
        %v2555 = vand.u32 %v399, 4294901760
        %2556 = vmatpush1.msra.mxu0 %v2555
        %2557 = vmatprep.subr.mxu0 0.0
        %v2558 = vand.u32 %v398, 4294901760
        %2559 = vmatpush1.msra.mxu0 %v2558
        %2560 = vmatprep.subr.mxu0 0.0
        %v2561 = vand.u32 %v397, 4294901760
        %2562 = vmatpush1.msra.mxu0 %v2561
        %2563 = vmatprep.subr.mxu0 0.0
        %v2564 = vand.u32 %v396, 4294901760
        %2565 = vmatpush1.msra.mxu0 %v2564
        %2566 = vmatprep.subr.mxu0 0.0
        %v2567 = vand.u32 %v395, 4294901760
        %2568 = vmatpush1.msra.mxu0 %v2567
        %2569 = vmatprep.subr.mxu0 0.0
        %v2570 = vand.u32 %v394, 4294901760
        %2571 = vmatpush1.msra.mxu0 %v2570
        %2572 = vmatprep.subr.mxu0 0.0
        %v2573 = vand.u32 %v393, 4294901760
        %2574 = vmatpush1.msra.mxu0 %v2573
        %2575 = vmatprep.subr.mxu0 0.0
        %v2576 = vand.u32 %v392, 4294901760
        %2577 = vmatpush1.msra.mxu0 %v2576
        %2578 = vmatprep.subr.mxu0 0.0
        %v2579 = vand.u32 %v391, 4294901760
        %2580 = vmatpush1.msra.mxu0 %v2579
        %2581 = vmatprep.subr.mxu0 0.0
        %v2582 = vand.u32 %v390, 4294901760
        %2583 = vmatpush1.msra.mxu0 %v2582
        %2584 = vmatprep.subr.mxu0 0.0
        %v2585 = vand.u32 %v389, 4294901760
        %2586 = vmatpush1.msra.mxu0 %v2585
        %2587 = vmatprep.subr.mxu0 0.0
        %v2588 = vand.u32 %v388, 4294901760
        %2589 = vmatpush1.msra.mxu0 %v2588
        %2590 = vmatprep.subr.mxu0 0.0
        %v2591 = vand.u32 %v387, 4294901760
        %2592 = vmatpush1.msra.mxu0 %v2591
        %2593 = vmatprep.subr.mxu0 0.0
        %2594 = vmatpush2.msra.mxu0 0.0
        %2595 = vmatprep.subr.mxu0 0.0
        %2596 = vmatpush2.msra.mxu0 0.0
        %2597 = vmatprep.subr.mxu0 0.0
        %2598 = vmatpush2.msra.mxu0 0.0
        %2599 = vmatprep.subr.mxu0 0.0
        %2600 = vmatpush2.msra.mxu0 0.0
        %2601 = vmatprep.subr.mxu0 0.0
        %2602 = vmatpush2.msra.mxu0 0.0
        %2603 = vmatprep.subr.mxu0 0.0
        %2604 = vmatpush2.msra.mxu0 0.0
        %2605 = vmatprep.subr.mxu0 0.0
        %2606 = vmatpush2.msra.mxu0 0.0
        %2607 = vmatprep.subr.mxu0 0.0
        %2608 = vmatpush2.msra.mxu0 0.0
        %2609 = vmatprep.subr.mxu0 0.0
        %2610 = vmatpush2.msra.mxu0 0.0
        %2611 = vmatprep.subr.mxu0 0.0
        %2612 = vmatpush2.msra.mxu0 0.0
        %2613 = vmatprep.subr.mxu0 0.0
        %2614 = vmatpush2.msra.mxu0 0.0
        %2615 = vmatprep.subr.mxu0 0.0
        %2616 = vmatpush2.msra.mxu0 0.0
        %2617 = vmatprep.subr.mxu0 0.0
        %2618 = vmatpush2.msra.mxu0 0.0
        %2619 = vmatprep.subr.mxu0 0.0
        %2620 = vmatpush2.msra.mxu0 0.0
        %2621 = vmatprep.subr.mxu0 0.0
        %2622 = vmatpush2.msra.mxu0 0.0
        %2623 = vmatprep.subr.mxu0 0.0
        %2624 = vmatpush2.msra.mxu0 0.0
        %2625 = vmatprep.mubr.f32.mxu0 0.0
        %v2626 = vand.u32 %v1859, 4294901760
        %v2627 = vsub.f32 %v1859, %v2626
        %v2628 = vand.u32 %v2627, 4294901760
        %v2629 = vsub.f32 %v2627, %v2628
        %v2630 = vand.u32 %v2629, 4294901760
        %2631 = vmatmul.mubr.f32.gmra.mxu0 %v2630
        %v2632 = vpop.f32.mrf.mxu0
        %v2633 = vadd.f32 0.0, %v2632
        %v2634 = vpop.f32.mrf.mxu0
        %2635 = vmatprep.mubr.f32.mxu0 0.0
        %v2636 = vand.u32 %v1860, 4294901760
        %v2637 = vsub.f32 %v1860, %v2636
        %v2638 = vand.u32 %v2637, 4294901760
        %v2639 = vsub.f32 %v2637, %v2638
        %v2640 = vand.u32 %v2639, 4294901760
        %2641 = vmatmul.mubr.f32.gmra.mxu0 %v2640
        %v2642 = vpop.f32.mrf.mxu0
        %v2643 = vadd.f32 0.0, %v2642
        %v2644 = vpop.f32.mrf.mxu0
        %2645 = vdwg.mxu0
        %2646 = vmatprep.subr.mxu0 0.0
        %v2647 = vand.u32 %v402, 4294901760
        %v2648 = vsub.f32 %v402, %v2647
        %v2649 = vand.u32 %v2648, 4294901760
        %v2650 = vsub.f32 %v2648, %v2649
        %v2651 = vand.u32 %v2650, 4294901760
        %2652 = vmatpush1.msra.mxu0 %v2651
        %2653 = vmatprep.subr.mxu0 0.0
        %v2654 = vand.u32 %v401, 4294901760
        %v2655 = vsub.f32 %v401, %v2654
        %v2656 = vand.u32 %v2655, 4294901760
        %v2657 = vsub.f32 %v2655, %v2656
        %v2658 = vand.u32 %v2657, 4294901760
        %2659 = vmatpush1.msra.mxu0 %v2658
        %2660 = vmatprep.subr.mxu0 0.0
        %v2661 = vand.u32 %v400, 4294901760
        %v2662 = vsub.f32 %v400, %v2661
        %v2663 = vand.u32 %v2662, 4294901760
        %v2664 = vsub.f32 %v2662, %v2663
        %v2665 = vand.u32 %v2664, 4294901760
        %2666 = vmatpush1.msra.mxu0 %v2665
        %2667 = vmatprep.subr.mxu0 0.0
        %v2668 = vand.u32 %v399, 4294901760
        %v2669 = vsub.f32 %v399, %v2668
        %v2670 = vand.u32 %v2669, 4294901760
        %v2671 = vsub.f32 %v2669, %v2670
        %v2672 = vand.u32 %v2671, 4294901760
        %2673 = vmatpush1.msra.mxu0 %v2672
        %2674 = vmatprep.subr.mxu0 0.0
        %v2675 = vand.u32 %v398, 4294901760
        %v2676 = vsub.f32 %v398, %v2675
        %v2677 = vand.u32 %v2676, 4294901760
        %v2678 = vsub.f32 %v2676, %v2677
        %v2679 = vand.u32 %v2678, 4294901760
        %2680 = vmatpush1.msra.mxu0 %v2679
        %2681 = vmatprep.subr.mxu0 0.0
        %v2682 = vand.u32 %v397, 4294901760
        %v2683 = vsub.f32 %v397, %v2682
        %v2684 = vand.u32 %v2683, 4294901760
        %v2685 = vsub.f32 %v2683, %v2684
        %v2686 = vand.u32 %v2685, 4294901760
        %2687 = vmatpush1.msra.mxu0 %v2686
        %2688 = vmatprep.subr.mxu0 0.0
        %v2689 = vand.u32 %v396, 4294901760
        %v2690 = vsub.f32 %v396, %v2689
        %v2691 = vand.u32 %v2690, 4294901760
        %v2692 = vsub.f32 %v2690, %v2691
        %v2693 = vand.u32 %v2692, 4294901760
        %2694 = vmatpush1.msra.mxu0 %v2693
        %2695 = vmatprep.subr.mxu0 0.0
        %v2696 = vand.u32 %v395, 4294901760
        %v2697 = vsub.f32 %v395, %v2696
        %v2698 = vand.u32 %v2697, 4294901760
        %v2699 = vsub.f32 %v2697, %v2698
        %v2700 = vand.u32 %v2699, 4294901760
        %2701 = vmatpush1.msra.mxu0 %v2700
        %2702 = vmatprep.subr.mxu0 0.0
        %v2703 = vand.u32 %v394, 4294901760
        %v2704 = vsub.f32 %v394, %v2703
        %v2705 = vand.u32 %v2704, 4294901760
        %v2706 = vsub.f32 %v2704, %v2705
        %v2707 = vand.u32 %v2706, 4294901760
        %2708 = vmatpush1.msra.mxu0 %v2707
        %2709 = vmatprep.subr.mxu0 0.0
        %v2710 = vand.u32 %v393, 4294901760
        %v2711 = vsub.f32 %v393, %v2710
        %v2712 = vand.u32 %v2711, 4294901760
        %v2713 = vsub.f32 %v2711, %v2712
        %v2714 = vand.u32 %v2713, 4294901760
        %2715 = vmatpush1.msra.mxu0 %v2714
        %2716 = vmatprep.subr.mxu0 0.0
        %v2717 = vand.u32 %v392, 4294901760
        %v2718 = vsub.f32 %v392, %v2717
        %v2719 = vand.u32 %v2718, 4294901760
        %v2720 = vsub.f32 %v2718, %v2719
        %v2721 = vand.u32 %v2720, 4294901760
        %2722 = vmatpush1.msra.mxu0 %v2721
        %2723 = vmatprep.subr.mxu0 0.0
        %v2724 = vand.u32 %v391, 4294901760
        %v2725 = vsub.f32 %v391, %v2724
        %v2726 = vand.u32 %v2725, 4294901760
        %v2727 = vsub.f32 %v2725, %v2726
        %v2728 = vand.u32 %v2727, 4294901760
        %2729 = vmatpush1.msra.mxu0 %v2728
        %2730 = vmatprep.subr.mxu0 0.0
        %v2731 = vand.u32 %v390, 4294901760
        %v2732 = vsub.f32 %v390, %v2731
        %v2733 = vand.u32 %v2732, 4294901760
        %v2734 = vsub.f32 %v2732, %v2733
        %v2735 = vand.u32 %v2734, 4294901760
        %2736 = vmatpush1.msra.mxu0 %v2735
        %2737 = vmatprep.subr.mxu0 0.0
        %v2738 = vand.u32 %v389, 4294901760
        %v2739 = vsub.f32 %v389, %v2738
        %v2740 = vand.u32 %v2739, 4294901760
        %v2741 = vsub.f32 %v2739, %v2740
        %v2742 = vand.u32 %v2741, 4294901760
        %2743 = vmatpush1.msra.mxu0 %v2742
        %2744 = vmatprep.subr.mxu0 0.0
        %v2745 = vand.u32 %v388, 4294901760
        %v2746 = vsub.f32 %v388, %v2745
        %v2747 = vand.u32 %v2746, 4294901760
        %v2748 = vsub.f32 %v2746, %v2747
        %v2749 = vand.u32 %v2748, 4294901760
        %2750 = vmatpush1.msra.mxu0 %v2749
        %2751 = vmatprep.subr.mxu0 0.0
        %v2752 = vand.u32 %v387, 4294901760
        %v2753 = vsub.f32 %v387, %v2752
        %v2754 = vand.u32 %v2753, 4294901760
        %v2755 = vsub.f32 %v2753, %v2754
        %v2756 = vand.u32 %v2755, 4294901760
        %2757 = vmatpush1.msra.mxu0 %v2756
        %2758 = vmatprep.subr.mxu0 0.0
        %2759 = vmatpush2.msra.mxu0 0.0
        %2760 = vmatprep.subr.mxu0 0.0
        %2761 = vmatpush2.msra.mxu0 0.0
        %2762 = vmatprep.subr.mxu0 0.0
        %2763 = vmatpush2.msra.mxu0 0.0
        %2764 = vmatprep.subr.mxu0 0.0
        %2765 = vmatpush2.msra.mxu0 0.0
        %2766 = vmatprep.subr.mxu0 0.0
        %2767 = vmatpush2.msra.mxu0 0.0
        %2768 = vmatprep.subr.mxu0 0.0
        %2769 = vmatpush2.msra.mxu0 0.0
        %2770 = vmatprep.subr.mxu0 0.0
        %2771 = vmatpush2.msra.mxu0 0.0
        %2772 = vmatprep.subr.mxu0 0.0
        %2773 = vmatpush2.msra.mxu0 0.0
        %2774 = vmatprep.subr.mxu0 0.0
        %2775 = vmatpush2.msra.mxu0 0.0
        %2776 = vmatprep.subr.mxu0 0.0
        %2777 = vmatpush2.msra.mxu0 0.0
        %2778 = vmatprep.subr.mxu0 0.0
        %2779 = vmatpush2.msra.mxu0 0.0
        %2780 = vmatprep.subr.mxu0 0.0
        %2781 = vmatpush2.msra.mxu0 0.0
        %2782 = vmatprep.subr.mxu0 0.0
        %2783 = vmatpush2.msra.mxu0 0.0
        %2784 = vmatprep.subr.mxu0 0.0
        %2785 = vmatpush2.msra.mxu0 0.0
        %2786 = vmatprep.subr.mxu0 0.0
        %2787 = vmatpush2.msra.mxu0 0.0
        %2788 = vmatprep.subr.mxu0 0.0
        %2789 = vmatpush2.msra.mxu0 0.0
        %2790 = vmatprep.mubr.f32.mxu0 0.0
        %v2791 = vand.u32 %v1859, 4294901760
        %2792 = vmatmul.mubr.f32.gmra.mxu0 %v2791
        %v2793 = vpop.f32.mrf.mxu0
        %v2794 = vadd.f32 %v2633, %v2793
        %v2795 = vpop.f32.mrf.mxu0
        %2796 = vmatprep.mubr.f32.mxu0 0.0
        %v2797 = vand.u32 %v1860, 4294901760
        %2798 = vmatmul.mubr.f32.gmra.mxu0 %v2797
        %v2799 = vpop.f32.mrf.mxu0
        %v2800 = vadd.f32 %v2643, %v2799
        %v2801 = vpop.f32.mrf.mxu0
        %2802 = vdwg.mxu0
        %2803 = vmatprep.subr.mxu0 0.0
        %v2804 = vand.u32 %v402, 4294901760
        %v2805 = vsub.f32 %v402, %v2804
        %2806 = vmatpush1.msra.mxu0 %v2805
        %2807 = vmatprep.subr.mxu0 0.0
        %v2808 = vand.u32 %v401, 4294901760
        %v2809 = vsub.f32 %v401, %v2808
        %2810 = vmatpush1.msra.mxu0 %v2809
        %2811 = vmatprep.subr.mxu0 0.0
        %v2812 = vand.u32 %v400, 4294901760
        %v2813 = vsub.f32 %v400, %v2812
        %2814 = vmatpush1.msra.mxu0 %v2813
        %2815 = vmatprep.subr.mxu0 0.0
        %v2816 = vand.u32 %v399, 4294901760
        %v2817 = vsub.f32 %v399, %v2816
        %2818 = vmatpush1.msra.mxu0 %v2817
        %2819 = vmatprep.subr.mxu0 0.0
        %v2820 = vand.u32 %v398, 4294901760
        %v2821 = vsub.f32 %v398, %v2820
        %2822 = vmatpush1.msra.mxu0 %v2821
        %2823 = vmatprep.subr.mxu0 0.0
        %v2824 = vand.u32 %v397, 4294901760
        %v2825 = vsub.f32 %v397, %v2824
        %2826 = vmatpush1.msra.mxu0 %v2825
        %2827 = vmatprep.subr.mxu0 0.0
        %v2828 = vand.u32 %v396, 4294901760
        %v2829 = vsub.f32 %v396, %v2828
        %2830 = vmatpush1.msra.mxu0 %v2829
        %2831 = vmatprep.subr.mxu0 0.0
        %v2832 = vand.u32 %v395, 4294901760
        %v2833 = vsub.f32 %v395, %v2832
        %2834 = vmatpush1.msra.mxu0 %v2833
        %2835 = vmatprep.subr.mxu0 0.0
        %v2836 = vand.u32 %v394, 4294901760
        %v2837 = vsub.f32 %v394, %v2836
        %2838 = vmatpush1.msra.mxu0 %v2837
        %2839 = vmatprep.subr.mxu0 0.0
        %v2840 = vand.u32 %v393, 4294901760
        %v2841 = vsub.f32 %v393, %v2840
        %2842 = vmatpush1.msra.mxu0 %v2841
        %2843 = vmatprep.subr.mxu0 0.0
        %v2844 = vand.u32 %v392, 4294901760
        %v2845 = vsub.f32 %v392, %v2844
        %2846 = vmatpush1.msra.mxu0 %v2845
        %2847 = vmatprep.subr.mxu0 0.0
        %v2848 = vand.u32 %v391, 4294901760
        %v2849 = vsub.f32 %v391, %v2848
        %2850 = vmatpush1.msra.mxu0 %v2849
        %2851 = vmatprep.subr.mxu0 0.0
        %v2852 = vand.u32 %v390, 4294901760
        %v2853 = vsub.f32 %v390, %v2852
        %2854 = vmatpush1.msra.mxu0 %v2853
        %2855 = vmatprep.subr.mxu0 0.0
        %v2856 = vand.u32 %v389, 4294901760
        %v2857 = vsub.f32 %v389, %v2856
        %2858 = vmatpush1.msra.mxu0 %v2857
        %2859 = vmatprep.subr.mxu0 0.0
        %v2860 = vand.u32 %v388, 4294901760
        %v2861 = vsub.f32 %v388, %v2860
        %2862 = vmatpush1.msra.mxu0 %v2861
        %2863 = vmatprep.subr.mxu0 0.0
        %v2864 = vand.u32 %v387, 4294901760
        %v2865 = vsub.f32 %v387, %v2864
        %2866 = vmatpush1.msra.mxu0 %v2865
        %2867 = vmatprep.subr.mxu0 0.0
        %2868 = vmatpush2.msra.mxu0 0.0
        %2869 = vmatprep.subr.mxu0 0.0
        %2870 = vmatpush2.msra.mxu0 0.0
        %2871 = vmatprep.subr.mxu0 0.0
        %2872 = vmatpush2.msra.mxu0 0.0
        %2873 = vmatprep.subr.mxu0 0.0
        %2874 = vmatpush2.msra.mxu0 0.0
        %2875 = vmatprep.subr.mxu0 0.0
        %2876 = vmatpush2.msra.mxu0 0.0
        %2877 = vmatprep.subr.mxu0 0.0
        %2878 = vmatpush2.msra.mxu0 0.0
        %2879 = vmatprep.subr.mxu0 0.0
        %2880 = vmatpush2.msra.mxu0 0.0
        %2881 = vmatprep.subr.mxu0 0.0
        %2882 = vmatpush2.msra.mxu0 0.0
        %2883 = vmatprep.subr.mxu0 0.0
        %2884 = vmatpush2.msra.mxu0 0.0
        %2885 = vmatprep.subr.mxu0 0.0
        %2886 = vmatpush2.msra.mxu0 0.0
        %2887 = vmatprep.subr.mxu0 0.0
        %2888 = vmatpush2.msra.mxu0 0.0
        %2889 = vmatprep.subr.mxu0 0.0
        %2890 = vmatpush2.msra.mxu0 0.0
        %2891 = vmatprep.subr.mxu0 0.0
        %2892 = vmatpush2.msra.mxu0 0.0
        %2893 = vmatprep.subr.mxu0 0.0
        %2894 = vmatpush2.msra.mxu0 0.0
        %2895 = vmatprep.subr.mxu0 0.0
        %2896 = vmatpush2.msra.mxu0 0.0
        %2897 = vmatprep.subr.mxu0 0.0
        %2898 = vmatpush2.msra.mxu0 0.0
        %2899 = vmatprep.mubr.f32.mxu0 0.0
        %v2900 = vand.u32 %v1859, 4294901760
        %v2901 = vsub.f32 %v1859, %v2900
        %2902 = vmatmul.mubr.f32.gmra.mxu0 %v2901
        %v2903 = vpop.f32.mrf.mxu0
        %v2904 = vadd.f32 %v2794, %v2903
        %v2905 = vpop.f32.mrf.mxu0
        %2906 = vmatprep.mubr.f32.mxu0 0.0
        %v2907 = vand.u32 %v1860, 4294901760
        %v2908 = vsub.f32 %v1860, %v2907
        %2909 = vmatmul.mubr.f32.gmra.mxu0 %v2908
        %v2910 = vpop.f32.mrf.mxu0
        %v2911 = vadd.f32 %v2800, %v2910
        %v2912 = vpop.f32.mrf.mxu0
        %2913 = vdwg.mxu0
        %2914 = vmatprep.subr.mxu0 0.0
        %v2915 = vand.u32 %v402, 4294901760
        %2916 = vmatpush1.msra.mxu0 %v2915
        %2917 = vmatprep.subr.mxu0 0.0
        %v2918 = vand.u32 %v401, 4294901760
        %2919 = vmatpush1.msra.mxu0 %v2918
        %2920 = vmatprep.subr.mxu0 0.0
        %v2921 = vand.u32 %v400, 4294901760
        %2922 = vmatpush1.msra.mxu0 %v2921
        %2923 = vmatprep.subr.mxu0 0.0
        %v2924 = vand.u32 %v399, 4294901760
        %2925 = vmatpush1.msra.mxu0 %v2924
        %2926 = vmatprep.subr.mxu0 0.0
        %v2927 = vand.u32 %v398, 4294901760
        %2928 = vmatpush1.msra.mxu0 %v2927
        %2929 = vmatprep.subr.mxu0 0.0
        %v2930 = vand.u32 %v397, 4294901760
        %2931 = vmatpush1.msra.mxu0 %v2930
        %2932 = vmatprep.subr.mxu0 0.0
        %v2933 = vand.u32 %v396, 4294901760
        %2934 = vmatpush1.msra.mxu0 %v2933
        %2935 = vmatprep.subr.mxu0 0.0
        %v2936 = vand.u32 %v395, 4294901760
        %2937 = vmatpush1.msra.mxu0 %v2936
        %2938 = vmatprep.subr.mxu0 0.0
        %v2939 = vand.u32 %v394, 4294901760
        %2940 = vmatpush1.msra.mxu0 %v2939
        %2941 = vmatprep.subr.mxu0 0.0
        %v2942 = vand.u32 %v393, 4294901760
        %2943 = vmatpush1.msra.mxu0 %v2942
        %2944 = vmatprep.subr.mxu0 0.0
        %v2945 = vand.u32 %v392, 4294901760
        %2946 = vmatpush1.msra.mxu0 %v2945
        %2947 = vmatprep.subr.mxu0 0.0
        %v2948 = vand.u32 %v391, 4294901760
        %2949 = vmatpush1.msra.mxu0 %v2948
        %2950 = vmatprep.subr.mxu0 0.0
        %v2951 = vand.u32 %v390, 4294901760
        %2952 = vmatpush1.msra.mxu0 %v2951
        %2953 = vmatprep.subr.mxu0 0.0
        %v2954 = vand.u32 %v389, 4294901760
        %2955 = vmatpush1.msra.mxu0 %v2954
        %2956 = vmatprep.subr.mxu0 0.0
        %v2957 = vand.u32 %v388, 4294901760
        %2958 = vmatpush1.msra.mxu0 %v2957
        %2959 = vmatprep.subr.mxu0 0.0
        %v2960 = vand.u32 %v387, 4294901760
        %2961 = vmatpush1.msra.mxu0 %v2960
        %2962 = vmatprep.subr.mxu0 0.0
        %2963 = vmatpush2.msra.mxu0 0.0
        %2964 = vmatprep.subr.mxu0 0.0
        %2965 = vmatpush2.msra.mxu0 0.0
        %2966 = vmatprep.subr.mxu0 0.0
        %2967 = vmatpush2.msra.mxu0 0.0
        %2968 = vmatprep.subr.mxu0 0.0
        %2969 = vmatpush2.msra.mxu0 0.0
        %2970 = vmatprep.subr.mxu0 0.0
        %2971 = vmatpush2.msra.mxu0 0.0
        %2972 = vmatprep.subr.mxu0 0.0
        %2973 = vmatpush2.msra.mxu0 0.0
        %2974 = vmatprep.subr.mxu0 0.0
        %2975 = vmatpush2.msra.mxu0 0.0
        %2976 = vmatprep.subr.mxu0 0.0
        %2977 = vmatpush2.msra.mxu0 0.0
        %2978 = vmatprep.subr.mxu0 0.0
        %2979 = vmatpush2.msra.mxu0 0.0
        %2980 = vmatprep.subr.mxu0 0.0
        %2981 = vmatpush2.msra.mxu0 0.0
        %2982 = vmatprep.subr.mxu0 0.0
        %2983 = vmatpush2.msra.mxu0 0.0
        %2984 = vmatprep.subr.mxu0 0.0
        %2985 = vmatpush2.msra.mxu0 0.0
        %2986 = vmatprep.subr.mxu0 0.0
        %2987 = vmatpush2.msra.mxu0 0.0
        %2988 = vmatprep.subr.mxu0 0.0
        %2989 = vmatpush2.msra.mxu0 0.0
        %2990 = vmatprep.subr.mxu0 0.0
        %2991 = vmatpush2.msra.mxu0 0.0
        %2992 = vmatprep.subr.mxu0 0.0
        %2993 = vmatpush2.msra.mxu0 0.0
        %2994 = vmatprep.mubr.f32.mxu0 0.0
        %v2995 = vand.u32 %v1859, 4294901760
        %v2996 = vsub.f32 %v1859, %v2995
        %v2997 = vand.u32 %v2996, 4294901760
        %2998 = vmatmul.mubr.f32.gmra.mxu0 %v2997
        %v2999 = vpop.f32.mrf.mxu0
        %v3000 = vadd.f32 %v2904, %v2999
        %v3001 = vpop.f32.mrf.mxu0
        %3002 = vmatprep.mubr.f32.mxu0 0.0
        %v3003 = vand.u32 %v1860, 4294901760
        %v3004 = vsub.f32 %v1860, %v3003
        %v3005 = vand.u32 %v3004, 4294901760
        %3006 = vmatmul.mubr.f32.gmra.mxu0 %v3005
        %v3007 = vpop.f32.mrf.mxu0
        %v3008 = vadd.f32 %v2911, %v3007
        %v3009 = vpop.f32.mrf.mxu0
        %3010 = vdwg.mxu0
        %3011 = vmatprep.subr.mxu0 0.0
        %v3012 = vand.u32 %v402, 4294901760
        %v3013 = vsub.f32 %v402, %v3012
        %v3014 = vand.u32 %v3013, 4294901760
        %3015 = vmatpush1.msra.mxu0 %v3014
        %3016 = vmatprep.subr.mxu0 0.0
        %v3017 = vand.u32 %v401, 4294901760
        %v3018 = vsub.f32 %v401, %v3017
        %v3019 = vand.u32 %v3018, 4294901760
        %3020 = vmatpush1.msra.mxu0 %v3019
        %3021 = vmatprep.subr.mxu0 0.0
        %v3022 = vand.u32 %v400, 4294901760
        %v3023 = vsub.f32 %v400, %v3022
        %v3024 = vand.u32 %v3023, 4294901760
        %3025 = vmatpush1.msra.mxu0 %v3024
        %3026 = vmatprep.subr.mxu0 0.0
        %v3027 = vand.u32 %v399, 4294901760
        %v3028 = vsub.f32 %v399, %v3027
        %v3029 = vand.u32 %v3028, 4294901760
        %3030 = vmatpush1.msra.mxu0 %v3029
        %3031 = vmatprep.subr.mxu0 0.0
        %v3032 = vand.u32 %v398, 4294901760
        %v3033 = vsub.f32 %v398, %v3032
        %v3034 = vand.u32 %v3033, 4294901760
        %3035 = vmatpush1.msra.mxu0 %v3034
        %3036 = vmatprep.subr.mxu0 0.0
        %v3037 = vand.u32 %v397, 4294901760
        %v3038 = vsub.f32 %v397, %v3037
        %v3039 = vand.u32 %v3038, 4294901760
        %3040 = vmatpush1.msra.mxu0 %v3039
        %3041 = vmatprep.subr.mxu0 0.0
        %v3042 = vand.u32 %v396, 4294901760
        %v3043 = vsub.f32 %v396, %v3042
        %v3044 = vand.u32 %v3043, 4294901760
        %3045 = vmatpush1.msra.mxu0 %v3044
        %3046 = vmatprep.subr.mxu0 0.0
        %v3047 = vand.u32 %v395, 4294901760
        %v3048 = vsub.f32 %v395, %v3047
        %v3049 = vand.u32 %v3048, 4294901760
        %3050 = vmatpush1.msra.mxu0 %v3049
        %3051 = vmatprep.subr.mxu0 0.0
        %v3052 = vand.u32 %v394, 4294901760
        %v3053 = vsub.f32 %v394, %v3052
        %v3054 = vand.u32 %v3053, 4294901760
        %3055 = vmatpush1.msra.mxu0 %v3054
        %3056 = vmatprep.subr.mxu0 0.0
        %v3057 = vand.u32 %v393, 4294901760
        %v3058 = vsub.f32 %v393, %v3057
        %v3059 = vand.u32 %v3058, 4294901760
        %3060 = vmatpush1.msra.mxu0 %v3059
        %3061 = vmatprep.subr.mxu0 0.0
        %v3062 = vand.u32 %v392, 4294901760
        %v3063 = vsub.f32 %v392, %v3062
        %v3064 = vand.u32 %v3063, 4294901760
        %3065 = vmatpush1.msra.mxu0 %v3064
        %3066 = vmatprep.subr.mxu0 0.0
        %v3067 = vand.u32 %v391, 4294901760
        %v3068 = vsub.f32 %v391, %v3067
        %v3069 = vand.u32 %v3068, 4294901760
        %3070 = vmatpush1.msra.mxu0 %v3069
        %3071 = vmatprep.subr.mxu0 0.0
        %v3072 = vand.u32 %v390, 4294901760
        %v3073 = vsub.f32 %v390, %v3072
        %v3074 = vand.u32 %v3073, 4294901760
        %3075 = vmatpush1.msra.mxu0 %v3074
        %3076 = vmatprep.subr.mxu0 0.0
        %v3077 = vand.u32 %v389, 4294901760
        %v3078 = vsub.f32 %v389, %v3077
        %v3079 = vand.u32 %v3078, 4294901760
        %3080 = vmatpush1.msra.mxu0 %v3079
        %3081 = vmatprep.subr.mxu0 0.0
        %v3082 = vand.u32 %v388, 4294901760
        %v3083 = vsub.f32 %v388, %v3082
        %v3084 = vand.u32 %v3083, 4294901760
        %3085 = vmatpush1.msra.mxu0 %v3084
        %3086 = vmatprep.subr.mxu0 0.0
        %v3087 = vand.u32 %v387, 4294901760
        %v3088 = vsub.f32 %v387, %v3087
        %v3089 = vand.u32 %v3088, 4294901760
        %3090 = vmatpush1.msra.mxu0 %v3089
        %3091 = vmatprep.subr.mxu0 0.0
        %3092 = vmatpush2.msra.mxu0 0.0
        %3093 = vmatprep.subr.mxu0 0.0
        %3094 = vmatpush2.msra.mxu0 0.0
        %3095 = vmatprep.subr.mxu0 0.0
        %3096 = vmatpush2.msra.mxu0 0.0
        %3097 = vmatprep.subr.mxu0 0.0
        %3098 = vmatpush2.msra.mxu0 0.0
        %3099 = vmatprep.subr.mxu0 0.0
        %3100 = vmatpush2.msra.mxu0 0.0
        %3101 = vmatprep.subr.mxu0 0.0
        %3102 = vmatpush2.msra.mxu0 0.0
        %3103 = vmatprep.subr.mxu0 0.0
        %3104 = vmatpush2.msra.mxu0 0.0
        %3105 = vmatprep.subr.mxu0 0.0
        %3106 = vmatpush2.msra.mxu0 0.0
        %3107 = vmatprep.subr.mxu0 0.0
        %3108 = vmatpush2.msra.mxu0 0.0
        %3109 = vmatprep.subr.mxu0 0.0
        %3110 = vmatpush2.msra.mxu0 0.0
        %3111 = vmatprep.subr.mxu0 0.0
        %3112 = vmatpush2.msra.mxu0 0.0
        %3113 = vmatprep.subr.mxu0 0.0
        %3114 = vmatpush2.msra.mxu0 0.0
        %3115 = vmatprep.subr.mxu0 0.0
        %3116 = vmatpush2.msra.mxu0 0.0
        %3117 = vmatprep.subr.mxu0 0.0
        %3118 = vmatpush2.msra.mxu0 0.0
        %3119 = vmatprep.subr.mxu0 0.0
        %3120 = vmatpush2.msra.mxu0 0.0
        %3121 = vmatprep.subr.mxu0 0.0
        %3122 = vmatpush2.msra.mxu0 0.0
        %3123 = vmatprep.mubr.f32.mxu0 0.0
        %v3124 = vand.u32 %v1859, 4294901760
        %3125 = vmatmul.mubr.f32.gmra.mxu0 %v3124
        %v3126 = vpop.f32.mrf.mxu0
        %v3127 = vadd.f32 %v3000, %v3126
        %v3128 = vpop.f32.mrf.mxu0
        %3129 = vmatprep.mubr.f32.mxu0 0.0
        %v3130 = vand.u32 %v1860, 4294901760
        %3131 = vmatmul.mubr.f32.gmra.mxu0 %v3130
        %v3132 = vpop.f32.mrf.mxu0
        %v3133 = vadd.f32 %v3008, %v3132
        %v3134 = vpop.f32.mrf.mxu0
        %3135 = vdwg.mxu0
        %3136 = vmatprep.subr.mxu0 0.0
        %v3137 = vand.u32 %v402, 4294901760
        %3138 = vmatpush1.msra.mxu0 %v3137
        %3139 = vmatprep.subr.mxu0 0.0
        %v3140 = vand.u32 %v401, 4294901760
        %3141 = vmatpush1.msra.mxu0 %v3140
        %3142 = vmatprep.subr.mxu0 0.0
        %v3143 = vand.u32 %v400, 4294901760
        %3144 = vmatpush1.msra.mxu0 %v3143
        %3145 = vmatprep.subr.mxu0 0.0
        %v3146 = vand.u32 %v399, 4294901760
        %3147 = vmatpush1.msra.mxu0 %v3146
        %3148 = vmatprep.subr.mxu0 0.0
        %v3149 = vand.u32 %v398, 4294901760
        %3150 = vmatpush1.msra.mxu0 %v3149
        %3151 = vmatprep.subr.mxu0 0.0
        %v3152 = vand.u32 %v397, 4294901760
        %3153 = vmatpush1.msra.mxu0 %v3152
        %3154 = vmatprep.subr.mxu0 0.0
        %v3155 = vand.u32 %v396, 4294901760
        %3156 = vmatpush1.msra.mxu0 %v3155
        %3157 = vmatprep.subr.mxu0 0.0
        %v3158 = vand.u32 %v395, 4294901760
        %3159 = vmatpush1.msra.mxu0 %v3158
        %3160 = vmatprep.subr.mxu0 0.0
        %v3161 = vand.u32 %v394, 4294901760
        %3162 = vmatpush1.msra.mxu0 %v3161
        %3163 = vmatprep.subr.mxu0 0.0
        %v3164 = vand.u32 %v393, 4294901760
        %3165 = vmatpush1.msra.mxu0 %v3164
        %3166 = vmatprep.subr.mxu0 0.0
        %v3167 = vand.u32 %v392, 4294901760
        %3168 = vmatpush1.msra.mxu0 %v3167
        %3169 = vmatprep.subr.mxu0 0.0
        %v3170 = vand.u32 %v391, 4294901760
        %3171 = vmatpush1.msra.mxu0 %v3170
        %3172 = vmatprep.subr.mxu0 0.0
        %v3173 = vand.u32 %v390, 4294901760
        %3174 = vmatpush1.msra.mxu0 %v3173
        %3175 = vmatprep.subr.mxu0 0.0
        %v3176 = vand.u32 %v389, 4294901760
        %3177 = vmatpush1.msra.mxu0 %v3176
        %3178 = vmatprep.subr.mxu0 0.0
        %v3179 = vand.u32 %v388, 4294901760
        %3180 = vmatpush1.msra.mxu0 %v3179
        %3181 = vmatprep.subr.mxu0 0.0
        %v3182 = vand.u32 %v387, 4294901760
        %3183 = vmatpush1.msra.mxu0 %v3182
        %3184 = vmatprep.subr.mxu0 0.0
        %3185 = vmatpush2.msra.mxu0 0.0
        %3186 = vmatprep.subr.mxu0 0.0
        %3187 = vmatpush2.msra.mxu0 0.0
        %3188 = vmatprep.subr.mxu0 0.0
        %3189 = vmatpush2.msra.mxu0 0.0
        %3190 = vmatprep.subr.mxu0 0.0
        %3191 = vmatpush2.msra.mxu0 0.0
        %3192 = vmatprep.subr.mxu0 0.0
        %3193 = vmatpush2.msra.mxu0 0.0
        %3194 = vmatprep.subr.mxu0 0.0
        %3195 = vmatpush2.msra.mxu0 0.0
        %3196 = vmatprep.subr.mxu0 0.0
        %3197 = vmatpush2.msra.mxu0 0.0
        %3198 = vmatprep.subr.mxu0 0.0
        %3199 = vmatpush2.msra.mxu0 0.0
        %3200 = vmatprep.subr.mxu0 0.0
        %3201 = vmatpush2.msra.mxu0 0.0
        %3202 = vmatprep.subr.mxu0 0.0
        %3203 = vmatpush2.msra.mxu0 0.0
        %3204 = vmatprep.subr.mxu0 0.0
        %3205 = vmatpush2.msra.mxu0 0.0
        %3206 = vmatprep.subr.mxu0 0.0
        %3207 = vmatpush2.msra.mxu0 0.0
        %3208 = vmatprep.subr.mxu0 0.0
        %3209 = vmatpush2.msra.mxu0 0.0
        %3210 = vmatprep.subr.mxu0 0.0
        %3211 = vmatpush2.msra.mxu0 0.0
        %3212 = vmatprep.subr.mxu0 0.0
        %3213 = vmatpush2.msra.mxu0 0.0
        %3214 = vmatprep.subr.mxu0 0.0
        %3215 = vmatpush2.msra.mxu0 0.0
        %3216 = vmatprep.mubr.f32.mxu0 0.0
        %v3217 = vand.u32 %v1859, 4294901760
        %3218 = vmatmul.mubr.f32.gmra.mxu0 %v3217
        %v3219 = vpop.f32.mrf.mxu0
        %v3220 = vadd.f32 %v3127, %v3219
        %v3221 = vpop.f32.mrf.mxu0
        %3222 = vmatprep.mubr.f32.mxu0 0.0
        %v3223 = vand.u32 %v1860, 4294901760
        %3224 = vmatmul.mubr.f32.gmra.mxu0 %v3223
        %v3225 = vpop.f32.mrf.mxu0
        %v3226 = vadd.f32 %v3133, %v3225
        %v3227 = vpop.f32.mrf.mxu0
        %3228 = vdwg.mxu0
        %v3229 = vand.u32 2147483647, %v2536
        %v3230 = vand.u32 2147483647, %v2542
        %v3231 = vadd.f32 %v1822, %v3229
        %v3232 = vadd.f32 %v1823, %v3230
        %v3233 = vand.u32 2147483647, %v3220
        %v3234 = vand.u32 2147483647, %v3226
        %v3235 = vadd.f32 %v1826, %v3233
        %v3236 = vadd.f32 %v1827, %v3234
        %s3237 = scalar_lea.vmem %s301, 32 [#allocation2]
        %v3238 = vld [vmem:[%s3237] sm:$0xff]
        %v3239 = vld [vmem:[%s3237 + $0x8] sm:$0xff]
        %v3240 = vld [vmem:[%s369 + $0x2] sm:$0x1]
        %v3241 = vld [vmem:[%s369 + $0x6] sm:$0x1]
        %v3242 = vrot.slane %v3238, 7
        %v3243 = vrot.slane %v3239, 7
        %v3244 = vsel %vm416, %v3242, %v3243
        %v3245 = vsel %vm416, %v3243, %v3242
        %v3246 = vlaneseq
        %v3247 = vshrl.u32 %v3246, 7
        %v3248 = vsub.s32 0, %v3247
        %v3249 = vrot.slane %v3240, %v3248
        %v3250 = vsel %vm421, %v3249, %v3245
        %v3251 = vsel %vm422, %v3249, %v3244
        %v3252 = vrot.slane %v3238, 1
        %v3253 = vrot.slane %v3239, 1
        %v3254 = vsel %vm431, %v3252, %v3253
        %v3255 = vsel %vm431, %v3253, %v3252
        %v3256 = vlaneseq
        %v3257 = vshrl.u32 %v3256, 7
        %v3258 = vsub.s32 0, %v3257
        %v3259 = vrot.slane %v3241, %v3258
        %v3260 = vsel %vm436, %v3259, %v3254
        %v3261 = vsel %vm437, %v3259, %v3255
        %v3262 = vmul.f32 %v3238, 2.0
        %v3263 = vmul.f32 %v3239, 2.0
        %v3264 = vadd.f32 %v3250, %v3262
        %v3265 = vadd.f32 %v3251, %v3263
        %v3266 = vadd.f32 %v3264, %v3260
        %v3267 = vadd.f32 %v3265, %v3261
        %v3268 = vsub.f32 %v3260, %v3250
        %v3269 = vsub.f32 %v3261, %v3251
        %3270 = vmatprep.subr.mxu0 0.0
        %v3271 = vand.u32 %v386, 4294901760
        %3272 = vmatpush1.msra.mxu0 %v3271
        %3273 = vmatprep.subr.mxu0 0.0
        %v3274 = vand.u32 %v385, 4294901760
        %3275 = vmatpush1.msra.mxu0 %v3274
        %3276 = vmatprep.subr.mxu0 0.0
        %v3277 = vand.u32 %v384, 4294901760
        %3278 = vmatpush1.msra.mxu0 %v3277
        %3279 = vmatprep.subr.mxu0 0.0
        %v3280 = vand.u32 %v383, 4294901760
        %3281 = vmatpush1.msra.mxu0 %v3280
        %3282 = vmatprep.subr.mxu0 0.0
        %v3283 = vand.u32 %v382, 4294901760
        %3284 = vmatpush1.msra.mxu0 %v3283
        %3285 = vmatprep.subr.mxu0 0.0
        %v3286 = vand.u32 %v381, 4294901760
        %3287 = vmatpush1.msra.mxu0 %v3286
        %3288 = vmatprep.subr.mxu0 0.0
        %v3289 = vand.u32 %v380, 4294901760
        %3290 = vmatpush1.msra.mxu0 %v3289
        %3291 = vmatprep.subr.mxu0 0.0
        %v3292 = vand.u32 %v379, 4294901760
        %3293 = vmatpush1.msra.mxu0 %v3292
        %3294 = vmatprep.subr.mxu0 0.0
        %v3295 = vand.u32 %v378, 4294901760
        %3296 = vmatpush1.msra.mxu0 %v3295
        %3297 = vmatprep.subr.mxu0 0.0
        %v3298 = vand.u32 %v377, 4294901760
        %3299 = vmatpush1.msra.mxu0 %v3298
        %3300 = vmatprep.subr.mxu0 0.0
        %v3301 = vand.u32 %v376, 4294901760
        %3302 = vmatpush1.msra.mxu0 %v3301
        %3303 = vmatprep.subr.mxu0 0.0
        %v3304 = vand.u32 %v375, 4294901760
        %3305 = vmatpush1.msra.mxu0 %v3304
        %3306 = vmatprep.subr.mxu0 0.0
        %v3307 = vand.u32 %v374, 4294901760
        %3308 = vmatpush1.msra.mxu0 %v3307
        %3309 = vmatprep.subr.mxu0 0.0
        %v3310 = vand.u32 %v373, 4294901760
        %3311 = vmatpush1.msra.mxu0 %v3310
        %3312 = vmatprep.subr.mxu0 0.0
        %v3313 = vand.u32 %v372, 4294901760
        %3314 = vmatpush1.msra.mxu0 %v3313
        %3315 = vmatprep.subr.mxu0 0.0
        %v3316 = vand.u32 %v371, 4294901760
        %3317 = vmatpush1.msra.mxu0 %v3316
        %3318 = vmatprep.subr.mxu0 0.0
        %3319 = vmatpush2.msra.mxu0 0.0
        %3320 = vmatprep.subr.mxu0 0.0
        %3321 = vmatpush2.msra.mxu0 0.0
        %3322 = vmatprep.subr.mxu0 0.0
        %3323 = vmatpush2.msra.mxu0 0.0
        %3324 = vmatprep.subr.mxu0 0.0
        %3325 = vmatpush2.msra.mxu0 0.0
        %3326 = vmatprep.subr.mxu0 0.0
        %3327 = vmatpush2.msra.mxu0 0.0
        %3328 = vmatprep.subr.mxu0 0.0
        %3329 = vmatpush2.msra.mxu0 0.0
        %3330 = vmatprep.subr.mxu0 0.0
        %3331 = vmatpush2.msra.mxu0 0.0
        %3332 = vmatprep.subr.mxu0 0.0
        %3333 = vmatpush2.msra.mxu0 0.0
        %3334 = vmatprep.subr.mxu0 0.0
        %3335 = vmatpush2.msra.mxu0 0.0
        %3336 = vmatprep.subr.mxu0 0.0
        %3337 = vmatpush2.msra.mxu0 0.0
        %3338 = vmatprep.subr.mxu0 0.0
        %3339 = vmatpush2.msra.mxu0 0.0
        %3340 = vmatprep.subr.mxu0 0.0
        %3341 = vmatpush2.msra.mxu0 0.0
        %3342 = vmatprep.subr.mxu0 0.0
        %3343 = vmatpush2.msra.mxu0 0.0
        %3344 = vmatprep.subr.mxu0 0.0
        %3345 = vmatpush2.msra.mxu0 0.0
        %3346 = vmatprep.subr.mxu0 0.0
        %3347 = vmatpush2.msra.mxu0 0.0
        %3348 = vmatprep.subr.mxu0 0.0
        %3349 = vmatpush2.msra.mxu0 0.0
        %3350 = vmatprep.mubr.f32.mxu0 0.0
        %v3351 = vand.u32 %v3266, 4294901760
        %v3352 = vsub.f32 %v3266, %v3351
        %v3353 = vand.u32 %v3352, 4294901760
        %v3354 = vsub.f32 %v3352, %v3353
        %v3355 = vand.u32 %v3354, 4294901760
        %3356 = vmatmul.mubr.f32.gmra.mxu0 %v3355
        %v3357 = vpop.f32.mrf.mxu0
        %v3358 = vadd.f32 0.0, %v3357
        %v3359 = vpop.f32.mrf.mxu0
        %3360 = vmatprep.mubr.f32.mxu0 0.0
        %v3361 = vand.u32 %v3267, 4294901760
        %v3362 = vsub.f32 %v3267, %v3361
        %v3363 = vand.u32 %v3362, 4294901760
        %v3364 = vsub.f32 %v3362, %v3363
        %v3365 = vand.u32 %v3364, 4294901760
        %3366 = vmatmul.mubr.f32.gmra.mxu0 %v3365
        %v3367 = vpop.f32.mrf.mxu0
        %v3368 = vadd.f32 0.0, %v3367
        %v3369 = vpop.f32.mrf.mxu0
        %3370 = vdwg.mxu0
        %3371 = vmatprep.subr.mxu0 0.0
        %v3372 = vand.u32 %v386, 4294901760
        %v3373 = vsub.f32 %v386, %v3372
        %v3374 = vand.u32 %v3373, 4294901760
        %v3375 = vsub.f32 %v3373, %v3374
        %v3376 = vand.u32 %v3375, 4294901760
        %3377 = vmatpush1.msra.mxu0 %v3376
        %3378 = vmatprep.subr.mxu0 0.0
        %v3379 = vand.u32 %v385, 4294901760
        %v3380 = vsub.f32 %v385, %v3379
        %v3381 = vand.u32 %v3380, 4294901760
        %v3382 = vsub.f32 %v3380, %v3381
        %v3383 = vand.u32 %v3382, 4294901760
        %3384 = vmatpush1.msra.mxu0 %v3383
        %3385 = vmatprep.subr.mxu0 0.0
        %v3386 = vand.u32 %v384, 4294901760
        %v3387 = vsub.f32 %v384, %v3386
        %v3388 = vand.u32 %v3387, 4294901760
        %v3389 = vsub.f32 %v3387, %v3388
        %v3390 = vand.u32 %v3389, 4294901760
        %3391 = vmatpush1.msra.mxu0 %v3390
        %3392 = vmatprep.subr.mxu0 0.0
        %v3393 = vand.u32 %v383, 4294901760
        %v3394 = vsub.f32 %v383, %v3393
        %v3395 = vand.u32 %v3394, 4294901760
        %v3396 = vsub.f32 %v3394, %v3395
        %v3397 = vand.u32 %v3396, 4294901760
        %3398 = vmatpush1.msra.mxu0 %v3397
        %3399 = vmatprep.subr.mxu0 0.0
        %v3400 = vand.u32 %v382, 4294901760
        %v3401 = vsub.f32 %v382, %v3400
        %v3402 = vand.u32 %v3401, 4294901760
        %v3403 = vsub.f32 %v3401, %v3402
        %v3404 = vand.u32 %v3403, 4294901760
        %3405 = vmatpush1.msra.mxu0 %v3404
        %3406 = vmatprep.subr.mxu0 0.0
        %v3407 = vand.u32 %v381, 4294901760
        %v3408 = vsub.f32 %v381, %v3407
        %v3409 = vand.u32 %v3408, 4294901760
        %v3410 = vsub.f32 %v3408, %v3409
        %v3411 = vand.u32 %v3410, 4294901760
        %3412 = vmatpush1.msra.mxu0 %v3411
        %3413 = vmatprep.subr.mxu0 0.0
        %v3414 = vand.u32 %v380, 4294901760
        %v3415 = vsub.f32 %v380, %v3414
        %v3416 = vand.u32 %v3415, 4294901760
        %v3417 = vsub.f32 %v3415, %v3416
        %v3418 = vand.u32 %v3417, 4294901760
        %3419 = vmatpush1.msra.mxu0 %v3418
        %3420 = vmatprep.subr.mxu0 0.0
        %v3421 = vand.u32 %v379, 4294901760
        %v3422 = vsub.f32 %v379, %v3421
        %v3423 = vand.u32 %v3422, 4294901760
        %v3424 = vsub.f32 %v3422, %v3423
        %v3425 = vand.u32 %v3424, 4294901760
        %3426 = vmatpush1.msra.mxu0 %v3425
        %3427 = vmatprep.subr.mxu0 0.0
        %v3428 = vand.u32 %v378, 4294901760
        %v3429 = vsub.f32 %v378, %v3428
        %v3430 = vand.u32 %v3429, 4294901760
        %v3431 = vsub.f32 %v3429, %v3430
        %v3432 = vand.u32 %v3431, 4294901760
        %3433 = vmatpush1.msra.mxu0 %v3432
        %3434 = vmatprep.subr.mxu0 0.0
        %v3435 = vand.u32 %v377, 4294901760
        %v3436 = vsub.f32 %v377, %v3435
        %v3437 = vand.u32 %v3436, 4294901760
        %v3438 = vsub.f32 %v3436, %v3437
        %v3439 = vand.u32 %v3438, 4294901760
        %3440 = vmatpush1.msra.mxu0 %v3439
        %3441 = vmatprep.subr.mxu0 0.0
        %v3442 = vand.u32 %v376, 4294901760
        %v3443 = vsub.f32 %v376, %v3442
        %v3444 = vand.u32 %v3443, 4294901760
        %v3445 = vsub.f32 %v3443, %v3444
        %v3446 = vand.u32 %v3445, 4294901760
        %3447 = vmatpush1.msra.mxu0 %v3446
        %3448 = vmatprep.subr.mxu0 0.0
        %v3449 = vand.u32 %v375, 4294901760
        %v3450 = vsub.f32 %v375, %v3449
        %v3451 = vand.u32 %v3450, 4294901760
        %v3452 = vsub.f32 %v3450, %v3451
        %v3453 = vand.u32 %v3452, 4294901760
        %3454 = vmatpush1.msra.mxu0 %v3453
        %3455 = vmatprep.subr.mxu0 0.0
        %v3456 = vand.u32 %v374, 4294901760
        %v3457 = vsub.f32 %v374, %v3456
        %v3458 = vand.u32 %v3457, 4294901760
        %v3459 = vsub.f32 %v3457, %v3458
        %v3460 = vand.u32 %v3459, 4294901760
        %3461 = vmatpush1.msra.mxu0 %v3460
        %3462 = vmatprep.subr.mxu0 0.0
        %v3463 = vand.u32 %v373, 4294901760
        %v3464 = vsub.f32 %v373, %v3463
        %v3465 = vand.u32 %v3464, 4294901760
        %v3466 = vsub.f32 %v3464, %v3465
        %v3467 = vand.u32 %v3466, 4294901760
        %3468 = vmatpush1.msra.mxu0 %v3467
        %3469 = vmatprep.subr.mxu0 0.0
        %v3470 = vand.u32 %v372, 4294901760
        %v3471 = vsub.f32 %v372, %v3470
        %v3472 = vand.u32 %v3471, 4294901760
        %v3473 = vsub.f32 %v3471, %v3472
        %v3474 = vand.u32 %v3473, 4294901760
        %3475 = vmatpush1.msra.mxu0 %v3474
        %3476 = vmatprep.subr.mxu0 0.0
        %v3477 = vand.u32 %v371, 4294901760
        %v3478 = vsub.f32 %v371, %v3477
        %v3479 = vand.u32 %v3478, 4294901760
        %v3480 = vsub.f32 %v3478, %v3479
        %v3481 = vand.u32 %v3480, 4294901760
        %3482 = vmatpush1.msra.mxu0 %v3481
        %3483 = vmatprep.subr.mxu0 0.0
        %3484 = vmatpush2.msra.mxu0 0.0
        %3485 = vmatprep.subr.mxu0 0.0
        %3486 = vmatpush2.msra.mxu0 0.0
        %3487 = vmatprep.subr.mxu0 0.0
        %3488 = vmatpush2.msra.mxu0 0.0
        %3489 = vmatprep.subr.mxu0 0.0
        %3490 = vmatpush2.msra.mxu0 0.0
        %3491 = vmatprep.subr.mxu0 0.0
        %3492 = vmatpush2.msra.mxu0 0.0
        %3493 = vmatprep.subr.mxu0 0.0
        %3494 = vmatpush2.msra.mxu0 0.0
        %3495 = vmatprep.subr.mxu0 0.0
        %3496 = vmatpush2.msra.mxu0 0.0
        %3497 = vmatprep.subr.mxu0 0.0
        %3498 = vmatpush2.msra.mxu0 0.0
        %3499 = vmatprep.subr.mxu0 0.0
        %3500 = vmatpush2.msra.mxu0 0.0
        %3501 = vmatprep.subr.mxu0 0.0
        %3502 = vmatpush2.msra.mxu0 0.0
        %3503 = vmatprep.subr.mxu0 0.0
        %3504 = vmatpush2.msra.mxu0 0.0
        %3505 = vmatprep.subr.mxu0 0.0
        %3506 = vmatpush2.msra.mxu0 0.0
        %3507 = vmatprep.subr.mxu0 0.0
        %3508 = vmatpush2.msra.mxu0 0.0
        %3509 = vmatprep.subr.mxu0 0.0
        %3510 = vmatpush2.msra.mxu0 0.0
        %3511 = vmatprep.subr.mxu0 0.0
        %3512 = vmatpush2.msra.mxu0 0.0
        %3513 = vmatprep.subr.mxu0 0.0
        %3514 = vmatpush2.msra.mxu0 0.0
        %3515 = vmatprep.mubr.f32.mxu0 0.0
        %v3516 = vand.u32 %v3266, 4294901760
        %3517 = vmatmul.mubr.f32.gmra.mxu0 %v3516
        %v3518 = vpop.f32.mrf.mxu0
        %v3519 = vadd.f32 %v3358, %v3518
        %v3520 = vpop.f32.mrf.mxu0
        %3521 = vmatprep.mubr.f32.mxu0 0.0
        %v3522 = vand.u32 %v3267, 4294901760
        %3523 = vmatmul.mubr.f32.gmra.mxu0 %v3522
        %v3524 = vpop.f32.mrf.mxu0
        %v3525 = vadd.f32 %v3368, %v3524
        %v3526 = vpop.f32.mrf.mxu0
        %3527 = vdwg.mxu0
        %3528 = vmatprep.subr.mxu0 0.0
        %v3529 = vand.u32 %v386, 4294901760
        %v3530 = vsub.f32 %v386, %v3529
        %3531 = vmatpush1.msra.mxu0 %v3530
        %3532 = vmatprep.subr.mxu0 0.0
        %v3533 = vand.u32 %v385, 4294901760
        %v3534 = vsub.f32 %v385, %v3533
        %3535 = vmatpush1.msra.mxu0 %v3534
        %3536 = vmatprep.subr.mxu0 0.0
        %v3537 = vand.u32 %v384, 4294901760
        %v3538 = vsub.f32 %v384, %v3537
        %3539 = vmatpush1.msra.mxu0 %v3538
        %3540 = vmatprep.subr.mxu0 0.0
        %v3541 = vand.u32 %v383, 4294901760
        %v3542 = vsub.f32 %v383, %v3541
        %3543 = vmatpush1.msra.mxu0 %v3542
        %3544 = vmatprep.subr.mxu0 0.0
        %v3545 = vand.u32 %v382, 4294901760
        %v3546 = vsub.f32 %v382, %v3545
        %3547 = vmatpush1.msra.mxu0 %v3546
        %3548 = vmatprep.subr.mxu0 0.0
        %v3549 = vand.u32 %v381, 4294901760
        %v3550 = vsub.f32 %v381, %v3549
        %3551 = vmatpush1.msra.mxu0 %v3550
        %3552 = vmatprep.subr.mxu0 0.0
        %v3553 = vand.u32 %v380, 4294901760
        %v3554 = vsub.f32 %v380, %v3553
        %3555 = vmatpush1.msra.mxu0 %v3554
        %3556 = vmatprep.subr.mxu0 0.0
        %v3557 = vand.u32 %v379, 4294901760
        %v3558 = vsub.f32 %v379, %v3557
        %3559 = vmatpush1.msra.mxu0 %v3558
        %3560 = vmatprep.subr.mxu0 0.0
        %v3561 = vand.u32 %v378, 4294901760
        %v3562 = vsub.f32 %v378, %v3561
        %3563 = vmatpush1.msra.mxu0 %v3562
        %3564 = vmatprep.subr.mxu0 0.0
        %v3565 = vand.u32 %v377, 4294901760
        %v3566 = vsub.f32 %v377, %v3565
        %3567 = vmatpush1.msra.mxu0 %v3566
        %3568 = vmatprep.subr.mxu0 0.0
        %v3569 = vand.u32 %v376, 4294901760
        %v3570 = vsub.f32 %v376, %v3569
        %3571 = vmatpush1.msra.mxu0 %v3570
        %3572 = vmatprep.subr.mxu0 0.0
        %v3573 = vand.u32 %v375, 4294901760
        %v3574 = vsub.f32 %v375, %v3573
        %3575 = vmatpush1.msra.mxu0 %v3574
        %3576 = vmatprep.subr.mxu0 0.0
        %v3577 = vand.u32 %v374, 4294901760
        %v3578 = vsub.f32 %v374, %v3577
        %3579 = vmatpush1.msra.mxu0 %v3578
        %3580 = vmatprep.subr.mxu0 0.0
        %v3581 = vand.u32 %v373, 4294901760
        %v3582 = vsub.f32 %v373, %v3581
        %3583 = vmatpush1.msra.mxu0 %v3582
        %3584 = vmatprep.subr.mxu0 0.0
        %v3585 = vand.u32 %v372, 4294901760
        %v3586 = vsub.f32 %v372, %v3585
        %3587 = vmatpush1.msra.mxu0 %v3586
        %3588 = vmatprep.subr.mxu0 0.0
        %v3589 = vand.u32 %v371, 4294901760
        %v3590 = vsub.f32 %v371, %v3589
        %3591 = vmatpush1.msra.mxu0 %v3590
        %3592 = vmatprep.subr.mxu0 0.0
        %3593 = vmatpush2.msra.mxu0 0.0
        %3594 = vmatprep.subr.mxu0 0.0
        %3595 = vmatpush2.msra.mxu0 0.0
        %3596 = vmatprep.subr.mxu0 0.0
        %3597 = vmatpush2.msra.mxu0 0.0
        %3598 = vmatprep.subr.mxu0 0.0
        %3599 = vmatpush2.msra.mxu0 0.0
        %3600 = vmatprep.subr.mxu0 0.0
        %3601 = vmatpush2.msra.mxu0 0.0
        %3602 = vmatprep.subr.mxu0 0.0
        %3603 = vmatpush2.msra.mxu0 0.0
        %3604 = vmatprep.subr.mxu0 0.0
        %3605 = vmatpush2.msra.mxu0 0.0
        %3606 = vmatprep.subr.mxu0 0.0
        %3607 = vmatpush2.msra.mxu0 0.0
        %3608 = vmatprep.subr.mxu0 0.0
        %3609 = vmatpush2.msra.mxu0 0.0
        %3610 = vmatprep.subr.mxu0 0.0
        %3611 = vmatpush2.msra.mxu0 0.0
        %3612 = vmatprep.subr.mxu0 0.0
        %3613 = vmatpush2.msra.mxu0 0.0
        %3614 = vmatprep.subr.mxu0 0.0
        %3615 = vmatpush2.msra.mxu0 0.0
        %3616 = vmatprep.subr.mxu0 0.0
        %3617 = vmatpush2.msra.mxu0 0.0
        %3618 = vmatprep.subr.mxu0 0.0
        %3619 = vmatpush2.msra.mxu0 0.0
        %3620 = vmatprep.subr.mxu0 0.0
        %3621 = vmatpush2.msra.mxu0 0.0
        %3622 = vmatprep.subr.mxu0 0.0
        %3623 = vmatpush2.msra.mxu0 0.0
        %3624 = vmatprep.mubr.f32.mxu0 0.0
        %v3625 = vand.u32 %v3266, 4294901760
        %v3626 = vsub.f32 %v3266, %v3625
        %3627 = vmatmul.mubr.f32.gmra.mxu0 %v3626
        %v3628 = vpop.f32.mrf.mxu0
        %v3629 = vadd.f32 %v3519, %v3628
        %v3630 = vpop.f32.mrf.mxu0
        %3631 = vmatprep.mubr.f32.mxu0 0.0
        %v3632 = vand.u32 %v3267, 4294901760
        %v3633 = vsub.f32 %v3267, %v3632
        %3634 = vmatmul.mubr.f32.gmra.mxu0 %v3633
        %v3635 = vpop.f32.mrf.mxu0
        %v3636 = vadd.f32 %v3525, %v3635
        %v3637 = vpop.f32.mrf.mxu0
        %3638 = vdwg.mxu0
        %3639 = vmatprep.subr.mxu0 0.0
        %v3640 = vand.u32 %v386, 4294901760
        %3641 = vmatpush1.msra.mxu0 %v3640
        %3642 = vmatprep.subr.mxu0 0.0
        %v3643 = vand.u32 %v385, 4294901760
        %3644 = vmatpush1.msra.mxu0 %v3643
        %3645 = vmatprep.subr.mxu0 0.0
        %v3646 = vand.u32 %v384, 4294901760
        %3647 = vmatpush1.msra.mxu0 %v3646
        %3648 = vmatprep.subr.mxu0 0.0
        %v3649 = vand.u32 %v383, 4294901760
        %3650 = vmatpush1.msra.mxu0 %v3649
        %3651 = vmatprep.subr.mxu0 0.0
        %v3652 = vand.u32 %v382, 4294901760
        %3653 = vmatpush1.msra.mxu0 %v3652
        %3654 = vmatprep.subr.mxu0 0.0
        %v3655 = vand.u32 %v381, 4294901760
        %3656 = vmatpush1.msra.mxu0 %v3655
        %3657 = vmatprep.subr.mxu0 0.0
        %v3658 = vand.u32 %v380, 4294901760
        %3659 = vmatpush1.msra.mxu0 %v3658
        %3660 = vmatprep.subr.mxu0 0.0
        %v3661 = vand.u32 %v379, 4294901760
        %3662 = vmatpush1.msra.mxu0 %v3661
        %3663 = vmatprep.subr.mxu0 0.0
        %v3664 = vand.u32 %v378, 4294901760
        %3665 = vmatpush1.msra.mxu0 %v3664
        %3666 = vmatprep.subr.mxu0 0.0
        %v3667 = vand.u32 %v377, 4294901760
        %3668 = vmatpush1.msra.mxu0 %v3667
        %3669 = vmatprep.subr.mxu0 0.0
        %v3670 = vand.u32 %v376, 4294901760
        %3671 = vmatpush1.msra.mxu0 %v3670
        %3672 = vmatprep.subr.mxu0 0.0
        %v3673 = vand.u32 %v375, 4294901760
        %3674 = vmatpush1.msra.mxu0 %v3673
        %3675 = vmatprep.subr.mxu0 0.0
        %v3676 = vand.u32 %v374, 4294901760
        %3677 = vmatpush1.msra.mxu0 %v3676
        %3678 = vmatprep.subr.mxu0 0.0
        %v3679 = vand.u32 %v373, 4294901760
        %3680 = vmatpush1.msra.mxu0 %v3679
        %3681 = vmatprep.subr.mxu0 0.0
        %v3682 = vand.u32 %v372, 4294901760
        %3683 = vmatpush1.msra.mxu0 %v3682
        %3684 = vmatprep.subr.mxu0 0.0
        %v3685 = vand.u32 %v371, 4294901760
        %3686 = vmatpush1.msra.mxu0 %v3685
        %3687 = vmatprep.subr.mxu0 0.0
        %3688 = vmatpush2.msra.mxu0 0.0
        %3689 = vmatprep.subr.mxu0 0.0
        %3690 = vmatpush2.msra.mxu0 0.0
        %3691 = vmatprep.subr.mxu0 0.0
        %3692 = vmatpush2.msra.mxu0 0.0
        %3693 = vmatprep.subr.mxu0 0.0
        %3694 = vmatpush2.msra.mxu0 0.0
        %3695 = vmatprep.subr.mxu0 0.0
        %3696 = vmatpush2.msra.mxu0 0.0
        %3697 = vmatprep.subr.mxu0 0.0
        %3698 = vmatpush2.msra.mxu0 0.0
        %3699 = vmatprep.subr.mxu0 0.0
        %3700 = vmatpush2.msra.mxu0 0.0
        %3701 = vmatprep.subr.mxu0 0.0
        %3702 = vmatpush2.msra.mxu0 0.0
        %3703 = vmatprep.subr.mxu0 0.0
        %3704 = vmatpush2.msra.mxu0 0.0
        %3705 = vmatprep.subr.mxu0 0.0
        %3706 = vmatpush2.msra.mxu0 0.0
        %3707 = vmatprep.subr.mxu0 0.0
        %3708 = vmatpush2.msra.mxu0 0.0
        %3709 = vmatprep.subr.mxu0 0.0
        %3710 = vmatpush2.msra.mxu0 0.0
        %3711 = vmatprep.subr.mxu0 0.0
        %3712 = vmatpush2.msra.mxu0 0.0
        %3713 = vmatprep.subr.mxu0 0.0
        %3714 = vmatpush2.msra.mxu0 0.0
        %3715 = vmatprep.subr.mxu0 0.0
        %3716 = vmatpush2.msra.mxu0 0.0
        %3717 = vmatprep.subr.mxu0 0.0
        %3718 = vmatpush2.msra.mxu0 0.0
        %3719 = vmatprep.mubr.f32.mxu0 0.0
        %v3720 = vand.u32 %v3266, 4294901760
        %v3721 = vsub.f32 %v3266, %v3720
        %v3722 = vand.u32 %v3721, 4294901760
        %3723 = vmatmul.mubr.f32.gmra.mxu0 %v3722
        %v3724 = vpop.f32.mrf.mxu0
        %v3725 = vadd.f32 %v3629, %v3724
        %v3726 = vpop.f32.mrf.mxu0
        %3727 = vmatprep.mubr.f32.mxu0 0.0
        %v3728 = vand.u32 %v3267, 4294901760
        %v3729 = vsub.f32 %v3267, %v3728
        %v3730 = vand.u32 %v3729, 4294901760
        %3731 = vmatmul.mubr.f32.gmra.mxu0 %v3730
        %v3732 = vpop.f32.mrf.mxu0
        %v3733 = vadd.f32 %v3636, %v3732
        %v3734 = vpop.f32.mrf.mxu0
        %3735 = vdwg.mxu0
        %3736 = vmatprep.subr.mxu0 0.0
        %v3737 = vand.u32 %v386, 4294901760
        %v3738 = vsub.f32 %v386, %v3737
        %v3739 = vand.u32 %v3738, 4294901760
        %3740 = vmatpush1.msra.mxu0 %v3739
        %3741 = vmatprep.subr.mxu0 0.0
        %v3742 = vand.u32 %v385, 4294901760
        %v3743 = vsub.f32 %v385, %v3742
        %v3744 = vand.u32 %v3743, 4294901760
        %3745 = vmatpush1.msra.mxu0 %v3744
        %3746 = vmatprep.subr.mxu0 0.0
        %v3747 = vand.u32 %v384, 4294901760
        %v3748 = vsub.f32 %v384, %v3747
        %v3749 = vand.u32 %v3748, 4294901760
        %3750 = vmatpush1.msra.mxu0 %v3749
        %3751 = vmatprep.subr.mxu0 0.0
        %v3752 = vand.u32 %v383, 4294901760
        %v3753 = vsub.f32 %v383, %v3752
        %v3754 = vand.u32 %v3753, 4294901760
        %3755 = vmatpush1.msra.mxu0 %v3754
        %3756 = vmatprep.subr.mxu0 0.0
        %v3757 = vand.u32 %v382, 4294901760
        %v3758 = vsub.f32 %v382, %v3757
        %v3759 = vand.u32 %v3758, 4294901760
        %3760 = vmatpush1.msra.mxu0 %v3759
        %3761 = vmatprep.subr.mxu0 0.0
        %v3762 = vand.u32 %v381, 4294901760
        %v3763 = vsub.f32 %v381, %v3762
        %v3764 = vand.u32 %v3763, 4294901760
        %3765 = vmatpush1.msra.mxu0 %v3764
        %3766 = vmatprep.subr.mxu0 0.0
        %v3767 = vand.u32 %v380, 4294901760
        %v3768 = vsub.f32 %v380, %v3767
        %v3769 = vand.u32 %v3768, 4294901760
        %3770 = vmatpush1.msra.mxu0 %v3769
        %3771 = vmatprep.subr.mxu0 0.0
        %v3772 = vand.u32 %v379, 4294901760
        %v3773 = vsub.f32 %v379, %v3772
        %v3774 = vand.u32 %v3773, 4294901760
        %3775 = vmatpush1.msra.mxu0 %v3774
        %3776 = vmatprep.subr.mxu0 0.0
        %v3777 = vand.u32 %v378, 4294901760
        %v3778 = vsub.f32 %v378, %v3777
        %v3779 = vand.u32 %v3778, 4294901760
        %3780 = vmatpush1.msra.mxu0 %v3779
        %3781 = vmatprep.subr.mxu0 0.0
        %v3782 = vand.u32 %v377, 4294901760
        %v3783 = vsub.f32 %v377, %v3782
        %v3784 = vand.u32 %v3783, 4294901760
        %3785 = vmatpush1.msra.mxu0 %v3784
        %3786 = vmatprep.subr.mxu0 0.0
        %v3787 = vand.u32 %v376, 4294901760
        %v3788 = vsub.f32 %v376, %v3787
        %v3789 = vand.u32 %v3788, 4294901760
        %3790 = vmatpush1.msra.mxu0 %v3789
        %3791 = vmatprep.subr.mxu0 0.0
        %v3792 = vand.u32 %v375, 4294901760
        %v3793 = vsub.f32 %v375, %v3792
        %v3794 = vand.u32 %v3793, 4294901760
        %3795 = vmatpush1.msra.mxu0 %v3794
        %3796 = vmatprep.subr.mxu0 0.0
        %v3797 = vand.u32 %v374, 4294901760
        %v3798 = vsub.f32 %v374, %v3797
        %v3799 = vand.u32 %v3798, 4294901760
        %3800 = vmatpush1.msra.mxu0 %v3799
        %3801 = vmatprep.subr.mxu0 0.0
        %v3802 = vand.u32 %v373, 4294901760
        %v3803 = vsub.f32 %v373, %v3802
        %v3804 = vand.u32 %v3803, 4294901760
        %3805 = vmatpush1.msra.mxu0 %v3804
        %3806 = vmatprep.subr.mxu0 0.0
        %v3807 = vand.u32 %v372, 4294901760
        %v3808 = vsub.f32 %v372, %v3807
        %v3809 = vand.u32 %v3808, 4294901760
        %3810 = vmatpush1.msra.mxu0 %v3809
        %3811 = vmatprep.subr.mxu0 0.0
        %v3812 = vand.u32 %v371, 4294901760
        %v3813 = vsub.f32 %v371, %v3812
        %v3814 = vand.u32 %v3813, 4294901760
        %3815 = vmatpush1.msra.mxu0 %v3814
        %3816 = vmatprep.subr.mxu0 0.0
        %3817 = vmatpush2.msra.mxu0 0.0
        %3818 = vmatprep.subr.mxu0 0.0
        %3819 = vmatpush2.msra.mxu0 0.0
        %3820 = vmatprep.subr.mxu0 0.0
        %3821 = vmatpush2.msra.mxu0 0.0
        %3822 = vmatprep.subr.mxu0 0.0
        %3823 = vmatpush2.msra.mxu0 0.0
        %3824 = vmatprep.subr.mxu0 0.0
        %3825 = vmatpush2.msra.mxu0 0.0
        %3826 = vmatprep.subr.mxu0 0.0
        %3827 = vmatpush2.msra.mxu0 0.0
        %3828 = vmatprep.subr.mxu0 0.0
        %3829 = vmatpush2.msra.mxu0 0.0
        %3830 = vmatprep.subr.mxu0 0.0
        %3831 = vmatpush2.msra.mxu0 0.0
        %3832 = vmatprep.subr.mxu0 0.0
        %3833 = vmatpush2.msra.mxu0 0.0
        %3834 = vmatprep.subr.mxu0 0.0
        %3835 = vmatpush2.msra.mxu0 0.0
        %3836 = vmatprep.subr.mxu0 0.0
        %3837 = vmatpush2.msra.mxu0 0.0
        %3838 = vmatprep.subr.mxu0 0.0
        %3839 = vmatpush2.msra.mxu0 0.0
        %3840 = vmatprep.subr.mxu0 0.0
        %3841 = vmatpush2.msra.mxu0 0.0
        %3842 = vmatprep.subr.mxu0 0.0
        %3843 = vmatpush2.msra.mxu0 0.0
        %3844 = vmatprep.subr.mxu0 0.0
        %3845 = vmatpush2.msra.mxu0 0.0
        %3846 = vmatprep.subr.mxu0 0.0
        %3847 = vmatpush2.msra.mxu0 0.0
        %3848 = vmatprep.mubr.f32.mxu0 0.0
        %v3849 = vand.u32 %v3266, 4294901760
        %3850 = vmatmul.mubr.f32.gmra.mxu0 %v3849
        %v3851 = vpop.f32.mrf.mxu0
        %v3852 = vadd.f32 %v3725, %v3851
        %v3853 = vpop.f32.mrf.mxu0
        %3854 = vmatprep.mubr.f32.mxu0 0.0
        %v3855 = vand.u32 %v3267, 4294901760
        %3856 = vmatmul.mubr.f32.gmra.mxu0 %v3855
        %v3857 = vpop.f32.mrf.mxu0
        %v3858 = vadd.f32 %v3733, %v3857
        %v3859 = vpop.f32.mrf.mxu0
        %3860 = vdwg.mxu0
        %3861 = vmatprep.subr.mxu0 0.0
        %v3862 = vand.u32 %v386, 4294901760
        %3863 = vmatpush1.msra.mxu0 %v3862
        %3864 = vmatprep.subr.mxu0 0.0
        %v3865 = vand.u32 %v385, 4294901760
        %3866 = vmatpush1.msra.mxu0 %v3865
        %3867 = vmatprep.subr.mxu0 0.0
        %v3868 = vand.u32 %v384, 4294901760
        %3869 = vmatpush1.msra.mxu0 %v3868
        %3870 = vmatprep.subr.mxu0 0.0
        %v3871 = vand.u32 %v383, 4294901760
        %3872 = vmatpush1.msra.mxu0 %v3871
        %3873 = vmatprep.subr.mxu0 0.0
        %v3874 = vand.u32 %v382, 4294901760
        %3875 = vmatpush1.msra.mxu0 %v3874
        %3876 = vmatprep.subr.mxu0 0.0
        %v3877 = vand.u32 %v381, 4294901760
        %3878 = vmatpush1.msra.mxu0 %v3877
        %3879 = vmatprep.subr.mxu0 0.0
        %v3880 = vand.u32 %v380, 4294901760
        %3881 = vmatpush1.msra.mxu0 %v3880
        %3882 = vmatprep.subr.mxu0 0.0
        %v3883 = vand.u32 %v379, 4294901760
        %3884 = vmatpush1.msra.mxu0 %v3883
        %3885 = vmatprep.subr.mxu0 0.0
        %v3886 = vand.u32 %v378, 4294901760
        %3887 = vmatpush1.msra.mxu0 %v3886
        %3888 = vmatprep.subr.mxu0 0.0
        %v3889 = vand.u32 %v377, 4294901760
        %3890 = vmatpush1.msra.mxu0 %v3889
        %3891 = vmatprep.subr.mxu0 0.0
        %v3892 = vand.u32 %v376, 4294901760
        %3893 = vmatpush1.msra.mxu0 %v3892
        %3894 = vmatprep.subr.mxu0 0.0
        %v3895 = vand.u32 %v375, 4294901760
        %3896 = vmatpush1.msra.mxu0 %v3895
        %3897 = vmatprep.subr.mxu0 0.0
        %v3898 = vand.u32 %v374, 4294901760
        %3899 = vmatpush1.msra.mxu0 %v3898
        %3900 = vmatprep.subr.mxu0 0.0
        %v3901 = vand.u32 %v373, 4294901760
        %3902 = vmatpush1.msra.mxu0 %v3901
        %3903 = vmatprep.subr.mxu0 0.0
        %v3904 = vand.u32 %v372, 4294901760
        %3905 = vmatpush1.msra.mxu0 %v3904
        %3906 = vmatprep.subr.mxu0 0.0
        %v3907 = vand.u32 %v371, 4294901760
        %3908 = vmatpush1.msra.mxu0 %v3907
        %3909 = vmatprep.subr.mxu0 0.0
        %3910 = vmatpush2.msra.mxu0 0.0
        %3911 = vmatprep.subr.mxu0 0.0
        %3912 = vmatpush2.msra.mxu0 0.0
        %3913 = vmatprep.subr.mxu0 0.0
        %3914 = vmatpush2.msra.mxu0 0.0
        %3915 = vmatprep.subr.mxu0 0.0
        %3916 = vmatpush2.msra.mxu0 0.0
        %3917 = vmatprep.subr.mxu0 0.0
        %3918 = vmatpush2.msra.mxu0 0.0
        %3919 = vmatprep.subr.mxu0 0.0
        %3920 = vmatpush2.msra.mxu0 0.0
        %3921 = vmatprep.subr.mxu0 0.0
        %3922 = vmatpush2.msra.mxu0 0.0
        %3923 = vmatprep.subr.mxu0 0.0
        %3924 = vmatpush2.msra.mxu0 0.0
        %3925 = vmatprep.subr.mxu0 0.0
        %3926 = vmatpush2.msra.mxu0 0.0
        %3927 = vmatprep.subr.mxu0 0.0
        %3928 = vmatpush2.msra.mxu0 0.0
        %3929 = vmatprep.subr.mxu0 0.0
        %3930 = vmatpush2.msra.mxu0 0.0
        %3931 = vmatprep.subr.mxu0 0.0
        %3932 = vmatpush2.msra.mxu0 0.0
        %3933 = vmatprep.subr.mxu0 0.0
        %3934 = vmatpush2.msra.mxu0 0.0
        %3935 = vmatprep.subr.mxu0 0.0
        %3936 = vmatpush2.msra.mxu0 0.0
        %3937 = vmatprep.subr.mxu0 0.0
        %3938 = vmatpush2.msra.mxu0 0.0
        %3939 = vmatprep.subr.mxu0 0.0
        %3940 = vmatpush2.msra.mxu0 0.0
        %3941 = vmatprep.mubr.f32.mxu0 0.0
        %v3942 = vand.u32 %v3266, 4294901760
        %3943 = vmatmul.mubr.f32.gmra.mxu0 %v3942
        %v3944 = vpop.f32.mrf.mxu0
        %v3945 = vadd.f32 %v3852, %v3944
        %v3946 = vpop.f32.mrf.mxu0
        %3947 = vmatprep.mubr.f32.mxu0 0.0
        %v3948 = vand.u32 %v3267, 4294901760
        %3949 = vmatmul.mubr.f32.gmra.mxu0 %v3948
        %v3950 = vpop.f32.mrf.mxu0
        %v3951 = vadd.f32 %v3858, %v3950
        %v3952 = vpop.f32.mrf.mxu0
        %3953 = vdwg.mxu0
        %3954 = vmatprep.subr.mxu0 0.0
        %v3955 = vand.u32 %v402, 4294901760
        %3956 = vmatpush1.msra.mxu0 %v3955
        %3957 = vmatprep.subr.mxu0 0.0
        %v3958 = vand.u32 %v401, 4294901760
        %3959 = vmatpush1.msra.mxu0 %v3958
        %3960 = vmatprep.subr.mxu0 0.0
        %v3961 = vand.u32 %v400, 4294901760
        %3962 = vmatpush1.msra.mxu0 %v3961
        %3963 = vmatprep.subr.mxu0 0.0
        %v3964 = vand.u32 %v399, 4294901760
        %3965 = vmatpush1.msra.mxu0 %v3964
        %3966 = vmatprep.subr.mxu0 0.0
        %v3967 = vand.u32 %v398, 4294901760
        %3968 = vmatpush1.msra.mxu0 %v3967
        %3969 = vmatprep.subr.mxu0 0.0
        %v3970 = vand.u32 %v397, 4294901760
        %3971 = vmatpush1.msra.mxu0 %v3970
        %3972 = vmatprep.subr.mxu0 0.0
        %v3973 = vand.u32 %v396, 4294901760
        %3974 = vmatpush1.msra.mxu0 %v3973
        %3975 = vmatprep.subr.mxu0 0.0
        %v3976 = vand.u32 %v395, 4294901760
        %3977 = vmatpush1.msra.mxu0 %v3976
        %3978 = vmatprep.subr.mxu0 0.0
        %v3979 = vand.u32 %v394, 4294901760
        %3980 = vmatpush1.msra.mxu0 %v3979
        %3981 = vmatprep.subr.mxu0 0.0
        %v3982 = vand.u32 %v393, 4294901760
        %3983 = vmatpush1.msra.mxu0 %v3982
        %3984 = vmatprep.subr.mxu0 0.0
        %v3985 = vand.u32 %v392, 4294901760
        %3986 = vmatpush1.msra.mxu0 %v3985
        %3987 = vmatprep.subr.mxu0 0.0
        %v3988 = vand.u32 %v391, 4294901760
        %3989 = vmatpush1.msra.mxu0 %v3988
        %3990 = vmatprep.subr.mxu0 0.0
        %v3991 = vand.u32 %v390, 4294901760
        %3992 = vmatpush1.msra.mxu0 %v3991
        %3993 = vmatprep.subr.mxu0 0.0
        %v3994 = vand.u32 %v389, 4294901760
        %3995 = vmatpush1.msra.mxu0 %v3994
        %3996 = vmatprep.subr.mxu0 0.0
        %v3997 = vand.u32 %v388, 4294901760
        %3998 = vmatpush1.msra.mxu0 %v3997
        %3999 = vmatprep.subr.mxu0 0.0
        %v4000 = vand.u32 %v387, 4294901760
        %4001 = vmatpush1.msra.mxu0 %v4000
        %4002 = vmatprep.subr.mxu0 0.0
        %4003 = vmatpush2.msra.mxu0 0.0
        %4004 = vmatprep.subr.mxu0 0.0
        %4005 = vmatpush2.msra.mxu0 0.0
        %4006 = vmatprep.subr.mxu0 0.0
        %4007 = vmatpush2.msra.mxu0 0.0
        %4008 = vmatprep.subr.mxu0 0.0
        %4009 = vmatpush2.msra.mxu0 0.0
        %4010 = vmatprep.subr.mxu0 0.0
        %4011 = vmatpush2.msra.mxu0 0.0
        %4012 = vmatprep.subr.mxu0 0.0
        %4013 = vmatpush2.msra.mxu0 0.0
        %4014 = vmatprep.subr.mxu0 0.0
        %4015 = vmatpush2.msra.mxu0 0.0
        %4016 = vmatprep.subr.mxu0 0.0
        %4017 = vmatpush2.msra.mxu0 0.0
        %4018 = vmatprep.subr.mxu0 0.0
        %4019 = vmatpush2.msra.mxu0 0.0
        %4020 = vmatprep.subr.mxu0 0.0
        %4021 = vmatpush2.msra.mxu0 0.0
        %4022 = vmatprep.subr.mxu0 0.0
        %4023 = vmatpush2.msra.mxu0 0.0
        %4024 = vmatprep.subr.mxu0 0.0
        %4025 = vmatpush2.msra.mxu0 0.0
        %4026 = vmatprep.subr.mxu0 0.0
        %4027 = vmatpush2.msra.mxu0 0.0
        %4028 = vmatprep.subr.mxu0 0.0
        %4029 = vmatpush2.msra.mxu0 0.0
        %4030 = vmatprep.subr.mxu0 0.0
        %4031 = vmatpush2.msra.mxu0 0.0
        %4032 = vmatprep.subr.mxu0 0.0
        %4033 = vmatpush2.msra.mxu0 0.0
        %4034 = vmatprep.mubr.f32.mxu0 0.0
        %v4035 = vand.u32 %v3268, 4294901760
        %v4036 = vsub.f32 %v3268, %v4035
        %v4037 = vand.u32 %v4036, 4294901760
        %v4038 = vsub.f32 %v4036, %v4037
        %v4039 = vand.u32 %v4038, 4294901760
        %4040 = vmatmul.mubr.f32.gmra.mxu0 %v4039
        %v4041 = vpop.f32.mrf.mxu0
        %v4042 = vadd.f32 0.0, %v4041
        %v4043 = vpop.f32.mrf.mxu0
        %4044 = vmatprep.mubr.f32.mxu0 0.0
        %v4045 = vand.u32 %v3269, 4294901760
        %v4046 = vsub.f32 %v3269, %v4045
        %v4047 = vand.u32 %v4046, 4294901760
        %v4048 = vsub.f32 %v4046, %v4047
        %v4049 = vand.u32 %v4048, 4294901760
        %4050 = vmatmul.mubr.f32.gmra.mxu0 %v4049
        %v4051 = vpop.f32.mrf.mxu0
        %v4052 = vadd.f32 0.0, %v4051
        %v4053 = vpop.f32.mrf.mxu0
        %4054 = vdwg.mxu0
        %4055 = vmatprep.subr.mxu0 0.0
        %v4056 = vand.u32 %v402, 4294901760
        %v4057 = vsub.f32 %v402, %v4056
        %v4058 = vand.u32 %v4057, 4294901760
        %v4059 = vsub.f32 %v4057, %v4058
        %v4060 = vand.u32 %v4059, 4294901760
        %4061 = vmatpush1.msra.mxu0 %v4060
        %4062 = vmatprep.subr.mxu0 0.0
        %v4063 = vand.u32 %v401, 4294901760
        %v4064 = vsub.f32 %v401, %v4063
        %v4065 = vand.u32 %v4064, 4294901760
        %v4066 = vsub.f32 %v4064, %v4065
        %v4067 = vand.u32 %v4066, 4294901760
        %4068 = vmatpush1.msra.mxu0 %v4067
        %4069 = vmatprep.subr.mxu0 0.0
        %v4070 = vand.u32 %v400, 4294901760
        %v4071 = vsub.f32 %v400, %v4070
        %v4072 = vand.u32 %v4071, 4294901760
        %v4073 = vsub.f32 %v4071, %v4072
        %v4074 = vand.u32 %v4073, 4294901760
        %4075 = vmatpush1.msra.mxu0 %v4074
        %4076 = vmatprep.subr.mxu0 0.0
        %v4077 = vand.u32 %v399, 4294901760
        %v4078 = vsub.f32 %v399, %v4077
        %v4079 = vand.u32 %v4078, 4294901760
        %v4080 = vsub.f32 %v4078, %v4079
        %v4081 = vand.u32 %v4080, 4294901760
        %4082 = vmatpush1.msra.mxu0 %v4081
        %4083 = vmatprep.subr.mxu0 0.0
        %v4084 = vand.u32 %v398, 4294901760
        %v4085 = vsub.f32 %v398, %v4084
        %v4086 = vand.u32 %v4085, 4294901760
        %v4087 = vsub.f32 %v4085, %v4086
        %v4088 = vand.u32 %v4087, 4294901760
        %4089 = vmatpush1.msra.mxu0 %v4088
        %4090 = vmatprep.subr.mxu0 0.0
        %v4091 = vand.u32 %v397, 4294901760
        %v4092 = vsub.f32 %v397, %v4091
        %v4093 = vand.u32 %v4092, 4294901760
        %v4094 = vsub.f32 %v4092, %v4093
        %v4095 = vand.u32 %v4094, 4294901760
        %4096 = vmatpush1.msra.mxu0 %v4095
        %4097 = vmatprep.subr.mxu0 0.0
        %v4098 = vand.u32 %v396, 4294901760
        %v4099 = vsub.f32 %v396, %v4098
        %v4100 = vand.u32 %v4099, 4294901760
        %v4101 = vsub.f32 %v4099, %v4100
        %v4102 = vand.u32 %v4101, 4294901760
        %4103 = vmatpush1.msra.mxu0 %v4102
        %4104 = vmatprep.subr.mxu0 0.0
        %v4105 = vand.u32 %v395, 4294901760
        %v4106 = vsub.f32 %v395, %v4105
        %v4107 = vand.u32 %v4106, 4294901760
        %v4108 = vsub.f32 %v4106, %v4107
        %v4109 = vand.u32 %v4108, 4294901760
        %4110 = vmatpush1.msra.mxu0 %v4109
        %4111 = vmatprep.subr.mxu0 0.0
        %v4112 = vand.u32 %v394, 4294901760
        %v4113 = vsub.f32 %v394, %v4112
        %v4114 = vand.u32 %v4113, 4294901760
        %v4115 = vsub.f32 %v4113, %v4114
        %v4116 = vand.u32 %v4115, 4294901760
        %4117 = vmatpush1.msra.mxu0 %v4116
        %4118 = vmatprep.subr.mxu0 0.0
        %v4119 = vand.u32 %v393, 4294901760
        %v4120 = vsub.f32 %v393, %v4119
        %v4121 = vand.u32 %v4120, 4294901760
        %v4122 = vsub.f32 %v4120, %v4121
        %v4123 = vand.u32 %v4122, 4294901760
        %4124 = vmatpush1.msra.mxu0 %v4123
        %4125 = vmatprep.subr.mxu0 0.0
        %v4126 = vand.u32 %v392, 4294901760
        %v4127 = vsub.f32 %v392, %v4126
        %v4128 = vand.u32 %v4127, 4294901760
        %v4129 = vsub.f32 %v4127, %v4128
        %v4130 = vand.u32 %v4129, 4294901760
        %4131 = vmatpush1.msra.mxu0 %v4130
        %4132 = vmatprep.subr.mxu0 0.0
        %v4133 = vand.u32 %v391, 4294901760
        %v4134 = vsub.f32 %v391, %v4133
        %v4135 = vand.u32 %v4134, 4294901760
        %v4136 = vsub.f32 %v4134, %v4135
        %v4137 = vand.u32 %v4136, 4294901760
        %4138 = vmatpush1.msra.mxu0 %v4137
        %4139 = vmatprep.subr.mxu0 0.0
        %v4140 = vand.u32 %v390, 4294901760
        %v4141 = vsub.f32 %v390, %v4140
        %v4142 = vand.u32 %v4141, 4294901760
        %v4143 = vsub.f32 %v4141, %v4142
        %v4144 = vand.u32 %v4143, 4294901760
        %4145 = vmatpush1.msra.mxu0 %v4144
        %4146 = vmatprep.subr.mxu0 0.0
        %v4147 = vand.u32 %v389, 4294901760
        %v4148 = vsub.f32 %v389, %v4147
        %v4149 = vand.u32 %v4148, 4294901760
        %v4150 = vsub.f32 %v4148, %v4149
        %v4151 = vand.u32 %v4150, 4294901760
        %4152 = vmatpush1.msra.mxu0 %v4151
        %4153 = vmatprep.subr.mxu0 0.0
        %v4154 = vand.u32 %v388, 4294901760
        %v4155 = vsub.f32 %v388, %v4154
        %v4156 = vand.u32 %v4155, 4294901760
        %v4157 = vsub.f32 %v4155, %v4156
        %v4158 = vand.u32 %v4157, 4294901760
        %4159 = vmatpush1.msra.mxu0 %v4158
        %4160 = vmatprep.subr.mxu0 0.0
        %v4161 = vand.u32 %v387, 4294901760
        %v4162 = vsub.f32 %v387, %v4161
        %v4163 = vand.u32 %v4162, 4294901760
        %v4164 = vsub.f32 %v4162, %v4163
        %v4165 = vand.u32 %v4164, 4294901760
        %4166 = vmatpush1.msra.mxu0 %v4165
        %4167 = vmatprep.subr.mxu0 0.0
        %4168 = vmatpush2.msra.mxu0 0.0
        %4169 = vmatprep.subr.mxu0 0.0
        %4170 = vmatpush2.msra.mxu0 0.0
        %4171 = vmatprep.subr.mxu0 0.0
        %4172 = vmatpush2.msra.mxu0 0.0
        %4173 = vmatprep.subr.mxu0 0.0
        %4174 = vmatpush2.msra.mxu0 0.0
        %4175 = vmatprep.subr.mxu0 0.0
        %4176 = vmatpush2.msra.mxu0 0.0
        %4177 = vmatprep.subr.mxu0 0.0
        %4178 = vmatpush2.msra.mxu0 0.0
        %4179 = vmatprep.subr.mxu0 0.0
        %4180 = vmatpush2.msra.mxu0 0.0
        %4181 = vmatprep.subr.mxu0 0.0
        %4182 = vmatpush2.msra.mxu0 0.0
        %4183 = vmatprep.subr.mxu0 0.0
        %4184 = vmatpush2.msra.mxu0 0.0
        %4185 = vmatprep.subr.mxu0 0.0
        %4186 = vmatpush2.msra.mxu0 0.0
        %4187 = vmatprep.subr.mxu0 0.0
        %4188 = vmatpush2.msra.mxu0 0.0
        %4189 = vmatprep.subr.mxu0 0.0
        %4190 = vmatpush2.msra.mxu0 0.0
        %4191 = vmatprep.subr.mxu0 0.0
        %4192 = vmatpush2.msra.mxu0 0.0
        %4193 = vmatprep.subr.mxu0 0.0
        %4194 = vmatpush2.msra.mxu0 0.0
        %4195 = vmatprep.subr.mxu0 0.0
        %4196 = vmatpush2.msra.mxu0 0.0
        %4197 = vmatprep.subr.mxu0 0.0
        %4198 = vmatpush2.msra.mxu0 0.0
        %4199 = vmatprep.mubr.f32.mxu0 0.0
        %v4200 = vand.u32 %v3268, 4294901760
        %4201 = vmatmul.mubr.f32.gmra.mxu0 %v4200
        %v4202 = vpop.f32.mrf.mxu0
        %v4203 = vadd.f32 %v4042, %v4202
        %v4204 = vpop.f32.mrf.mxu0
        %4205 = vmatprep.mubr.f32.mxu0 0.0
        %v4206 = vand.u32 %v3269, 4294901760
        %4207 = vmatmul.mubr.f32.gmra.mxu0 %v4206
        %v4208 = vpop.f32.mrf.mxu0
        %v4209 = vadd.f32 %v4052, %v4208
        %v4210 = vpop.f32.mrf.mxu0
        %4211 = vdwg.mxu0
        %4212 = vmatprep.subr.mxu0 0.0
        %v4213 = vand.u32 %v402, 4294901760
        %v4214 = vsub.f32 %v402, %v4213
        %4215 = vmatpush1.msra.mxu0 %v4214
        %4216 = vmatprep.subr.mxu0 0.0
        %v4217 = vand.u32 %v401, 4294901760
        %v4218 = vsub.f32 %v401, %v4217
        %4219 = vmatpush1.msra.mxu0 %v4218
        %4220 = vmatprep.subr.mxu0 0.0
        %v4221 = vand.u32 %v400, 4294901760
        %v4222 = vsub.f32 %v400, %v4221
        %4223 = vmatpush1.msra.mxu0 %v4222
        %4224 = vmatprep.subr.mxu0 0.0
        %v4225 = vand.u32 %v399, 4294901760
        %v4226 = vsub.f32 %v399, %v4225
        %4227 = vmatpush1.msra.mxu0 %v4226
        %4228 = vmatprep.subr.mxu0 0.0
        %v4229 = vand.u32 %v398, 4294901760
        %v4230 = vsub.f32 %v398, %v4229
        %4231 = vmatpush1.msra.mxu0 %v4230
        %4232 = vmatprep.subr.mxu0 0.0
        %v4233 = vand.u32 %v397, 4294901760
        %v4234 = vsub.f32 %v397, %v4233
        %4235 = vmatpush1.msra.mxu0 %v4234
        %4236 = vmatprep.subr.mxu0 0.0
        %v4237 = vand.u32 %v396, 4294901760
        %v4238 = vsub.f32 %v396, %v4237
        %4239 = vmatpush1.msra.mxu0 %v4238
        %4240 = vmatprep.subr.mxu0 0.0
        %v4241 = vand.u32 %v395, 4294901760
        %v4242 = vsub.f32 %v395, %v4241
        %4243 = vmatpush1.msra.mxu0 %v4242
        %4244 = vmatprep.subr.mxu0 0.0
        %v4245 = vand.u32 %v394, 4294901760
        %v4246 = vsub.f32 %v394, %v4245
        %4247 = vmatpush1.msra.mxu0 %v4246
        %4248 = vmatprep.subr.mxu0 0.0
        %v4249 = vand.u32 %v393, 4294901760
        %v4250 = vsub.f32 %v393, %v4249
        %4251 = vmatpush1.msra.mxu0 %v4250
        %4252 = vmatprep.subr.mxu0 0.0
        %v4253 = vand.u32 %v392, 4294901760
        %v4254 = vsub.f32 %v392, %v4253
        %4255 = vmatpush1.msra.mxu0 %v4254
        %4256 = vmatprep.subr.mxu0 0.0
        %v4257 = vand.u32 %v391, 4294901760
        %v4258 = vsub.f32 %v391, %v4257
        %4259 = vmatpush1.msra.mxu0 %v4258
        %4260 = vmatprep.subr.mxu0 0.0
        %v4261 = vand.u32 %v390, 4294901760
        %v4262 = vsub.f32 %v390, %v4261
        %4263 = vmatpush1.msra.mxu0 %v4262
        %4264 = vmatprep.subr.mxu0 0.0
        %v4265 = vand.u32 %v389, 4294901760
        %v4266 = vsub.f32 %v389, %v4265
        %4267 = vmatpush1.msra.mxu0 %v4266
        %4268 = vmatprep.subr.mxu0 0.0
        %v4269 = vand.u32 %v388, 4294901760
        %v4270 = vsub.f32 %v388, %v4269
        %4271 = vmatpush1.msra.mxu0 %v4270
        %4272 = vmatprep.subr.mxu0 0.0
        %v4273 = vand.u32 %v387, 4294901760
        %v4274 = vsub.f32 %v387, %v4273
        %4275 = vmatpush1.msra.mxu0 %v4274
        %4276 = vmatprep.subr.mxu0 0.0
        %4277 = vmatpush2.msra.mxu0 0.0
        %4278 = vmatprep.subr.mxu0 0.0
        %4279 = vmatpush2.msra.mxu0 0.0
        %4280 = vmatprep.subr.mxu0 0.0
        %4281 = vmatpush2.msra.mxu0 0.0
        %4282 = vmatprep.subr.mxu0 0.0
        %4283 = vmatpush2.msra.mxu0 0.0
        %4284 = vmatprep.subr.mxu0 0.0
        %4285 = vmatpush2.msra.mxu0 0.0
        %4286 = vmatprep.subr.mxu0 0.0
        %4287 = vmatpush2.msra.mxu0 0.0
        %4288 = vmatprep.subr.mxu0 0.0
        %4289 = vmatpush2.msra.mxu0 0.0
        %4290 = vmatprep.subr.mxu0 0.0
        %4291 = vmatpush2.msra.mxu0 0.0
        %4292 = vmatprep.subr.mxu0 0.0
        %4293 = vmatpush2.msra.mxu0 0.0
        %4294 = vmatprep.subr.mxu0 0.0
        %4295 = vmatpush2.msra.mxu0 0.0
        %4296 = vmatprep.subr.mxu0 0.0
        %4297 = vmatpush2.msra.mxu0 0.0
        %4298 = vmatprep.subr.mxu0 0.0
        %4299 = vmatpush2.msra.mxu0 0.0
        %4300 = vmatprep.subr.mxu0 0.0
        %4301 = vmatpush2.msra.mxu0 0.0
        %4302 = vmatprep.subr.mxu0 0.0
        %4303 = vmatpush2.msra.mxu0 0.0
        %4304 = vmatprep.subr.mxu0 0.0
        %4305 = vmatpush2.msra.mxu0 0.0
        %4306 = vmatprep.subr.mxu0 0.0
        %4307 = vmatpush2.msra.mxu0 0.0
        %4308 = vmatprep.mubr.f32.mxu0 0.0
        %v4309 = vand.u32 %v3268, 4294901760
        %v4310 = vsub.f32 %v3268, %v4309
        %4311 = vmatmul.mubr.f32.gmra.mxu0 %v4310
        %v4312 = vpop.f32.mrf.mxu0
        %v4313 = vadd.f32 %v4203, %v4312
        %v4314 = vpop.f32.mrf.mxu0
        %4315 = vmatprep.mubr.f32.mxu0 0.0
        %v4316 = vand.u32 %v3269, 4294901760
        %v4317 = vsub.f32 %v3269, %v4316
        %4318 = vmatmul.mubr.f32.gmra.mxu0 %v4317
        %v4319 = vpop.f32.mrf.mxu0
        %v4320 = vadd.f32 %v4209, %v4319
        %v4321 = vpop.f32.mrf.mxu0
        %4322 = vdwg.mxu0
        %4323 = vmatprep.subr.mxu0 0.0
        %v4324 = vand.u32 %v402, 4294901760
        %4325 = vmatpush1.msra.mxu0 %v4324
        %4326 = vmatprep.subr.mxu0 0.0
        %v4327 = vand.u32 %v401, 4294901760
        %4328 = vmatpush1.msra.mxu0 %v4327
        %4329 = vmatprep.subr.mxu0 0.0
        %v4330 = vand.u32 %v400, 4294901760
        %4331 = vmatpush1.msra.mxu0 %v4330
        %4332 = vmatprep.subr.mxu0 0.0
        %v4333 = vand.u32 %v399, 4294901760
        %4334 = vmatpush1.msra.mxu0 %v4333
        %4335 = vmatprep.subr.mxu0 0.0
        %v4336 = vand.u32 %v398, 4294901760
        %4337 = vmatpush1.msra.mxu0 %v4336
        %4338 = vmatprep.subr.mxu0 0.0
        %v4339 = vand.u32 %v397, 4294901760
        %4340 = vmatpush1.msra.mxu0 %v4339
        %4341 = vmatprep.subr.mxu0 0.0
        %v4342 = vand.u32 %v396, 4294901760
        %4343 = vmatpush1.msra.mxu0 %v4342
        %4344 = vmatprep.subr.mxu0 0.0
        %v4345 = vand.u32 %v395, 4294901760
        %4346 = vmatpush1.msra.mxu0 %v4345
        %4347 = vmatprep.subr.mxu0 0.0
        %v4348 = vand.u32 %v394, 4294901760
        %4349 = vmatpush1.msra.mxu0 %v4348
        %4350 = vmatprep.subr.mxu0 0.0
        %v4351 = vand.u32 %v393, 4294901760
        %4352 = vmatpush1.msra.mxu0 %v4351
        %4353 = vmatprep.subr.mxu0 0.0
        %v4354 = vand.u32 %v392, 4294901760
        %4355 = vmatpush1.msra.mxu0 %v4354
        %4356 = vmatprep.subr.mxu0 0.0
        %v4357 = vand.u32 %v391, 4294901760
        %4358 = vmatpush1.msra.mxu0 %v4357
        %4359 = vmatprep.subr.mxu0 0.0
        %v4360 = vand.u32 %v390, 4294901760
        %4361 = vmatpush1.msra.mxu0 %v4360
        %4362 = vmatprep.subr.mxu0 0.0
        %v4363 = vand.u32 %v389, 4294901760
        %4364 = vmatpush1.msra.mxu0 %v4363
        %4365 = vmatprep.subr.mxu0 0.0
        %v4366 = vand.u32 %v388, 4294901760
        %4367 = vmatpush1.msra.mxu0 %v4366
        %4368 = vmatprep.subr.mxu0 0.0
        %v4369 = vand.u32 %v387, 4294901760
        %4370 = vmatpush1.msra.mxu0 %v4369
        %4371 = vmatprep.subr.mxu0 0.0
        %4372 = vmatpush2.msra.mxu0 0.0
        %4373 = vmatprep.subr.mxu0 0.0
        %4374 = vmatpush2.msra.mxu0 0.0
        %4375 = vmatprep.subr.mxu0 0.0
        %4376 = vmatpush2.msra.mxu0 0.0
        %4377 = vmatprep.subr.mxu0 0.0
        %4378 = vmatpush2.msra.mxu0 0.0
        %4379 = vmatprep.subr.mxu0 0.0
        %4380 = vmatpush2.msra.mxu0 0.0
        %4381 = vmatprep.subr.mxu0 0.0
        %4382 = vmatpush2.msra.mxu0 0.0
        %4383 = vmatprep.subr.mxu0 0.0
        %4384 = vmatpush2.msra.mxu0 0.0
        %4385 = vmatprep.subr.mxu0 0.0
        %4386 = vmatpush2.msra.mxu0 0.0
        %4387 = vmatprep.subr.mxu0 0.0
        %4388 = vmatpush2.msra.mxu0 0.0
        %4389 = vmatprep.subr.mxu0 0.0
        %4390 = vmatpush2.msra.mxu0 0.0
        %4391 = vmatprep.subr.mxu0 0.0
        %4392 = vmatpush2.msra.mxu0 0.0
        %4393 = vmatprep.subr.mxu0 0.0
        %4394 = vmatpush2.msra.mxu0 0.0
        %4395 = vmatprep.subr.mxu0 0.0
        %4396 = vmatpush2.msra.mxu0 0.0
        %4397 = vmatprep.subr.mxu0 0.0
        %4398 = vmatpush2.msra.mxu0 0.0
        %4399 = vmatprep.subr.mxu0 0.0
        %4400 = vmatpush2.msra.mxu0 0.0
        %4401 = vmatprep.subr.mxu0 0.0
        %4402 = vmatpush2.msra.mxu0 0.0
        %4403 = vmatprep.mubr.f32.mxu0 0.0
        %v4404 = vand.u32 %v3268, 4294901760
        %v4405 = vsub.f32 %v3268, %v4404
        %v4406 = vand.u32 %v4405, 4294901760
        %4407 = vmatmul.mubr.f32.gmra.mxu0 %v4406
        %v4408 = vpop.f32.mrf.mxu0
        %v4409 = vadd.f32 %v4313, %v4408
        %v4410 = vpop.f32.mrf.mxu0
        %4411 = vmatprep.mubr.f32.mxu0 0.0
        %v4412 = vand.u32 %v3269, 4294901760
        %v4413 = vsub.f32 %v3269, %v4412
        %v4414 = vand.u32 %v4413, 4294901760
        %4415 = vmatmul.mubr.f32.gmra.mxu0 %v4414
        %v4416 = vpop.f32.mrf.mxu0
        %v4417 = vadd.f32 %v4320, %v4416
        %v4418 = vpop.f32.mrf.mxu0
        %4419 = vdwg.mxu0
        %4420 = vmatprep.subr.mxu0 0.0
        %v4421 = vand.u32 %v402, 4294901760
        %v4422 = vsub.f32 %v402, %v4421
        %v4423 = vand.u32 %v4422, 4294901760
        %4424 = vmatpush1.msra.mxu0 %v4423
        %4425 = vmatprep.subr.mxu0 0.0
        %v4426 = vand.u32 %v401, 4294901760
        %v4427 = vsub.f32 %v401, %v4426
        %v4428 = vand.u32 %v4427, 4294901760
        %4429 = vmatpush1.msra.mxu0 %v4428
        %4430 = vmatprep.subr.mxu0 0.0
        %v4431 = vand.u32 %v400, 4294901760
        %v4432 = vsub.f32 %v400, %v4431
        %v4433 = vand.u32 %v4432, 4294901760
        %4434 = vmatpush1.msra.mxu0 %v4433
        %4435 = vmatprep.subr.mxu0 0.0
        %v4436 = vand.u32 %v399, 4294901760
        %v4437 = vsub.f32 %v399, %v4436
        %v4438 = vand.u32 %v4437, 4294901760
        %4439 = vmatpush1.msra.mxu0 %v4438
        %4440 = vmatprep.subr.mxu0 0.0
        %v4441 = vand.u32 %v398, 4294901760
        %v4442 = vsub.f32 %v398, %v4441
        %v4443 = vand.u32 %v4442, 4294901760
        %4444 = vmatpush1.msra.mxu0 %v4443
        %4445 = vmatprep.subr.mxu0 0.0
        %v4446 = vand.u32 %v397, 4294901760
        %v4447 = vsub.f32 %v397, %v4446
        %v4448 = vand.u32 %v4447, 4294901760
        %4449 = vmatpush1.msra.mxu0 %v4448
        %4450 = vmatprep.subr.mxu0 0.0
        %v4451 = vand.u32 %v396, 4294901760
        %v4452 = vsub.f32 %v396, %v4451
        %v4453 = vand.u32 %v4452, 4294901760
        %4454 = vmatpush1.msra.mxu0 %v4453
        %4455 = vmatprep.subr.mxu0 0.0
        %v4456 = vand.u32 %v395, 4294901760
        %v4457 = vsub.f32 %v395, %v4456
        %v4458 = vand.u32 %v4457, 4294901760
        %4459 = vmatpush1.msra.mxu0 %v4458
        %4460 = vmatprep.subr.mxu0 0.0
        %v4461 = vand.u32 %v394, 4294901760
        %v4462 = vsub.f32 %v394, %v4461
        %v4463 = vand.u32 %v4462, 4294901760
        %4464 = vmatpush1.msra.mxu0 %v4463
        %4465 = vmatprep.subr.mxu0 0.0
        %v4466 = vand.u32 %v393, 4294901760
        %v4467 = vsub.f32 %v393, %v4466
        %v4468 = vand.u32 %v4467, 4294901760
        %4469 = vmatpush1.msra.mxu0 %v4468
        %4470 = vmatprep.subr.mxu0 0.0
        %v4471 = vand.u32 %v392, 4294901760
        %v4472 = vsub.f32 %v392, %v4471
        %v4473 = vand.u32 %v4472, 4294901760
        %4474 = vmatpush1.msra.mxu0 %v4473
        %4475 = vmatprep.subr.mxu0 0.0
        %v4476 = vand.u32 %v391, 4294901760
        %v4477 = vsub.f32 %v391, %v4476
        %v4478 = vand.u32 %v4477, 4294901760
        %4479 = vmatpush1.msra.mxu0 %v4478
        %4480 = vmatprep.subr.mxu0 0.0
        %v4481 = vand.u32 %v390, 4294901760
        %v4482 = vsub.f32 %v390, %v4481
        %v4483 = vand.u32 %v4482, 4294901760
        %4484 = vmatpush1.msra.mxu0 %v4483
        %4485 = vmatprep.subr.mxu0 0.0
        %v4486 = vand.u32 %v389, 4294901760
        %v4487 = vsub.f32 %v389, %v4486
        %v4488 = vand.u32 %v4487, 4294901760
        %4489 = vmatpush1.msra.mxu0 %v4488
        %4490 = vmatprep.subr.mxu0 0.0
        %v4491 = vand.u32 %v388, 4294901760
        %v4492 = vsub.f32 %v388, %v4491
        %v4493 = vand.u32 %v4492, 4294901760
        %4494 = vmatpush1.msra.mxu0 %v4493
        %4495 = vmatprep.subr.mxu0 0.0
        %v4496 = vand.u32 %v387, 4294901760
        %v4497 = vsub.f32 %v387, %v4496
        %v4498 = vand.u32 %v4497, 4294901760
        %4499 = vmatpush1.msra.mxu0 %v4498
        %4500 = vmatprep.subr.mxu0 0.0
        %4501 = vmatpush2.msra.mxu0 0.0
        %4502 = vmatprep.subr.mxu0 0.0
        %4503 = vmatpush2.msra.mxu0 0.0
        %4504 = vmatprep.subr.mxu0 0.0
        %4505 = vmatpush2.msra.mxu0 0.0
        %4506 = vmatprep.subr.mxu0 0.0
        %4507 = vmatpush2.msra.mxu0 0.0
        %4508 = vmatprep.subr.mxu0 0.0
        %4509 = vmatpush2.msra.mxu0 0.0
        %4510 = vmatprep.subr.mxu0 0.0
        %4511 = vmatpush2.msra.mxu0 0.0
        %4512 = vmatprep.subr.mxu0 0.0
        %4513 = vmatpush2.msra.mxu0 0.0
        %4514 = vmatprep.subr.mxu0 0.0
        %4515 = vmatpush2.msra.mxu0 0.0
        %4516 = vmatprep.subr.mxu0 0.0
        %4517 = vmatpush2.msra.mxu0 0.0
        %4518 = vmatprep.subr.mxu0 0.0
        %4519 = vmatpush2.msra.mxu0 0.0
        %4520 = vmatprep.subr.mxu0 0.0
        %4521 = vmatpush2.msra.mxu0 0.0
        %4522 = vmatprep.subr.mxu0 0.0
        %4523 = vmatpush2.msra.mxu0 0.0
        %4524 = vmatprep.subr.mxu0 0.0
        %4525 = vmatpush2.msra.mxu0 0.0
        %4526 = vmatprep.subr.mxu0 0.0
        %4527 = vmatpush2.msra.mxu0 0.0
        %4528 = vmatprep.subr.mxu0 0.0
        %4529 = vmatpush2.msra.mxu0 0.0
        %4530 = vmatprep.subr.mxu0 0.0
        %4531 = vmatpush2.msra.mxu0 0.0
        %4532 = vmatprep.mubr.f32.mxu0 0.0
        %v4533 = vand.u32 %v3268, 4294901760
        %4534 = vmatmul.mubr.f32.gmra.mxu0 %v4533
        %v4535 = vpop.f32.mrf.mxu0
        %v4536 = vadd.f32 %v4409, %v4535
        %v4537 = vpop.f32.mrf.mxu0
        %4538 = vmatprep.mubr.f32.mxu0 0.0
        %v4539 = vand.u32 %v3269, 4294901760
        %4540 = vmatmul.mubr.f32.gmra.mxu0 %v4539
        %v4541 = vpop.f32.mrf.mxu0
        %v4542 = vadd.f32 %v4417, %v4541
        %v4543 = vpop.f32.mrf.mxu0
        %4544 = vdwg.mxu0
        %4545 = vmatprep.subr.mxu0 0.0
        %v4546 = vand.u32 %v402, 4294901760
        %4547 = vmatpush1.msra.mxu0 %v4546
        %4548 = vmatprep.subr.mxu0 0.0
        %v4549 = vand.u32 %v401, 4294901760
        %4550 = vmatpush1.msra.mxu0 %v4549
        %4551 = vmatprep.subr.mxu0 0.0
        %v4552 = vand.u32 %v400, 4294901760
        %4553 = vmatpush1.msra.mxu0 %v4552
        %4554 = vmatprep.subr.mxu0 0.0
        %v4555 = vand.u32 %v399, 4294901760
        %4556 = vmatpush1.msra.mxu0 %v4555
        %4557 = vmatprep.subr.mxu0 0.0
        %v4558 = vand.u32 %v398, 4294901760
        %4559 = vmatpush1.msra.mxu0 %v4558
        %4560 = vmatprep.subr.mxu0 0.0
        %v4561 = vand.u32 %v397, 4294901760
        %4562 = vmatpush1.msra.mxu0 %v4561
        %4563 = vmatprep.subr.mxu0 0.0
        %v4564 = vand.u32 %v396, 4294901760
        %4565 = vmatpush1.msra.mxu0 %v4564
        %4566 = vmatprep.subr.mxu0 0.0
        %v4567 = vand.u32 %v395, 4294901760
        %4568 = vmatpush1.msra.mxu0 %v4567
        %4569 = vmatprep.subr.mxu0 0.0
        %v4570 = vand.u32 %v394, 4294901760
        %4571 = vmatpush1.msra.mxu0 %v4570
        %4572 = vmatprep.subr.mxu0 0.0
        %v4573 = vand.u32 %v393, 4294901760
        %4574 = vmatpush1.msra.mxu0 %v4573
        %4575 = vmatprep.subr.mxu0 0.0
        %v4576 = vand.u32 %v392, 4294901760
        %4577 = vmatpush1.msra.mxu0 %v4576
        %4578 = vmatprep.subr.mxu0 0.0
        %v4579 = vand.u32 %v391, 4294901760
        %4580 = vmatpush1.msra.mxu0 %v4579
        %4581 = vmatprep.subr.mxu0 0.0
        %v4582 = vand.u32 %v390, 4294901760
        %4583 = vmatpush1.msra.mxu0 %v4582
        %4584 = vmatprep.subr.mxu0 0.0
        %v4585 = vand.u32 %v389, 4294901760
        %4586 = vmatpush1.msra.mxu0 %v4585
        %4587 = vmatprep.subr.mxu0 0.0
        %v4588 = vand.u32 %v388, 4294901760
        %4589 = vmatpush1.msra.mxu0 %v4588
        %4590 = vmatprep.subr.mxu0 0.0
        %v4591 = vand.u32 %v387, 4294901760
        %4592 = vmatpush1.msra.mxu0 %v4591
        %4593 = vmatprep.subr.mxu0 0.0
        %4594 = vmatpush2.msra.mxu0 0.0
        %4595 = vmatprep.subr.mxu0 0.0
        %4596 = vmatpush2.msra.mxu0 0.0
        %4597 = vmatprep.subr.mxu0 0.0
        %4598 = vmatpush2.msra.mxu0 0.0
        %4599 = vmatprep.subr.mxu0 0.0
        %4600 = vmatpush2.msra.mxu0 0.0
        %4601 = vmatprep.subr.mxu0 0.0
        %4602 = vmatpush2.msra.mxu0 0.0
        %4603 = vmatprep.subr.mxu0 0.0
        %4604 = vmatpush2.msra.mxu0 0.0
        %4605 = vmatprep.subr.mxu0 0.0
        %4606 = vmatpush2.msra.mxu0 0.0
        %4607 = vmatprep.subr.mxu0 0.0
        %4608 = vmatpush2.msra.mxu0 0.0
        %4609 = vmatprep.subr.mxu0 0.0
        %4610 = vmatpush2.msra.mxu0 0.0
        %4611 = vmatprep.subr.mxu0 0.0
        %4612 = vmatpush2.msra.mxu0 0.0
        %4613 = vmatprep.subr.mxu0 0.0
        %4614 = vmatpush2.msra.mxu0 0.0
        %4615 = vmatprep.subr.mxu0 0.0
        %4616 = vmatpush2.msra.mxu0 0.0
        %4617 = vmatprep.subr.mxu0 0.0
        %4618 = vmatpush2.msra.mxu0 0.0
        %4619 = vmatprep.subr.mxu0 0.0
        %4620 = vmatpush2.msra.mxu0 0.0
        %4621 = vmatprep.subr.mxu0 0.0
        %4622 = vmatpush2.msra.mxu0 0.0
        %4623 = vmatprep.subr.mxu0 0.0
        %4624 = vmatpush2.msra.mxu0 0.0
        %4625 = vmatprep.mubr.f32.mxu0 0.0
        %v4626 = vand.u32 %v3268, 4294901760
        %4627 = vmatmul.mubr.f32.gmra.mxu0 %v4626
        %v4628 = vpop.f32.mrf.mxu0
        %v4629 = vadd.f32 %v4536, %v4628
        %v4630 = vpop.f32.mrf.mxu0
        %4631 = vmatprep.mubr.f32.mxu0 0.0
        %v4632 = vand.u32 %v3269, 4294901760
        %4633 = vmatmul.mubr.f32.gmra.mxu0 %v4632
        %v4634 = vpop.f32.mrf.mxu0
        %v4635 = vadd.f32 %v4542, %v4634
        %v4636 = vpop.f32.mrf.mxu0
        %4637 = vdwg.mxu0
        %v4638 = vand.u32 2147483647, %v3945
        %v4639 = vand.u32 2147483647, %v3951
        %v4640 = vadd.f32 %v3231, %v4638
        %v4641 = vadd.f32 %v3232, %v4639
        %v4642 = vand.u32 2147483647, %v4629
        %v4643 = vand.u32 2147483647, %v4635
        %v4644 = vadd.f32 %v3235, %v4642
        %v4645 = vadd.f32 %v3236, %v4643
        %s4646 = scalar_lea.vmem %s301, 48 [#allocation2]
        %v4647 = vld [vmem:[%s4646] sm:$0xff]
        %v4648 = vld [vmem:[%s4646 + $0x8] sm:$0xff]
        %v4649 = vld [vmem:[%s369 + $0x3] sm:$0x1]
        %v4650 = vld [vmem:[%s369 + $0x7] sm:$0x1]
        %v4651 = vrot.slane %v4647, 7
        %v4652 = vrot.slane %v4648, 7
        %v4653 = vsel %vm416, %v4651, %v4652
        %v4654 = vsel %vm416, %v4652, %v4651
        %v4655 = vlaneseq
        %v4656 = vshrl.u32 %v4655, 7
        %v4657 = vsub.s32 0, %v4656
        %v4658 = vrot.slane %v4649, %v4657
        %v4659 = vsel %vm421, %v4658, %v4654
        %v4660 = vsel %vm422, %v4658, %v4653
        %v4661 = vrot.slane %v4647, 1
        %v4662 = vrot.slane %v4648, 1
        %v4663 = vsel %vm431, %v4661, %v4662
        %v4664 = vsel %vm431, %v4662, %v4661
        %v4665 = vlaneseq
        %v4666 = vshrl.u32 %v4665, 7
        %v4667 = vsub.s32 0, %v4666
        %v4668 = vrot.slane %v4650, %v4667
        %v4669 = vsel %vm436, %v4668, %v4663
        %v4670 = vsel %vm437, %v4668, %v4664
        %v4671 = vmul.f32 %v4647, 2.0
        %v4672 = vmul.f32 %v4648, 2.0
        %v4673 = vadd.f32 %v4659, %v4671
        %v4674 = vadd.f32 %v4660, %v4672
        %v4675 = vadd.f32 %v4673, %v4669
        %v4676 = vadd.f32 %v4674, %v4670
        %v4677 = vsub.f32 %v4669, %v4659
        %v4678 = vsub.f32 %v4670, %v4660
        %4679 = vmatprep.subr.mxu0 0.0
        %v4680 = vand.u32 %v386, 4294901760
        %4681 = vmatpush1.msra.mxu0 %v4680
        %4682 = vmatprep.subr.mxu0 0.0
        %v4683 = vand.u32 %v385, 4294901760
        %4684 = vmatpush1.msra.mxu0 %v4683
        %4685 = vmatprep.subr.mxu0 0.0
        %v4686 = vand.u32 %v384, 4294901760
        %4687 = vmatpush1.msra.mxu0 %v4686
        %4688 = vmatprep.subr.mxu0 0.0
        %v4689 = vand.u32 %v383, 4294901760
        %4690 = vmatpush1.msra.mxu0 %v4689
        %4691 = vmatprep.subr.mxu0 0.0
        %v4692 = vand.u32 %v382, 4294901760
        %4693 = vmatpush1.msra.mxu0 %v4692
        %4694 = vmatprep.subr.mxu0 0.0
        %v4695 = vand.u32 %v381, 4294901760
        %4696 = vmatpush1.msra.mxu0 %v4695
        %4697 = vmatprep.subr.mxu0 0.0
        %v4698 = vand.u32 %v380, 4294901760
        %4699 = vmatpush1.msra.mxu0 %v4698
        %4700 = vmatprep.subr.mxu0 0.0
        %v4701 = vand.u32 %v379, 4294901760
        %4702 = vmatpush1.msra.mxu0 %v4701
        %4703 = vmatprep.subr.mxu0 0.0
        %v4704 = vand.u32 %v378, 4294901760
        %4705 = vmatpush1.msra.mxu0 %v4704
        %4706 = vmatprep.subr.mxu0 0.0
        %v4707 = vand.u32 %v377, 4294901760
        %4708 = vmatpush1.msra.mxu0 %v4707
        %4709 = vmatprep.subr.mxu0 0.0
        %v4710 = vand.u32 %v376, 4294901760
        %4711 = vmatpush1.msra.mxu0 %v4710
        %4712 = vmatprep.subr.mxu0 0.0
        %v4713 = vand.u32 %v375, 4294901760
        %4714 = vmatpush1.msra.mxu0 %v4713
        %4715 = vmatprep.subr.mxu0 0.0
        %v4716 = vand.u32 %v374, 4294901760
        %4717 = vmatpush1.msra.mxu0 %v4716
        %4718 = vmatprep.subr.mxu0 0.0
        %v4719 = vand.u32 %v373, 4294901760
        %4720 = vmatpush1.msra.mxu0 %v4719
        %4721 = vmatprep.subr.mxu0 0.0
        %v4722 = vand.u32 %v372, 4294901760
        %4723 = vmatpush1.msra.mxu0 %v4722
        %4724 = vmatprep.subr.mxu0 0.0
        %v4725 = vand.u32 %v371, 4294901760
        %4726 = vmatpush1.msra.mxu0 %v4725
        %4727 = vmatprep.subr.mxu0 0.0
        %4728 = vmatpush2.msra.mxu0 0.0
        %4729 = vmatprep.subr.mxu0 0.0
        %4730 = vmatpush2.msra.mxu0 0.0
        %4731 = vmatprep.subr.mxu0 0.0
        %4732 = vmatpush2.msra.mxu0 0.0
        %4733 = vmatprep.subr.mxu0 0.0
        %4734 = vmatpush2.msra.mxu0 0.0
        %4735 = vmatprep.subr.mxu0 0.0
        %4736 = vmatpush2.msra.mxu0 0.0
        %4737 = vmatprep.subr.mxu0 0.0
        %4738 = vmatpush2.msra.mxu0 0.0
        %4739 = vmatprep.subr.mxu0 0.0
        %4740 = vmatpush2.msra.mxu0 0.0
        %4741 = vmatprep.subr.mxu0 0.0
        %4742 = vmatpush2.msra.mxu0 0.0
        %4743 = vmatprep.subr.mxu0 0.0
        %4744 = vmatpush2.msra.mxu0 0.0
        %4745 = vmatprep.subr.mxu0 0.0
        %4746 = vmatpush2.msra.mxu0 0.0
        %4747 = vmatprep.subr.mxu0 0.0
        %4748 = vmatpush2.msra.mxu0 0.0
        %4749 = vmatprep.subr.mxu0 0.0
        %4750 = vmatpush2.msra.mxu0 0.0
        %4751 = vmatprep.subr.mxu0 0.0
        %4752 = vmatpush2.msra.mxu0 0.0
        %4753 = vmatprep.subr.mxu0 0.0
        %4754 = vmatpush2.msra.mxu0 0.0
        %4755 = vmatprep.subr.mxu0 0.0
        %4756 = vmatpush2.msra.mxu0 0.0
        %4757 = vmatprep.subr.mxu0 0.0
        %4758 = vmatpush2.msra.mxu0 0.0
        %4759 = vmatprep.mubr.f32.mxu0 0.0
        %v4760 = vand.u32 %v4675, 4294901760
        %v4761 = vsub.f32 %v4675, %v4760
        %v4762 = vand.u32 %v4761, 4294901760
        %v4763 = vsub.f32 %v4761, %v4762
        %v4764 = vand.u32 %v4763, 4294901760
        %4765 = vmatmul.mubr.f32.gmra.mxu0 %v4764
        %v4766 = vpop.f32.mrf.mxu0
        %v4767 = vadd.f32 0.0, %v4766
        %v4768 = vpop.f32.mrf.mxu0
        %4769 = vmatprep.mubr.f32.mxu0 0.0
        %v4770 = vand.u32 %v4676, 4294901760
        %v4771 = vsub.f32 %v4676, %v4770
        %v4772 = vand.u32 %v4771, 4294901760
        %v4773 = vsub.f32 %v4771, %v4772
        %v4774 = vand.u32 %v4773, 4294901760
        %4775 = vmatmul.mubr.f32.gmra.mxu0 %v4774
        %v4776 = vpop.f32.mrf.mxu0
        %v4777 = vadd.f32 0.0, %v4776
        %v4778 = vpop.f32.mrf.mxu0
        %4779 = vdwg.mxu0
        %4780 = vmatprep.subr.mxu0 0.0
        %v4781 = vand.u32 %v386, 4294901760
        %v4782 = vsub.f32 %v386, %v4781
        %v4783 = vand.u32 %v4782, 4294901760
        %v4784 = vsub.f32 %v4782, %v4783
        %v4785 = vand.u32 %v4784, 4294901760
        %4786 = vmatpush1.msra.mxu0 %v4785
        %4787 = vmatprep.subr.mxu0 0.0
        %v4788 = vand.u32 %v385, 4294901760
        %v4789 = vsub.f32 %v385, %v4788
        %v4790 = vand.u32 %v4789, 4294901760
        %v4791 = vsub.f32 %v4789, %v4790
        %v4792 = vand.u32 %v4791, 4294901760
        %4793 = vmatpush1.msra.mxu0 %v4792
        %4794 = vmatprep.subr.mxu0 0.0
        %v4795 = vand.u32 %v384, 4294901760
        %v4796 = vsub.f32 %v384, %v4795
        %v4797 = vand.u32 %v4796, 4294901760
        %v4798 = vsub.f32 %v4796, %v4797
        %v4799 = vand.u32 %v4798, 4294901760
        %4800 = vmatpush1.msra.mxu0 %v4799
        %4801 = vmatprep.subr.mxu0 0.0
        %v4802 = vand.u32 %v383, 4294901760
        %v4803 = vsub.f32 %v383, %v4802
        %v4804 = vand.u32 %v4803, 4294901760
        %v4805 = vsub.f32 %v4803, %v4804
        %v4806 = vand.u32 %v4805, 4294901760
        %4807 = vmatpush1.msra.mxu0 %v4806
        %4808 = vmatprep.subr.mxu0 0.0
        %v4809 = vand.u32 %v382, 4294901760
        %v4810 = vsub.f32 %v382, %v4809
        %v4811 = vand.u32 %v4810, 4294901760
        %v4812 = vsub.f32 %v4810, %v4811
        %v4813 = vand.u32 %v4812, 4294901760
        %4814 = vmatpush1.msra.mxu0 %v4813
        %4815 = vmatprep.subr.mxu0 0.0
        %v4816 = vand.u32 %v381, 4294901760
        %v4817 = vsub.f32 %v381, %v4816
        %v4818 = vand.u32 %v4817, 4294901760
        %v4819 = vsub.f32 %v4817, %v4818
        %v4820 = vand.u32 %v4819, 4294901760
        %4821 = vmatpush1.msra.mxu0 %v4820
        %4822 = vmatprep.subr.mxu0 0.0
        %v4823 = vand.u32 %v380, 4294901760
        %v4824 = vsub.f32 %v380, %v4823
        %v4825 = vand.u32 %v4824, 4294901760
        %v4826 = vsub.f32 %v4824, %v4825
        %v4827 = vand.u32 %v4826, 4294901760
        %4828 = vmatpush1.msra.mxu0 %v4827
        %4829 = vmatprep.subr.mxu0 0.0
        %v4830 = vand.u32 %v379, 4294901760
        %v4831 = vsub.f32 %v379, %v4830
        %v4832 = vand.u32 %v4831, 4294901760
        %v4833 = vsub.f32 %v4831, %v4832
        %v4834 = vand.u32 %v4833, 4294901760
        %4835 = vmatpush1.msra.mxu0 %v4834
        %4836 = vmatprep.subr.mxu0 0.0
        %v4837 = vand.u32 %v378, 4294901760
        %v4838 = vsub.f32 %v378, %v4837
        %v4839 = vand.u32 %v4838, 4294901760
        %v4840 = vsub.f32 %v4838, %v4839
        %v4841 = vand.u32 %v4840, 4294901760
        %4842 = vmatpush1.msra.mxu0 %v4841
        %4843 = vmatprep.subr.mxu0 0.0
        %v4844 = vand.u32 %v377, 4294901760
        %v4845 = vsub.f32 %v377, %v4844
        %v4846 = vand.u32 %v4845, 4294901760
        %v4847 = vsub.f32 %v4845, %v4846
        %v4848 = vand.u32 %v4847, 4294901760
        %4849 = vmatpush1.msra.mxu0 %v4848
        %4850 = vmatprep.subr.mxu0 0.0
        %v4851 = vand.u32 %v376, 4294901760
        %v4852 = vsub.f32 %v376, %v4851
        %v4853 = vand.u32 %v4852, 4294901760
        %v4854 = vsub.f32 %v4852, %v4853
        %v4855 = vand.u32 %v4854, 4294901760
        %4856 = vmatpush1.msra.mxu0 %v4855
        %4857 = vmatprep.subr.mxu0 0.0
        %v4858 = vand.u32 %v375, 4294901760
        %v4859 = vsub.f32 %v375, %v4858
        %v4860 = vand.u32 %v4859, 4294901760
        %v4861 = vsub.f32 %v4859, %v4860
        %v4862 = vand.u32 %v4861, 4294901760
        %4863 = vmatpush1.msra.mxu0 %v4862
        %4864 = vmatprep.subr.mxu0 0.0
        %v4865 = vand.u32 %v374, 4294901760
        %v4866 = vsub.f32 %v374, %v4865
        %v4867 = vand.u32 %v4866, 4294901760
        %v4868 = vsub.f32 %v4866, %v4867
        %v4869 = vand.u32 %v4868, 4294901760
        %4870 = vmatpush1.msra.mxu0 %v4869
        %4871 = vmatprep.subr.mxu0 0.0
        %v4872 = vand.u32 %v373, 4294901760
        %v4873 = vsub.f32 %v373, %v4872
        %v4874 = vand.u32 %v4873, 4294901760
        %v4875 = vsub.f32 %v4873, %v4874
        %v4876 = vand.u32 %v4875, 4294901760
        %4877 = vmatpush1.msra.mxu0 %v4876
        %4878 = vmatprep.subr.mxu0 0.0
        %v4879 = vand.u32 %v372, 4294901760
        %v4880 = vsub.f32 %v372, %v4879
        %v4881 = vand.u32 %v4880, 4294901760
        %v4882 = vsub.f32 %v4880, %v4881
        %v4883 = vand.u32 %v4882, 4294901760
        %4884 = vmatpush1.msra.mxu0 %v4883
        %4885 = vmatprep.subr.mxu0 0.0
        %v4886 = vand.u32 %v371, 4294901760
        %v4887 = vsub.f32 %v371, %v4886
        %v4888 = vand.u32 %v4887, 4294901760
        %v4889 = vsub.f32 %v4887, %v4888
        %v4890 = vand.u32 %v4889, 4294901760
        %4891 = vmatpush1.msra.mxu0 %v4890
        %4892 = vmatprep.subr.mxu0 0.0
        %4893 = vmatpush2.msra.mxu0 0.0
        %4894 = vmatprep.subr.mxu0 0.0
        %4895 = vmatpush2.msra.mxu0 0.0
        %4896 = vmatprep.subr.mxu0 0.0
        %4897 = vmatpush2.msra.mxu0 0.0
        %4898 = vmatprep.subr.mxu0 0.0
        %4899 = vmatpush2.msra.mxu0 0.0
        %4900 = vmatprep.subr.mxu0 0.0
        %4901 = vmatpush2.msra.mxu0 0.0
        %4902 = vmatprep.subr.mxu0 0.0
        %4903 = vmatpush2.msra.mxu0 0.0
        %4904 = vmatprep.subr.mxu0 0.0
        %4905 = vmatpush2.msra.mxu0 0.0
        %4906 = vmatprep.subr.mxu0 0.0
        %4907 = vmatpush2.msra.mxu0 0.0
        %4908 = vmatprep.subr.mxu0 0.0
        %4909 = vmatpush2.msra.mxu0 0.0
        %4910 = vmatprep.subr.mxu0 0.0
        %4911 = vmatpush2.msra.mxu0 0.0
        %4912 = vmatprep.subr.mxu0 0.0
        %4913 = vmatpush2.msra.mxu0 0.0
        %4914 = vmatprep.subr.mxu0 0.0
        %4915 = vmatpush2.msra.mxu0 0.0
        %4916 = vmatprep.subr.mxu0 0.0
        %4917 = vmatpush2.msra.mxu0 0.0
        %4918 = vmatprep.subr.mxu0 0.0
        %4919 = vmatpush2.msra.mxu0 0.0
        %4920 = vmatprep.subr.mxu0 0.0
        %4921 = vmatpush2.msra.mxu0 0.0
        %4922 = vmatprep.subr.mxu0 0.0
        %4923 = vmatpush2.msra.mxu0 0.0
        %4924 = vmatprep.mubr.f32.mxu0 0.0
        %v4925 = vand.u32 %v4675, 4294901760
        %4926 = vmatmul.mubr.f32.gmra.mxu0 %v4925
        %v4927 = vpop.f32.mrf.mxu0
        %v4928 = vadd.f32 %v4767, %v4927
        %v4929 = vpop.f32.mrf.mxu0
        %4930 = vmatprep.mubr.f32.mxu0 0.0
        %v4931 = vand.u32 %v4676, 4294901760
        %4932 = vmatmul.mubr.f32.gmra.mxu0 %v4931
        %v4933 = vpop.f32.mrf.mxu0
        %v4934 = vadd.f32 %v4777, %v4933
        %v4935 = vpop.f32.mrf.mxu0
        %4936 = vdwg.mxu0
        %4937 = vmatprep.subr.mxu0 0.0
        %v4938 = vand.u32 %v386, 4294901760
        %v4939 = vsub.f32 %v386, %v4938
        %4940 = vmatpush1.msra.mxu0 %v4939
        %4941 = vmatprep.subr.mxu0 0.0
        %v4942 = vand.u32 %v385, 4294901760
        %v4943 = vsub.f32 %v385, %v4942
        %4944 = vmatpush1.msra.mxu0 %v4943
        %4945 = vmatprep.subr.mxu0 0.0
        %v4946 = vand.u32 %v384, 4294901760
        %v4947 = vsub.f32 %v384, %v4946
        %4948 = vmatpush1.msra.mxu0 %v4947
        %4949 = vmatprep.subr.mxu0 0.0
        %v4950 = vand.u32 %v383, 4294901760
        %v4951 = vsub.f32 %v383, %v4950
        %4952 = vmatpush1.msra.mxu0 %v4951
        %4953 = vmatprep.subr.mxu0 0.0
        %v4954 = vand.u32 %v382, 4294901760
        %v4955 = vsub.f32 %v382, %v4954
        %4956 = vmatpush1.msra.mxu0 %v4955
        %4957 = vmatprep.subr.mxu0 0.0
        %v4958 = vand.u32 %v381, 4294901760
        %v4959 = vsub.f32 %v381, %v4958
        %4960 = vmatpush1.msra.mxu0 %v4959
        %4961 = vmatprep.subr.mxu0 0.0
        %v4962 = vand.u32 %v380, 4294901760
        %v4963 = vsub.f32 %v380, %v4962
        %4964 = vmatpush1.msra.mxu0 %v4963
        %4965 = vmatprep.subr.mxu0 0.0
        %v4966 = vand.u32 %v379, 4294901760
        %v4967 = vsub.f32 %v379, %v4966
        %4968 = vmatpush1.msra.mxu0 %v4967
        %4969 = vmatprep.subr.mxu0 0.0
        %v4970 = vand.u32 %v378, 4294901760
        %v4971 = vsub.f32 %v378, %v4970
        %4972 = vmatpush1.msra.mxu0 %v4971
        %4973 = vmatprep.subr.mxu0 0.0
        %v4974 = vand.u32 %v377, 4294901760
        %v4975 = vsub.f32 %v377, %v4974
        %4976 = vmatpush1.msra.mxu0 %v4975
        %4977 = vmatprep.subr.mxu0 0.0
        %v4978 = vand.u32 %v376, 4294901760
        %v4979 = vsub.f32 %v376, %v4978
        %4980 = vmatpush1.msra.mxu0 %v4979
        %4981 = vmatprep.subr.mxu0 0.0
        %v4982 = vand.u32 %v375, 4294901760
        %v4983 = vsub.f32 %v375, %v4982
        %4984 = vmatpush1.msra.mxu0 %v4983
        %4985 = vmatprep.subr.mxu0 0.0
        %v4986 = vand.u32 %v374, 4294901760
        %v4987 = vsub.f32 %v374, %v4986
        %4988 = vmatpush1.msra.mxu0 %v4987
        %4989 = vmatprep.subr.mxu0 0.0
        %v4990 = vand.u32 %v373, 4294901760
        %v4991 = vsub.f32 %v373, %v4990
        %4992 = vmatpush1.msra.mxu0 %v4991
        %4993 = vmatprep.subr.mxu0 0.0
        %v4994 = vand.u32 %v372, 4294901760
        %v4995 = vsub.f32 %v372, %v4994
        %4996 = vmatpush1.msra.mxu0 %v4995
        %4997 = vmatprep.subr.mxu0 0.0
        %v4998 = vand.u32 %v371, 4294901760
        %v4999 = vsub.f32 %v371, %v4998
        %5000 = vmatpush1.msra.mxu0 %v4999
        %5001 = vmatprep.subr.mxu0 0.0
        %5002 = vmatpush2.msra.mxu0 0.0
        %5003 = vmatprep.subr.mxu0 0.0
        %5004 = vmatpush2.msra.mxu0 0.0
        %5005 = vmatprep.subr.mxu0 0.0
        %5006 = vmatpush2.msra.mxu0 0.0
        %5007 = vmatprep.subr.mxu0 0.0
        %5008 = vmatpush2.msra.mxu0 0.0
        %5009 = vmatprep.subr.mxu0 0.0
        %5010 = vmatpush2.msra.mxu0 0.0
        %5011 = vmatprep.subr.mxu0 0.0
        %5012 = vmatpush2.msra.mxu0 0.0
        %5013 = vmatprep.subr.mxu0 0.0
        %5014 = vmatpush2.msra.mxu0 0.0
        %5015 = vmatprep.subr.mxu0 0.0
        %5016 = vmatpush2.msra.mxu0 0.0
        %5017 = vmatprep.subr.mxu0 0.0
        %5018 = vmatpush2.msra.mxu0 0.0
        %5019 = vmatprep.subr.mxu0 0.0
        %5020 = vmatpush2.msra.mxu0 0.0
        %5021 = vmatprep.subr.mxu0 0.0
        %5022 = vmatpush2.msra.mxu0 0.0
        %5023 = vmatprep.subr.mxu0 0.0
        %5024 = vmatpush2.msra.mxu0 0.0
        %5025 = vmatprep.subr.mxu0 0.0
        %5026 = vmatpush2.msra.mxu0 0.0
        %5027 = vmatprep.subr.mxu0 0.0
        %5028 = vmatpush2.msra.mxu0 0.0
        %5029 = vmatprep.subr.mxu0 0.0
        %5030 = vmatpush2.msra.mxu0 0.0
        %5031 = vmatprep.subr.mxu0 0.0
        %5032 = vmatpush2.msra.mxu0 0.0
        %5033 = vmatprep.mubr.f32.mxu0 0.0
        %v5034 = vand.u32 %v4675, 4294901760
        %v5035 = vsub.f32 %v4675, %v5034
        %5036 = vmatmul.mubr.f32.gmra.mxu0 %v5035
        %v5037 = vpop.f32.mrf.mxu0
        %v5038 = vadd.f32 %v4928, %v5037
        %v5039 = vpop.f32.mrf.mxu0
        %5040 = vmatprep.mubr.f32.mxu0 0.0
        %v5041 = vand.u32 %v4676, 4294901760
        %v5042 = vsub.f32 %v4676, %v5041
        %5043 = vmatmul.mubr.f32.gmra.mxu0 %v5042
        %v5044 = vpop.f32.mrf.mxu0
        %v5045 = vadd.f32 %v4934, %v5044
        %v5046 = vpop.f32.mrf.mxu0
        %5047 = vdwg.mxu0
        %5048 = vmatprep.subr.mxu0 0.0
        %v5049 = vand.u32 %v386, 4294901760
        %5050 = vmatpush1.msra.mxu0 %v5049
        %5051 = vmatprep.subr.mxu0 0.0
        %v5052 = vand.u32 %v385, 4294901760
        %5053 = vmatpush1.msra.mxu0 %v5052
        %5054 = vmatprep.subr.mxu0 0.0
        %v5055 = vand.u32 %v384, 4294901760
        %5056 = vmatpush1.msra.mxu0 %v5055
        %5057 = vmatprep.subr.mxu0 0.0
        %v5058 = vand.u32 %v383, 4294901760
        %5059 = vmatpush1.msra.mxu0 %v5058
        %5060 = vmatprep.subr.mxu0 0.0
        %v5061 = vand.u32 %v382, 4294901760
        %5062 = vmatpush1.msra.mxu0 %v5061
        %5063 = vmatprep.subr.mxu0 0.0
        %v5064 = vand.u32 %v381, 4294901760
        %5065 = vmatpush1.msra.mxu0 %v5064
        %5066 = vmatprep.subr.mxu0 0.0
        %v5067 = vand.u32 %v380, 4294901760
        %5068 = vmatpush1.msra.mxu0 %v5067
        %5069 = vmatprep.subr.mxu0 0.0
        %v5070 = vand.u32 %v379, 4294901760
        %5071 = vmatpush1.msra.mxu0 %v5070
        %5072 = vmatprep.subr.mxu0 0.0
        %v5073 = vand.u32 %v378, 4294901760
        %5074 = vmatpush1.msra.mxu0 %v5073
        %5075 = vmatprep.subr.mxu0 0.0
        %v5076 = vand.u32 %v377, 4294901760
        %5077 = vmatpush1.msra.mxu0 %v5076
        %5078 = vmatprep.subr.mxu0 0.0
        %v5079 = vand.u32 %v376, 4294901760
        %5080 = vmatpush1.msra.mxu0 %v5079
        %5081 = vmatprep.subr.mxu0 0.0
        %v5082 = vand.u32 %v375, 4294901760
        %5083 = vmatpush1.msra.mxu0 %v5082
        %5084 = vmatprep.subr.mxu0 0.0
        %v5085 = vand.u32 %v374, 4294901760
        %5086 = vmatpush1.msra.mxu0 %v5085
        %5087 = vmatprep.subr.mxu0 0.0
        %v5088 = vand.u32 %v373, 4294901760
        %5089 = vmatpush1.msra.mxu0 %v5088
        %5090 = vmatprep.subr.mxu0 0.0
        %v5091 = vand.u32 %v372, 4294901760
        %5092 = vmatpush1.msra.mxu0 %v5091
        %5093 = vmatprep.subr.mxu0 0.0
        %v5094 = vand.u32 %v371, 4294901760
        %5095 = vmatpush1.msra.mxu0 %v5094
        %5096 = vmatprep.subr.mxu0 0.0
        %5097 = vmatpush2.msra.mxu0 0.0
        %5098 = vmatprep.subr.mxu0 0.0
        %5099 = vmatpush2.msra.mxu0 0.0
        %5100 = vmatprep.subr.mxu0 0.0
        %5101 = vmatpush2.msra.mxu0 0.0
        %5102 = vmatprep.subr.mxu0 0.0
        %5103 = vmatpush2.msra.mxu0 0.0
        %5104 = vmatprep.subr.mxu0 0.0
        %5105 = vmatpush2.msra.mxu0 0.0
        %5106 = vmatprep.subr.mxu0 0.0
        %5107 = vmatpush2.msra.mxu0 0.0
        %5108 = vmatprep.subr.mxu0 0.0
        %5109 = vmatpush2.msra.mxu0 0.0
        %5110 = vmatprep.subr.mxu0 0.0
        %5111 = vmatpush2.msra.mxu0 0.0
        %5112 = vmatprep.subr.mxu0 0.0
        %5113 = vmatpush2.msra.mxu0 0.0
        %5114 = vmatprep.subr.mxu0 0.0
        %5115 = vmatpush2.msra.mxu0 0.0
        %5116 = vmatprep.subr.mxu0 0.0
        %5117 = vmatpush2.msra.mxu0 0.0
        %5118 = vmatprep.subr.mxu0 0.0
        %5119 = vmatpush2.msra.mxu0 0.0
        %5120 = vmatprep.subr.mxu0 0.0
        %5121 = vmatpush2.msra.mxu0 0.0
        %5122 = vmatprep.subr.mxu0 0.0
        %5123 = vmatpush2.msra.mxu0 0.0
        %5124 = vmatprep.subr.mxu0 0.0
        %5125 = vmatpush2.msra.mxu0 0.0
        %5126 = vmatprep.subr.mxu0 0.0
        %5127 = vmatpush2.msra.mxu0 0.0
        %5128 = vmatprep.mubr.f32.mxu0 0.0
        %v5129 = vand.u32 %v4675, 4294901760
        %v5130 = vsub.f32 %v4675, %v5129
        %v5131 = vand.u32 %v5130, 4294901760
        %5132 = vmatmul.mubr.f32.gmra.mxu0 %v5131
        %v5133 = vpop.f32.mrf.mxu0
        %v5134 = vadd.f32 %v5038, %v5133
        %v5135 = vpop.f32.mrf.mxu0
        %5136 = vmatprep.mubr.f32.mxu0 0.0
        %v5137 = vand.u32 %v4676, 4294901760
        %v5138 = vsub.f32 %v4676, %v5137
        %v5139 = vand.u32 %v5138, 4294901760
        %5140 = vmatmul.mubr.f32.gmra.mxu0 %v5139
        %v5141 = vpop.f32.mrf.mxu0
        %v5142 = vadd.f32 %v5045, %v5141
        %v5143 = vpop.f32.mrf.mxu0
        %5144 = vdwg.mxu0
        %5145 = vmatprep.subr.mxu0 0.0
        %v5146 = vand.u32 %v386, 4294901760
        %v5147 = vsub.f32 %v386, %v5146
        %v5148 = vand.u32 %v5147, 4294901760
        %5149 = vmatpush1.msra.mxu0 %v5148
        %5150 = vmatprep.subr.mxu0 0.0
        %v5151 = vand.u32 %v385, 4294901760
        %v5152 = vsub.f32 %v385, %v5151
        %v5153 = vand.u32 %v5152, 4294901760
        %5154 = vmatpush1.msra.mxu0 %v5153
        %5155 = vmatprep.subr.mxu0 0.0
        %v5156 = vand.u32 %v384, 4294901760
        %v5157 = vsub.f32 %v384, %v5156
        %v5158 = vand.u32 %v5157, 4294901760
        %5159 = vmatpush1.msra.mxu0 %v5158
        %5160 = vmatprep.subr.mxu0 0.0
        %v5161 = vand.u32 %v383, 4294901760
        %v5162 = vsub.f32 %v383, %v5161
        %v5163 = vand.u32 %v5162, 4294901760
        %5164 = vmatpush1.msra.mxu0 %v5163
        %5165 = vmatprep.subr.mxu0 0.0
        %v5166 = vand.u32 %v382, 4294901760
        %v5167 = vsub.f32 %v382, %v5166
        %v5168 = vand.u32 %v5167, 4294901760
        %5169 = vmatpush1.msra.mxu0 %v5168
        %5170 = vmatprep.subr.mxu0 0.0
        %v5171 = vand.u32 %v381, 4294901760
        %v5172 = vsub.f32 %v381, %v5171
        %v5173 = vand.u32 %v5172, 4294901760
        %5174 = vmatpush1.msra.mxu0 %v5173
        %5175 = vmatprep.subr.mxu0 0.0
        %v5176 = vand.u32 %v380, 4294901760
        %v5177 = vsub.f32 %v380, %v5176
        %v5178 = vand.u32 %v5177, 4294901760
        %5179 = vmatpush1.msra.mxu0 %v5178
        %5180 = vmatprep.subr.mxu0 0.0
        %v5181 = vand.u32 %v379, 4294901760
        %v5182 = vsub.f32 %v379, %v5181
        %v5183 = vand.u32 %v5182, 4294901760
        %5184 = vmatpush1.msra.mxu0 %v5183
        %5185 = vmatprep.subr.mxu0 0.0
        %v5186 = vand.u32 %v378, 4294901760
        %v5187 = vsub.f32 %v378, %v5186
        %v5188 = vand.u32 %v5187, 4294901760
        %5189 = vmatpush1.msra.mxu0 %v5188
        %5190 = vmatprep.subr.mxu0 0.0
        %v5191 = vand.u32 %v377, 4294901760
        %v5192 = vsub.f32 %v377, %v5191
        %v5193 = vand.u32 %v5192, 4294901760
        %5194 = vmatpush1.msra.mxu0 %v5193
        %5195 = vmatprep.subr.mxu0 0.0
        %v5196 = vand.u32 %v376, 4294901760
        %v5197 = vsub.f32 %v376, %v5196
        %v5198 = vand.u32 %v5197, 4294901760
        %5199 = vmatpush1.msra.mxu0 %v5198
        %5200 = vmatprep.subr.mxu0 0.0
        %v5201 = vand.u32 %v375, 4294901760
        %v5202 = vsub.f32 %v375, %v5201
        %v5203 = vand.u32 %v5202, 4294901760
        %5204 = vmatpush1.msra.mxu0 %v5203
        %5205 = vmatprep.subr.mxu0 0.0
        %v5206 = vand.u32 %v374, 4294901760
        %v5207 = vsub.f32 %v374, %v5206
        %v5208 = vand.u32 %v5207, 4294901760
        %5209 = vmatpush1.msra.mxu0 %v5208
        %5210 = vmatprep.subr.mxu0 0.0
        %v5211 = vand.u32 %v373, 4294901760
        %v5212 = vsub.f32 %v373, %v5211
        %v5213 = vand.u32 %v5212, 4294901760
        %5214 = vmatpush1.msra.mxu0 %v5213
        %5215 = vmatprep.subr.mxu0 0.0
        %v5216 = vand.u32 %v372, 4294901760
        %v5217 = vsub.f32 %v372, %v5216
        %v5218 = vand.u32 %v5217, 4294901760
        %5219 = vmatpush1.msra.mxu0 %v5218
        %5220 = vmatprep.subr.mxu0 0.0
        %v5221 = vand.u32 %v371, 4294901760
        %v5222 = vsub.f32 %v371, %v5221
        %v5223 = vand.u32 %v5222, 4294901760
        %5224 = vmatpush1.msra.mxu0 %v5223
        %5225 = vmatprep.subr.mxu0 0.0
        %5226 = vmatpush2.msra.mxu0 0.0
        %5227 = vmatprep.subr.mxu0 0.0
        %5228 = vmatpush2.msra.mxu0 0.0
        %5229 = vmatprep.subr.mxu0 0.0
        %5230 = vmatpush2.msra.mxu0 0.0
        %5231 = vmatprep.subr.mxu0 0.0
        %5232 = vmatpush2.msra.mxu0 0.0
        %5233 = vmatprep.subr.mxu0 0.0
        %5234 = vmatpush2.msra.mxu0 0.0
        %5235 = vmatprep.subr.mxu0 0.0
        %5236 = vmatpush2.msra.mxu0 0.0
        %5237 = vmatprep.subr.mxu0 0.0
        %5238 = vmatpush2.msra.mxu0 0.0
        %5239 = vmatprep.subr.mxu0 0.0
        %5240 = vmatpush2.msra.mxu0 0.0
        %5241 = vmatprep.subr.mxu0 0.0
        %5242 = vmatpush2.msra.mxu0 0.0
        %5243 = vmatprep.subr.mxu0 0.0
        %5244 = vmatpush2.msra.mxu0 0.0
        %5245 = vmatprep.subr.mxu0 0.0
        %5246 = vmatpush2.msra.mxu0 0.0
        %5247 = vmatprep.subr.mxu0 0.0
        %5248 = vmatpush2.msra.mxu0 0.0
        %5249 = vmatprep.subr.mxu0 0.0
        %5250 = vmatpush2.msra.mxu0 0.0
        %5251 = vmatprep.subr.mxu0 0.0
        %5252 = vmatpush2.msra.mxu0 0.0
        %5253 = vmatprep.subr.mxu0 0.0
        %5254 = vmatpush2.msra.mxu0 0.0
        %5255 = vmatprep.subr.mxu0 0.0
        %5256 = vmatpush2.msra.mxu0 0.0
        %5257 = vmatprep.mubr.f32.mxu0 0.0
        %v5258 = vand.u32 %v4675, 4294901760
        %5259 = vmatmul.mubr.f32.gmra.mxu0 %v5258
        %v5260 = vpop.f32.mrf.mxu0
        %v5261 = vadd.f32 %v5134, %v5260
        %v5262 = vpop.f32.mrf.mxu0
        %5263 = vmatprep.mubr.f32.mxu0 0.0
        %v5264 = vand.u32 %v4676, 4294901760
        %5265 = vmatmul.mubr.f32.gmra.mxu0 %v5264
        %v5266 = vpop.f32.mrf.mxu0
        %v5267 = vadd.f32 %v5142, %v5266
        %v5268 = vpop.f32.mrf.mxu0
        %5269 = vdwg.mxu0
        %5270 = vmatprep.subr.mxu0 0.0
        %v5271 = vand.u32 %v386, 4294901760
        %5272 = vmatpush1.msra.mxu0 %v5271
        %5273 = vmatprep.subr.mxu0 0.0
        %v5274 = vand.u32 %v385, 4294901760
        %5275 = vmatpush1.msra.mxu0 %v5274
        %5276 = vmatprep.subr.mxu0 0.0
        %v5277 = vand.u32 %v384, 4294901760
        %5278 = vmatpush1.msra.mxu0 %v5277
        %5279 = vmatprep.subr.mxu0 0.0
        %v5280 = vand.u32 %v383, 4294901760
        %5281 = vmatpush1.msra.mxu0 %v5280
        %5282 = vmatprep.subr.mxu0 0.0
        %v5283 = vand.u32 %v382, 4294901760
        %5284 = vmatpush1.msra.mxu0 %v5283
        %5285 = vmatprep.subr.mxu0 0.0
        %v5286 = vand.u32 %v381, 4294901760
        %5287 = vmatpush1.msra.mxu0 %v5286
        %5288 = vmatprep.subr.mxu0 0.0
        %v5289 = vand.u32 %v380, 4294901760
        %5290 = vmatpush1.msra.mxu0 %v5289
        %5291 = vmatprep.subr.mxu0 0.0
        %v5292 = vand.u32 %v379, 4294901760
        %5293 = vmatpush1.msra.mxu0 %v5292
        %5294 = vmatprep.subr.mxu0 0.0
        %v5295 = vand.u32 %v378, 4294901760
        %5296 = vmatpush1.msra.mxu0 %v5295
        %5297 = vmatprep.subr.mxu0 0.0
        %v5298 = vand.u32 %v377, 4294901760
        %5299 = vmatpush1.msra.mxu0 %v5298
        %5300 = vmatprep.subr.mxu0 0.0
        %v5301 = vand.u32 %v376, 4294901760
        %5302 = vmatpush1.msra.mxu0 %v5301
        %5303 = vmatprep.subr.mxu0 0.0
        %v5304 = vand.u32 %v375, 4294901760
        %5305 = vmatpush1.msra.mxu0 %v5304
        %5306 = vmatprep.subr.mxu0 0.0
        %v5307 = vand.u32 %v374, 4294901760
        %5308 = vmatpush1.msra.mxu0 %v5307
        %5309 = vmatprep.subr.mxu0 0.0
        %v5310 = vand.u32 %v373, 4294901760
        %5311 = vmatpush1.msra.mxu0 %v5310
        %5312 = vmatprep.subr.mxu0 0.0
        %v5313 = vand.u32 %v372, 4294901760
        %5314 = vmatpush1.msra.mxu0 %v5313
        %5315 = vmatprep.subr.mxu0 0.0
        %v5316 = vand.u32 %v371, 4294901760
        %5317 = vmatpush1.msra.mxu0 %v5316
        %5318 = vmatprep.subr.mxu0 0.0
        %5319 = vmatpush2.msra.mxu0 0.0
        %5320 = vmatprep.subr.mxu0 0.0
        %5321 = vmatpush2.msra.mxu0 0.0
        %5322 = vmatprep.subr.mxu0 0.0
        %5323 = vmatpush2.msra.mxu0 0.0
        %5324 = vmatprep.subr.mxu0 0.0
        %5325 = vmatpush2.msra.mxu0 0.0
        %5326 = vmatprep.subr.mxu0 0.0
        %5327 = vmatpush2.msra.mxu0 0.0
        %5328 = vmatprep.subr.mxu0 0.0
        %5329 = vmatpush2.msra.mxu0 0.0
        %5330 = vmatprep.subr.mxu0 0.0
        %5331 = vmatpush2.msra.mxu0 0.0
        %5332 = vmatprep.subr.mxu0 0.0
        %5333 = vmatpush2.msra.mxu0 0.0
        %5334 = vmatprep.subr.mxu0 0.0
        %5335 = vmatpush2.msra.mxu0 0.0
        %5336 = vmatprep.subr.mxu0 0.0
        %5337 = vmatpush2.msra.mxu0 0.0
        %5338 = vmatprep.subr.mxu0 0.0
        %5339 = vmatpush2.msra.mxu0 0.0
        %5340 = vmatprep.subr.mxu0 0.0
        %5341 = vmatpush2.msra.mxu0 0.0
        %5342 = vmatprep.subr.mxu0 0.0
        %5343 = vmatpush2.msra.mxu0 0.0
        %5344 = vmatprep.subr.mxu0 0.0
        %5345 = vmatpush2.msra.mxu0 0.0
        %5346 = vmatprep.subr.mxu0 0.0
        %5347 = vmatpush2.msra.mxu0 0.0
        %5348 = vmatprep.subr.mxu0 0.0
        %5349 = vmatpush2.msra.mxu0 0.0
        %5350 = vmatprep.mubr.f32.mxu0 0.0
        %v5351 = vand.u32 %v4675, 4294901760
        %5352 = vmatmul.mubr.f32.gmra.mxu0 %v5351
        %v5353 = vpop.f32.mrf.mxu0
        %v5354 = vadd.f32 %v5261, %v5353
        %v5355 = vpop.f32.mrf.mxu0
        %5356 = vmatprep.mubr.f32.mxu0 0.0
        %v5357 = vand.u32 %v4676, 4294901760
        %5358 = vmatmul.mubr.f32.gmra.mxu0 %v5357
        %v5359 = vpop.f32.mrf.mxu0
        %v5360 = vadd.f32 %v5267, %v5359
        %v5361 = vpop.f32.mrf.mxu0
        %5362 = vdwg.mxu0
        %5363 = vmatprep.subr.mxu0 0.0
        %v5364 = vand.u32 %v402, 4294901760
        %5365 = vmatpush1.msra.mxu0 %v5364
        %5366 = vmatprep.subr.mxu0 0.0
        %v5367 = vand.u32 %v401, 4294901760
        %5368 = vmatpush1.msra.mxu0 %v5367
        %5369 = vmatprep.subr.mxu0 0.0
        %v5370 = vand.u32 %v400, 4294901760
        %5371 = vmatpush1.msra.mxu0 %v5370
        %5372 = vmatprep.subr.mxu0 0.0
        %v5373 = vand.u32 %v399, 4294901760
        %5374 = vmatpush1.msra.mxu0 %v5373
        %5375 = vmatprep.subr.mxu0 0.0
        %v5376 = vand.u32 %v398, 4294901760
        %5377 = vmatpush1.msra.mxu0 %v5376
        %5378 = vmatprep.subr.mxu0 0.0
        %v5379 = vand.u32 %v397, 4294901760
        %5380 = vmatpush1.msra.mxu0 %v5379
        %5381 = vmatprep.subr.mxu0 0.0
        %v5382 = vand.u32 %v396, 4294901760
        %5383 = vmatpush1.msra.mxu0 %v5382
        %5384 = vmatprep.subr.mxu0 0.0
        %v5385 = vand.u32 %v395, 4294901760
        %5386 = vmatpush1.msra.mxu0 %v5385
        %5387 = vmatprep.subr.mxu0 0.0
        %v5388 = vand.u32 %v394, 4294901760
        %5389 = vmatpush1.msra.mxu0 %v5388
        %5390 = vmatprep.subr.mxu0 0.0
        %v5391 = vand.u32 %v393, 4294901760
        %5392 = vmatpush1.msra.mxu0 %v5391
        %5393 = vmatprep.subr.mxu0 0.0
        %v5394 = vand.u32 %v392, 4294901760
        %5395 = vmatpush1.msra.mxu0 %v5394
        %5396 = vmatprep.subr.mxu0 0.0
        %v5397 = vand.u32 %v391, 4294901760
        %5398 = vmatpush1.msra.mxu0 %v5397
        %5399 = vmatprep.subr.mxu0 0.0
        %v5400 = vand.u32 %v390, 4294901760
        %5401 = vmatpush1.msra.mxu0 %v5400
        %5402 = vmatprep.subr.mxu0 0.0
        %v5403 = vand.u32 %v389, 4294901760
        %5404 = vmatpush1.msra.mxu0 %v5403
        %5405 = vmatprep.subr.mxu0 0.0
        %v5406 = vand.u32 %v388, 4294901760
        %5407 = vmatpush1.msra.mxu0 %v5406
        %5408 = vmatprep.subr.mxu0 0.0
        %v5409 = vand.u32 %v387, 4294901760
        %5410 = vmatpush1.msra.mxu0 %v5409
        %5411 = vmatprep.subr.mxu0 0.0
        %5412 = vmatpush2.msra.mxu0 0.0
        %5413 = vmatprep.subr.mxu0 0.0
        %5414 = vmatpush2.msra.mxu0 0.0
        %5415 = vmatprep.subr.mxu0 0.0
        %5416 = vmatpush2.msra.mxu0 0.0
        %5417 = vmatprep.subr.mxu0 0.0
        %5418 = vmatpush2.msra.mxu0 0.0
        %5419 = vmatprep.subr.mxu0 0.0
        %5420 = vmatpush2.msra.mxu0 0.0
        %5421 = vmatprep.subr.mxu0 0.0
        %5422 = vmatpush2.msra.mxu0 0.0
        %5423 = vmatprep.subr.mxu0 0.0
        %5424 = vmatpush2.msra.mxu0 0.0
        %5425 = vmatprep.subr.mxu0 0.0
        %5426 = vmatpush2.msra.mxu0 0.0
        %5427 = vmatprep.subr.mxu0 0.0
        %5428 = vmatpush2.msra.mxu0 0.0
        %5429 = vmatprep.subr.mxu0 0.0
        %5430 = vmatpush2.msra.mxu0 0.0
        %5431 = vmatprep.subr.mxu0 0.0
        %5432 = vmatpush2.msra.mxu0 0.0
        %5433 = vmatprep.subr.mxu0 0.0
        %5434 = vmatpush2.msra.mxu0 0.0
        %5435 = vmatprep.subr.mxu0 0.0
        %5436 = vmatpush2.msra.mxu0 0.0
        %5437 = vmatprep.subr.mxu0 0.0
        %5438 = vmatpush2.msra.mxu0 0.0
        %5439 = vmatprep.subr.mxu0 0.0
        %5440 = vmatpush2.msra.mxu0 0.0
        %5441 = vmatprep.subr.mxu0 0.0
        %5442 = vmatpush2.msra.mxu0 0.0
        %5443 = vmatprep.mubr.f32.mxu0 0.0
        %v5444 = vand.u32 %v4677, 4294901760
        %v5445 = vsub.f32 %v4677, %v5444
        %v5446 = vand.u32 %v5445, 4294901760
        %v5447 = vsub.f32 %v5445, %v5446
        %v5448 = vand.u32 %v5447, 4294901760
        %5449 = vmatmul.mubr.f32.gmra.mxu0 %v5448
        %v5450 = vpop.f32.mrf.mxu0
        %v5451 = vadd.f32 0.0, %v5450
        %v5452 = vpop.f32.mrf.mxu0
        %5453 = vmatprep.mubr.f32.mxu0 0.0
        %v5454 = vand.u32 %v4678, 4294901760
        %v5455 = vsub.f32 %v4678, %v5454
        %v5456 = vand.u32 %v5455, 4294901760
        %v5457 = vsub.f32 %v5455, %v5456
        %v5458 = vand.u32 %v5457, 4294901760
        %5459 = vmatmul.mubr.f32.gmra.mxu0 %v5458
        %v5460 = vpop.f32.mrf.mxu0
        %v5461 = vadd.f32 0.0, %v5460
        %v5462 = vpop.f32.mrf.mxu0
        %5463 = vdwg.mxu0
        %5464 = vmatprep.subr.mxu0 0.0
        %v5465 = vand.u32 %v402, 4294901760
        %v5466 = vsub.f32 %v402, %v5465
        %v5467 = vand.u32 %v5466, 4294901760
        %v5468 = vsub.f32 %v5466, %v5467
        %v5469 = vand.u32 %v5468, 4294901760
        %5470 = vmatpush1.msra.mxu0 %v5469
        %5471 = vmatprep.subr.mxu0 0.0
        %v5472 = vand.u32 %v401, 4294901760
        %v5473 = vsub.f32 %v401, %v5472
        %v5474 = vand.u32 %v5473, 4294901760
        %v5475 = vsub.f32 %v5473, %v5474
        %v5476 = vand.u32 %v5475, 4294901760
        %5477 = vmatpush1.msra.mxu0 %v5476
        %5478 = vmatprep.subr.mxu0 0.0
        %v5479 = vand.u32 %v400, 4294901760
        %v5480 = vsub.f32 %v400, %v5479
        %v5481 = vand.u32 %v5480, 4294901760
        %v5482 = vsub.f32 %v5480, %v5481
        %v5483 = vand.u32 %v5482, 4294901760
        %5484 = vmatpush1.msra.mxu0 %v5483
        %5485 = vmatprep.subr.mxu0 0.0
        %v5486 = vand.u32 %v399, 4294901760
        %v5487 = vsub.f32 %v399, %v5486
        %v5488 = vand.u32 %v5487, 4294901760
        %v5489 = vsub.f32 %v5487, %v5488
        %v5490 = vand.u32 %v5489, 4294901760
        %5491 = vmatpush1.msra.mxu0 %v5490
        %5492 = vmatprep.subr.mxu0 0.0
        %v5493 = vand.u32 %v398, 4294901760
        %v5494 = vsub.f32 %v398, %v5493
        %v5495 = vand.u32 %v5494, 4294901760
        %v5496 = vsub.f32 %v5494, %v5495
        %v5497 = vand.u32 %v5496, 4294901760
        %5498 = vmatpush1.msra.mxu0 %v5497
        %5499 = vmatprep.subr.mxu0 0.0
        %v5500 = vand.u32 %v397, 4294901760
        %v5501 = vsub.f32 %v397, %v5500
        %v5502 = vand.u32 %v5501, 4294901760
        %v5503 = vsub.f32 %v5501, %v5502
        %v5504 = vand.u32 %v5503, 4294901760
        %5505 = vmatpush1.msra.mxu0 %v5504
        %5506 = vmatprep.subr.mxu0 0.0
        %v5507 = vand.u32 %v396, 4294901760
        %v5508 = vsub.f32 %v396, %v5507
        %v5509 = vand.u32 %v5508, 4294901760
        %v5510 = vsub.f32 %v5508, %v5509
        %v5511 = vand.u32 %v5510, 4294901760
        %5512 = vmatpush1.msra.mxu0 %v5511
        %5513 = vmatprep.subr.mxu0 0.0
        %v5514 = vand.u32 %v395, 4294901760
        %v5515 = vsub.f32 %v395, %v5514
        %v5516 = vand.u32 %v5515, 4294901760
        %v5517 = vsub.f32 %v5515, %v5516
        %v5518 = vand.u32 %v5517, 4294901760
        %5519 = vmatpush1.msra.mxu0 %v5518
        %5520 = vmatprep.subr.mxu0 0.0
        %v5521 = vand.u32 %v394, 4294901760
        %v5522 = vsub.f32 %v394, %v5521
        %v5523 = vand.u32 %v5522, 4294901760
        %v5524 = vsub.f32 %v5522, %v5523
        %v5525 = vand.u32 %v5524, 4294901760
        %5526 = vmatpush1.msra.mxu0 %v5525
        %5527 = vmatprep.subr.mxu0 0.0
        %v5528 = vand.u32 %v393, 4294901760
        %v5529 = vsub.f32 %v393, %v5528
        %v5530 = vand.u32 %v5529, 4294901760
        %v5531 = vsub.f32 %v5529, %v5530
        %v5532 = vand.u32 %v5531, 4294901760
        %5533 = vmatpush1.msra.mxu0 %v5532
        %5534 = vmatprep.subr.mxu0 0.0
        %v5535 = vand.u32 %v392, 4294901760
        %v5536 = vsub.f32 %v392, %v5535
        %v5537 = vand.u32 %v5536, 4294901760
        %v5538 = vsub.f32 %v5536, %v5537
        %v5539 = vand.u32 %v5538, 4294901760
        %5540 = vmatpush1.msra.mxu0 %v5539
        %5541 = vmatprep.subr.mxu0 0.0
        %v5542 = vand.u32 %v391, 4294901760
        %v5543 = vsub.f32 %v391, %v5542
        %v5544 = vand.u32 %v5543, 4294901760
        %v5545 = vsub.f32 %v5543, %v5544
        %v5546 = vand.u32 %v5545, 4294901760
        %5547 = vmatpush1.msra.mxu0 %v5546
        %5548 = vmatprep.subr.mxu0 0.0
        %v5549 = vand.u32 %v390, 4294901760
        %v5550 = vsub.f32 %v390, %v5549
        %v5551 = vand.u32 %v5550, 4294901760
        %v5552 = vsub.f32 %v5550, %v5551
        %v5553 = vand.u32 %v5552, 4294901760
        %5554 = vmatpush1.msra.mxu0 %v5553
        %5555 = vmatprep.subr.mxu0 0.0
        %v5556 = vand.u32 %v389, 4294901760
        %v5557 = vsub.f32 %v389, %v5556
        %v5558 = vand.u32 %v5557, 4294901760
        %v5559 = vsub.f32 %v5557, %v5558
        %v5560 = vand.u32 %v5559, 4294901760
        %5561 = vmatpush1.msra.mxu0 %v5560
        %5562 = vmatprep.subr.mxu0 0.0
        %v5563 = vand.u32 %v388, 4294901760
        %v5564 = vsub.f32 %v388, %v5563
        %v5565 = vand.u32 %v5564, 4294901760
        %v5566 = vsub.f32 %v5564, %v5565
        %v5567 = vand.u32 %v5566, 4294901760
        %5568 = vmatpush1.msra.mxu0 %v5567
        %5569 = vmatprep.subr.mxu0 0.0
        %v5570 = vand.u32 %v387, 4294901760
        %v5571 = vsub.f32 %v387, %v5570
        %v5572 = vand.u32 %v5571, 4294901760
        %v5573 = vsub.f32 %v5571, %v5572
        %v5574 = vand.u32 %v5573, 4294901760
        %5575 = vmatpush1.msra.mxu0 %v5574
        %5576 = vmatprep.subr.mxu0 0.0
        %5577 = vmatpush2.msra.mxu0 0.0
        %5578 = vmatprep.subr.mxu0 0.0
        %5579 = vmatpush2.msra.mxu0 0.0
        %5580 = vmatprep.subr.mxu0 0.0
        %5581 = vmatpush2.msra.mxu0 0.0
        %5582 = vmatprep.subr.mxu0 0.0
        %5583 = vmatpush2.msra.mxu0 0.0
        %5584 = vmatprep.subr.mxu0 0.0
        %5585 = vmatpush2.msra.mxu0 0.0
        %5586 = vmatprep.subr.mxu0 0.0
        %5587 = vmatpush2.msra.mxu0 0.0
        %5588 = vmatprep.subr.mxu0 0.0
        %5589 = vmatpush2.msra.mxu0 0.0
        %5590 = vmatprep.subr.mxu0 0.0
        %5591 = vmatpush2.msra.mxu0 0.0
        %5592 = vmatprep.subr.mxu0 0.0
        %5593 = vmatpush2.msra.mxu0 0.0
        %5594 = vmatprep.subr.mxu0 0.0
        %5595 = vmatpush2.msra.mxu0 0.0
        %5596 = vmatprep.subr.mxu0 0.0
        %5597 = vmatpush2.msra.mxu0 0.0
        %5598 = vmatprep.subr.mxu0 0.0
        %5599 = vmatpush2.msra.mxu0 0.0
        %5600 = vmatprep.subr.mxu0 0.0
        %5601 = vmatpush2.msra.mxu0 0.0
        %5602 = vmatprep.subr.mxu0 0.0
        %5603 = vmatpush2.msra.mxu0 0.0
        %5604 = vmatprep.subr.mxu0 0.0
        %5605 = vmatpush2.msra.mxu0 0.0
        %5606 = vmatprep.subr.mxu0 0.0
        %5607 = vmatpush2.msra.mxu0 0.0
        %5608 = vmatprep.mubr.f32.mxu0 0.0
        %v5609 = vand.u32 %v4677, 4294901760
        %5610 = vmatmul.mubr.f32.gmra.mxu0 %v5609
        %v5611 = vpop.f32.mrf.mxu0
        %v5612 = vadd.f32 %v5451, %v5611
        %v5613 = vpop.f32.mrf.mxu0
        %5614 = vmatprep.mubr.f32.mxu0 0.0
        %v5615 = vand.u32 %v4678, 4294901760
        %5616 = vmatmul.mubr.f32.gmra.mxu0 %v5615
        %v5617 = vpop.f32.mrf.mxu0
        %v5618 = vadd.f32 %v5461, %v5617
        %v5619 = vpop.f32.mrf.mxu0
        %5620 = vdwg.mxu0
        %5621 = vmatprep.subr.mxu0 0.0
        %v5622 = vand.u32 %v402, 4294901760
        %v5623 = vsub.f32 %v402, %v5622
        %5624 = vmatpush1.msra.mxu0 %v5623
        %5625 = vmatprep.subr.mxu0 0.0
        %v5626 = vand.u32 %v401, 4294901760
        %v5627 = vsub.f32 %v401, %v5626
        %5628 = vmatpush1.msra.mxu0 %v5627
        %5629 = vmatprep.subr.mxu0 0.0
        %v5630 = vand.u32 %v400, 4294901760
        %v5631 = vsub.f32 %v400, %v5630
        %5632 = vmatpush1.msra.mxu0 %v5631
        %5633 = vmatprep.subr.mxu0 0.0
        %v5634 = vand.u32 %v399, 4294901760
        %v5635 = vsub.f32 %v399, %v5634
        %5636 = vmatpush1.msra.mxu0 %v5635
        %5637 = vmatprep.subr.mxu0 0.0
        %v5638 = vand.u32 %v398, 4294901760
        %v5639 = vsub.f32 %v398, %v5638
        %5640 = vmatpush1.msra.mxu0 %v5639
        %5641 = vmatprep.subr.mxu0 0.0
        %v5642 = vand.u32 %v397, 4294901760
        %v5643 = vsub.f32 %v397, %v5642
        %5644 = vmatpush1.msra.mxu0 %v5643
        %5645 = vmatprep.subr.mxu0 0.0
        %v5646 = vand.u32 %v396, 4294901760
        %v5647 = vsub.f32 %v396, %v5646
        %5648 = vmatpush1.msra.mxu0 %v5647
        %5649 = vmatprep.subr.mxu0 0.0
        %v5650 = vand.u32 %v395, 4294901760
        %v5651 = vsub.f32 %v395, %v5650
        %5652 = vmatpush1.msra.mxu0 %v5651
        %5653 = vmatprep.subr.mxu0 0.0
        %v5654 = vand.u32 %v394, 4294901760
        %v5655 = vsub.f32 %v394, %v5654
        %5656 = vmatpush1.msra.mxu0 %v5655
        %5657 = vmatprep.subr.mxu0 0.0
        %v5658 = vand.u32 %v393, 4294901760
        %v5659 = vsub.f32 %v393, %v5658
        %5660 = vmatpush1.msra.mxu0 %v5659
        %5661 = vmatprep.subr.mxu0 0.0
        %v5662 = vand.u32 %v392, 4294901760
        %v5663 = vsub.f32 %v392, %v5662
        %5664 = vmatpush1.msra.mxu0 %v5663
        %5665 = vmatprep.subr.mxu0 0.0
        %v5666 = vand.u32 %v391, 4294901760
        %v5667 = vsub.f32 %v391, %v5666
        %5668 = vmatpush1.msra.mxu0 %v5667
        %5669 = vmatprep.subr.mxu0 0.0
        %v5670 = vand.u32 %v390, 4294901760
        %v5671 = vsub.f32 %v390, %v5670
        %5672 = vmatpush1.msra.mxu0 %v5671
        %5673 = vmatprep.subr.mxu0 0.0
        %v5674 = vand.u32 %v389, 4294901760
        %v5675 = vsub.f32 %v389, %v5674
        %5676 = vmatpush1.msra.mxu0 %v5675
        %5677 = vmatprep.subr.mxu0 0.0
        %v5678 = vand.u32 %v388, 4294901760
        %v5679 = vsub.f32 %v388, %v5678
        %5680 = vmatpush1.msra.mxu0 %v5679
        %5681 = vmatprep.subr.mxu0 0.0
        %v5682 = vand.u32 %v387, 4294901760
        %v5683 = vsub.f32 %v387, %v5682
        %5684 = vmatpush1.msra.mxu0 %v5683
        %5685 = vmatprep.subr.mxu0 0.0
        %5686 = vmatpush2.msra.mxu0 0.0
        %5687 = vmatprep.subr.mxu0 0.0
        %5688 = vmatpush2.msra.mxu0 0.0
        %5689 = vmatprep.subr.mxu0 0.0
        %5690 = vmatpush2.msra.mxu0 0.0
        %5691 = vmatprep.subr.mxu0 0.0
        %5692 = vmatpush2.msra.mxu0 0.0
        %5693 = vmatprep.subr.mxu0 0.0
        %5694 = vmatpush2.msra.mxu0 0.0
        %5695 = vmatprep.subr.mxu0 0.0
        %5696 = vmatpush2.msra.mxu0 0.0
        %5697 = vmatprep.subr.mxu0 0.0
        %5698 = vmatpush2.msra.mxu0 0.0
        %5699 = vmatprep.subr.mxu0 0.0
        %5700 = vmatpush2.msra.mxu0 0.0
        %5701 = vmatprep.subr.mxu0 0.0
        %5702 = vmatpush2.msra.mxu0 0.0
        %5703 = vmatprep.subr.mxu0 0.0
        %5704 = vmatpush2.msra.mxu0 0.0
        %5705 = vmatprep.subr.mxu0 0.0
        %5706 = vmatpush2.msra.mxu0 0.0
        %5707 = vmatprep.subr.mxu0 0.0
        %5708 = vmatpush2.msra.mxu0 0.0
        %5709 = vmatprep.subr.mxu0 0.0
        %5710 = vmatpush2.msra.mxu0 0.0
        %5711 = vmatprep.subr.mxu0 0.0
        %5712 = vmatpush2.msra.mxu0 0.0
        %5713 = vmatprep.subr.mxu0 0.0
        %5714 = vmatpush2.msra.mxu0 0.0
        %5715 = vmatprep.subr.mxu0 0.0
        %5716 = vmatpush2.msra.mxu0 0.0
        %5717 = vmatprep.mubr.f32.mxu0 0.0
        %v5718 = vand.u32 %v4677, 4294901760
        %v5719 = vsub.f32 %v4677, %v5718
        %5720 = vmatmul.mubr.f32.gmra.mxu0 %v5719
        %v5721 = vpop.f32.mrf.mxu0
        %v5722 = vadd.f32 %v5612, %v5721
        %v5723 = vpop.f32.mrf.mxu0
        %5724 = vmatprep.mubr.f32.mxu0 0.0
        %v5725 = vand.u32 %v4678, 4294901760
        %v5726 = vsub.f32 %v4678, %v5725
        %5727 = vmatmul.mubr.f32.gmra.mxu0 %v5726
        %v5728 = vpop.f32.mrf.mxu0
        %v5729 = vadd.f32 %v5618, %v5728
        %v5730 = vpop.f32.mrf.mxu0
        %5731 = vdwg.mxu0
        %5732 = vmatprep.subr.mxu0 0.0
        %v5733 = vand.u32 %v402, 4294901760
        %5734 = vmatpush1.msra.mxu0 %v5733
        %5735 = vmatprep.subr.mxu0 0.0
        %v5736 = vand.u32 %v401, 4294901760
        %5737 = vmatpush1.msra.mxu0 %v5736
        %5738 = vmatprep.subr.mxu0 0.0
        %v5739 = vand.u32 %v400, 4294901760
        %5740 = vmatpush1.msra.mxu0 %v5739
        %5741 = vmatprep.subr.mxu0 0.0
        %v5742 = vand.u32 %v399, 4294901760
        %5743 = vmatpush1.msra.mxu0 %v5742
        %5744 = vmatprep.subr.mxu0 0.0
        %v5745 = vand.u32 %v398, 4294901760
        %5746 = vmatpush1.msra.mxu0 %v5745
        %5747 = vmatprep.subr.mxu0 0.0
        %v5748 = vand.u32 %v397, 4294901760
        %5749 = vmatpush1.msra.mxu0 %v5748
        %5750 = vmatprep.subr.mxu0 0.0
        %v5751 = vand.u32 %v396, 4294901760
        %5752 = vmatpush1.msra.mxu0 %v5751
        %5753 = vmatprep.subr.mxu0 0.0
        %v5754 = vand.u32 %v395, 4294901760
        %5755 = vmatpush1.msra.mxu0 %v5754
        %5756 = vmatprep.subr.mxu0 0.0
        %v5757 = vand.u32 %v394, 4294901760
        %5758 = vmatpush1.msra.mxu0 %v5757
        %5759 = vmatprep.subr.mxu0 0.0
        %v5760 = vand.u32 %v393, 4294901760
        %5761 = vmatpush1.msra.mxu0 %v5760
        %5762 = vmatprep.subr.mxu0 0.0
        %v5763 = vand.u32 %v392, 4294901760
        %5764 = vmatpush1.msra.mxu0 %v5763
        %5765 = vmatprep.subr.mxu0 0.0
        %v5766 = vand.u32 %v391, 4294901760
        %5767 = vmatpush1.msra.mxu0 %v5766
        %5768 = vmatprep.subr.mxu0 0.0
        %v5769 = vand.u32 %v390, 4294901760
        %5770 = vmatpush1.msra.mxu0 %v5769
        %5771 = vmatprep.subr.mxu0 0.0
        %v5772 = vand.u32 %v389, 4294901760
        %5773 = vmatpush1.msra.mxu0 %v5772
        %5774 = vmatprep.subr.mxu0 0.0
        %v5775 = vand.u32 %v388, 4294901760
        %5776 = vmatpush1.msra.mxu0 %v5775
        %5777 = vmatprep.subr.mxu0 0.0
        %v5778 = vand.u32 %v387, 4294901760
        %5779 = vmatpush1.msra.mxu0 %v5778
        %5780 = vmatprep.subr.mxu0 0.0
        %5781 = vmatpush2.msra.mxu0 0.0
        %5782 = vmatprep.subr.mxu0 0.0
        %5783 = vmatpush2.msra.mxu0 0.0
        %5784 = vmatprep.subr.mxu0 0.0
        %5785 = vmatpush2.msra.mxu0 0.0
        %5786 = vmatprep.subr.mxu0 0.0
        %5787 = vmatpush2.msra.mxu0 0.0
        %5788 = vmatprep.subr.mxu0 0.0
        %5789 = vmatpush2.msra.mxu0 0.0
        %5790 = vmatprep.subr.mxu0 0.0
        %5791 = vmatpush2.msra.mxu0 0.0
        %5792 = vmatprep.subr.mxu0 0.0
        %5793 = vmatpush2.msra.mxu0 0.0
        %5794 = vmatprep.subr.mxu0 0.0
        %5795 = vmatpush2.msra.mxu0 0.0
        %5796 = vmatprep.subr.mxu0 0.0
        %5797 = vmatpush2.msra.mxu0 0.0
        %5798 = vmatprep.subr.mxu0 0.0
        %5799 = vmatpush2.msra.mxu0 0.0
        %5800 = vmatprep.subr.mxu0 0.0
        %5801 = vmatpush2.msra.mxu0 0.0
        %5802 = vmatprep.subr.mxu0 0.0
        %5803 = vmatpush2.msra.mxu0 0.0
        %5804 = vmatprep.subr.mxu0 0.0
        %5805 = vmatpush2.msra.mxu0 0.0
        %5806 = vmatprep.subr.mxu0 0.0
        %5807 = vmatpush2.msra.mxu0 0.0
        %5808 = vmatprep.subr.mxu0 0.0
        %5809 = vmatpush2.msra.mxu0 0.0
        %5810 = vmatprep.subr.mxu0 0.0
        %5811 = vmatpush2.msra.mxu0 0.0
        %5812 = vmatprep.mubr.f32.mxu0 0.0
        %v5813 = vand.u32 %v4677, 4294901760
        %v5814 = vsub.f32 %v4677, %v5813
        %v5815 = vand.u32 %v5814, 4294901760
        %5816 = vmatmul.mubr.f32.gmra.mxu0 %v5815
        %v5817 = vpop.f32.mrf.mxu0
        %v5818 = vadd.f32 %v5722, %v5817
        %v5819 = vpop.f32.mrf.mxu0
        %5820 = vmatprep.mubr.f32.mxu0 0.0
        %v5821 = vand.u32 %v4678, 4294901760
        %v5822 = vsub.f32 %v4678, %v5821
        %v5823 = vand.u32 %v5822, 4294901760
        %5824 = vmatmul.mubr.f32.gmra.mxu0 %v5823
        %v5825 = vpop.f32.mrf.mxu0
        %v5826 = vadd.f32 %v5729, %v5825
        %v5827 = vpop.f32.mrf.mxu0
        %5828 = vdwg.mxu0
        %5829 = vmatprep.subr.mxu0 0.0
        %v5830 = vand.u32 %v402, 4294901760
        %v5831 = vsub.f32 %v402, %v5830
        %v5832 = vand.u32 %v5831, 4294901760
        %5833 = vmatpush1.msra.mxu0 %v5832
        %5834 = vmatprep.subr.mxu0 0.0
        %v5835 = vand.u32 %v401, 4294901760
        %v5836 = vsub.f32 %v401, %v5835
        %v5837 = vand.u32 %v5836, 4294901760
        %5838 = vmatpush1.msra.mxu0 %v5837
        %5839 = vmatprep.subr.mxu0 0.0
        %v5840 = vand.u32 %v400, 4294901760
        %v5841 = vsub.f32 %v400, %v5840
        %v5842 = vand.u32 %v5841, 4294901760
        %5843 = vmatpush1.msra.mxu0 %v5842
        %5844 = vmatprep.subr.mxu0 0.0
        %v5845 = vand.u32 %v399, 4294901760
        %v5846 = vsub.f32 %v399, %v5845
        %v5847 = vand.u32 %v5846, 4294901760
        %5848 = vmatpush1.msra.mxu0 %v5847
        %5849 = vmatprep.subr.mxu0 0.0
        %v5850 = vand.u32 %v398, 4294901760
        %v5851 = vsub.f32 %v398, %v5850
        %v5852 = vand.u32 %v5851, 4294901760
        %5853 = vmatpush1.msra.mxu0 %v5852
        %5854 = vmatprep.subr.mxu0 0.0
        %v5855 = vand.u32 %v397, 4294901760
        %v5856 = vsub.f32 %v397, %v5855
        %v5857 = vand.u32 %v5856, 4294901760
        %5858 = vmatpush1.msra.mxu0 %v5857
        %5859 = vmatprep.subr.mxu0 0.0
        %v5860 = vand.u32 %v396, 4294901760
        %v5861 = vsub.f32 %v396, %v5860
        %v5862 = vand.u32 %v5861, 4294901760
        %5863 = vmatpush1.msra.mxu0 %v5862
        %5864 = vmatprep.subr.mxu0 0.0
        %v5865 = vand.u32 %v395, 4294901760
        %v5866 = vsub.f32 %v395, %v5865
        %v5867 = vand.u32 %v5866, 4294901760
        %5868 = vmatpush1.msra.mxu0 %v5867
        %5869 = vmatprep.subr.mxu0 0.0
        %v5870 = vand.u32 %v394, 4294901760
        %v5871 = vsub.f32 %v394, %v5870
        %v5872 = vand.u32 %v5871, 4294901760
        %5873 = vmatpush1.msra.mxu0 %v5872
        %5874 = vmatprep.subr.mxu0 0.0
        %v5875 = vand.u32 %v393, 4294901760
        %v5876 = vsub.f32 %v393, %v5875
        %v5877 = vand.u32 %v5876, 4294901760
        %5878 = vmatpush1.msra.mxu0 %v5877
        %5879 = vmatprep.subr.mxu0 0.0
        %v5880 = vand.u32 %v392, 4294901760
        %v5881 = vsub.f32 %v392, %v5880
        %v5882 = vand.u32 %v5881, 4294901760
        %5883 = vmatpush1.msra.mxu0 %v5882
        %5884 = vmatprep.subr.mxu0 0.0
        %v5885 = vand.u32 %v391, 4294901760
        %v5886 = vsub.f32 %v391, %v5885
        %v5887 = vand.u32 %v5886, 4294901760
        %5888 = vmatpush1.msra.mxu0 %v5887
        %5889 = vmatprep.subr.mxu0 0.0
        %v5890 = vand.u32 %v390, 4294901760
        %v5891 = vsub.f32 %v390, %v5890
        %v5892 = vand.u32 %v5891, 4294901760
        %5893 = vmatpush1.msra.mxu0 %v5892
        %5894 = vmatprep.subr.mxu0 0.0
        %v5895 = vand.u32 %v389, 4294901760
        %v5896 = vsub.f32 %v389, %v5895
        %v5897 = vand.u32 %v5896, 4294901760
        %5898 = vmatpush1.msra.mxu0 %v5897
        %5899 = vmatprep.subr.mxu0 0.0
        %v5900 = vand.u32 %v388, 4294901760
        %v5901 = vsub.f32 %v388, %v5900
        %v5902 = vand.u32 %v5901, 4294901760
        %5903 = vmatpush1.msra.mxu0 %v5902
        %5904 = vmatprep.subr.mxu0 0.0
        %v5905 = vand.u32 %v387, 4294901760
        %v5906 = vsub.f32 %v387, %v5905
        %v5907 = vand.u32 %v5906, 4294901760
        %5908 = vmatpush1.msra.mxu0 %v5907
        %5909 = vmatprep.subr.mxu0 0.0
        %5910 = vmatpush2.msra.mxu0 0.0
        %5911 = vmatprep.subr.mxu0 0.0
        %5912 = vmatpush2.msra.mxu0 0.0
        %5913 = vmatprep.subr.mxu0 0.0
        %5914 = vmatpush2.msra.mxu0 0.0
        %5915 = vmatprep.subr.mxu0 0.0
        %5916 = vmatpush2.msra.mxu0 0.0
        %5917 = vmatprep.subr.mxu0 0.0
        %5918 = vmatpush2.msra.mxu0 0.0
        %5919 = vmatprep.subr.mxu0 0.0
        %5920 = vmatpush2.msra.mxu0 0.0
        %5921 = vmatprep.subr.mxu0 0.0
        %5922 = vmatpush2.msra.mxu0 0.0
        %5923 = vmatprep.subr.mxu0 0.0
        %5924 = vmatpush2.msra.mxu0 0.0
        %5925 = vmatprep.subr.mxu0 0.0
        %5926 = vmatpush2.msra.mxu0 0.0
        %5927 = vmatprep.subr.mxu0 0.0
        %5928 = vmatpush2.msra.mxu0 0.0
        %5929 = vmatprep.subr.mxu0 0.0
        %5930 = vmatpush2.msra.mxu0 0.0
        %5931 = vmatprep.subr.mxu0 0.0
        %5932 = vmatpush2.msra.mxu0 0.0
        %5933 = vmatprep.subr.mxu0 0.0
        %5934 = vmatpush2.msra.mxu0 0.0
        %5935 = vmatprep.subr.mxu0 0.0
        %5936 = vmatpush2.msra.mxu0 0.0
        %5937 = vmatprep.subr.mxu0 0.0
        %5938 = vmatpush2.msra.mxu0 0.0
        %5939 = vmatprep.subr.mxu0 0.0
        %5940 = vmatpush2.msra.mxu0 0.0
        %5941 = vmatprep.mubr.f32.mxu0 0.0
        %v5942 = vand.u32 %v4677, 4294901760
        %5943 = vmatmul.mubr.f32.gmra.mxu0 %v5942
        %v5944 = vpop.f32.mrf.mxu0
        %v5945 = vadd.f32 %v5818, %v5944
        %v5946 = vpop.f32.mrf.mxu0
        %5947 = vmatprep.mubr.f32.mxu0 0.0
        %v5948 = vand.u32 %v4678, 4294901760
        %5949 = vmatmul.mubr.f32.gmra.mxu0 %v5948
        %v5950 = vpop.f32.mrf.mxu0
        %v5951 = vadd.f32 %v5826, %v5950
        %v5952 = vpop.f32.mrf.mxu0
        %5953 = vdwg.mxu0
        %5954 = vmatprep.subr.mxu0 0.0
        %v5955 = vand.u32 %v402, 4294901760
        %5956 = vmatpush1.msra.mxu0 %v5955
        %5957 = vmatprep.subr.mxu0 0.0
        %v5958 = vand.u32 %v401, 4294901760
        %5959 = vmatpush1.msra.mxu0 %v5958
        %5960 = vmatprep.subr.mxu0 0.0
        %v5961 = vand.u32 %v400, 4294901760
        %5962 = vmatpush1.msra.mxu0 %v5961
        %5963 = vmatprep.subr.mxu0 0.0
        %v5964 = vand.u32 %v399, 4294901760
        %5965 = vmatpush1.msra.mxu0 %v5964
        %5966 = vmatprep.subr.mxu0 0.0
        %v5967 = vand.u32 %v398, 4294901760
        %5968 = vmatpush1.msra.mxu0 %v5967
        %5969 = vmatprep.subr.mxu0 0.0
        %v5970 = vand.u32 %v397, 4294901760
        %5971 = vmatpush1.msra.mxu0 %v5970
        %5972 = vmatprep.subr.mxu0 0.0
        %v5973 = vand.u32 %v396, 4294901760
        %5974 = vmatpush1.msra.mxu0 %v5973
        %5975 = vmatprep.subr.mxu0 0.0
        %v5976 = vand.u32 %v395, 4294901760
        %5977 = vmatpush1.msra.mxu0 %v5976
        %5978 = vmatprep.subr.mxu0 0.0
        %v5979 = vand.u32 %v394, 4294901760
        %5980 = vmatpush1.msra.mxu0 %v5979
        %5981 = vmatprep.subr.mxu0 0.0
        %v5982 = vand.u32 %v393, 4294901760
        %5983 = vmatpush1.msra.mxu0 %v5982
        %5984 = vmatprep.subr.mxu0 0.0
        %v5985 = vand.u32 %v392, 4294901760
        %5986 = vmatpush1.msra.mxu0 %v5985
        %5987 = vmatprep.subr.mxu0 0.0
        %v5988 = vand.u32 %v391, 4294901760
        %5989 = vmatpush1.msra.mxu0 %v5988
        %5990 = vmatprep.subr.mxu0 0.0
        %v5991 = vand.u32 %v390, 4294901760
        %5992 = vmatpush1.msra.mxu0 %v5991
        %5993 = vmatprep.subr.mxu0 0.0
        %v5994 = vand.u32 %v389, 4294901760
        %5995 = vmatpush1.msra.mxu0 %v5994
        %5996 = vmatprep.subr.mxu0 0.0
        %v5997 = vand.u32 %v388, 4294901760
        %5998 = vmatpush1.msra.mxu0 %v5997
        %5999 = vmatprep.subr.mxu0 0.0
        %v6000 = vand.u32 %v387, 4294901760
        %6001 = vmatpush1.msra.mxu0 %v6000
        %6002 = vmatprep.subr.mxu0 0.0
        %6003 = vmatpush2.msra.mxu0 0.0
        %6004 = vmatprep.subr.mxu0 0.0
        %6005 = vmatpush2.msra.mxu0 0.0
        %6006 = vmatprep.subr.mxu0 0.0
        %6007 = vmatpush2.msra.mxu0 0.0
        %6008 = vmatprep.subr.mxu0 0.0
        %6009 = vmatpush2.msra.mxu0 0.0
        %6010 = vmatprep.subr.mxu0 0.0
        %6011 = vmatpush2.msra.mxu0 0.0
        %6012 = vmatprep.subr.mxu0 0.0
        %6013 = vmatpush2.msra.mxu0 0.0
        %6014 = vmatprep.subr.mxu0 0.0
        %6015 = vmatpush2.msra.mxu0 0.0
        %6016 = vmatprep.subr.mxu0 0.0
        %6017 = vmatpush2.msra.mxu0 0.0
        %6018 = vmatprep.subr.mxu0 0.0
        %6019 = vmatpush2.msra.mxu0 0.0
        %6020 = vmatprep.subr.mxu0 0.0
        %6021 = vmatpush2.msra.mxu0 0.0
        %6022 = vmatprep.subr.mxu0 0.0
        %6023 = vmatpush2.msra.mxu0 0.0
        %6024 = vmatprep.subr.mxu0 0.0
        %6025 = vmatpush2.msra.mxu0 0.0
        %6026 = vmatprep.subr.mxu0 0.0
        %6027 = vmatpush2.msra.mxu0 0.0
        %6028 = vmatprep.subr.mxu0 0.0
        %6029 = vmatpush2.msra.mxu0 0.0
        %6030 = vmatprep.subr.mxu0 0.0
        %6031 = vmatpush2.msra.mxu0 0.0
        %6032 = vmatprep.subr.mxu0 0.0
        %6033 = vmatpush2.msra.mxu0 0.0
        %6034 = vmatprep.mubr.f32.mxu0 0.0
        %v6035 = vand.u32 %v4677, 4294901760
        %6036 = vmatmul.mubr.f32.gmra.mxu0 %v6035
        %v6037 = vpop.f32.mrf.mxu0
        %v6038 = vadd.f32 %v5945, %v6037
        %v6039 = vpop.f32.mrf.mxu0
        %6040 = vmatprep.mubr.f32.mxu0 0.0
        %v6041 = vand.u32 %v4678, 4294901760
        %6042 = vmatmul.mubr.f32.gmra.mxu0 %v6041
        %v6043 = vpop.f32.mrf.mxu0
        %v6044 = vadd.f32 %v5951, %v6043
        %v6045 = vpop.f32.mrf.mxu0
        %6046 = vdwg.mxu0
        %v6047 = vand.u32 2147483647, %v5354
        %v6048 = vand.u32 2147483647, %v5360
        %v6049 = vadd.f32 %v4640, %v6047
        %v6050 = vadd.f32 %v4641, %v6048
        %v6051 = vand.u32 2147483647, %v6038
        %v6052 = vand.u32 2147483647, %v6044
        %v6053 = vadd.f32 %v4644, %v6051
        %v6054 = vadd.f32 %v4645, %v6052
        %v6055 = vmul.f32 %v6049, -25.0
        %v6056 = vmul.f32 %v6050, -25.0
        %v6057 = vmul.f32 %v6055, 1.442695
        %v6058 = vpow.pop %v6057
        %v6059 = vmul.f32 %v6056, 1.442695
        %v6060 = vpow.pop %v6059
        %v6061 = vmul.f32 %v6053, -25.0
        %v6062 = vmul.f32 %v6054, -25.0
        %v6063 = vmul.f32 %v6061, 1.442695
        %v6064 = vpow.pop %v6063
        %v6065 = vmul.f32 %v6062, 1.442695
        %v6066 = vpow.pop %v6065
        %v6067 = vld [vmem:[%s310] sm:$0xff]
        %v6068 = vld [vmem:[%s310 + $0x8] sm:$0xff]
        %v6069 = vld [vmem:[%s369 + $0x8] sm:$0x1]
        %v6070 = vld [vmem:[%s369 + $0xa] sm:$0x1]
        %v6071 = vrot.slane %v6067, 7
        %v6072 = vrot.slane %v6068, 7
        %v6073 = vsel %vm416, %v6071, %v6072
        %v6074 = vsel %vm416, %v6072, %v6071
        %v6075 = vlaneseq
        %v6076 = vshrl.u32 %v6075, 7
        %v6077 = vsub.s32 0, %v6076
        %v6078 = vrot.slane %v6069, %v6077
        %v6079 = vsel %vm421, %v6078, %v6074
        %v6080 = vsel %vm422, %v6078, %v6073
        %v6081 = vrot.slane %v6067, 1
        %v6082 = vrot.slane %v6068, 1
        %v6083 = vsel %vm431, %v6081, %v6082
        %v6084 = vsel %vm431, %v6082, %v6081
        %v6085 = vlaneseq
        %v6086 = vshrl.u32 %v6085, 7
        %v6087 = vsub.s32 0, %v6086
        %v6088 = vrot.slane %v6070, %v6087
        %v6089 = vsel %vm436, %v6088, %v6083
        %v6090 = vsel %vm437, %v6088, %v6084
        %v6091 = vmul.f32 %v6067, 2.0
        %v6092 = vmul.f32 %v6068, 2.0
        %v6093 = vadd.f32 %v6079, %v6091
        %v6094 = vadd.f32 %v6080, %v6092
        %v6095 = vadd.f32 %v6093, %v6089
        %v6096 = vadd.f32 %v6094, %v6090
        %v6097 = vsub.f32 %v6089, %v6079
        %v6098 = vsub.f32 %v6090, %v6080
        %6099 = vmatprep.subr.mxu0 0.0
        %v6100 = vand.u32 %v386, 4294901760
        %6101 = vmatpush1.msra.mxu0 %v6100
        %6102 = vmatprep.subr.mxu0 0.0
        %v6103 = vand.u32 %v385, 4294901760
        %6104 = vmatpush1.msra.mxu0 %v6103
        %6105 = vmatprep.subr.mxu0 0.0
        %v6106 = vand.u32 %v384, 4294901760
        %6107 = vmatpush1.msra.mxu0 %v6106
        %6108 = vmatprep.subr.mxu0 0.0
        %v6109 = vand.u32 %v383, 4294901760
        %6110 = vmatpush1.msra.mxu0 %v6109
        %6111 = vmatprep.subr.mxu0 0.0
        %v6112 = vand.u32 %v382, 4294901760
        %6113 = vmatpush1.msra.mxu0 %v6112
        %6114 = vmatprep.subr.mxu0 0.0
        %v6115 = vand.u32 %v381, 4294901760
        %6116 = vmatpush1.msra.mxu0 %v6115
        %6117 = vmatprep.subr.mxu0 0.0
        %v6118 = vand.u32 %v380, 4294901760
        %6119 = vmatpush1.msra.mxu0 %v6118
        %6120 = vmatprep.subr.mxu0 0.0
        %v6121 = vand.u32 %v379, 4294901760
        %6122 = vmatpush1.msra.mxu0 %v6121
        %6123 = vmatprep.subr.mxu0 0.0
        %v6124 = vand.u32 %v378, 4294901760
        %6125 = vmatpush1.msra.mxu0 %v6124
        %6126 = vmatprep.subr.mxu0 0.0
        %v6127 = vand.u32 %v377, 4294901760
        %6128 = vmatpush1.msra.mxu0 %v6127
        %6129 = vmatprep.subr.mxu0 0.0
        %v6130 = vand.u32 %v376, 4294901760
        %6131 = vmatpush1.msra.mxu0 %v6130
        %6132 = vmatprep.subr.mxu0 0.0
        %v6133 = vand.u32 %v375, 4294901760
        %6134 = vmatpush1.msra.mxu0 %v6133
        %6135 = vmatprep.subr.mxu0 0.0
        %v6136 = vand.u32 %v374, 4294901760
        %6137 = vmatpush1.msra.mxu0 %v6136
        %6138 = vmatprep.subr.mxu0 0.0
        %v6139 = vand.u32 %v373, 4294901760
        %6140 = vmatpush1.msra.mxu0 %v6139
        %6141 = vmatprep.subr.mxu0 0.0
        %v6142 = vand.u32 %v372, 4294901760
        %6143 = vmatpush1.msra.mxu0 %v6142
        %6144 = vmatprep.subr.mxu0 0.0
        %v6145 = vand.u32 %v371, 4294901760
        %6146 = vmatpush1.msra.mxu0 %v6145
        %6147 = vmatprep.subr.mxu0 0.0
        %6148 = vmatpush2.msra.mxu0 0.0
        %6149 = vmatprep.subr.mxu0 0.0
        %6150 = vmatpush2.msra.mxu0 0.0
        %6151 = vmatprep.subr.mxu0 0.0
        %6152 = vmatpush2.msra.mxu0 0.0
        %6153 = vmatprep.subr.mxu0 0.0
        %6154 = vmatpush2.msra.mxu0 0.0
        %6155 = vmatprep.subr.mxu0 0.0
        %6156 = vmatpush2.msra.mxu0 0.0
        %6157 = vmatprep.subr.mxu0 0.0
        %6158 = vmatpush2.msra.mxu0 0.0
        %6159 = vmatprep.subr.mxu0 0.0
        %6160 = vmatpush2.msra.mxu0 0.0
        %6161 = vmatprep.subr.mxu0 0.0
        %6162 = vmatpush2.msra.mxu0 0.0
        %6163 = vmatprep.subr.mxu0 0.0
        %6164 = vmatpush2.msra.mxu0 0.0
        %6165 = vmatprep.subr.mxu0 0.0
        %6166 = vmatpush2.msra.mxu0 0.0
        %6167 = vmatprep.subr.mxu0 0.0
        %6168 = vmatpush2.msra.mxu0 0.0
        %6169 = vmatprep.subr.mxu0 0.0
        %6170 = vmatpush2.msra.mxu0 0.0
        %6171 = vmatprep.subr.mxu0 0.0
        %6172 = vmatpush2.msra.mxu0 0.0
        %6173 = vmatprep.subr.mxu0 0.0
        %6174 = vmatpush2.msra.mxu0 0.0
        %6175 = vmatprep.subr.mxu0 0.0
        %6176 = vmatpush2.msra.mxu0 0.0
        %6177 = vmatprep.subr.mxu0 0.0
        %6178 = vmatpush2.msra.mxu0 0.0
        %6179 = vmatprep.mubr.f32.mxu0 0.0
        %v6180 = vand.u32 %v6095, 4294901760
        %v6181 = vsub.f32 %v6095, %v6180
        %v6182 = vand.u32 %v6181, 4294901760
        %v6183 = vsub.f32 %v6181, %v6182
        %v6184 = vand.u32 %v6183, 4294901760
        %6185 = vmatmul.mubr.f32.gmra.mxu0 %v6184
        %v6186 = vpop.f32.mrf.mxu0
        %v6187 = vadd.f32 0.0, %v6186
        %v6188 = vpop.f32.mrf.mxu0
        %6189 = vmatprep.mubr.f32.mxu0 0.0
        %v6190 = vand.u32 %v6096, 4294901760
        %v6191 = vsub.f32 %v6096, %v6190
        %v6192 = vand.u32 %v6191, 4294901760
        %v6193 = vsub.f32 %v6191, %v6192
        %v6194 = vand.u32 %v6193, 4294901760
        %6195 = vmatmul.mubr.f32.gmra.mxu0 %v6194
        %v6196 = vpop.f32.mrf.mxu0
        %v6197 = vadd.f32 0.0, %v6196
        %v6198 = vpop.f32.mrf.mxu0
        %6199 = vdwg.mxu0
        %6200 = vmatprep.subr.mxu0 0.0
        %v6201 = vand.u32 %v386, 4294901760
        %v6202 = vsub.f32 %v386, %v6201
        %v6203 = vand.u32 %v6202, 4294901760
        %v6204 = vsub.f32 %v6202, %v6203
        %v6205 = vand.u32 %v6204, 4294901760
        %6206 = vmatpush1.msra.mxu0 %v6205
        %6207 = vmatprep.subr.mxu0 0.0
        %v6208 = vand.u32 %v385, 4294901760
        %v6209 = vsub.f32 %v385, %v6208
        %v6210 = vand.u32 %v6209, 4294901760
        %v6211 = vsub.f32 %v6209, %v6210
        %v6212 = vand.u32 %v6211, 4294901760
        %6213 = vmatpush1.msra.mxu0 %v6212
        %6214 = vmatprep.subr.mxu0 0.0
        %v6215 = vand.u32 %v384, 4294901760
        %v6216 = vsub.f32 %v384, %v6215
        %v6217 = vand.u32 %v6216, 4294901760
        %v6218 = vsub.f32 %v6216, %v6217
        %v6219 = vand.u32 %v6218, 4294901760
        %6220 = vmatpush1.msra.mxu0 %v6219
        %6221 = vmatprep.subr.mxu0 0.0
        %v6222 = vand.u32 %v383, 4294901760
        %v6223 = vsub.f32 %v383, %v6222
        %v6224 = vand.u32 %v6223, 4294901760
        %v6225 = vsub.f32 %v6223, %v6224
        %v6226 = vand.u32 %v6225, 4294901760
        %6227 = vmatpush1.msra.mxu0 %v6226
        %6228 = vmatprep.subr.mxu0 0.0
        %v6229 = vand.u32 %v382, 4294901760
        %v6230 = vsub.f32 %v382, %v6229
        %v6231 = vand.u32 %v6230, 4294901760
        %v6232 = vsub.f32 %v6230, %v6231
        %v6233 = vand.u32 %v6232, 4294901760
        %6234 = vmatpush1.msra.mxu0 %v6233
        %6235 = vmatprep.subr.mxu0 0.0
        %v6236 = vand.u32 %v381, 4294901760
        %v6237 = vsub.f32 %v381, %v6236
        %v6238 = vand.u32 %v6237, 4294901760
        %v6239 = vsub.f32 %v6237, %v6238
        %v6240 = vand.u32 %v6239, 4294901760
        %6241 = vmatpush1.msra.mxu0 %v6240
        %6242 = vmatprep.subr.mxu0 0.0
        %v6243 = vand.u32 %v380, 4294901760
        %v6244 = vsub.f32 %v380, %v6243
        %v6245 = vand.u32 %v6244, 4294901760
        %v6246 = vsub.f32 %v6244, %v6245
        %v6247 = vand.u32 %v6246, 4294901760
        %6248 = vmatpush1.msra.mxu0 %v6247
        %6249 = vmatprep.subr.mxu0 0.0
        %v6250 = vand.u32 %v379, 4294901760
        %v6251 = vsub.f32 %v379, %v6250
        %v6252 = vand.u32 %v6251, 4294901760
        %v6253 = vsub.f32 %v6251, %v6252
        %v6254 = vand.u32 %v6253, 4294901760
        %6255 = vmatpush1.msra.mxu0 %v6254
        %6256 = vmatprep.subr.mxu0 0.0
        %v6257 = vand.u32 %v378, 4294901760
        %v6258 = vsub.f32 %v378, %v6257
        %v6259 = vand.u32 %v6258, 4294901760
        %v6260 = vsub.f32 %v6258, %v6259
        %v6261 = vand.u32 %v6260, 4294901760
        %6262 = vmatpush1.msra.mxu0 %v6261
        %6263 = vmatprep.subr.mxu0 0.0
        %v6264 = vand.u32 %v377, 4294901760
        %v6265 = vsub.f32 %v377, %v6264
        %v6266 = vand.u32 %v6265, 4294901760
        %v6267 = vsub.f32 %v6265, %v6266
        %v6268 = vand.u32 %v6267, 4294901760
        %6269 = vmatpush1.msra.mxu0 %v6268
        %6270 = vmatprep.subr.mxu0 0.0
        %v6271 = vand.u32 %v376, 4294901760
        %v6272 = vsub.f32 %v376, %v6271
        %v6273 = vand.u32 %v6272, 4294901760
        %v6274 = vsub.f32 %v6272, %v6273
        %v6275 = vand.u32 %v6274, 4294901760
        %6276 = vmatpush1.msra.mxu0 %v6275
        %6277 = vmatprep.subr.mxu0 0.0
        %v6278 = vand.u32 %v375, 4294901760
        %v6279 = vsub.f32 %v375, %v6278
        %v6280 = vand.u32 %v6279, 4294901760
        %v6281 = vsub.f32 %v6279, %v6280
        %v6282 = vand.u32 %v6281, 4294901760
        %6283 = vmatpush1.msra.mxu0 %v6282
        %6284 = vmatprep.subr.mxu0 0.0
        %v6285 = vand.u32 %v374, 4294901760
        %v6286 = vsub.f32 %v374, %v6285
        %v6287 = vand.u32 %v6286, 4294901760
        %v6288 = vsub.f32 %v6286, %v6287
        %v6289 = vand.u32 %v6288, 4294901760
        %6290 = vmatpush1.msra.mxu0 %v6289
        %6291 = vmatprep.subr.mxu0 0.0
        %v6292 = vand.u32 %v373, 4294901760
        %v6293 = vsub.f32 %v373, %v6292
        %v6294 = vand.u32 %v6293, 4294901760
        %v6295 = vsub.f32 %v6293, %v6294
        %v6296 = vand.u32 %v6295, 4294901760
        %6297 = vmatpush1.msra.mxu0 %v6296
        %6298 = vmatprep.subr.mxu0 0.0
        %v6299 = vand.u32 %v372, 4294901760
        %v6300 = vsub.f32 %v372, %v6299
        %v6301 = vand.u32 %v6300, 4294901760
        %v6302 = vsub.f32 %v6300, %v6301
        %v6303 = vand.u32 %v6302, 4294901760
        %6304 = vmatpush1.msra.mxu0 %v6303
        %6305 = vmatprep.subr.mxu0 0.0
        %v6306 = vand.u32 %v371, 4294901760
        %v6307 = vsub.f32 %v371, %v6306
        %v6308 = vand.u32 %v6307, 4294901760
        %v6309 = vsub.f32 %v6307, %v6308
        %v6310 = vand.u32 %v6309, 4294901760
        %6311 = vmatpush1.msra.mxu0 %v6310
        %6312 = vmatprep.subr.mxu0 0.0
        %6313 = vmatpush2.msra.mxu0 0.0
        %6314 = vmatprep.subr.mxu0 0.0
        %6315 = vmatpush2.msra.mxu0 0.0
        %6316 = vmatprep.subr.mxu0 0.0
        %6317 = vmatpush2.msra.mxu0 0.0
        %6318 = vmatprep.subr.mxu0 0.0
        %6319 = vmatpush2.msra.mxu0 0.0
        %6320 = vmatprep.subr.mxu0 0.0
        %6321 = vmatpush2.msra.mxu0 0.0
        %6322 = vmatprep.subr.mxu0 0.0
        %6323 = vmatpush2.msra.mxu0 0.0
        %6324 = vmatprep.subr.mxu0 0.0
        %6325 = vmatpush2.msra.mxu0 0.0
        %6326 = vmatprep.subr.mxu0 0.0
        %6327 = vmatpush2.msra.mxu0 0.0
        %6328 = vmatprep.subr.mxu0 0.0
        %6329 = vmatpush2.msra.mxu0 0.0
        %6330 = vmatprep.subr.mxu0 0.0
        %6331 = vmatpush2.msra.mxu0 0.0
        %6332 = vmatprep.subr.mxu0 0.0
        %6333 = vmatpush2.msra.mxu0 0.0
        %6334 = vmatprep.subr.mxu0 0.0
        %6335 = vmatpush2.msra.mxu0 0.0
        %6336 = vmatprep.subr.mxu0 0.0
        %6337 = vmatpush2.msra.mxu0 0.0
        %6338 = vmatprep.subr.mxu0 0.0
        %6339 = vmatpush2.msra.mxu0 0.0
        %6340 = vmatprep.subr.mxu0 0.0
        %6341 = vmatpush2.msra.mxu0 0.0
        %6342 = vmatprep.subr.mxu0 0.0
        %6343 = vmatpush2.msra.mxu0 0.0
        %6344 = vmatprep.mubr.f32.mxu0 0.0
        %v6345 = vand.u32 %v6095, 4294901760
        %6346 = vmatmul.mubr.f32.gmra.mxu0 %v6345
        %v6347 = vpop.f32.mrf.mxu0
        %v6348 = vadd.f32 %v6187, %v6347
        %v6349 = vpop.f32.mrf.mxu0
        %6350 = vmatprep.mubr.f32.mxu0 0.0
        %v6351 = vand.u32 %v6096, 4294901760
        %6352 = vmatmul.mubr.f32.gmra.mxu0 %v6351
        %v6353 = vpop.f32.mrf.mxu0
        %v6354 = vadd.f32 %v6197, %v6353
        %v6355 = vpop.f32.mrf.mxu0
        %6356 = vdwg.mxu0
        %6357 = vmatprep.subr.mxu0 0.0
        %v6358 = vand.u32 %v386, 4294901760
        %v6359 = vsub.f32 %v386, %v6358
        %6360 = vmatpush1.msra.mxu0 %v6359
        %6361 = vmatprep.subr.mxu0 0.0
        %v6362 = vand.u32 %v385, 4294901760
        %v6363 = vsub.f32 %v385, %v6362
        %6364 = vmatpush1.msra.mxu0 %v6363
        %6365 = vmatprep.subr.mxu0 0.0
        %v6366 = vand.u32 %v384, 4294901760
        %v6367 = vsub.f32 %v384, %v6366
        %6368 = vmatpush1.msra.mxu0 %v6367
        %6369 = vmatprep.subr.mxu0 0.0
        %v6370 = vand.u32 %v383, 4294901760
        %v6371 = vsub.f32 %v383, %v6370
        %6372 = vmatpush1.msra.mxu0 %v6371
        %6373 = vmatprep.subr.mxu0 0.0
        %v6374 = vand.u32 %v382, 4294901760
        %v6375 = vsub.f32 %v382, %v6374
        %6376 = vmatpush1.msra.mxu0 %v6375
        %6377 = vmatprep.subr.mxu0 0.0
        %v6378 = vand.u32 %v381, 4294901760
        %v6379 = vsub.f32 %v381, %v6378
        %6380 = vmatpush1.msra.mxu0 %v6379
        %6381 = vmatprep.subr.mxu0 0.0
        %v6382 = vand.u32 %v380, 4294901760
        %v6383 = vsub.f32 %v380, %v6382
        %6384 = vmatpush1.msra.mxu0 %v6383
        %6385 = vmatprep.subr.mxu0 0.0
        %v6386 = vand.u32 %v379, 4294901760
        %v6387 = vsub.f32 %v379, %v6386
        %6388 = vmatpush1.msra.mxu0 %v6387
        %6389 = vmatprep.subr.mxu0 0.0
        %v6390 = vand.u32 %v378, 4294901760
        %v6391 = vsub.f32 %v378, %v6390
        %6392 = vmatpush1.msra.mxu0 %v6391
        %6393 = vmatprep.subr.mxu0 0.0
        %v6394 = vand.u32 %v377, 4294901760
        %v6395 = vsub.f32 %v377, %v6394
        %6396 = vmatpush1.msra.mxu0 %v6395
        %6397 = vmatprep.subr.mxu0 0.0
        %v6398 = vand.u32 %v376, 4294901760
        %v6399 = vsub.f32 %v376, %v6398
        %6400 = vmatpush1.msra.mxu0 %v6399
        %6401 = vmatprep.subr.mxu0 0.0
        %v6402 = vand.u32 %v375, 4294901760
        %v6403 = vsub.f32 %v375, %v6402
        %6404 = vmatpush1.msra.mxu0 %v6403
        %6405 = vmatprep.subr.mxu0 0.0
        %v6406 = vand.u32 %v374, 4294901760
        %v6407 = vsub.f32 %v374, %v6406
        %6408 = vmatpush1.msra.mxu0 %v6407
        %6409 = vmatprep.subr.mxu0 0.0
        %v6410 = vand.u32 %v373, 4294901760
        %v6411 = vsub.f32 %v373, %v6410
        %6412 = vmatpush1.msra.mxu0 %v6411
        %6413 = vmatprep.subr.mxu0 0.0
        %v6414 = vand.u32 %v372, 4294901760
        %v6415 = vsub.f32 %v372, %v6414
        %6416 = vmatpush1.msra.mxu0 %v6415
        %6417 = vmatprep.subr.mxu0 0.0
        %v6418 = vand.u32 %v371, 4294901760
        %v6419 = vsub.f32 %v371, %v6418
        %6420 = vmatpush1.msra.mxu0 %v6419
        %6421 = vmatprep.subr.mxu0 0.0
        %6422 = vmatpush2.msra.mxu0 0.0
        %6423 = vmatprep.subr.mxu0 0.0
        %6424 = vmatpush2.msra.mxu0 0.0
        %6425 = vmatprep.subr.mxu0 0.0
        %6426 = vmatpush2.msra.mxu0 0.0
        %6427 = vmatprep.subr.mxu0 0.0
        %6428 = vmatpush2.msra.mxu0 0.0
        %6429 = vmatprep.subr.mxu0 0.0
        %6430 = vmatpush2.msra.mxu0 0.0
        %6431 = vmatprep.subr.mxu0 0.0
        %6432 = vmatpush2.msra.mxu0 0.0
        %6433 = vmatprep.subr.mxu0 0.0
        %6434 = vmatpush2.msra.mxu0 0.0
        %6435 = vmatprep.subr.mxu0 0.0
        %6436 = vmatpush2.msra.mxu0 0.0
        %6437 = vmatprep.subr.mxu0 0.0
        %6438 = vmatpush2.msra.mxu0 0.0
        %6439 = vmatprep.subr.mxu0 0.0
        %6440 = vmatpush2.msra.mxu0 0.0
        %6441 = vmatprep.subr.mxu0 0.0
        %6442 = vmatpush2.msra.mxu0 0.0
        %6443 = vmatprep.subr.mxu0 0.0
        %6444 = vmatpush2.msra.mxu0 0.0
        %6445 = vmatprep.subr.mxu0 0.0
        %6446 = vmatpush2.msra.mxu0 0.0
        %6447 = vmatprep.subr.mxu0 0.0
        %6448 = vmatpush2.msra.mxu0 0.0
        %6449 = vmatprep.subr.mxu0 0.0
        %6450 = vmatpush2.msra.mxu0 0.0
        %6451 = vmatprep.subr.mxu0 0.0
        %6452 = vmatpush2.msra.mxu0 0.0
        %6453 = vmatprep.mubr.f32.mxu0 0.0
        %v6454 = vand.u32 %v6095, 4294901760
        %v6455 = vsub.f32 %v6095, %v6454
        %6456 = vmatmul.mubr.f32.gmra.mxu0 %v6455
        %v6457 = vpop.f32.mrf.mxu0
        %v6458 = vadd.f32 %v6348, %v6457
        %v6459 = vpop.f32.mrf.mxu0
        %6460 = vmatprep.mubr.f32.mxu0 0.0
        %v6461 = vand.u32 %v6096, 4294901760
        %v6462 = vsub.f32 %v6096, %v6461
        %6463 = vmatmul.mubr.f32.gmra.mxu0 %v6462
        %v6464 = vpop.f32.mrf.mxu0
        %v6465 = vadd.f32 %v6354, %v6464
        %v6466 = vpop.f32.mrf.mxu0
        %6467 = vdwg.mxu0
        %6468 = vmatprep.subr.mxu0 0.0
        %v6469 = vand.u32 %v386, 4294901760
        %6470 = vmatpush1.msra.mxu0 %v6469
        %6471 = vmatprep.subr.mxu0 0.0
        %v6472 = vand.u32 %v385, 4294901760
        %6473 = vmatpush1.msra.mxu0 %v6472
        %6474 = vmatprep.subr.mxu0 0.0
        %v6475 = vand.u32 %v384, 4294901760
        %6476 = vmatpush1.msra.mxu0 %v6475
        %6477 = vmatprep.subr.mxu0 0.0
        %v6478 = vand.u32 %v383, 4294901760
        %6479 = vmatpush1.msra.mxu0 %v6478
        %6480 = vmatprep.subr.mxu0 0.0
        %v6481 = vand.u32 %v382, 4294901760
        %6482 = vmatpush1.msra.mxu0 %v6481
        %6483 = vmatprep.subr.mxu0 0.0
        %v6484 = vand.u32 %v381, 4294901760
        %6485 = vmatpush1.msra.mxu0 %v6484
        %6486 = vmatprep.subr.mxu0 0.0
        %v6487 = vand.u32 %v380, 4294901760
        %6488 = vmatpush1.msra.mxu0 %v6487
        %6489 = vmatprep.subr.mxu0 0.0
        %v6490 = vand.u32 %v379, 4294901760
        %6491 = vmatpush1.msra.mxu0 %v6490
        %6492 = vmatprep.subr.mxu0 0.0
        %v6493 = vand.u32 %v378, 4294901760
        %6494 = vmatpush1.msra.mxu0 %v6493
        %6495 = vmatprep.subr.mxu0 0.0
        %v6496 = vand.u32 %v377, 4294901760
        %6497 = vmatpush1.msra.mxu0 %v6496
        %6498 = vmatprep.subr.mxu0 0.0
        %v6499 = vand.u32 %v376, 4294901760
        %6500 = vmatpush1.msra.mxu0 %v6499
        %6501 = vmatprep.subr.mxu0 0.0
        %v6502 = vand.u32 %v375, 4294901760
        %6503 = vmatpush1.msra.mxu0 %v6502
        %6504 = vmatprep.subr.mxu0 0.0
        %v6505 = vand.u32 %v374, 4294901760
        %6506 = vmatpush1.msra.mxu0 %v6505
        %6507 = vmatprep.subr.mxu0 0.0
        %v6508 = vand.u32 %v373, 4294901760
        %6509 = vmatpush1.msra.mxu0 %v6508
        %6510 = vmatprep.subr.mxu0 0.0
        %v6511 = vand.u32 %v372, 4294901760
        %6512 = vmatpush1.msra.mxu0 %v6511
        %6513 = vmatprep.subr.mxu0 0.0
        %v6514 = vand.u32 %v371, 4294901760
        %6515 = vmatpush1.msra.mxu0 %v6514
        %6516 = vmatprep.subr.mxu0 0.0
        %6517 = vmatpush2.msra.mxu0 0.0
        %6518 = vmatprep.subr.mxu0 0.0
        %6519 = vmatpush2.msra.mxu0 0.0
        %6520 = vmatprep.subr.mxu0 0.0
        %6521 = vmatpush2.msra.mxu0 0.0
        %6522 = vmatprep.subr.mxu0 0.0
        %6523 = vmatpush2.msra.mxu0 0.0
        %6524 = vmatprep.subr.mxu0 0.0
        %6525 = vmatpush2.msra.mxu0 0.0
        %6526 = vmatprep.subr.mxu0 0.0
        %6527 = vmatpush2.msra.mxu0 0.0
        %6528 = vmatprep.subr.mxu0 0.0
        %6529 = vmatpush2.msra.mxu0 0.0
        %6530 = vmatprep.subr.mxu0 0.0
        %6531 = vmatpush2.msra.mxu0 0.0
        %6532 = vmatprep.subr.mxu0 0.0
        %6533 = vmatpush2.msra.mxu0 0.0
        %6534 = vmatprep.subr.mxu0 0.0
        %6535 = vmatpush2.msra.mxu0 0.0
        %6536 = vmatprep.subr.mxu0 0.0
        %6537 = vmatpush2.msra.mxu0 0.0
        %6538 = vmatprep.subr.mxu0 0.0
        %6539 = vmatpush2.msra.mxu0 0.0
        %6540 = vmatprep.subr.mxu0 0.0
        %6541 = vmatpush2.msra.mxu0 0.0
        %6542 = vmatprep.subr.mxu0 0.0
        %6543 = vmatpush2.msra.mxu0 0.0
        %6544 = vmatprep.subr.mxu0 0.0
        %6545 = vmatpush2.msra.mxu0 0.0
        %6546 = vmatprep.subr.mxu0 0.0
        %6547 = vmatpush2.msra.mxu0 0.0
        %6548 = vmatprep.mubr.f32.mxu0 0.0
        %v6549 = vand.u32 %v6095, 4294901760
        %v6550 = vsub.f32 %v6095, %v6549
        %v6551 = vand.u32 %v6550, 4294901760
        %6552 = vmatmul.mubr.f32.gmra.mxu0 %v6551
        %v6553 = vpop.f32.mrf.mxu0
        %v6554 = vadd.f32 %v6458, %v6553
        %v6555 = vpop.f32.mrf.mxu0
        %6556 = vmatprep.mubr.f32.mxu0 0.0
        %v6557 = vand.u32 %v6096, 4294901760
        %v6558 = vsub.f32 %v6096, %v6557
        %v6559 = vand.u32 %v6558, 4294901760
        %6560 = vmatmul.mubr.f32.gmra.mxu0 %v6559
        %v6561 = vpop.f32.mrf.mxu0
        %v6562 = vadd.f32 %v6465, %v6561
        %v6563 = vpop.f32.mrf.mxu0
        %6564 = vdwg.mxu0
        %6565 = vmatprep.subr.mxu0 0.0
        %v6566 = vand.u32 %v386, 4294901760
        %v6567 = vsub.f32 %v386, %v6566
        %v6568 = vand.u32 %v6567, 4294901760
        %6569 = vmatpush1.msra.mxu0 %v6568
        %6570 = vmatprep.subr.mxu0 0.0
        %v6571 = vand.u32 %v385, 4294901760
        %v6572 = vsub.f32 %v385, %v6571
        %v6573 = vand.u32 %v6572, 4294901760
        %6574 = vmatpush1.msra.mxu0 %v6573
        %6575 = vmatprep.subr.mxu0 0.0
        %v6576 = vand.u32 %v384, 4294901760
        %v6577 = vsub.f32 %v384, %v6576
        %v6578 = vand.u32 %v6577, 4294901760
        %6579 = vmatpush1.msra.mxu0 %v6578
        %6580 = vmatprep.subr.mxu0 0.0
        %v6581 = vand.u32 %v383, 4294901760
        %v6582 = vsub.f32 %v383, %v6581
        %v6583 = vand.u32 %v6582, 4294901760
        %6584 = vmatpush1.msra.mxu0 %v6583
        %6585 = vmatprep.subr.mxu0 0.0
        %v6586 = vand.u32 %v382, 4294901760
        %v6587 = vsub.f32 %v382, %v6586
        %v6588 = vand.u32 %v6587, 4294901760
        %6589 = vmatpush1.msra.mxu0 %v6588
        %6590 = vmatprep.subr.mxu0 0.0
        %v6591 = vand.u32 %v381, 4294901760
        %v6592 = vsub.f32 %v381, %v6591
        %v6593 = vand.u32 %v6592, 4294901760
        %6594 = vmatpush1.msra.mxu0 %v6593
        %6595 = vmatprep.subr.mxu0 0.0
        %v6596 = vand.u32 %v380, 4294901760
        %v6597 = vsub.f32 %v380, %v6596
        %v6598 = vand.u32 %v6597, 4294901760
        %6599 = vmatpush1.msra.mxu0 %v6598
        %6600 = vmatprep.subr.mxu0 0.0
        %v6601 = vand.u32 %v379, 4294901760
        %v6602 = vsub.f32 %v379, %v6601
        %v6603 = vand.u32 %v6602, 4294901760
        %6604 = vmatpush1.msra.mxu0 %v6603
        %6605 = vmatprep.subr.mxu0 0.0
        %v6606 = vand.u32 %v378, 4294901760
        %v6607 = vsub.f32 %v378, %v6606
        %v6608 = vand.u32 %v6607, 4294901760
        %6609 = vmatpush1.msra.mxu0 %v6608
        %6610 = vmatprep.subr.mxu0 0.0
        %v6611 = vand.u32 %v377, 4294901760
        %v6612 = vsub.f32 %v377, %v6611
        %v6613 = vand.u32 %v6612, 4294901760
        %6614 = vmatpush1.msra.mxu0 %v6613
        %6615 = vmatprep.subr.mxu0 0.0
        %v6616 = vand.u32 %v376, 4294901760
        %v6617 = vsub.f32 %v376, %v6616
        %v6618 = vand.u32 %v6617, 4294901760
        %6619 = vmatpush1.msra.mxu0 %v6618
        %6620 = vmatprep.subr.mxu0 0.0
        %v6621 = vand.u32 %v375, 4294901760
        %v6622 = vsub.f32 %v375, %v6621
        %v6623 = vand.u32 %v6622, 4294901760
        %6624 = vmatpush1.msra.mxu0 %v6623
        %6625 = vmatprep.subr.mxu0 0.0
        %v6626 = vand.u32 %v374, 4294901760
        %v6627 = vsub.f32 %v374, %v6626
        %v6628 = vand.u32 %v6627, 4294901760
        %6629 = vmatpush1.msra.mxu0 %v6628
        %6630 = vmatprep.subr.mxu0 0.0
        %v6631 = vand.u32 %v373, 4294901760
        %v6632 = vsub.f32 %v373, %v6631
        %v6633 = vand.u32 %v6632, 4294901760
        %6634 = vmatpush1.msra.mxu0 %v6633
        %6635 = vmatprep.subr.mxu0 0.0
        %v6636 = vand.u32 %v372, 4294901760
        %v6637 = vsub.f32 %v372, %v6636
        %v6638 = vand.u32 %v6637, 4294901760
        %6639 = vmatpush1.msra.mxu0 %v6638
        %6640 = vmatprep.subr.mxu0 0.0
        %v6641 = vand.u32 %v371, 4294901760
        %v6642 = vsub.f32 %v371, %v6641
        %v6643 = vand.u32 %v6642, 4294901760
        %6644 = vmatpush1.msra.mxu0 %v6643
        %6645 = vmatprep.subr.mxu0 0.0
        %6646 = vmatpush2.msra.mxu0 0.0
        %6647 = vmatprep.subr.mxu0 0.0
        %6648 = vmatpush2.msra.mxu0 0.0
        %6649 = vmatprep.subr.mxu0 0.0
        %6650 = vmatpush2.msra.mxu0 0.0
        %6651 = vmatprep.subr.mxu0 0.0
        %6652 = vmatpush2.msra.mxu0 0.0
        %6653 = vmatprep.subr.mxu0 0.0
        %6654 = vmatpush2.msra.mxu0 0.0
        %6655 = vmatprep.subr.mxu0 0.0
        %6656 = vmatpush2.msra.mxu0 0.0
        %6657 = vmatprep.subr.mxu0 0.0
        %6658 = vmatpush2.msra.mxu0 0.0
        %6659 = vmatprep.subr.mxu0 0.0
        %6660 = vmatpush2.msra.mxu0 0.0
        %6661 = vmatprep.subr.mxu0 0.0
        %6662 = vmatpush2.msra.mxu0 0.0
        %6663 = vmatprep.subr.mxu0 0.0
        %6664 = vmatpush2.msra.mxu0 0.0
        %6665 = vmatprep.subr.mxu0 0.0
        %6666 = vmatpush2.msra.mxu0 0.0
        %6667 = vmatprep.subr.mxu0 0.0
        %6668 = vmatpush2.msra.mxu0 0.0
        %6669 = vmatprep.subr.mxu0 0.0
        %6670 = vmatpush2.msra.mxu0 0.0
        %6671 = vmatprep.subr.mxu0 0.0
        %6672 = vmatpush2.msra.mxu0 0.0
        %6673 = vmatprep.subr.mxu0 0.0
        %6674 = vmatpush2.msra.mxu0 0.0
        %6675 = vmatprep.subr.mxu0 0.0
        %6676 = vmatpush2.msra.mxu0 0.0
        %6677 = vmatprep.mubr.f32.mxu0 0.0
        %v6678 = vand.u32 %v6095, 4294901760
        %6679 = vmatmul.mubr.f32.gmra.mxu0 %v6678
        %v6680 = vpop.f32.mrf.mxu0
        %v6681 = vadd.f32 %v6554, %v6680
        %v6682 = vpop.f32.mrf.mxu0
        %6683 = vmatprep.mubr.f32.mxu0 0.0
        %v6684 = vand.u32 %v6096, 4294901760
        %6685 = vmatmul.mubr.f32.gmra.mxu0 %v6684
        %v6686 = vpop.f32.mrf.mxu0
        %v6687 = vadd.f32 %v6562, %v6686
        %v6688 = vpop.f32.mrf.mxu0
        %6689 = vdwg.mxu0
        %6690 = vmatprep.subr.mxu0 0.0
        %v6691 = vand.u32 %v386, 4294901760
        %6692 = vmatpush1.msra.mxu0 %v6691
        %6693 = vmatprep.subr.mxu0 0.0
        %v6694 = vand.u32 %v385, 4294901760
        %6695 = vmatpush1.msra.mxu0 %v6694
        %6696 = vmatprep.subr.mxu0 0.0
        %v6697 = vand.u32 %v384, 4294901760
        %6698 = vmatpush1.msra.mxu0 %v6697
        %6699 = vmatprep.subr.mxu0 0.0
        %v6700 = vand.u32 %v383, 4294901760
        %6701 = vmatpush1.msra.mxu0 %v6700
        %6702 = vmatprep.subr.mxu0 0.0
        %v6703 = vand.u32 %v382, 4294901760
        %6704 = vmatpush1.msra.mxu0 %v6703
        %6705 = vmatprep.subr.mxu0 0.0
        %v6706 = vand.u32 %v381, 4294901760
        %6707 = vmatpush1.msra.mxu0 %v6706
        %6708 = vmatprep.subr.mxu0 0.0
        %v6709 = vand.u32 %v380, 4294901760
        %6710 = vmatpush1.msra.mxu0 %v6709
        %6711 = vmatprep.subr.mxu0 0.0
        %v6712 = vand.u32 %v379, 4294901760
        %6713 = vmatpush1.msra.mxu0 %v6712
        %6714 = vmatprep.subr.mxu0 0.0
        %v6715 = vand.u32 %v378, 4294901760
        %6716 = vmatpush1.msra.mxu0 %v6715
        %6717 = vmatprep.subr.mxu0 0.0
        %v6718 = vand.u32 %v377, 4294901760
        %6719 = vmatpush1.msra.mxu0 %v6718
        %6720 = vmatprep.subr.mxu0 0.0
        %v6721 = vand.u32 %v376, 4294901760
        %6722 = vmatpush1.msra.mxu0 %v6721
        %6723 = vmatprep.subr.mxu0 0.0
        %v6724 = vand.u32 %v375, 4294901760
        %6725 = vmatpush1.msra.mxu0 %v6724
        %6726 = vmatprep.subr.mxu0 0.0
        %v6727 = vand.u32 %v374, 4294901760
        %6728 = vmatpush1.msra.mxu0 %v6727
        %6729 = vmatprep.subr.mxu0 0.0
        %v6730 = vand.u32 %v373, 4294901760
        %6731 = vmatpush1.msra.mxu0 %v6730
        %6732 = vmatprep.subr.mxu0 0.0
        %v6733 = vand.u32 %v372, 4294901760
        %6734 = vmatpush1.msra.mxu0 %v6733
        %6735 = vmatprep.subr.mxu0 0.0
        %v6736 = vand.u32 %v371, 4294901760
        %6737 = vmatpush1.msra.mxu0 %v6736
        %6738 = vmatprep.subr.mxu0 0.0
        %6739 = vmatpush2.msra.mxu0 0.0
        %6740 = vmatprep.subr.mxu0 0.0
        %6741 = vmatpush2.msra.mxu0 0.0
        %6742 = vmatprep.subr.mxu0 0.0
        %6743 = vmatpush2.msra.mxu0 0.0
        %6744 = vmatprep.subr.mxu0 0.0
        %6745 = vmatpush2.msra.mxu0 0.0
        %6746 = vmatprep.subr.mxu0 0.0
        %6747 = vmatpush2.msra.mxu0 0.0
        %6748 = vmatprep.subr.mxu0 0.0
        %6749 = vmatpush2.msra.mxu0 0.0
        %6750 = vmatprep.subr.mxu0 0.0
        %6751 = vmatpush2.msra.mxu0 0.0
        %6752 = vmatprep.subr.mxu0 0.0
        %6753 = vmatpush2.msra.mxu0 0.0
        %6754 = vmatprep.subr.mxu0 0.0
        %6755 = vmatpush2.msra.mxu0 0.0
        %6756 = vmatprep.subr.mxu0 0.0
        %6757 = vmatpush2.msra.mxu0 0.0
        %6758 = vmatprep.subr.mxu0 0.0
        %6759 = vmatpush2.msra.mxu0 0.0
        %6760 = vmatprep.subr.mxu0 0.0
        %6761 = vmatpush2.msra.mxu0 0.0
        %6762 = vmatprep.subr.mxu0 0.0
        %6763 = vmatpush2.msra.mxu0 0.0
        %6764 = vmatprep.subr.mxu0 0.0
        %6765 = vmatpush2.msra.mxu0 0.0
        %6766 = vmatprep.subr.mxu0 0.0
        %6767 = vmatpush2.msra.mxu0 0.0
        %6768 = vmatprep.subr.mxu0 0.0
        %6769 = vmatpush2.msra.mxu0 0.0
        %6770 = vmatprep.mubr.f32.mxu0 0.0
        %v6771 = vand.u32 %v6095, 4294901760
        %6772 = vmatmul.mubr.f32.gmra.mxu0 %v6771
        %v6773 = vpop.f32.mrf.mxu0
        %v6774 = vadd.f32 %v6681, %v6773
        %v6775 = vpop.f32.mrf.mxu0
        %6776 = vmatprep.mubr.f32.mxu0 0.0
        %v6777 = vand.u32 %v6096, 4294901760
        %6778 = vmatmul.mubr.f32.gmra.mxu0 %v6777
        %v6779 = vpop.f32.mrf.mxu0
        %v6780 = vadd.f32 %v6687, %v6779
        %v6781 = vpop.f32.mrf.mxu0
        %6782 = vdwg.mxu0
        %6783 = vmatprep.subr.mxu0 0.0
        %v6784 = vand.u32 %v402, 4294901760
        %6785 = vmatpush1.msra.mxu0 %v6784
        %6786 = vmatprep.subr.mxu0 0.0
        %v6787 = vand.u32 %v401, 4294901760
        %6788 = vmatpush1.msra.mxu0 %v6787
        %6789 = vmatprep.subr.mxu0 0.0
        %v6790 = vand.u32 %v400, 4294901760
        %6791 = vmatpush1.msra.mxu0 %v6790
        %6792 = vmatprep.subr.mxu0 0.0
        %v6793 = vand.u32 %v399, 4294901760
        %6794 = vmatpush1.msra.mxu0 %v6793
        %6795 = vmatprep.subr.mxu0 0.0
        %v6796 = vand.u32 %v398, 4294901760
        %6797 = vmatpush1.msra.mxu0 %v6796
        %6798 = vmatprep.subr.mxu0 0.0
        %v6799 = vand.u32 %v397, 4294901760
        %6800 = vmatpush1.msra.mxu0 %v6799
        %6801 = vmatprep.subr.mxu0 0.0
        %v6802 = vand.u32 %v396, 4294901760
        %6803 = vmatpush1.msra.mxu0 %v6802
        %6804 = vmatprep.subr.mxu0 0.0
        %v6805 = vand.u32 %v395, 4294901760
        %6806 = vmatpush1.msra.mxu0 %v6805
        %6807 = vmatprep.subr.mxu0 0.0
        %v6808 = vand.u32 %v394, 4294901760
        %6809 = vmatpush1.msra.mxu0 %v6808
        %6810 = vmatprep.subr.mxu0 0.0
        %v6811 = vand.u32 %v393, 4294901760
        %6812 = vmatpush1.msra.mxu0 %v6811
        %6813 = vmatprep.subr.mxu0 0.0
        %v6814 = vand.u32 %v392, 4294901760
        %6815 = vmatpush1.msra.mxu0 %v6814
        %6816 = vmatprep.subr.mxu0 0.0
        %v6817 = vand.u32 %v391, 4294901760
        %6818 = vmatpush1.msra.mxu0 %v6817
        %6819 = vmatprep.subr.mxu0 0.0
        %v6820 = vand.u32 %v390, 4294901760
        %6821 = vmatpush1.msra.mxu0 %v6820
        %6822 = vmatprep.subr.mxu0 0.0
        %v6823 = vand.u32 %v389, 4294901760
        %6824 = vmatpush1.msra.mxu0 %v6823
        %6825 = vmatprep.subr.mxu0 0.0
        %v6826 = vand.u32 %v388, 4294901760
        %6827 = vmatpush1.msra.mxu0 %v6826
        %6828 = vmatprep.subr.mxu0 0.0
        %v6829 = vand.u32 %v387, 4294901760
        %6830 = vmatpush1.msra.mxu0 %v6829
        %6831 = vmatprep.subr.mxu0 0.0
        %6832 = vmatpush2.msra.mxu0 0.0
        %6833 = vmatprep.subr.mxu0 0.0
        %6834 = vmatpush2.msra.mxu0 0.0
        %6835 = vmatprep.subr.mxu0 0.0
        %6836 = vmatpush2.msra.mxu0 0.0
        %6837 = vmatprep.subr.mxu0 0.0
        %6838 = vmatpush2.msra.mxu0 0.0
        %6839 = vmatprep.subr.mxu0 0.0
        %6840 = vmatpush2.msra.mxu0 0.0
        %6841 = vmatprep.subr.mxu0 0.0
        %6842 = vmatpush2.msra.mxu0 0.0
        %6843 = vmatprep.subr.mxu0 0.0
        %6844 = vmatpush2.msra.mxu0 0.0
        %6845 = vmatprep.subr.mxu0 0.0
        %6846 = vmatpush2.msra.mxu0 0.0
        %6847 = vmatprep.subr.mxu0 0.0
        %6848 = vmatpush2.msra.mxu0 0.0
        %6849 = vmatprep.subr.mxu0 0.0
        %6850 = vmatpush2.msra.mxu0 0.0
        %6851 = vmatprep.subr.mxu0 0.0
        %6852 = vmatpush2.msra.mxu0 0.0
        %6853 = vmatprep.subr.mxu0 0.0
        %6854 = vmatpush2.msra.mxu0 0.0
        %6855 = vmatprep.subr.mxu0 0.0
        %6856 = vmatpush2.msra.mxu0 0.0
        %6857 = vmatprep.subr.mxu0 0.0
        %6858 = vmatpush2.msra.mxu0 0.0
        %6859 = vmatprep.subr.mxu0 0.0
        %6860 = vmatpush2.msra.mxu0 0.0
        %6861 = vmatprep.subr.mxu0 0.0
        %6862 = vmatpush2.msra.mxu0 0.0
        %6863 = vmatprep.mubr.f32.mxu0 0.0
        %v6864 = vand.u32 %v6097, 4294901760
        %v6865 = vsub.f32 %v6097, %v6864
        %v6866 = vand.u32 %v6865, 4294901760
        %v6867 = vsub.f32 %v6865, %v6866
        %v6868 = vand.u32 %v6867, 4294901760
        %6869 = vmatmul.mubr.f32.gmra.mxu0 %v6868
        %v6870 = vpop.f32.mrf.mxu0
        %v6871 = vadd.f32 0.0, %v6870
        %v6872 = vpop.f32.mrf.mxu0
        %6873 = vmatprep.mubr.f32.mxu0 0.0
        %v6874 = vand.u32 %v6098, 4294901760
        %v6875 = vsub.f32 %v6098, %v6874
        %v6876 = vand.u32 %v6875, 4294901760
        %v6877 = vsub.f32 %v6875, %v6876
        %v6878 = vand.u32 %v6877, 4294901760
        %6879 = vmatmul.mubr.f32.gmra.mxu0 %v6878
        %v6880 = vpop.f32.mrf.mxu0
        %v6881 = vadd.f32 0.0, %v6880
        %v6882 = vpop.f32.mrf.mxu0
        %6883 = vdwg.mxu0
        %6884 = vmatprep.subr.mxu0 0.0
        %v6885 = vand.u32 %v402, 4294901760
        %v6886 = vsub.f32 %v402, %v6885
        %v6887 = vand.u32 %v6886, 4294901760
        %v6888 = vsub.f32 %v6886, %v6887
        %v6889 = vand.u32 %v6888, 4294901760
        %6890 = vmatpush1.msra.mxu0 %v6889
        %6891 = vmatprep.subr.mxu0 0.0
        %v6892 = vand.u32 %v401, 4294901760
        %v6893 = vsub.f32 %v401, %v6892
        %v6894 = vand.u32 %v6893, 4294901760
        %v6895 = vsub.f32 %v6893, %v6894
        %v6896 = vand.u32 %v6895, 4294901760
        %6897 = vmatpush1.msra.mxu0 %v6896
        %6898 = vmatprep.subr.mxu0 0.0
        %v6899 = vand.u32 %v400, 4294901760
        %v6900 = vsub.f32 %v400, %v6899
        %v6901 = vand.u32 %v6900, 4294901760
        %v6902 = vsub.f32 %v6900, %v6901
        %v6903 = vand.u32 %v6902, 4294901760
        %6904 = vmatpush1.msra.mxu0 %v6903
        %6905 = vmatprep.subr.mxu0 0.0
        %v6906 = vand.u32 %v399, 4294901760
        %v6907 = vsub.f32 %v399, %v6906
        %v6908 = vand.u32 %v6907, 4294901760
        %v6909 = vsub.f32 %v6907, %v6908
        %v6910 = vand.u32 %v6909, 4294901760
        %6911 = vmatpush1.msra.mxu0 %v6910
        %6912 = vmatprep.subr.mxu0 0.0
        %v6913 = vand.u32 %v398, 4294901760
        %v6914 = vsub.f32 %v398, %v6913
        %v6915 = vand.u32 %v6914, 4294901760
        %v6916 = vsub.f32 %v6914, %v6915
        %v6917 = vand.u32 %v6916, 4294901760
        %6918 = vmatpush1.msra.mxu0 %v6917
        %6919 = vmatprep.subr.mxu0 0.0
        %v6920 = vand.u32 %v397, 4294901760
        %v6921 = vsub.f32 %v397, %v6920
        %v6922 = vand.u32 %v6921, 4294901760
        %v6923 = vsub.f32 %v6921, %v6922
        %v6924 = vand.u32 %v6923, 4294901760
        %6925 = vmatpush1.msra.mxu0 %v6924
        %6926 = vmatprep.subr.mxu0 0.0
        %v6927 = vand.u32 %v396, 4294901760
        %v6928 = vsub.f32 %v396, %v6927
        %v6929 = vand.u32 %v6928, 4294901760
        %v6930 = vsub.f32 %v6928, %v6929
        %v6931 = vand.u32 %v6930, 4294901760
        %6932 = vmatpush1.msra.mxu0 %v6931
        %6933 = vmatprep.subr.mxu0 0.0
        %v6934 = vand.u32 %v395, 4294901760
        %v6935 = vsub.f32 %v395, %v6934
        %v6936 = vand.u32 %v6935, 4294901760
        %v6937 = vsub.f32 %v6935, %v6936
        %v6938 = vand.u32 %v6937, 4294901760
        %6939 = vmatpush1.msra.mxu0 %v6938
        %6940 = vmatprep.subr.mxu0 0.0
        %v6941 = vand.u32 %v394, 4294901760
        %v6942 = vsub.f32 %v394, %v6941
        %v6943 = vand.u32 %v6942, 4294901760
        %v6944 = vsub.f32 %v6942, %v6943
        %v6945 = vand.u32 %v6944, 4294901760
        %6946 = vmatpush1.msra.mxu0 %v6945
        %6947 = vmatprep.subr.mxu0 0.0
        %v6948 = vand.u32 %v393, 4294901760
        %v6949 = vsub.f32 %v393, %v6948
        %v6950 = vand.u32 %v6949, 4294901760
        %v6951 = vsub.f32 %v6949, %v6950
        %v6952 = vand.u32 %v6951, 4294901760
        %6953 = vmatpush1.msra.mxu0 %v6952
        %6954 = vmatprep.subr.mxu0 0.0
        %v6955 = vand.u32 %v392, 4294901760
        %v6956 = vsub.f32 %v392, %v6955
        %v6957 = vand.u32 %v6956, 4294901760
        %v6958 = vsub.f32 %v6956, %v6957
        %v6959 = vand.u32 %v6958, 4294901760
        %6960 = vmatpush1.msra.mxu0 %v6959
        %6961 = vmatprep.subr.mxu0 0.0
        %v6962 = vand.u32 %v391, 4294901760
        %v6963 = vsub.f32 %v391, %v6962
        %v6964 = vand.u32 %v6963, 4294901760
        %v6965 = vsub.f32 %v6963, %v6964
        %v6966 = vand.u32 %v6965, 4294901760
        %6967 = vmatpush1.msra.mxu0 %v6966
        %6968 = vmatprep.subr.mxu0 0.0
        %v6969 = vand.u32 %v390, 4294901760
        %v6970 = vsub.f32 %v390, %v6969
        %v6971 = vand.u32 %v6970, 4294901760
        %v6972 = vsub.f32 %v6970, %v6971
        %v6973 = vand.u32 %v6972, 4294901760
        %6974 = vmatpush1.msra.mxu0 %v6973
        %6975 = vmatprep.subr.mxu0 0.0
        %v6976 = vand.u32 %v389, 4294901760
        %v6977 = vsub.f32 %v389, %v6976
        %v6978 = vand.u32 %v6977, 4294901760
        %v6979 = vsub.f32 %v6977, %v6978
        %v6980 = vand.u32 %v6979, 4294901760
        %6981 = vmatpush1.msra.mxu0 %v6980
        %6982 = vmatprep.subr.mxu0 0.0
        %v6983 = vand.u32 %v388, 4294901760
        %v6984 = vsub.f32 %v388, %v6983
        %v6985 = vand.u32 %v6984, 4294901760
        %v6986 = vsub.f32 %v6984, %v6985
        %v6987 = vand.u32 %v6986, 4294901760
        %6988 = vmatpush1.msra.mxu0 %v6987
        %6989 = vmatprep.subr.mxu0 0.0
        %v6990 = vand.u32 %v387, 4294901760
        %v6991 = vsub.f32 %v387, %v6990
        %v6992 = vand.u32 %v6991, 4294901760
        %v6993 = vsub.f32 %v6991, %v6992
        %v6994 = vand.u32 %v6993, 4294901760
        %6995 = vmatpush1.msra.mxu0 %v6994
        %6996 = vmatprep.subr.mxu0 0.0
        %6997 = vmatpush2.msra.mxu0 0.0
        %6998 = vmatprep.subr.mxu0 0.0
        %6999 = vmatpush2.msra.mxu0 0.0
        %7000 = vmatprep.subr.mxu0 0.0
        %7001 = vmatpush2.msra.mxu0 0.0
        %7002 = vmatprep.subr.mxu0 0.0
        %7003 = vmatpush2.msra.mxu0 0.0
        %7004 = vmatprep.subr.mxu0 0.0
        %7005 = vmatpush2.msra.mxu0 0.0
        %7006 = vmatprep.subr.mxu0 0.0
        %7007 = vmatpush2.msra.mxu0 0.0
        %7008 = vmatprep.subr.mxu0 0.0
        %7009 = vmatpush2.msra.mxu0 0.0
        %7010 = vmatprep.subr.mxu0 0.0
        %7011 = vmatpush2.msra.mxu0 0.0
        %7012 = vmatprep.subr.mxu0 0.0
        %7013 = vmatpush2.msra.mxu0 0.0
        %7014 = vmatprep.subr.mxu0 0.0
        %7015 = vmatpush2.msra.mxu0 0.0
        %7016 = vmatprep.subr.mxu0 0.0
        %7017 = vmatpush2.msra.mxu0 0.0
        %7018 = vmatprep.subr.mxu0 0.0
        %7019 = vmatpush2.msra.mxu0 0.0
        %7020 = vmatprep.subr.mxu0 0.0
        %7021 = vmatpush2.msra.mxu0 0.0
        %7022 = vmatprep.subr.mxu0 0.0
        %7023 = vmatpush2.msra.mxu0 0.0
        %7024 = vmatprep.subr.mxu0 0.0
        %7025 = vmatpush2.msra.mxu0 0.0
        %7026 = vmatprep.subr.mxu0 0.0
        %7027 = vmatpush2.msra.mxu0 0.0
        %7028 = vmatprep.mubr.f32.mxu0 0.0
        %v7029 = vand.u32 %v6097, 4294901760
        %7030 = vmatmul.mubr.f32.gmra.mxu0 %v7029
        %v7031 = vpop.f32.mrf.mxu0
        %v7032 = vadd.f32 %v6871, %v7031
        %v7033 = vpop.f32.mrf.mxu0
        %7034 = vmatprep.mubr.f32.mxu0 0.0
        %v7035 = vand.u32 %v6098, 4294901760
        %7036 = vmatmul.mubr.f32.gmra.mxu0 %v7035
        %v7037 = vpop.f32.mrf.mxu0
        %v7038 = vadd.f32 %v6881, %v7037
        %v7039 = vpop.f32.mrf.mxu0
        %7040 = vdwg.mxu0
        %7041 = vmatprep.subr.mxu0 0.0
        %v7042 = vand.u32 %v402, 4294901760
        %v7043 = vsub.f32 %v402, %v7042
        %7044 = vmatpush1.msra.mxu0 %v7043
        %7045 = vmatprep.subr.mxu0 0.0
        %v7046 = vand.u32 %v401, 4294901760
        %v7047 = vsub.f32 %v401, %v7046
        %7048 = vmatpush1.msra.mxu0 %v7047
        %7049 = vmatprep.subr.mxu0 0.0
        %v7050 = vand.u32 %v400, 4294901760
        %v7051 = vsub.f32 %v400, %v7050
        %7052 = vmatpush1.msra.mxu0 %v7051
        %7053 = vmatprep.subr.mxu0 0.0
        %v7054 = vand.u32 %v399, 4294901760
        %v7055 = vsub.f32 %v399, %v7054
        %7056 = vmatpush1.msra.mxu0 %v7055
        %7057 = vmatprep.subr.mxu0 0.0
        %v7058 = vand.u32 %v398, 4294901760
        %v7059 = vsub.f32 %v398, %v7058
        %7060 = vmatpush1.msra.mxu0 %v7059
        %7061 = vmatprep.subr.mxu0 0.0
        %v7062 = vand.u32 %v397, 4294901760
        %v7063 = vsub.f32 %v397, %v7062
        %7064 = vmatpush1.msra.mxu0 %v7063
        %7065 = vmatprep.subr.mxu0 0.0
        %v7066 = vand.u32 %v396, 4294901760
        %v7067 = vsub.f32 %v396, %v7066
        %7068 = vmatpush1.msra.mxu0 %v7067
        %7069 = vmatprep.subr.mxu0 0.0
        %v7070 = vand.u32 %v395, 4294901760
        %v7071 = vsub.f32 %v395, %v7070
        %7072 = vmatpush1.msra.mxu0 %v7071
        %7073 = vmatprep.subr.mxu0 0.0
        %v7074 = vand.u32 %v394, 4294901760
        %v7075 = vsub.f32 %v394, %v7074
        %7076 = vmatpush1.msra.mxu0 %v7075
        %7077 = vmatprep.subr.mxu0 0.0
        %v7078 = vand.u32 %v393, 4294901760
        %v7079 = vsub.f32 %v393, %v7078
        %7080 = vmatpush1.msra.mxu0 %v7079
        %7081 = vmatprep.subr.mxu0 0.0
        %v7082 = vand.u32 %v392, 4294901760
        %v7083 = vsub.f32 %v392, %v7082
        %7084 = vmatpush1.msra.mxu0 %v7083
        %7085 = vmatprep.subr.mxu0 0.0
        %v7086 = vand.u32 %v391, 4294901760
        %v7087 = vsub.f32 %v391, %v7086
        %7088 = vmatpush1.msra.mxu0 %v7087
        %7089 = vmatprep.subr.mxu0 0.0
        %v7090 = vand.u32 %v390, 4294901760
        %v7091 = vsub.f32 %v390, %v7090
        %7092 = vmatpush1.msra.mxu0 %v7091
        %7093 = vmatprep.subr.mxu0 0.0
        %v7094 = vand.u32 %v389, 4294901760
        %v7095 = vsub.f32 %v389, %v7094
        %7096 = vmatpush1.msra.mxu0 %v7095
        %7097 = vmatprep.subr.mxu0 0.0
        %v7098 = vand.u32 %v388, 4294901760
        %v7099 = vsub.f32 %v388, %v7098
        %7100 = vmatpush1.msra.mxu0 %v7099
        %7101 = vmatprep.subr.mxu0 0.0
        %v7102 = vand.u32 %v387, 4294901760
        %v7103 = vsub.f32 %v387, %v7102
        %7104 = vmatpush1.msra.mxu0 %v7103
        %7105 = vmatprep.subr.mxu0 0.0
        %7106 = vmatpush2.msra.mxu0 0.0
        %7107 = vmatprep.subr.mxu0 0.0
        %7108 = vmatpush2.msra.mxu0 0.0
        %7109 = vmatprep.subr.mxu0 0.0
        %7110 = vmatpush2.msra.mxu0 0.0
        %7111 = vmatprep.subr.mxu0 0.0
        %7112 = vmatpush2.msra.mxu0 0.0
        %7113 = vmatprep.subr.mxu0 0.0
        %7114 = vmatpush2.msra.mxu0 0.0
        %7115 = vmatprep.subr.mxu0 0.0
        %7116 = vmatpush2.msra.mxu0 0.0
        %7117 = vmatprep.subr.mxu0 0.0
        %7118 = vmatpush2.msra.mxu0 0.0
        %7119 = vmatprep.subr.mxu0 0.0
        %7120 = vmatpush2.msra.mxu0 0.0
        %7121 = vmatprep.subr.mxu0 0.0
        %7122 = vmatpush2.msra.mxu0 0.0
        %7123 = vmatprep.subr.mxu0 0.0
        %7124 = vmatpush2.msra.mxu0 0.0
        %7125 = vmatprep.subr.mxu0 0.0
        %7126 = vmatpush2.msra.mxu0 0.0
        %7127 = vmatprep.subr.mxu0 0.0
        %7128 = vmatpush2.msra.mxu0 0.0
        %7129 = vmatprep.subr.mxu0 0.0
        %7130 = vmatpush2.msra.mxu0 0.0
        %7131 = vmatprep.subr.mxu0 0.0
        %7132 = vmatpush2.msra.mxu0 0.0
        %7133 = vmatprep.subr.mxu0 0.0
        %7134 = vmatpush2.msra.mxu0 0.0
        %7135 = vmatprep.subr.mxu0 0.0
        %7136 = vmatpush2.msra.mxu0 0.0
        %7137 = vmatprep.mubr.f32.mxu0 0.0
        %v7138 = vand.u32 %v6097, 4294901760
        %v7139 = vsub.f32 %v6097, %v7138
        %7140 = vmatmul.mubr.f32.gmra.mxu0 %v7139
        %v7141 = vpop.f32.mrf.mxu0
        %v7142 = vadd.f32 %v7032, %v7141
        %v7143 = vpop.f32.mrf.mxu0
        %7144 = vmatprep.mubr.f32.mxu0 0.0
        %v7145 = vand.u32 %v6098, 4294901760
        %v7146 = vsub.f32 %v6098, %v7145
        %7147 = vmatmul.mubr.f32.gmra.mxu0 %v7146
        %v7148 = vpop.f32.mrf.mxu0
        %v7149 = vadd.f32 %v7038, %v7148
        %v7150 = vpop.f32.mrf.mxu0
        %7151 = vdwg.mxu0
        %7152 = vmatprep.subr.mxu0 0.0
        %v7153 = vand.u32 %v402, 4294901760
        %7154 = vmatpush1.msra.mxu0 %v7153
        %7155 = vmatprep.subr.mxu0 0.0
        %v7156 = vand.u32 %v401, 4294901760
        %7157 = vmatpush1.msra.mxu0 %v7156
        %7158 = vmatprep.subr.mxu0 0.0
        %v7159 = vand.u32 %v400, 4294901760
        %7160 = vmatpush1.msra.mxu0 %v7159
        %7161 = vmatprep.subr.mxu0 0.0
        %v7162 = vand.u32 %v399, 4294901760
        %7163 = vmatpush1.msra.mxu0 %v7162
        %7164 = vmatprep.subr.mxu0 0.0
        %v7165 = vand.u32 %v398, 4294901760
        %7166 = vmatpush1.msra.mxu0 %v7165
        %7167 = vmatprep.subr.mxu0 0.0
        %v7168 = vand.u32 %v397, 4294901760
        %7169 = vmatpush1.msra.mxu0 %v7168
        %7170 = vmatprep.subr.mxu0 0.0
        %v7171 = vand.u32 %v396, 4294901760
        %7172 = vmatpush1.msra.mxu0 %v7171
        %7173 = vmatprep.subr.mxu0 0.0
        %v7174 = vand.u32 %v395, 4294901760
        %7175 = vmatpush1.msra.mxu0 %v7174
        %7176 = vmatprep.subr.mxu0 0.0
        %v7177 = vand.u32 %v394, 4294901760
        %7178 = vmatpush1.msra.mxu0 %v7177
        %7179 = vmatprep.subr.mxu0 0.0
        %v7180 = vand.u32 %v393, 4294901760
        %7181 = vmatpush1.msra.mxu0 %v7180
        %7182 = vmatprep.subr.mxu0 0.0
        %v7183 = vand.u32 %v392, 4294901760
        %7184 = vmatpush1.msra.mxu0 %v7183
        %7185 = vmatprep.subr.mxu0 0.0
        %v7186 = vand.u32 %v391, 4294901760
        %7187 = vmatpush1.msra.mxu0 %v7186
        %7188 = vmatprep.subr.mxu0 0.0
        %v7189 = vand.u32 %v390, 4294901760
        %7190 = vmatpush1.msra.mxu0 %v7189
        %7191 = vmatprep.subr.mxu0 0.0
        %v7192 = vand.u32 %v389, 4294901760
        %7193 = vmatpush1.msra.mxu0 %v7192
        %7194 = vmatprep.subr.mxu0 0.0
        %v7195 = vand.u32 %v388, 4294901760
        %7196 = vmatpush1.msra.mxu0 %v7195
        %7197 = vmatprep.subr.mxu0 0.0
        %v7198 = vand.u32 %v387, 4294901760
        %7199 = vmatpush1.msra.mxu0 %v7198
        %7200 = vmatprep.subr.mxu0 0.0
        %7201 = vmatpush2.msra.mxu0 0.0
        %7202 = vmatprep.subr.mxu0 0.0
        %7203 = vmatpush2.msra.mxu0 0.0
        %7204 = vmatprep.subr.mxu0 0.0
        %7205 = vmatpush2.msra.mxu0 0.0
        %7206 = vmatprep.subr.mxu0 0.0
        %7207 = vmatpush2.msra.mxu0 0.0
        %7208 = vmatprep.subr.mxu0 0.0
        %7209 = vmatpush2.msra.mxu0 0.0
        %7210 = vmatprep.subr.mxu0 0.0
        %7211 = vmatpush2.msra.mxu0 0.0
        %7212 = vmatprep.subr.mxu0 0.0
        %7213 = vmatpush2.msra.mxu0 0.0
        %7214 = vmatprep.subr.mxu0 0.0
        %7215 = vmatpush2.msra.mxu0 0.0
        %7216 = vmatprep.subr.mxu0 0.0
        %7217 = vmatpush2.msra.mxu0 0.0
        %7218 = vmatprep.subr.mxu0 0.0
        %7219 = vmatpush2.msra.mxu0 0.0
        %7220 = vmatprep.subr.mxu0 0.0
        %7221 = vmatpush2.msra.mxu0 0.0
        %7222 = vmatprep.subr.mxu0 0.0
        %7223 = vmatpush2.msra.mxu0 0.0
        %7224 = vmatprep.subr.mxu0 0.0
        %7225 = vmatpush2.msra.mxu0 0.0
        %7226 = vmatprep.subr.mxu0 0.0
        %7227 = vmatpush2.msra.mxu0 0.0
        %7228 = vmatprep.subr.mxu0 0.0
        %7229 = vmatpush2.msra.mxu0 0.0
        %7230 = vmatprep.subr.mxu0 0.0
        %7231 = vmatpush2.msra.mxu0 0.0
        %7232 = vmatprep.mubr.f32.mxu0 0.0
        %v7233 = vand.u32 %v6097, 4294901760
        %v7234 = vsub.f32 %v6097, %v7233
        %v7235 = vand.u32 %v7234, 4294901760
        %7236 = vmatmul.mubr.f32.gmra.mxu0 %v7235
        %v7237 = vpop.f32.mrf.mxu0
        %v7238 = vadd.f32 %v7142, %v7237
        %v7239 = vpop.f32.mrf.mxu0
        %7240 = vmatprep.mubr.f32.mxu0 0.0
        %v7241 = vand.u32 %v6098, 4294901760
        %v7242 = vsub.f32 %v6098, %v7241
        %v7243 = vand.u32 %v7242, 4294901760
        %7244 = vmatmul.mubr.f32.gmra.mxu0 %v7243
        %v7245 = vpop.f32.mrf.mxu0
        %v7246 = vadd.f32 %v7149, %v7245
        %v7247 = vpop.f32.mrf.mxu0
        %7248 = vdwg.mxu0
        %7249 = vmatprep.subr.mxu0 0.0
        %v7250 = vand.u32 %v402, 4294901760
        %v7251 = vsub.f32 %v402, %v7250
        %v7252 = vand.u32 %v7251, 4294901760
        %7253 = vmatpush1.msra.mxu0 %v7252
        %7254 = vmatprep.subr.mxu0 0.0
        %v7255 = vand.u32 %v401, 4294901760
        %v7256 = vsub.f32 %v401, %v7255
        %v7257 = vand.u32 %v7256, 4294901760
        %7258 = vmatpush1.msra.mxu0 %v7257
        %7259 = vmatprep.subr.mxu0 0.0
        %v7260 = vand.u32 %v400, 4294901760
        %v7261 = vsub.f32 %v400, %v7260
        %v7262 = vand.u32 %v7261, 4294901760
        %7263 = vmatpush1.msra.mxu0 %v7262
        %7264 = vmatprep.subr.mxu0 0.0
        %v7265 = vand.u32 %v399, 4294901760
        %v7266 = vsub.f32 %v399, %v7265
        %v7267 = vand.u32 %v7266, 4294901760
        %7268 = vmatpush1.msra.mxu0 %v7267
        %7269 = vmatprep.subr.mxu0 0.0
        %v7270 = vand.u32 %v398, 4294901760
        %v7271 = vsub.f32 %v398, %v7270
        %v7272 = vand.u32 %v7271, 4294901760
        %7273 = vmatpush1.msra.mxu0 %v7272
        %7274 = vmatprep.subr.mxu0 0.0
        %v7275 = vand.u32 %v397, 4294901760
        %v7276 = vsub.f32 %v397, %v7275
        %v7277 = vand.u32 %v7276, 4294901760
        %7278 = vmatpush1.msra.mxu0 %v7277
        %7279 = vmatprep.subr.mxu0 0.0
        %v7280 = vand.u32 %v396, 4294901760
        %v7281 = vsub.f32 %v396, %v7280
        %v7282 = vand.u32 %v7281, 4294901760
        %7283 = vmatpush1.msra.mxu0 %v7282
        %7284 = vmatprep.subr.mxu0 0.0
        %v7285 = vand.u32 %v395, 4294901760
        %v7286 = vsub.f32 %v395, %v7285
        %v7287 = vand.u32 %v7286, 4294901760
        %7288 = vmatpush1.msra.mxu0 %v7287
        %7289 = vmatprep.subr.mxu0 0.0
        %v7290 = vand.u32 %v394, 4294901760
        %v7291 = vsub.f32 %v394, %v7290
        %v7292 = vand.u32 %v7291, 4294901760
        %7293 = vmatpush1.msra.mxu0 %v7292
        %7294 = vmatprep.subr.mxu0 0.0
        %v7295 = vand.u32 %v393, 4294901760
        %v7296 = vsub.f32 %v393, %v7295
        %v7297 = vand.u32 %v7296, 4294901760
        %7298 = vmatpush1.msra.mxu0 %v7297
        %7299 = vmatprep.subr.mxu0 0.0
        %v7300 = vand.u32 %v392, 4294901760
        %v7301 = vsub.f32 %v392, %v7300
        %v7302 = vand.u32 %v7301, 4294901760
        %7303 = vmatpush1.msra.mxu0 %v7302
        %7304 = vmatprep.subr.mxu0 0.0
        %v7305 = vand.u32 %v391, 4294901760
        %v7306 = vsub.f32 %v391, %v7305
        %v7307 = vand.u32 %v7306, 4294901760
        %7308 = vmatpush1.msra.mxu0 %v7307
        %7309 = vmatprep.subr.mxu0 0.0
        %v7310 = vand.u32 %v390, 4294901760
        %v7311 = vsub.f32 %v390, %v7310
        %v7312 = vand.u32 %v7311, 4294901760
        %7313 = vmatpush1.msra.mxu0 %v7312
        %7314 = vmatprep.subr.mxu0 0.0
        %v7315 = vand.u32 %v389, 4294901760
        %v7316 = vsub.f32 %v389, %v7315
        %v7317 = vand.u32 %v7316, 4294901760
        %7318 = vmatpush1.msra.mxu0 %v7317
        %7319 = vmatprep.subr.mxu0 0.0
        %v7320 = vand.u32 %v388, 4294901760
        %v7321 = vsub.f32 %v388, %v7320
        %v7322 = vand.u32 %v7321, 4294901760
        %7323 = vmatpush1.msra.mxu0 %v7322
        %7324 = vmatprep.subr.mxu0 0.0
        %v7325 = vand.u32 %v387, 4294901760
        %v7326 = vsub.f32 %v387, %v7325
        %v7327 = vand.u32 %v7326, 4294901760
        %7328 = vmatpush1.msra.mxu0 %v7327
        %7329 = vmatprep.subr.mxu0 0.0
        %7330 = vmatpush2.msra.mxu0 0.0
        %7331 = vmatprep.subr.mxu0 0.0
        %7332 = vmatpush2.msra.mxu0 0.0
        %7333 = vmatprep.subr.mxu0 0.0
        %7334 = vmatpush2.msra.mxu0 0.0
        %7335 = vmatprep.subr.mxu0 0.0
        %7336 = vmatpush2.msra.mxu0 0.0
        %7337 = vmatprep.subr.mxu0 0.0
        %7338 = vmatpush2.msra.mxu0 0.0
        %7339 = vmatprep.subr.mxu0 0.0
        %7340 = vmatpush2.msra.mxu0 0.0
        %7341 = vmatprep.subr.mxu0 0.0
        %7342 = vmatpush2.msra.mxu0 0.0
        %7343 = vmatprep.subr.mxu0 0.0
        %7344 = vmatpush2.msra.mxu0 0.0
        %7345 = vmatprep.subr.mxu0 0.0
        %7346 = vmatpush2.msra.mxu0 0.0
        %7347 = vmatprep.subr.mxu0 0.0
        %7348 = vmatpush2.msra.mxu0 0.0
        %7349 = vmatprep.subr.mxu0 0.0
        %7350 = vmatpush2.msra.mxu0 0.0
        %7351 = vmatprep.subr.mxu0 0.0
        %7352 = vmatpush2.msra.mxu0 0.0
        %7353 = vmatprep.subr.mxu0 0.0
        %7354 = vmatpush2.msra.mxu0 0.0
        %7355 = vmatprep.subr.mxu0 0.0
        %7356 = vmatpush2.msra.mxu0 0.0
        %7357 = vmatprep.subr.mxu0 0.0
        %7358 = vmatpush2.msra.mxu0 0.0
        %7359 = vmatprep.subr.mxu0 0.0
        %7360 = vmatpush2.msra.mxu0 0.0
        %7361 = vmatprep.mubr.f32.mxu0 0.0
        %v7362 = vand.u32 %v6097, 4294901760
        %7363 = vmatmul.mubr.f32.gmra.mxu0 %v7362
        %v7364 = vpop.f32.mrf.mxu0
        %v7365 = vadd.f32 %v7238, %v7364
        %v7366 = vpop.f32.mrf.mxu0
        %7367 = vmatprep.mubr.f32.mxu0 0.0
        %v7368 = vand.u32 %v6098, 4294901760
        %7369 = vmatmul.mubr.f32.gmra.mxu0 %v7368
        %v7370 = vpop.f32.mrf.mxu0
        %v7371 = vadd.f32 %v7246, %v7370
        %v7372 = vpop.f32.mrf.mxu0
        %7373 = vdwg.mxu0
        %7374 = vmatprep.subr.mxu0 0.0
        %v7375 = vand.u32 %v402, 4294901760
        %7376 = vmatpush1.msra.mxu0 %v7375
        %7377 = vmatprep.subr.mxu0 0.0
        %v7378 = vand.u32 %v401, 4294901760
        %7379 = vmatpush1.msra.mxu0 %v7378
        %7380 = vmatprep.subr.mxu0 0.0
        %v7381 = vand.u32 %v400, 4294901760
        %7382 = vmatpush1.msra.mxu0 %v7381
        %7383 = vmatprep.subr.mxu0 0.0
        %v7384 = vand.u32 %v399, 4294901760
        %7385 = vmatpush1.msra.mxu0 %v7384
        %7386 = vmatprep.subr.mxu0 0.0
        %v7387 = vand.u32 %v398, 4294901760
        %7388 = vmatpush1.msra.mxu0 %v7387
        %7389 = vmatprep.subr.mxu0 0.0
        %v7390 = vand.u32 %v397, 4294901760
        %7391 = vmatpush1.msra.mxu0 %v7390
        %7392 = vmatprep.subr.mxu0 0.0
        %v7393 = vand.u32 %v396, 4294901760
        %7394 = vmatpush1.msra.mxu0 %v7393
        %7395 = vmatprep.subr.mxu0 0.0
        %v7396 = vand.u32 %v395, 4294901760
        %7397 = vmatpush1.msra.mxu0 %v7396
        %7398 = vmatprep.subr.mxu0 0.0
        %v7399 = vand.u32 %v394, 4294901760
        %7400 = vmatpush1.msra.mxu0 %v7399
        %7401 = vmatprep.subr.mxu0 0.0
        %v7402 = vand.u32 %v393, 4294901760
        %7403 = vmatpush1.msra.mxu0 %v7402
        %7404 = vmatprep.subr.mxu0 0.0
        %v7405 = vand.u32 %v392, 4294901760
        %7406 = vmatpush1.msra.mxu0 %v7405
        %7407 = vmatprep.subr.mxu0 0.0
        %v7408 = vand.u32 %v391, 4294901760
        %7409 = vmatpush1.msra.mxu0 %v7408
        %7410 = vmatprep.subr.mxu0 0.0
        %v7411 = vand.u32 %v390, 4294901760
        %7412 = vmatpush1.msra.mxu0 %v7411
        %7413 = vmatprep.subr.mxu0 0.0
        %v7414 = vand.u32 %v389, 4294901760
        %7415 = vmatpush1.msra.mxu0 %v7414
        %7416 = vmatprep.subr.mxu0 0.0
        %v7417 = vand.u32 %v388, 4294901760
        %7418 = vmatpush1.msra.mxu0 %v7417
        %7419 = vmatprep.subr.mxu0 0.0
        %v7420 = vand.u32 %v387, 4294901760
        %7421 = vmatpush1.msra.mxu0 %v7420
        %7422 = vmatprep.subr.mxu0 0.0
        %7423 = vmatpush2.msra.mxu0 0.0
        %7424 = vmatprep.subr.mxu0 0.0
        %7425 = vmatpush2.msra.mxu0 0.0
        %7426 = vmatprep.subr.mxu0 0.0
        %7427 = vmatpush2.msra.mxu0 0.0
        %7428 = vmatprep.subr.mxu0 0.0
        %7429 = vmatpush2.msra.mxu0 0.0
        %7430 = vmatprep.subr.mxu0 0.0
        %7431 = vmatpush2.msra.mxu0 0.0
        %7432 = vmatprep.subr.mxu0 0.0
        %7433 = vmatpush2.msra.mxu0 0.0
        %7434 = vmatprep.subr.mxu0 0.0
        %7435 = vmatpush2.msra.mxu0 0.0
        %7436 = vmatprep.subr.mxu0 0.0
        %7437 = vmatpush2.msra.mxu0 0.0
        %7438 = vmatprep.subr.mxu0 0.0
        %7439 = vmatpush2.msra.mxu0 0.0
        %7440 = vmatprep.subr.mxu0 0.0
        %7441 = vmatpush2.msra.mxu0 0.0
        %7442 = vmatprep.subr.mxu0 0.0
        %7443 = vmatpush2.msra.mxu0 0.0
        %7444 = vmatprep.subr.mxu0 0.0
        %7445 = vmatpush2.msra.mxu0 0.0
        %7446 = vmatprep.subr.mxu0 0.0
        %7447 = vmatpush2.msra.mxu0 0.0
        %7448 = vmatprep.subr.mxu0 0.0
        %7449 = vmatpush2.msra.mxu0 0.0
        %7450 = vmatprep.subr.mxu0 0.0
        %7451 = vmatpush2.msra.mxu0 0.0
        %7452 = vmatprep.subr.mxu0 0.0
        %7453 = vmatpush2.msra.mxu0 0.0
        %7454 = vmatprep.mubr.f32.mxu0 0.0
        %v7455 = vand.u32 %v6097, 4294901760
        %7456 = vmatmul.mubr.f32.gmra.mxu0 %v7455
        %v7457 = vpop.f32.mrf.mxu0
        %v7458 = vadd.f32 %v7365, %v7457
        %v7459 = vpop.f32.mrf.mxu0
        %7460 = vmatprep.mubr.f32.mxu0 0.0
        %v7461 = vand.u32 %v6098, 4294901760
        %7462 = vmatmul.mubr.f32.gmra.mxu0 %v7461
        %v7463 = vpop.f32.mrf.mxu0
        %v7464 = vadd.f32 %v7371, %v7463
        %v7465 = vpop.f32.mrf.mxu0
        %7466 = vdwg.mxu0
        %v7467 = vmul.f32 %v6774, %v6774
        %v7468 = vmul.f32 %v6780, %v6780
        %v7469 = vadd.f32 %v7467, 1e-06
        %v7470 = vadd.f32 %v7468, 1e-06
        %v7471 = vrsqrt.pop %v7469
        %v7472 = vmul.f32 %v7469, %v7471
        %vm7473 = vcmp.eq.f32.partialorder %v7469, inf
        %v7474 = vsel %vm7473, %v7469, %v7472
        %vm7475 = vcmp.eq.f32.partialorder %v7469, 0.0
        %v7476 = vand.u32 %v7469, 2147483648
        %v7477 = vsel %vm7475, %v7476, %v7474
        %v7478 = vrsqrt.pop %v7470
        %v7479 = vmul.f32 %v7470, %v7478
        %vm7480 = vcmp.eq.f32.partialorder %v7470, inf
        %v7481 = vsel %vm7480, %v7470, %v7479
        %vm7482 = vcmp.eq.f32.partialorder %v7470, 0.0
        %v7483 = vand.u32 %v7470, 2147483648
        %v7484 = vsel %vm7482, %v7483, %v7481
        %v7485 = vadd.f32 %v7477, 0.0
        %v7486 = vadd.f32 %v7484, 0.0
        %v7487 = vmul.f32 %v7458, %v7458
        %v7488 = vmul.f32 %v7464, %v7464
        %v7489 = vadd.f32 %v7487, 1e-06
        %v7490 = vadd.f32 %v7488, 1e-06
        %v7491 = vrsqrt.pop %v7489
        %v7492 = vmul.f32 %v7489, %v7491
        %vm7493 = vcmp.eq.f32.partialorder %v7489, inf
        %v7494 = vsel %vm7493, %v7489, %v7492
        %vm7495 = vcmp.eq.f32.partialorder %v7489, 0.0
        %v7496 = vand.u32 %v7489, 2147483648
        %v7497 = vsel %vm7495, %v7496, %v7494
        %v7498 = vrsqrt.pop %v7490
        %v7499 = vmul.f32 %v7490, %v7498
        %vm7500 = vcmp.eq.f32.partialorder %v7490, inf
        %v7501 = vsel %vm7500, %v7490, %v7499
        %vm7502 = vcmp.eq.f32.partialorder %v7490, 0.0
        %v7503 = vand.u32 %v7490, 2147483648
        %v7504 = vsel %vm7502, %v7503, %v7501
        %v7505 = vadd.f32 %v7497, 0.0
        %v7506 = vadd.f32 %v7504, 0.0
        %s7507 = scalar_lea.vmem %s310, 16 [#allocation5]
        %v7508 = vld [vmem:[%s7507] sm:$0xff]
        %v7509 = vld [vmem:[%s7507 + $0x8] sm:$0xff]
        %v7510 = vld [vmem:[%s369 + $0x9] sm:$0x1]
        %v7511 = vld [vmem:[%s369 + $0xb] sm:$0x1]
        %v7512 = vrot.slane %v7508, 7
        %v7513 = vrot.slane %v7509, 7
        %v7514 = vsel %vm416, %v7512, %v7513
        %v7515 = vsel %vm416, %v7513, %v7512
        %v7516 = vlaneseq
        %v7517 = vshrl.u32 %v7516, 7
        %v7518 = vsub.s32 0, %v7517
        %v7519 = vrot.slane %v7510, %v7518
        %v7520 = vsel %vm421, %v7519, %v7515
        %v7521 = vsel %vm422, %v7519, %v7514
        %v7522 = vrot.slane %v7508, 1
        %v7523 = vrot.slane %v7509, 1
        %v7524 = vsel %vm431, %v7522, %v7523
        %v7525 = vsel %vm431, %v7523, %v7522
        %v7526 = vlaneseq
        %v7527 = vshrl.u32 %v7526, 7
        %v7528 = vsub.s32 0, %v7527
        %v7529 = vrot.slane %v7511, %v7528
        %v7530 = vsel %vm436, %v7529, %v7524
        %v7531 = vsel %vm437, %v7529, %v7525
        %v7532 = vmul.f32 %v7508, 2.0
        %v7533 = vmul.f32 %v7509, 2.0
        %v7534 = vadd.f32 %v7520, %v7532
        %v7535 = vadd.f32 %v7521, %v7533
        %v7536 = vadd.f32 %v7534, %v7530
        %v7537 = vadd.f32 %v7535, %v7531
        %v7538 = vsub.f32 %v7530, %v7520
        %v7539 = vsub.f32 %v7531, %v7521
        %7540 = vmatprep.subr.mxu0 0.0
        %v7541 = vand.u32 %v386, 4294901760
        %7542 = vmatpush1.msra.mxu0 %v7541
        %7543 = vmatprep.subr.mxu0 0.0
        %v7544 = vand.u32 %v385, 4294901760
        %7545 = vmatpush1.msra.mxu0 %v7544
        %7546 = vmatprep.subr.mxu0 0.0
        %v7547 = vand.u32 %v384, 4294901760
        %7548 = vmatpush1.msra.mxu0 %v7547
        %7549 = vmatprep.subr.mxu0 0.0
        %v7550 = vand.u32 %v383, 4294901760
        %7551 = vmatpush1.msra.mxu0 %v7550
        %7552 = vmatprep.subr.mxu0 0.0
        %v7553 = vand.u32 %v382, 4294901760
        %7554 = vmatpush1.msra.mxu0 %v7553
        %7555 = vmatprep.subr.mxu0 0.0
        %v7556 = vand.u32 %v381, 4294901760
        %7557 = vmatpush1.msra.mxu0 %v7556
        %7558 = vmatprep.subr.mxu0 0.0
        %v7559 = vand.u32 %v380, 4294901760
        %7560 = vmatpush1.msra.mxu0 %v7559
        %7561 = vmatprep.subr.mxu0 0.0
        %v7562 = vand.u32 %v379, 4294901760
        %7563 = vmatpush1.msra.mxu0 %v7562
        %7564 = vmatprep.subr.mxu0 0.0
        %v7565 = vand.u32 %v378, 4294901760
        %7566 = vmatpush1.msra.mxu0 %v7565
        %7567 = vmatprep.subr.mxu0 0.0
        %v7568 = vand.u32 %v377, 4294901760
        %7569 = vmatpush1.msra.mxu0 %v7568
        %7570 = vmatprep.subr.mxu0 0.0
        %v7571 = vand.u32 %v376, 4294901760
        %7572 = vmatpush1.msra.mxu0 %v7571
        %7573 = vmatprep.subr.mxu0 0.0
        %v7574 = vand.u32 %v375, 4294901760
        %7575 = vmatpush1.msra.mxu0 %v7574
        %7576 = vmatprep.subr.mxu0 0.0
        %v7577 = vand.u32 %v374, 4294901760
        %7578 = vmatpush1.msra.mxu0 %v7577
        %7579 = vmatprep.subr.mxu0 0.0
        %v7580 = vand.u32 %v373, 4294901760
        %7581 = vmatpush1.msra.mxu0 %v7580
        %7582 = vmatprep.subr.mxu0 0.0
        %v7583 = vand.u32 %v372, 4294901760
        %7584 = vmatpush1.msra.mxu0 %v7583
        %7585 = vmatprep.subr.mxu0 0.0
        %v7586 = vand.u32 %v371, 4294901760
        %7587 = vmatpush1.msra.mxu0 %v7586
        %7588 = vmatprep.subr.mxu0 0.0
        %7589 = vmatpush2.msra.mxu0 0.0
        %7590 = vmatprep.subr.mxu0 0.0
        %7591 = vmatpush2.msra.mxu0 0.0
        %7592 = vmatprep.subr.mxu0 0.0
        %7593 = vmatpush2.msra.mxu0 0.0
        %7594 = vmatprep.subr.mxu0 0.0
        %7595 = vmatpush2.msra.mxu0 0.0
        %7596 = vmatprep.subr.mxu0 0.0
        %7597 = vmatpush2.msra.mxu0 0.0
        %7598 = vmatprep.subr.mxu0 0.0
        %7599 = vmatpush2.msra.mxu0 0.0
        %7600 = vmatprep.subr.mxu0 0.0
        %7601 = vmatpush2.msra.mxu0 0.0
        %7602 = vmatprep.subr.mxu0 0.0
        %7603 = vmatpush2.msra.mxu0 0.0
        %7604 = vmatprep.subr.mxu0 0.0
        %7605 = vmatpush2.msra.mxu0 0.0
        %7606 = vmatprep.subr.mxu0 0.0
        %7607 = vmatpush2.msra.mxu0 0.0
        %7608 = vmatprep.subr.mxu0 0.0
        %7609 = vmatpush2.msra.mxu0 0.0
        %7610 = vmatprep.subr.mxu0 0.0
        %7611 = vmatpush2.msra.mxu0 0.0
        %7612 = vmatprep.subr.mxu0 0.0
        %7613 = vmatpush2.msra.mxu0 0.0
        %7614 = vmatprep.subr.mxu0 0.0
        %7615 = vmatpush2.msra.mxu0 0.0
        %7616 = vmatprep.subr.mxu0 0.0
        %7617 = vmatpush2.msra.mxu0 0.0
        %7618 = vmatprep.subr.mxu0 0.0
        %7619 = vmatpush2.msra.mxu0 0.0
        %7620 = vmatprep.mubr.f32.mxu0 0.0
        %v7621 = vand.u32 %v7536, 4294901760
        %v7622 = vsub.f32 %v7536, %v7621
        %v7623 = vand.u32 %v7622, 4294901760
        %v7624 = vsub.f32 %v7622, %v7623
        %v7625 = vand.u32 %v7624, 4294901760
        %7626 = vmatmul.mubr.f32.gmra.mxu0 %v7625
        %v7627 = vpop.f32.mrf.mxu0
        %v7628 = vadd.f32 0.0, %v7627
        %v7629 = vpop.f32.mrf.mxu0
        %7630 = vmatprep.mubr.f32.mxu0 0.0
        %v7631 = vand.u32 %v7537, 4294901760
        %v7632 = vsub.f32 %v7537, %v7631
        %v7633 = vand.u32 %v7632, 4294901760
        %v7634 = vsub.f32 %v7632, %v7633
        %v7635 = vand.u32 %v7634, 4294901760
        %7636 = vmatmul.mubr.f32.gmra.mxu0 %v7635
        %v7637 = vpop.f32.mrf.mxu0
        %v7638 = vadd.f32 0.0, %v7637
        %v7639 = vpop.f32.mrf.mxu0
        %7640 = vdwg.mxu0
        %7641 = vmatprep.subr.mxu0 0.0
        %v7642 = vand.u32 %v386, 4294901760
        %v7643 = vsub.f32 %v386, %v7642
        %v7644 = vand.u32 %v7643, 4294901760
        %v7645 = vsub.f32 %v7643, %v7644
        %v7646 = vand.u32 %v7645, 4294901760
        %7647 = vmatpush1.msra.mxu0 %v7646
        %7648 = vmatprep.subr.mxu0 0.0
        %v7649 = vand.u32 %v385, 4294901760
        %v7650 = vsub.f32 %v385, %v7649
        %v7651 = vand.u32 %v7650, 4294901760
        %v7652 = vsub.f32 %v7650, %v7651
        %v7653 = vand.u32 %v7652, 4294901760
        %7654 = vmatpush1.msra.mxu0 %v7653
        %7655 = vmatprep.subr.mxu0 0.0
        %v7656 = vand.u32 %v384, 4294901760
        %v7657 = vsub.f32 %v384, %v7656
        %v7658 = vand.u32 %v7657, 4294901760
        %v7659 = vsub.f32 %v7657, %v7658
        %v7660 = vand.u32 %v7659, 4294901760
        %7661 = vmatpush1.msra.mxu0 %v7660
        %7662 = vmatprep.subr.mxu0 0.0
        %v7663 = vand.u32 %v383, 4294901760
        %v7664 = vsub.f32 %v383, %v7663
        %v7665 = vand.u32 %v7664, 4294901760
        %v7666 = vsub.f32 %v7664, %v7665
        %v7667 = vand.u32 %v7666, 4294901760
        %7668 = vmatpush1.msra.mxu0 %v7667
        %7669 = vmatprep.subr.mxu0 0.0
        %v7670 = vand.u32 %v382, 4294901760
        %v7671 = vsub.f32 %v382, %v7670
        %v7672 = vand.u32 %v7671, 4294901760
        %v7673 = vsub.f32 %v7671, %v7672
        %v7674 = vand.u32 %v7673, 4294901760
        %7675 = vmatpush1.msra.mxu0 %v7674
        %7676 = vmatprep.subr.mxu0 0.0
        %v7677 = vand.u32 %v381, 4294901760
        %v7678 = vsub.f32 %v381, %v7677
        %v7679 = vand.u32 %v7678, 4294901760
        %v7680 = vsub.f32 %v7678, %v7679
        %v7681 = vand.u32 %v7680, 4294901760
        %7682 = vmatpush1.msra.mxu0 %v7681
        %7683 = vmatprep.subr.mxu0 0.0
        %v7684 = vand.u32 %v380, 4294901760
        %v7685 = vsub.f32 %v380, %v7684
        %v7686 = vand.u32 %v7685, 4294901760
        %v7687 = vsub.f32 %v7685, %v7686
        %v7688 = vand.u32 %v7687, 4294901760
        %7689 = vmatpush1.msra.mxu0 %v7688
        %7690 = vmatprep.subr.mxu0 0.0
        %v7691 = vand.u32 %v379, 4294901760
        %v7692 = vsub.f32 %v379, %v7691
        %v7693 = vand.u32 %v7692, 4294901760
        %v7694 = vsub.f32 %v7692, %v7693
        %v7695 = vand.u32 %v7694, 4294901760
        %7696 = vmatpush1.msra.mxu0 %v7695
        %7697 = vmatprep.subr.mxu0 0.0
        %v7698 = vand.u32 %v378, 4294901760
        %v7699 = vsub.f32 %v378, %v7698
        %v7700 = vand.u32 %v7699, 4294901760
        %v7701 = vsub.f32 %v7699, %v7700
        %v7702 = vand.u32 %v7701, 4294901760
        %7703 = vmatpush1.msra.mxu0 %v7702
        %7704 = vmatprep.subr.mxu0 0.0
        %v7705 = vand.u32 %v377, 4294901760
        %v7706 = vsub.f32 %v377, %v7705
        %v7707 = vand.u32 %v7706, 4294901760
        %v7708 = vsub.f32 %v7706, %v7707
        %v7709 = vand.u32 %v7708, 4294901760
        %7710 = vmatpush1.msra.mxu0 %v7709
        %7711 = vmatprep.subr.mxu0 0.0
        %v7712 = vand.u32 %v376, 4294901760
        %v7713 = vsub.f32 %v376, %v7712
        %v7714 = vand.u32 %v7713, 4294901760
        %v7715 = vsub.f32 %v7713, %v7714
        %v7716 = vand.u32 %v7715, 4294901760
        %7717 = vmatpush1.msra.mxu0 %v7716
        %7718 = vmatprep.subr.mxu0 0.0
        %v7719 = vand.u32 %v375, 4294901760
        %v7720 = vsub.f32 %v375, %v7719
        %v7721 = vand.u32 %v7720, 4294901760
        %v7722 = vsub.f32 %v7720, %v7721
        %v7723 = vand.u32 %v7722, 4294901760
        %7724 = vmatpush1.msra.mxu0 %v7723
        %7725 = vmatprep.subr.mxu0 0.0
        %v7726 = vand.u32 %v374, 4294901760
        %v7727 = vsub.f32 %v374, %v7726
        %v7728 = vand.u32 %v7727, 4294901760
        %v7729 = vsub.f32 %v7727, %v7728
        %v7730 = vand.u32 %v7729, 4294901760
        %7731 = vmatpush1.msra.mxu0 %v7730
        %7732 = vmatprep.subr.mxu0 0.0
        %v7733 = vand.u32 %v373, 4294901760
        %v7734 = vsub.f32 %v373, %v7733
        %v7735 = vand.u32 %v7734, 4294901760
        %v7736 = vsub.f32 %v7734, %v7735
        %v7737 = vand.u32 %v7736, 4294901760
        %7738 = vmatpush1.msra.mxu0 %v7737
        %7739 = vmatprep.subr.mxu0 0.0
        %v7740 = vand.u32 %v372, 4294901760
        %v7741 = vsub.f32 %v372, %v7740
        %v7742 = vand.u32 %v7741, 4294901760
        %v7743 = vsub.f32 %v7741, %v7742
        %v7744 = vand.u32 %v7743, 4294901760
        %7745 = vmatpush1.msra.mxu0 %v7744
        %7746 = vmatprep.subr.mxu0 0.0
        %v7747 = vand.u32 %v371, 4294901760
        %v7748 = vsub.f32 %v371, %v7747
        %v7749 = vand.u32 %v7748, 4294901760
        %v7750 = vsub.f32 %v7748, %v7749
        %v7751 = vand.u32 %v7750, 4294901760
        %7752 = vmatpush1.msra.mxu0 %v7751
        %7753 = vmatprep.subr.mxu0 0.0
        %7754 = vmatpush2.msra.mxu0 0.0
        %7755 = vmatprep.subr.mxu0 0.0
        %7756 = vmatpush2.msra.mxu0 0.0
        %7757 = vmatprep.subr.mxu0 0.0
        %7758 = vmatpush2.msra.mxu0 0.0
        %7759 = vmatprep.subr.mxu0 0.0
        %7760 = vmatpush2.msra.mxu0 0.0
        %7761 = vmatprep.subr.mxu0 0.0
        %7762 = vmatpush2.msra.mxu0 0.0
        %7763 = vmatprep.subr.mxu0 0.0
        %7764 = vmatpush2.msra.mxu0 0.0
        %7765 = vmatprep.subr.mxu0 0.0
        %7766 = vmatpush2.msra.mxu0 0.0
        %7767 = vmatprep.subr.mxu0 0.0
        %7768 = vmatpush2.msra.mxu0 0.0
        %7769 = vmatprep.subr.mxu0 0.0
        %7770 = vmatpush2.msra.mxu0 0.0
        %7771 = vmatprep.subr.mxu0 0.0
        %7772 = vmatpush2.msra.mxu0 0.0
        %7773 = vmatprep.subr.mxu0 0.0
        %7774 = vmatpush2.msra.mxu0 0.0
        %7775 = vmatprep.subr.mxu0 0.0
        %7776 = vmatpush2.msra.mxu0 0.0
        %7777 = vmatprep.subr.mxu0 0.0
        %7778 = vmatpush2.msra.mxu0 0.0
        %7779 = vmatprep.subr.mxu0 0.0
        %7780 = vmatpush2.msra.mxu0 0.0
        %7781 = vmatprep.subr.mxu0 0.0
        %7782 = vmatpush2.msra.mxu0 0.0
        %7783 = vmatprep.subr.mxu0 0.0
        %7784 = vmatpush2.msra.mxu0 0.0
        %7785 = vmatprep.mubr.f32.mxu0 0.0
        %v7786 = vand.u32 %v7536, 4294901760
        %7787 = vmatmul.mubr.f32.gmra.mxu0 %v7786
        %v7788 = vpop.f32.mrf.mxu0
        %v7789 = vadd.f32 %v7628, %v7788
        %v7790 = vpop.f32.mrf.mxu0
        %7791 = vmatprep.mubr.f32.mxu0 0.0
        %v7792 = vand.u32 %v7537, 4294901760
        %7793 = vmatmul.mubr.f32.gmra.mxu0 %v7792
        %v7794 = vpop.f32.mrf.mxu0
        %v7795 = vadd.f32 %v7638, %v7794
        %v7796 = vpop.f32.mrf.mxu0
        %7797 = vdwg.mxu0
        %7798 = vmatprep.subr.mxu0 0.0
        %v7799 = vand.u32 %v386, 4294901760
        %v7800 = vsub.f32 %v386, %v7799
        %7801 = vmatpush1.msra.mxu0 %v7800
        %7802 = vmatprep.subr.mxu0 0.0
        %v7803 = vand.u32 %v385, 4294901760
        %v7804 = vsub.f32 %v385, %v7803
        %7805 = vmatpush1.msra.mxu0 %v7804
        %7806 = vmatprep.subr.mxu0 0.0
        %v7807 = vand.u32 %v384, 4294901760
        %v7808 = vsub.f32 %v384, %v7807
        %7809 = vmatpush1.msra.mxu0 %v7808
        %7810 = vmatprep.subr.mxu0 0.0
        %v7811 = vand.u32 %v383, 4294901760
        %v7812 = vsub.f32 %v383, %v7811
        %7813 = vmatpush1.msra.mxu0 %v7812
        %7814 = vmatprep.subr.mxu0 0.0
        %v7815 = vand.u32 %v382, 4294901760
        %v7816 = vsub.f32 %v382, %v7815
        %7817 = vmatpush1.msra.mxu0 %v7816
        %7818 = vmatprep.subr.mxu0 0.0
        %v7819 = vand.u32 %v381, 4294901760
        %v7820 = vsub.f32 %v381, %v7819
        %7821 = vmatpush1.msra.mxu0 %v7820
        %7822 = vmatprep.subr.mxu0 0.0
        %v7823 = vand.u32 %v380, 4294901760
        %v7824 = vsub.f32 %v380, %v7823
        %7825 = vmatpush1.msra.mxu0 %v7824
        %7826 = vmatprep.subr.mxu0 0.0
        %v7827 = vand.u32 %v379, 4294901760
        %v7828 = vsub.f32 %v379, %v7827
        %7829 = vmatpush1.msra.mxu0 %v7828
        %7830 = vmatprep.subr.mxu0 0.0
        %v7831 = vand.u32 %v378, 4294901760
        %v7832 = vsub.f32 %v378, %v7831
        %7833 = vmatpush1.msra.mxu0 %v7832
        %7834 = vmatprep.subr.mxu0 0.0
        %v7835 = vand.u32 %v377, 4294901760
        %v7836 = vsub.f32 %v377, %v7835
        %7837 = vmatpush1.msra.mxu0 %v7836
        %7838 = vmatprep.subr.mxu0 0.0
        %v7839 = vand.u32 %v376, 4294901760
        %v7840 = vsub.f32 %v376, %v7839
        %7841 = vmatpush1.msra.mxu0 %v7840
        %7842 = vmatprep.subr.mxu0 0.0
        %v7843 = vand.u32 %v375, 4294901760
        %v7844 = vsub.f32 %v375, %v7843
        %7845 = vmatpush1.msra.mxu0 %v7844
        %7846 = vmatprep.subr.mxu0 0.0
        %v7847 = vand.u32 %v374, 4294901760
        %v7848 = vsub.f32 %v374, %v7847
        %7849 = vmatpush1.msra.mxu0 %v7848
        %7850 = vmatprep.subr.mxu0 0.0
        %v7851 = vand.u32 %v373, 4294901760
        %v7852 = vsub.f32 %v373, %v7851
        %7853 = vmatpush1.msra.mxu0 %v7852
        %7854 = vmatprep.subr.mxu0 0.0
        %v7855 = vand.u32 %v372, 4294901760
        %v7856 = vsub.f32 %v372, %v7855
        %7857 = vmatpush1.msra.mxu0 %v7856
        %7858 = vmatprep.subr.mxu0 0.0
        %v7859 = vand.u32 %v371, 4294901760
        %v7860 = vsub.f32 %v371, %v7859
        %7861 = vmatpush1.msra.mxu0 %v7860
        %7862 = vmatprep.subr.mxu0 0.0
        %7863 = vmatpush2.msra.mxu0 0.0
        %7864 = vmatprep.subr.mxu0 0.0
        %7865 = vmatpush2.msra.mxu0 0.0
        %7866 = vmatprep.subr.mxu0 0.0
        %7867 = vmatpush2.msra.mxu0 0.0
        %7868 = vmatprep.subr.mxu0 0.0
        %7869 = vmatpush2.msra.mxu0 0.0
        %7870 = vmatprep.subr.mxu0 0.0
        %7871 = vmatpush2.msra.mxu0 0.0
        %7872 = vmatprep.subr.mxu0 0.0
        %7873 = vmatpush2.msra.mxu0 0.0
        %7874 = vmatprep.subr.mxu0 0.0
        %7875 = vmatpush2.msra.mxu0 0.0
        %7876 = vmatprep.subr.mxu0 0.0
        %7877 = vmatpush2.msra.mxu0 0.0
        %7878 = vmatprep.subr.mxu0 0.0
        %7879 = vmatpush2.msra.mxu0 0.0
        %7880 = vmatprep.subr.mxu0 0.0
        %7881 = vmatpush2.msra.mxu0 0.0
        %7882 = vmatprep.subr.mxu0 0.0
        %7883 = vmatpush2.msra.mxu0 0.0
        %7884 = vmatprep.subr.mxu0 0.0
        %7885 = vmatpush2.msra.mxu0 0.0
        %7886 = vmatprep.subr.mxu0 0.0
        %7887 = vmatpush2.msra.mxu0 0.0
        %7888 = vmatprep.subr.mxu0 0.0
        %7889 = vmatpush2.msra.mxu0 0.0
        %7890 = vmatprep.subr.mxu0 0.0
        %7891 = vmatpush2.msra.mxu0 0.0
        %7892 = vmatprep.subr.mxu0 0.0
        %7893 = vmatpush2.msra.mxu0 0.0
        %7894 = vmatprep.mubr.f32.mxu0 0.0
        %v7895 = vand.u32 %v7536, 4294901760
        %v7896 = vsub.f32 %v7536, %v7895
        %7897 = vmatmul.mubr.f32.gmra.mxu0 %v7896
        %v7898 = vpop.f32.mrf.mxu0
        %v7899 = vadd.f32 %v7789, %v7898
        %v7900 = vpop.f32.mrf.mxu0
        %7901 = vmatprep.mubr.f32.mxu0 0.0
        %v7902 = vand.u32 %v7537, 4294901760
        %v7903 = vsub.f32 %v7537, %v7902
        %7904 = vmatmul.mubr.f32.gmra.mxu0 %v7903
        %v7905 = vpop.f32.mrf.mxu0
        %v7906 = vadd.f32 %v7795, %v7905
        %v7907 = vpop.f32.mrf.mxu0
        %7908 = vdwg.mxu0
        %7909 = vmatprep.subr.mxu0 0.0
        %v7910 = vand.u32 %v386, 4294901760
        %7911 = vmatpush1.msra.mxu0 %v7910
        %7912 = vmatprep.subr.mxu0 0.0
        %v7913 = vand.u32 %v385, 4294901760
        %7914 = vmatpush1.msra.mxu0 %v7913
        %7915 = vmatprep.subr.mxu0 0.0
        %v7916 = vand.u32 %v384, 4294901760
        %7917 = vmatpush1.msra.mxu0 %v7916
        %7918 = vmatprep.subr.mxu0 0.0
        %v7919 = vand.u32 %v383, 4294901760
        %7920 = vmatpush1.msra.mxu0 %v7919
        %7921 = vmatprep.subr.mxu0 0.0
        %v7922 = vand.u32 %v382, 4294901760
        %7923 = vmatpush1.msra.mxu0 %v7922
        %7924 = vmatprep.subr.mxu0 0.0
        %v7925 = vand.u32 %v381, 4294901760
        %7926 = vmatpush1.msra.mxu0 %v7925
        %7927 = vmatprep.subr.mxu0 0.0
        %v7928 = vand.u32 %v380, 4294901760
        %7929 = vmatpush1.msra.mxu0 %v7928
        %7930 = vmatprep.subr.mxu0 0.0
        %v7931 = vand.u32 %v379, 4294901760
        %7932 = vmatpush1.msra.mxu0 %v7931
        %7933 = vmatprep.subr.mxu0 0.0
        %v7934 = vand.u32 %v378, 4294901760
        %7935 = vmatpush1.msra.mxu0 %v7934
        %7936 = vmatprep.subr.mxu0 0.0
        %v7937 = vand.u32 %v377, 4294901760
        %7938 = vmatpush1.msra.mxu0 %v7937
        %7939 = vmatprep.subr.mxu0 0.0
        %v7940 = vand.u32 %v376, 4294901760
        %7941 = vmatpush1.msra.mxu0 %v7940
        %7942 = vmatprep.subr.mxu0 0.0
        %v7943 = vand.u32 %v375, 4294901760
        %7944 = vmatpush1.msra.mxu0 %v7943
        %7945 = vmatprep.subr.mxu0 0.0
        %v7946 = vand.u32 %v374, 4294901760
        %7947 = vmatpush1.msra.mxu0 %v7946
        %7948 = vmatprep.subr.mxu0 0.0
        %v7949 = vand.u32 %v373, 4294901760
        %7950 = vmatpush1.msra.mxu0 %v7949
        %7951 = vmatprep.subr.mxu0 0.0
        %v7952 = vand.u32 %v372, 4294901760
        %7953 = vmatpush1.msra.mxu0 %v7952
        %7954 = vmatprep.subr.mxu0 0.0
        %v7955 = vand.u32 %v371, 4294901760
        %7956 = vmatpush1.msra.mxu0 %v7955
        %7957 = vmatprep.subr.mxu0 0.0
        %7958 = vmatpush2.msra.mxu0 0.0
        %7959 = vmatprep.subr.mxu0 0.0
        %7960 = vmatpush2.msra.mxu0 0.0
        %7961 = vmatprep.subr.mxu0 0.0
        %7962 = vmatpush2.msra.mxu0 0.0
        %7963 = vmatprep.subr.mxu0 0.0
        %7964 = vmatpush2.msra.mxu0 0.0
        %7965 = vmatprep.subr.mxu0 0.0
        %7966 = vmatpush2.msra.mxu0 0.0
        %7967 = vmatprep.subr.mxu0 0.0
        %7968 = vmatpush2.msra.mxu0 0.0
        %7969 = vmatprep.subr.mxu0 0.0
        %7970 = vmatpush2.msra.mxu0 0.0
        %7971 = vmatprep.subr.mxu0 0.0
        %7972 = vmatpush2.msra.mxu0 0.0
        %7973 = vmatprep.subr.mxu0 0.0
        %7974 = vmatpush2.msra.mxu0 0.0
        %7975 = vmatprep.subr.mxu0 0.0
        %7976 = vmatpush2.msra.mxu0 0.0
        %7977 = vmatprep.subr.mxu0 0.0
        %7978 = vmatpush2.msra.mxu0 0.0
        %7979 = vmatprep.subr.mxu0 0.0
        %7980 = vmatpush2.msra.mxu0 0.0
        %7981 = vmatprep.subr.mxu0 0.0
        %7982 = vmatpush2.msra.mxu0 0.0
        %7983 = vmatprep.subr.mxu0 0.0
        %7984 = vmatpush2.msra.mxu0 0.0
        %7985 = vmatprep.subr.mxu0 0.0
        %7986 = vmatpush2.msra.mxu0 0.0
        %7987 = vmatprep.subr.mxu0 0.0
        %7988 = vmatpush2.msra.mxu0 0.0
        %7989 = vmatprep.mubr.f32.mxu0 0.0
        %v7990 = vand.u32 %v7536, 4294901760
        %v7991 = vsub.f32 %v7536, %v7990
        %v7992 = vand.u32 %v7991, 4294901760
        %7993 = vmatmul.mubr.f32.gmra.mxu0 %v7992
        %v7994 = vpop.f32.mrf.mxu0
        %v7995 = vadd.f32 %v7899, %v7994
        %v7996 = vpop.f32.mrf.mxu0
        %7997 = vmatprep.mubr.f32.mxu0 0.0
        %v7998 = vand.u32 %v7537, 4294901760
        %v7999 = vsub.f32 %v7537, %v7998
        %v8000 = vand.u32 %v7999, 4294901760
        %8001 = vmatmul.mubr.f32.gmra.mxu0 %v8000
        %v8002 = vpop.f32.mrf.mxu0
        %v8003 = vadd.f32 %v7906, %v8002
        %v8004 = vpop.f32.mrf.mxu0
        %8005 = vdwg.mxu0
        %8006 = vmatprep.subr.mxu0 0.0
        %v8007 = vand.u32 %v386, 4294901760
        %v8008 = vsub.f32 %v386, %v8007
        %v8009 = vand.u32 %v8008, 4294901760
        %8010 = vmatpush1.msra.mxu0 %v8009
        %8011 = vmatprep.subr.mxu0 0.0
        %v8012 = vand.u32 %v385, 4294901760
        %v8013 = vsub.f32 %v385, %v8012
        %v8014 = vand.u32 %v8013, 4294901760
        %8015 = vmatpush1.msra.mxu0 %v8014
        %8016 = vmatprep.subr.mxu0 0.0
        %v8017 = vand.u32 %v384, 4294901760
        %v8018 = vsub.f32 %v384, %v8017
        %v8019 = vand.u32 %v8018, 4294901760
        %8020 = vmatpush1.msra.mxu0 %v8019
        %8021 = vmatprep.subr.mxu0 0.0
        %v8022 = vand.u32 %v383, 4294901760
        %v8023 = vsub.f32 %v383, %v8022
        %v8024 = vand.u32 %v8023, 4294901760
        %8025 = vmatpush1.msra.mxu0 %v8024
        %8026 = vmatprep.subr.mxu0 0.0
        %v8027 = vand.u32 %v382, 4294901760
        %v8028 = vsub.f32 %v382, %v8027
        %v8029 = vand.u32 %v8028, 4294901760
        %8030 = vmatpush1.msra.mxu0 %v8029
        %8031 = vmatprep.subr.mxu0 0.0
        %v8032 = vand.u32 %v381, 4294901760
        %v8033 = vsub.f32 %v381, %v8032
        %v8034 = vand.u32 %v8033, 4294901760
        %8035 = vmatpush1.msra.mxu0 %v8034
        %8036 = vmatprep.subr.mxu0 0.0
        %v8037 = vand.u32 %v380, 4294901760
        %v8038 = vsub.f32 %v380, %v8037
        %v8039 = vand.u32 %v8038, 4294901760
        %8040 = vmatpush1.msra.mxu0 %v8039
        %8041 = vmatprep.subr.mxu0 0.0
        %v8042 = vand.u32 %v379, 4294901760
        %v8043 = vsub.f32 %v379, %v8042
        %v8044 = vand.u32 %v8043, 4294901760
        %8045 = vmatpush1.msra.mxu0 %v8044
        %8046 = vmatprep.subr.mxu0 0.0
        %v8047 = vand.u32 %v378, 4294901760
        %v8048 = vsub.f32 %v378, %v8047
        %v8049 = vand.u32 %v8048, 4294901760
        %8050 = vmatpush1.msra.mxu0 %v8049
        %8051 = vmatprep.subr.mxu0 0.0
        %v8052 = vand.u32 %v377, 4294901760
        %v8053 = vsub.f32 %v377, %v8052
        %v8054 = vand.u32 %v8053, 4294901760
        %8055 = vmatpush1.msra.mxu0 %v8054
        %8056 = vmatprep.subr.mxu0 0.0
        %v8057 = vand.u32 %v376, 4294901760
        %v8058 = vsub.f32 %v376, %v8057
        %v8059 = vand.u32 %v8058, 4294901760
        %8060 = vmatpush1.msra.mxu0 %v8059
        %8061 = vmatprep.subr.mxu0 0.0
        %v8062 = vand.u32 %v375, 4294901760
        %v8063 = vsub.f32 %v375, %v8062
        %v8064 = vand.u32 %v8063, 4294901760
        %8065 = vmatpush1.msra.mxu0 %v8064
        %8066 = vmatprep.subr.mxu0 0.0
        %v8067 = vand.u32 %v374, 4294901760
        %v8068 = vsub.f32 %v374, %v8067
        %v8069 = vand.u32 %v8068, 4294901760
        %8070 = vmatpush1.msra.mxu0 %v8069
        %8071 = vmatprep.subr.mxu0 0.0
        %v8072 = vand.u32 %v373, 4294901760
        %v8073 = vsub.f32 %v373, %v8072
        %v8074 = vand.u32 %v8073, 4294901760
        %8075 = vmatpush1.msra.mxu0 %v8074
        %8076 = vmatprep.subr.mxu0 0.0
        %v8077 = vand.u32 %v372, 4294901760
        %v8078 = vsub.f32 %v372, %v8077
        %v8079 = vand.u32 %v8078, 4294901760
        %8080 = vmatpush1.msra.mxu0 %v8079
        %8081 = vmatprep.subr.mxu0 0.0
        %v8082 = vand.u32 %v371, 4294901760
        %v8083 = vsub.f32 %v371, %v8082
        %v8084 = vand.u32 %v8083, 4294901760
        %8085 = vmatpush1.msra.mxu0 %v8084
        %8086 = vmatprep.subr.mxu0 0.0
        %8087 = vmatpush2.msra.mxu0 0.0
        %8088 = vmatprep.subr.mxu0 0.0
        %8089 = vmatpush2.msra.mxu0 0.0
        %8090 = vmatprep.subr.mxu0 0.0
        %8091 = vmatpush2.msra.mxu0 0.0
        %8092 = vmatprep.subr.mxu0 0.0
        %8093 = vmatpush2.msra.mxu0 0.0
        %8094 = vmatprep.subr.mxu0 0.0
        %8095 = vmatpush2.msra.mxu0 0.0
        %8096 = vmatprep.subr.mxu0 0.0
        %8097 = vmatpush2.msra.mxu0 0.0
        %8098 = vmatprep.subr.mxu0 0.0
        %8099 = vmatpush2.msra.mxu0 0.0
        %8100 = vmatprep.subr.mxu0 0.0
        %8101 = vmatpush2.msra.mxu0 0.0
        %8102 = vmatprep.subr.mxu0 0.0
        %8103 = vmatpush2.msra.mxu0 0.0
        %8104 = vmatprep.subr.mxu0 0.0
        %8105 = vmatpush2.msra.mxu0 0.0
        %8106 = vmatprep.subr.mxu0 0.0
        %8107 = vmatpush2.msra.mxu0 0.0
        %8108 = vmatprep.subr.mxu0 0.0
        %8109 = vmatpush2.msra.mxu0 0.0
        %8110 = vmatprep.subr.mxu0 0.0
        %8111 = vmatpush2.msra.mxu0 0.0
        %8112 = vmatprep.subr.mxu0 0.0
        %8113 = vmatpush2.msra.mxu0 0.0
        %8114 = vmatprep.subr.mxu0 0.0
        %8115 = vmatpush2.msra.mxu0 0.0
        %8116 = vmatprep.subr.mxu0 0.0
        %8117 = vmatpush2.msra.mxu0 0.0
        %8118 = vmatprep.mubr.f32.mxu0 0.0
        %v8119 = vand.u32 %v7536, 4294901760
        %8120 = vmatmul.mubr.f32.gmra.mxu0 %v8119
        %v8121 = vpop.f32.mrf.mxu0
        %v8122 = vadd.f32 %v7995, %v8121
        %v8123 = vpop.f32.mrf.mxu0
        %8124 = vmatprep.mubr.f32.mxu0 0.0
        %v8125 = vand.u32 %v7537, 4294901760
        %8126 = vmatmul.mubr.f32.gmra.mxu0 %v8125
        %v8127 = vpop.f32.mrf.mxu0
        %v8128 = vadd.f32 %v8003, %v8127
        %v8129 = vpop.f32.mrf.mxu0
        %8130 = vdwg.mxu0
        %8131 = vmatprep.subr.mxu0 0.0
        %v8132 = vand.u32 %v386, 4294901760
        %8133 = vmatpush1.msra.mxu0 %v8132
        %8134 = vmatprep.subr.mxu0 0.0
        %v8135 = vand.u32 %v385, 4294901760
        %8136 = vmatpush1.msra.mxu0 %v8135
        %8137 = vmatprep.subr.mxu0 0.0
        %v8138 = vand.u32 %v384, 4294901760
        %8139 = vmatpush1.msra.mxu0 %v8138
        %8140 = vmatprep.subr.mxu0 0.0
        %v8141 = vand.u32 %v383, 4294901760
        %8142 = vmatpush1.msra.mxu0 %v8141
        %8143 = vmatprep.subr.mxu0 0.0
        %v8144 = vand.u32 %v382, 4294901760
        %8145 = vmatpush1.msra.mxu0 %v8144
        %8146 = vmatprep.subr.mxu0 0.0
        %v8147 = vand.u32 %v381, 4294901760
        %8148 = vmatpush1.msra.mxu0 %v8147
        %8149 = vmatprep.subr.mxu0 0.0
        %v8150 = vand.u32 %v380, 4294901760
        %8151 = vmatpush1.msra.mxu0 %v8150
        %8152 = vmatprep.subr.mxu0 0.0
        %v8153 = vand.u32 %v379, 4294901760
        %8154 = vmatpush1.msra.mxu0 %v8153
        %8155 = vmatprep.subr.mxu0 0.0
        %v8156 = vand.u32 %v378, 4294901760
        %8157 = vmatpush1.msra.mxu0 %v8156
        %8158 = vmatprep.subr.mxu0 0.0
        %v8159 = vand.u32 %v377, 4294901760
        %8160 = vmatpush1.msra.mxu0 %v8159
        %8161 = vmatprep.subr.mxu0 0.0
        %v8162 = vand.u32 %v376, 4294901760
        %8163 = vmatpush1.msra.mxu0 %v8162
        %8164 = vmatprep.subr.mxu0 0.0
        %v8165 = vand.u32 %v375, 4294901760
        %8166 = vmatpush1.msra.mxu0 %v8165
        %8167 = vmatprep.subr.mxu0 0.0
        %v8168 = vand.u32 %v374, 4294901760
        %8169 = vmatpush1.msra.mxu0 %v8168
        %8170 = vmatprep.subr.mxu0 0.0
        %v8171 = vand.u32 %v373, 4294901760
        %8172 = vmatpush1.msra.mxu0 %v8171
        %8173 = vmatprep.subr.mxu0 0.0
        %v8174 = vand.u32 %v372, 4294901760
        %8175 = vmatpush1.msra.mxu0 %v8174
        %8176 = vmatprep.subr.mxu0 0.0
        %v8177 = vand.u32 %v371, 4294901760
        %8178 = vmatpush1.msra.mxu0 %v8177
        %8179 = vmatprep.subr.mxu0 0.0
        %8180 = vmatpush2.msra.mxu0 0.0
        %8181 = vmatprep.subr.mxu0 0.0
        %8182 = vmatpush2.msra.mxu0 0.0
        %8183 = vmatprep.subr.mxu0 0.0
        %8184 = vmatpush2.msra.mxu0 0.0
        %8185 = vmatprep.subr.mxu0 0.0
        %8186 = vmatpush2.msra.mxu0 0.0
        %8187 = vmatprep.subr.mxu0 0.0
        %8188 = vmatpush2.msra.mxu0 0.0
        %8189 = vmatprep.subr.mxu0 0.0
        %8190 = vmatpush2.msra.mxu0 0.0
        %8191 = vmatprep.subr.mxu0 0.0
        %8192 = vmatpush2.msra.mxu0 0.0
        %8193 = vmatprep.subr.mxu0 0.0
        %8194 = vmatpush2.msra.mxu0 0.0
        %8195 = vmatprep.subr.mxu0 0.0
        %8196 = vmatpush2.msra.mxu0 0.0
        %8197 = vmatprep.subr.mxu0 0.0
        %8198 = vmatpush2.msra.mxu0 0.0
        %8199 = vmatprep.subr.mxu0 0.0
        %8200 = vmatpush2.msra.mxu0 0.0
        %8201 = vmatprep.subr.mxu0 0.0
        %8202 = vmatpush2.msra.mxu0 0.0
        %8203 = vmatprep.subr.mxu0 0.0
        %8204 = vmatpush2.msra.mxu0 0.0
        %8205 = vmatprep.subr.mxu0 0.0
        %8206 = vmatpush2.msra.mxu0 0.0
        %8207 = vmatprep.subr.mxu0 0.0
        %8208 = vmatpush2.msra.mxu0 0.0
        %8209 = vmatprep.subr.mxu0 0.0
        %8210 = vmatpush2.msra.mxu0 0.0
        %8211 = vmatprep.mubr.f32.mxu0 0.0
        %v8212 = vand.u32 %v7536, 4294901760
        %8213 = vmatmul.mubr.f32.gmra.mxu0 %v8212
        %v8214 = vpop.f32.mrf.mxu0
        %v8215 = vadd.f32 %v8122, %v8214
        %v8216 = vpop.f32.mrf.mxu0
        %8217 = vmatprep.mubr.f32.mxu0 0.0
        %v8218 = vand.u32 %v7537, 4294901760
        %8219 = vmatmul.mubr.f32.gmra.mxu0 %v8218
        %v8220 = vpop.f32.mrf.mxu0
        %v8221 = vadd.f32 %v8128, %v8220
        %v8222 = vpop.f32.mrf.mxu0
        %8223 = vdwg.mxu0
        %8224 = vmatprep.subr.mxu0 0.0
        %v8225 = vand.u32 %v402, 4294901760
        %8226 = vmatpush1.msra.mxu0 %v8225
        %8227 = vmatprep.subr.mxu0 0.0
        %v8228 = vand.u32 %v401, 4294901760
        %8229 = vmatpush1.msra.mxu0 %v8228
        %8230 = vmatprep.subr.mxu0 0.0
        %v8231 = vand.u32 %v400, 4294901760
        %8232 = vmatpush1.msra.mxu0 %v8231
        %8233 = vmatprep.subr.mxu0 0.0
        %v8234 = vand.u32 %v399, 4294901760
        %8235 = vmatpush1.msra.mxu0 %v8234
        %8236 = vmatprep.subr.mxu0 0.0
        %v8237 = vand.u32 %v398, 4294901760
        %8238 = vmatpush1.msra.mxu0 %v8237
        %8239 = vmatprep.subr.mxu0 0.0
        %v8240 = vand.u32 %v397, 4294901760
        %8241 = vmatpush1.msra.mxu0 %v8240
        %8242 = vmatprep.subr.mxu0 0.0
        %v8243 = vand.u32 %v396, 4294901760
        %8244 = vmatpush1.msra.mxu0 %v8243
        %8245 = vmatprep.subr.mxu0 0.0
        %v8246 = vand.u32 %v395, 4294901760
        %8247 = vmatpush1.msra.mxu0 %v8246
        %8248 = vmatprep.subr.mxu0 0.0
        %v8249 = vand.u32 %v394, 4294901760
        %8250 = vmatpush1.msra.mxu0 %v8249
        %8251 = vmatprep.subr.mxu0 0.0
        %v8252 = vand.u32 %v393, 4294901760
        %8253 = vmatpush1.msra.mxu0 %v8252
        %8254 = vmatprep.subr.mxu0 0.0
        %v8255 = vand.u32 %v392, 4294901760
        %8256 = vmatpush1.msra.mxu0 %v8255
        %8257 = vmatprep.subr.mxu0 0.0
        %v8258 = vand.u32 %v391, 4294901760
        %8259 = vmatpush1.msra.mxu0 %v8258
        %8260 = vmatprep.subr.mxu0 0.0
        %v8261 = vand.u32 %v390, 4294901760
        %8262 = vmatpush1.msra.mxu0 %v8261
        %8263 = vmatprep.subr.mxu0 0.0
        %v8264 = vand.u32 %v389, 4294901760
        %8265 = vmatpush1.msra.mxu0 %v8264
        %8266 = vmatprep.subr.mxu0 0.0
        %v8267 = vand.u32 %v388, 4294901760
        %8268 = vmatpush1.msra.mxu0 %v8267
        %8269 = vmatprep.subr.mxu0 0.0
        %v8270 = vand.u32 %v387, 4294901760
        %8271 = vmatpush1.msra.mxu0 %v8270
        %8272 = vmatprep.subr.mxu0 0.0
        %8273 = vmatpush2.msra.mxu0 0.0
        %8274 = vmatprep.subr.mxu0 0.0
        %8275 = vmatpush2.msra.mxu0 0.0
        %8276 = vmatprep.subr.mxu0 0.0
        %8277 = vmatpush2.msra.mxu0 0.0
        %8278 = vmatprep.subr.mxu0 0.0
        %8279 = vmatpush2.msra.mxu0 0.0
        %8280 = vmatprep.subr.mxu0 0.0
        %8281 = vmatpush2.msra.mxu0 0.0
        %8282 = vmatprep.subr.mxu0 0.0
        %8283 = vmatpush2.msra.mxu0 0.0
        %8284 = vmatprep.subr.mxu0 0.0
        %8285 = vmatpush2.msra.mxu0 0.0
        %8286 = vmatprep.subr.mxu0 0.0
        %8287 = vmatpush2.msra.mxu0 0.0
        %8288 = vmatprep.subr.mxu0 0.0
        %8289 = vmatpush2.msra.mxu0 0.0
        %8290 = vmatprep.subr.mxu0 0.0
        %8291 = vmatpush2.msra.mxu0 0.0
        %8292 = vmatprep.subr.mxu0 0.0
        %8293 = vmatpush2.msra.mxu0 0.0
        %8294 = vmatprep.subr.mxu0 0.0
        %8295 = vmatpush2.msra.mxu0 0.0
        %8296 = vmatprep.subr.mxu0 0.0
        %8297 = vmatpush2.msra.mxu0 0.0
        %8298 = vmatprep.subr.mxu0 0.0
        %8299 = vmatpush2.msra.mxu0 0.0
        %8300 = vmatprep.subr.mxu0 0.0
        %8301 = vmatpush2.msra.mxu0 0.0
        %8302 = vmatprep.subr.mxu0 0.0
        %8303 = vmatpush2.msra.mxu0 0.0
        %8304 = vmatprep.mubr.f32.mxu0 0.0
        %v8305 = vand.u32 %v7538, 4294901760
        %v8306 = vsub.f32 %v7538, %v8305
        %v8307 = vand.u32 %v8306, 4294901760
        %v8308 = vsub.f32 %v8306, %v8307
        %v8309 = vand.u32 %v8308, 4294901760
        %8310 = vmatmul.mubr.f32.gmra.mxu0 %v8309
        %v8311 = vpop.f32.mrf.mxu0
        %v8312 = vadd.f32 0.0, %v8311
        %v8313 = vpop.f32.mrf.mxu0
        %8314 = vmatprep.mubr.f32.mxu0 0.0
        %v8315 = vand.u32 %v7539, 4294901760
        %v8316 = vsub.f32 %v7539, %v8315
        %v8317 = vand.u32 %v8316, 4294901760
        %v8318 = vsub.f32 %v8316, %v8317
        %v8319 = vand.u32 %v8318, 4294901760
        %8320 = vmatmul.mubr.f32.gmra.mxu0 %v8319
        %v8321 = vpop.f32.mrf.mxu0
        %v8322 = vadd.f32 0.0, %v8321
        %v8323 = vpop.f32.mrf.mxu0
        %8324 = vdwg.mxu0
        %8325 = vmatprep.subr.mxu0 0.0
        %v8326 = vand.u32 %v402, 4294901760
        %v8327 = vsub.f32 %v402, %v8326
        %v8328 = vand.u32 %v8327, 4294901760
        %v8329 = vsub.f32 %v8327, %v8328
        %v8330 = vand.u32 %v8329, 4294901760
        %8331 = vmatpush1.msra.mxu0 %v8330
        %8332 = vmatprep.subr.mxu0 0.0
        %v8333 = vand.u32 %v401, 4294901760
        %v8334 = vsub.f32 %v401, %v8333
        %v8335 = vand.u32 %v8334, 4294901760
        %v8336 = vsub.f32 %v8334, %v8335
        %v8337 = vand.u32 %v8336, 4294901760
        %8338 = vmatpush1.msra.mxu0 %v8337
        %8339 = vmatprep.subr.mxu0 0.0
        %v8340 = vand.u32 %v400, 4294901760
        %v8341 = vsub.f32 %v400, %v8340
        %v8342 = vand.u32 %v8341, 4294901760
        %v8343 = vsub.f32 %v8341, %v8342
        %v8344 = vand.u32 %v8343, 4294901760
        %8345 = vmatpush1.msra.mxu0 %v8344
        %8346 = vmatprep.subr.mxu0 0.0
        %v8347 = vand.u32 %v399, 4294901760
        %v8348 = vsub.f32 %v399, %v8347
        %v8349 = vand.u32 %v8348, 4294901760
        %v8350 = vsub.f32 %v8348, %v8349
        %v8351 = vand.u32 %v8350, 4294901760
        %8352 = vmatpush1.msra.mxu0 %v8351
        %8353 = vmatprep.subr.mxu0 0.0
        %v8354 = vand.u32 %v398, 4294901760
        %v8355 = vsub.f32 %v398, %v8354
        %v8356 = vand.u32 %v8355, 4294901760
        %v8357 = vsub.f32 %v8355, %v8356
        %v8358 = vand.u32 %v8357, 4294901760
        %8359 = vmatpush1.msra.mxu0 %v8358
        %8360 = vmatprep.subr.mxu0 0.0
        %v8361 = vand.u32 %v397, 4294901760
        %v8362 = vsub.f32 %v397, %v8361
        %v8363 = vand.u32 %v8362, 4294901760
        %v8364 = vsub.f32 %v8362, %v8363
        %v8365 = vand.u32 %v8364, 4294901760
        %8366 = vmatpush1.msra.mxu0 %v8365
        %8367 = vmatprep.subr.mxu0 0.0
        %v8368 = vand.u32 %v396, 4294901760
        %v8369 = vsub.f32 %v396, %v8368
        %v8370 = vand.u32 %v8369, 4294901760
        %v8371 = vsub.f32 %v8369, %v8370
        %v8372 = vand.u32 %v8371, 4294901760
        %8373 = vmatpush1.msra.mxu0 %v8372
        %8374 = vmatprep.subr.mxu0 0.0
        %v8375 = vand.u32 %v395, 4294901760
        %v8376 = vsub.f32 %v395, %v8375
        %v8377 = vand.u32 %v8376, 4294901760
        %v8378 = vsub.f32 %v8376, %v8377
        %v8379 = vand.u32 %v8378, 4294901760
        %8380 = vmatpush1.msra.mxu0 %v8379
        %8381 = vmatprep.subr.mxu0 0.0
        %v8382 = vand.u32 %v394, 4294901760
        %v8383 = vsub.f32 %v394, %v8382
        %v8384 = vand.u32 %v8383, 4294901760
        %v8385 = vsub.f32 %v8383, %v8384
        %v8386 = vand.u32 %v8385, 4294901760
        %8387 = vmatpush1.msra.mxu0 %v8386
        %8388 = vmatprep.subr.mxu0 0.0
        %v8389 = vand.u32 %v393, 4294901760
        %v8390 = vsub.f32 %v393, %v8389
        %v8391 = vand.u32 %v8390, 4294901760
        %v8392 = vsub.f32 %v8390, %v8391
        %v8393 = vand.u32 %v8392, 4294901760
        %8394 = vmatpush1.msra.mxu0 %v8393
        %8395 = vmatprep.subr.mxu0 0.0
        %v8396 = vand.u32 %v392, 4294901760
        %v8397 = vsub.f32 %v392, %v8396
        %v8398 = vand.u32 %v8397, 4294901760
        %v8399 = vsub.f32 %v8397, %v8398
        %v8400 = vand.u32 %v8399, 4294901760
        %8401 = vmatpush1.msra.mxu0 %v8400
        %8402 = vmatprep.subr.mxu0 0.0
        %v8403 = vand.u32 %v391, 4294901760
        %v8404 = vsub.f32 %v391, %v8403
        %v8405 = vand.u32 %v8404, 4294901760
        %v8406 = vsub.f32 %v8404, %v8405
        %v8407 = vand.u32 %v8406, 4294901760
        %8408 = vmatpush1.msra.mxu0 %v8407
        %8409 = vmatprep.subr.mxu0 0.0
        %v8410 = vand.u32 %v390, 4294901760
        %v8411 = vsub.f32 %v390, %v8410
        %v8412 = vand.u32 %v8411, 4294901760
        %v8413 = vsub.f32 %v8411, %v8412
        %v8414 = vand.u32 %v8413, 4294901760
        %8415 = vmatpush1.msra.mxu0 %v8414
        %8416 = vmatprep.subr.mxu0 0.0
        %v8417 = vand.u32 %v389, 4294901760
        %v8418 = vsub.f32 %v389, %v8417
        %v8419 = vand.u32 %v8418, 4294901760
        %v8420 = vsub.f32 %v8418, %v8419
        %v8421 = vand.u32 %v8420, 4294901760
        %8422 = vmatpush1.msra.mxu0 %v8421
        %8423 = vmatprep.subr.mxu0 0.0
        %v8424 = vand.u32 %v388, 4294901760
        %v8425 = vsub.f32 %v388, %v8424
        %v8426 = vand.u32 %v8425, 4294901760
        %v8427 = vsub.f32 %v8425, %v8426
        %v8428 = vand.u32 %v8427, 4294901760
        %8429 = vmatpush1.msra.mxu0 %v8428
        %8430 = vmatprep.subr.mxu0 0.0
        %v8431 = vand.u32 %v387, 4294901760
        %v8432 = vsub.f32 %v387, %v8431
        %v8433 = vand.u32 %v8432, 4294901760
        %v8434 = vsub.f32 %v8432, %v8433
        %v8435 = vand.u32 %v8434, 4294901760
        %8436 = vmatpush1.msra.mxu0 %v8435
        %8437 = vmatprep.subr.mxu0 0.0
        %8438 = vmatpush2.msra.mxu0 0.0
        %8439 = vmatprep.subr.mxu0 0.0
        %8440 = vmatpush2.msra.mxu0 0.0
        %8441 = vmatprep.subr.mxu0 0.0
        %8442 = vmatpush2.msra.mxu0 0.0
        %8443 = vmatprep.subr.mxu0 0.0
        %8444 = vmatpush2.msra.mxu0 0.0
        %8445 = vmatprep.subr.mxu0 0.0
        %8446 = vmatpush2.msra.mxu0 0.0
        %8447 = vmatprep.subr.mxu0 0.0
        %8448 = vmatpush2.msra.mxu0 0.0
        %8449 = vmatprep.subr.mxu0 0.0
        %8450 = vmatpush2.msra.mxu0 0.0
        %8451 = vmatprep.subr.mxu0 0.0
        %8452 = vmatpush2.msra.mxu0 0.0
        %8453 = vmatprep.subr.mxu0 0.0
        %8454 = vmatpush2.msra.mxu0 0.0
        %8455 = vmatprep.subr.mxu0 0.0
        %8456 = vmatpush2.msra.mxu0 0.0
        %8457 = vmatprep.subr.mxu0 0.0
        %8458 = vmatpush2.msra.mxu0 0.0
        %8459 = vmatprep.subr.mxu0 0.0
        %8460 = vmatpush2.msra.mxu0 0.0
        %8461 = vmatprep.subr.mxu0 0.0
        %8462 = vmatpush2.msra.mxu0 0.0
        %8463 = vmatprep.subr.mxu0 0.0
        %8464 = vmatpush2.msra.mxu0 0.0
        %8465 = vmatprep.subr.mxu0 0.0
        %8466 = vmatpush2.msra.mxu0 0.0
        %8467 = vmatprep.subr.mxu0 0.0
        %8468 = vmatpush2.msra.mxu0 0.0
        %8469 = vmatprep.mubr.f32.mxu0 0.0
        %v8470 = vand.u32 %v7538, 4294901760
        %8471 = vmatmul.mubr.f32.gmra.mxu0 %v8470
        %v8472 = vpop.f32.mrf.mxu0
        %v8473 = vadd.f32 %v8312, %v8472
        %v8474 = vpop.f32.mrf.mxu0
        %8475 = vmatprep.mubr.f32.mxu0 0.0
        %v8476 = vand.u32 %v7539, 4294901760
        %8477 = vmatmul.mubr.f32.gmra.mxu0 %v8476
        %v8478 = vpop.f32.mrf.mxu0
        %v8479 = vadd.f32 %v8322, %v8478
        %v8480 = vpop.f32.mrf.mxu0
        %8481 = vdwg.mxu0
        %8482 = vmatprep.subr.mxu0 0.0
        %v8483 = vand.u32 %v402, 4294901760
        %v8484 = vsub.f32 %v402, %v8483
        %8485 = vmatpush1.msra.mxu0 %v8484
        %8486 = vmatprep.subr.mxu0 0.0
        %v8487 = vand.u32 %v401, 4294901760
        %v8488 = vsub.f32 %v401, %v8487
        %8489 = vmatpush1.msra.mxu0 %v8488
        %8490 = vmatprep.subr.mxu0 0.0
        %v8491 = vand.u32 %v400, 4294901760
        %v8492 = vsub.f32 %v400, %v8491
        %8493 = vmatpush1.msra.mxu0 %v8492
        %8494 = vmatprep.subr.mxu0 0.0
        %v8495 = vand.u32 %v399, 4294901760
        %v8496 = vsub.f32 %v399, %v8495
        %8497 = vmatpush1.msra.mxu0 %v8496
        %8498 = vmatprep.subr.mxu0 0.0
        %v8499 = vand.u32 %v398, 4294901760
        %v8500 = vsub.f32 %v398, %v8499
        %8501 = vmatpush1.msra.mxu0 %v8500
        %8502 = vmatprep.subr.mxu0 0.0
        %v8503 = vand.u32 %v397, 4294901760
        %v8504 = vsub.f32 %v397, %v8503
        %8505 = vmatpush1.msra.mxu0 %v8504
        %8506 = vmatprep.subr.mxu0 0.0
        %v8507 = vand.u32 %v396, 4294901760
        %v8508 = vsub.f32 %v396, %v8507
        %8509 = vmatpush1.msra.mxu0 %v8508
        %8510 = vmatprep.subr.mxu0 0.0
        %v8511 = vand.u32 %v395, 4294901760
        %v8512 = vsub.f32 %v395, %v8511
        %8513 = vmatpush1.msra.mxu0 %v8512
        %8514 = vmatprep.subr.mxu0 0.0
        %v8515 = vand.u32 %v394, 4294901760
        %v8516 = vsub.f32 %v394, %v8515
        %8517 = vmatpush1.msra.mxu0 %v8516
        %8518 = vmatprep.subr.mxu0 0.0
        %v8519 = vand.u32 %v393, 4294901760
        %v8520 = vsub.f32 %v393, %v8519
        %8521 = vmatpush1.msra.mxu0 %v8520
        %8522 = vmatprep.subr.mxu0 0.0
        %v8523 = vand.u32 %v392, 4294901760
        %v8524 = vsub.f32 %v392, %v8523
        %8525 = vmatpush1.msra.mxu0 %v8524
        %8526 = vmatprep.subr.mxu0 0.0
        %v8527 = vand.u32 %v391, 4294901760
        %v8528 = vsub.f32 %v391, %v8527
        %8529 = vmatpush1.msra.mxu0 %v8528
        %8530 = vmatprep.subr.mxu0 0.0
        %v8531 = vand.u32 %v390, 4294901760
        %v8532 = vsub.f32 %v390, %v8531
        %8533 = vmatpush1.msra.mxu0 %v8532
        %8534 = vmatprep.subr.mxu0 0.0
        %v8535 = vand.u32 %v389, 4294901760
        %v8536 = vsub.f32 %v389, %v8535
        %8537 = vmatpush1.msra.mxu0 %v8536
        %8538 = vmatprep.subr.mxu0 0.0
        %v8539 = vand.u32 %v388, 4294901760
        %v8540 = vsub.f32 %v388, %v8539
        %8541 = vmatpush1.msra.mxu0 %v8540
        %8542 = vmatprep.subr.mxu0 0.0
        %v8543 = vand.u32 %v387, 4294901760
        %v8544 = vsub.f32 %v387, %v8543
        %8545 = vmatpush1.msra.mxu0 %v8544
        %8546 = vmatprep.subr.mxu0 0.0
        %8547 = vmatpush2.msra.mxu0 0.0
        %8548 = vmatprep.subr.mxu0 0.0
        %8549 = vmatpush2.msra.mxu0 0.0
        %8550 = vmatprep.subr.mxu0 0.0
        %8551 = vmatpush2.msra.mxu0 0.0
        %8552 = vmatprep.subr.mxu0 0.0
        %8553 = vmatpush2.msra.mxu0 0.0
        %8554 = vmatprep.subr.mxu0 0.0
        %8555 = vmatpush2.msra.mxu0 0.0
        %8556 = vmatprep.subr.mxu0 0.0
        %8557 = vmatpush2.msra.mxu0 0.0
        %8558 = vmatprep.subr.mxu0 0.0
        %8559 = vmatpush2.msra.mxu0 0.0
        %8560 = vmatprep.subr.mxu0 0.0
        %8561 = vmatpush2.msra.mxu0 0.0
        %8562 = vmatprep.subr.mxu0 0.0
        %8563 = vmatpush2.msra.mxu0 0.0
        %8564 = vmatprep.subr.mxu0 0.0
        %8565 = vmatpush2.msra.mxu0 0.0
        %8566 = vmatprep.subr.mxu0 0.0
        %8567 = vmatpush2.msra.mxu0 0.0
        %8568 = vmatprep.subr.mxu0 0.0
        %8569 = vmatpush2.msra.mxu0 0.0
        %8570 = vmatprep.subr.mxu0 0.0
        %8571 = vmatpush2.msra.mxu0 0.0
        %8572 = vmatprep.subr.mxu0 0.0
        %8573 = vmatpush2.msra.mxu0 0.0
        %8574 = vmatprep.subr.mxu0 0.0
        %8575 = vmatpush2.msra.mxu0 0.0
        %8576 = vmatprep.subr.mxu0 0.0
        %8577 = vmatpush2.msra.mxu0 0.0
        %8578 = vmatprep.mubr.f32.mxu0 0.0
        %v8579 = vand.u32 %v7538, 4294901760
        %v8580 = vsub.f32 %v7538, %v8579
        %8581 = vmatmul.mubr.f32.gmra.mxu0 %v8580
        %v8582 = vpop.f32.mrf.mxu0
        %v8583 = vadd.f32 %v8473, %v8582
        %v8584 = vpop.f32.mrf.mxu0
        %8585 = vmatprep.mubr.f32.mxu0 0.0
        %v8586 = vand.u32 %v7539, 4294901760
        %v8587 = vsub.f32 %v7539, %v8586
        %8588 = vmatmul.mubr.f32.gmra.mxu0 %v8587
        %v8589 = vpop.f32.mrf.mxu0
        %v8590 = vadd.f32 %v8479, %v8589
        %v8591 = vpop.f32.mrf.mxu0
        %8592 = vdwg.mxu0
        %8593 = vmatprep.subr.mxu0 0.0
        %v8594 = vand.u32 %v402, 4294901760
        %8595 = vmatpush1.msra.mxu0 %v8594
        %8596 = vmatprep.subr.mxu0 0.0
        %v8597 = vand.u32 %v401, 4294901760
        %8598 = vmatpush1.msra.mxu0 %v8597
        %8599 = vmatprep.subr.mxu0 0.0
        %v8600 = vand.u32 %v400, 4294901760
        %8601 = vmatpush1.msra.mxu0 %v8600
        %8602 = vmatprep.subr.mxu0 0.0
        %v8603 = vand.u32 %v399, 4294901760
        %8604 = vmatpush1.msra.mxu0 %v8603
        %8605 = vmatprep.subr.mxu0 0.0
        %v8606 = vand.u32 %v398, 4294901760
        %8607 = vmatpush1.msra.mxu0 %v8606
        %8608 = vmatprep.subr.mxu0 0.0
        %v8609 = vand.u32 %v397, 4294901760
        %8610 = vmatpush1.msra.mxu0 %v8609
        %8611 = vmatprep.subr.mxu0 0.0
        %v8612 = vand.u32 %v396, 4294901760
        %8613 = vmatpush1.msra.mxu0 %v8612
        %8614 = vmatprep.subr.mxu0 0.0
        %v8615 = vand.u32 %v395, 4294901760
        %8616 = vmatpush1.msra.mxu0 %v8615
        %8617 = vmatprep.subr.mxu0 0.0
        %v8618 = vand.u32 %v394, 4294901760
        %8619 = vmatpush1.msra.mxu0 %v8618
        %8620 = vmatprep.subr.mxu0 0.0
        %v8621 = vand.u32 %v393, 4294901760
        %8622 = vmatpush1.msra.mxu0 %v8621
        %8623 = vmatprep.subr.mxu0 0.0
        %v8624 = vand.u32 %v392, 4294901760
        %8625 = vmatpush1.msra.mxu0 %v8624
        %8626 = vmatprep.subr.mxu0 0.0
        %v8627 = vand.u32 %v391, 4294901760
        %8628 = vmatpush1.msra.mxu0 %v8627
        %8629 = vmatprep.subr.mxu0 0.0
        %v8630 = vand.u32 %v390, 4294901760
        %8631 = vmatpush1.msra.mxu0 %v8630
        %8632 = vmatprep.subr.mxu0 0.0
        %v8633 = vand.u32 %v389, 4294901760
        %8634 = vmatpush1.msra.mxu0 %v8633
        %8635 = vmatprep.subr.mxu0 0.0
        %v8636 = vand.u32 %v388, 4294901760
        %8637 = vmatpush1.msra.mxu0 %v8636
        %8638 = vmatprep.subr.mxu0 0.0
        %v8639 = vand.u32 %v387, 4294901760
        %8640 = vmatpush1.msra.mxu0 %v8639
        %8641 = vmatprep.subr.mxu0 0.0
        %8642 = vmatpush2.msra.mxu0 0.0
        %8643 = vmatprep.subr.mxu0 0.0
        %8644 = vmatpush2.msra.mxu0 0.0
        %8645 = vmatprep.subr.mxu0 0.0
        %8646 = vmatpush2.msra.mxu0 0.0
        %8647 = vmatprep.subr.mxu0 0.0
        %8648 = vmatpush2.msra.mxu0 0.0
        %8649 = vmatprep.subr.mxu0 0.0
        %8650 = vmatpush2.msra.mxu0 0.0
        %8651 = vmatprep.subr.mxu0 0.0
        %8652 = vmatpush2.msra.mxu0 0.0
        %8653 = vmatprep.subr.mxu0 0.0
        %8654 = vmatpush2.msra.mxu0 0.0
        %8655 = vmatprep.subr.mxu0 0.0
        %8656 = vmatpush2.msra.mxu0 0.0
        %8657 = vmatprep.subr.mxu0 0.0
        %8658 = vmatpush2.msra.mxu0 0.0
        %8659 = vmatprep.subr.mxu0 0.0
        %8660 = vmatpush2.msra.mxu0 0.0
        %8661 = vmatprep.subr.mxu0 0.0
        %8662 = vmatpush2.msra.mxu0 0.0
        %8663 = vmatprep.subr.mxu0 0.0
        %8664 = vmatpush2.msra.mxu0 0.0
        %8665 = vmatprep.subr.mxu0 0.0
        %8666 = vmatpush2.msra.mxu0 0.0
        %8667 = vmatprep.subr.mxu0 0.0
        %8668 = vmatpush2.msra.mxu0 0.0
        %8669 = vmatprep.subr.mxu0 0.0
        %8670 = vmatpush2.msra.mxu0 0.0
        %8671 = vmatprep.subr.mxu0 0.0
        %8672 = vmatpush2.msra.mxu0 0.0
        %8673 = vmatprep.mubr.f32.mxu0 0.0
        %v8674 = vand.u32 %v7538, 4294901760
        %v8675 = vsub.f32 %v7538, %v8674
        %v8676 = vand.u32 %v8675, 4294901760
        %8677 = vmatmul.mubr.f32.gmra.mxu0 %v8676
        %v8678 = vpop.f32.mrf.mxu0
        %v8679 = vadd.f32 %v8583, %v8678
        %v8680 = vpop.f32.mrf.mxu0
        %8681 = vmatprep.mubr.f32.mxu0 0.0
        %v8682 = vand.u32 %v7539, 4294901760
        %v8683 = vsub.f32 %v7539, %v8682
        %v8684 = vand.u32 %v8683, 4294901760
        %8685 = vmatmul.mubr.f32.gmra.mxu0 %v8684
        %v8686 = vpop.f32.mrf.mxu0
        %v8687 = vadd.f32 %v8590, %v8686
        %v8688 = vpop.f32.mrf.mxu0
        %8689 = vdwg.mxu0
        %8690 = vmatprep.subr.mxu0 0.0
        %v8691 = vand.u32 %v402, 4294901760
        %v8692 = vsub.f32 %v402, %v8691
        %v8693 = vand.u32 %v8692, 4294901760
        %8694 = vmatpush1.msra.mxu0 %v8693
        %8695 = vmatprep.subr.mxu0 0.0
        %v8696 = vand.u32 %v401, 4294901760
        %v8697 = vsub.f32 %v401, %v8696
        %v8698 = vand.u32 %v8697, 4294901760
        %8699 = vmatpush1.msra.mxu0 %v8698
        %8700 = vmatprep.subr.mxu0 0.0
        %v8701 = vand.u32 %v400, 4294901760
        %v8702 = vsub.f32 %v400, %v8701
        %v8703 = vand.u32 %v8702, 4294901760
        %8704 = vmatpush1.msra.mxu0 %v8703
        %8705 = vmatprep.subr.mxu0 0.0
        %v8706 = vand.u32 %v399, 4294901760
        %v8707 = vsub.f32 %v399, %v8706
        %v8708 = vand.u32 %v8707, 4294901760
        %8709 = vmatpush1.msra.mxu0 %v8708
        %8710 = vmatprep.subr.mxu0 0.0
        %v8711 = vand.u32 %v398, 4294901760
        %v8712 = vsub.f32 %v398, %v8711
        %v8713 = vand.u32 %v8712, 4294901760
        %8714 = vmatpush1.msra.mxu0 %v8713
        %8715 = vmatprep.subr.mxu0 0.0
        %v8716 = vand.u32 %v397, 4294901760
        %v8717 = vsub.f32 %v397, %v8716
        %v8718 = vand.u32 %v8717, 4294901760
        %8719 = vmatpush1.msra.mxu0 %v8718
        %8720 = vmatprep.subr.mxu0 0.0
        %v8721 = vand.u32 %v396, 4294901760
        %v8722 = vsub.f32 %v396, %v8721
        %v8723 = vand.u32 %v8722, 4294901760
        %8724 = vmatpush1.msra.mxu0 %v8723
        %8725 = vmatprep.subr.mxu0 0.0
        %v8726 = vand.u32 %v395, 4294901760
        %v8727 = vsub.f32 %v395, %v8726
        %v8728 = vand.u32 %v8727, 4294901760
        %8729 = vmatpush1.msra.mxu0 %v8728
        %8730 = vmatprep.subr.mxu0 0.0
        %v8731 = vand.u32 %v394, 4294901760
        %v8732 = vsub.f32 %v394, %v8731
        %v8733 = vand.u32 %v8732, 4294901760
        %8734 = vmatpush1.msra.mxu0 %v8733
        %8735 = vmatprep.subr.mxu0 0.0
        %v8736 = vand.u32 %v393, 4294901760
        %v8737 = vsub.f32 %v393, %v8736
        %v8738 = vand.u32 %v8737, 4294901760
        %8739 = vmatpush1.msra.mxu0 %v8738
        %8740 = vmatprep.subr.mxu0 0.0
        %v8741 = vand.u32 %v392, 4294901760
        %v8742 = vsub.f32 %v392, %v8741
        %v8743 = vand.u32 %v8742, 4294901760
        %8744 = vmatpush1.msra.mxu0 %v8743
        %8745 = vmatprep.subr.mxu0 0.0
        %v8746 = vand.u32 %v391, 4294901760
        %v8747 = vsub.f32 %v391, %v8746
        %v8748 = vand.u32 %v8747, 4294901760
        %8749 = vmatpush1.msra.mxu0 %v8748
        %8750 = vmatprep.subr.mxu0 0.0
        %v8751 = vand.u32 %v390, 4294901760
        %v8752 = vsub.f32 %v390, %v8751
        %v8753 = vand.u32 %v8752, 4294901760
        %8754 = vmatpush1.msra.mxu0 %v8753
        %8755 = vmatprep.subr.mxu0 0.0
        %v8756 = vand.u32 %v389, 4294901760
        %v8757 = vsub.f32 %v389, %v8756
        %v8758 = vand.u32 %v8757, 4294901760
        %8759 = vmatpush1.msra.mxu0 %v8758
        %8760 = vmatprep.subr.mxu0 0.0
        %v8761 = vand.u32 %v388, 4294901760
        %v8762 = vsub.f32 %v388, %v8761
        %v8763 = vand.u32 %v8762, 4294901760
        %8764 = vmatpush1.msra.mxu0 %v8763
        %8765 = vmatprep.subr.mxu0 0.0
        %v8766 = vand.u32 %v387, 4294901760
        %v8767 = vsub.f32 %v387, %v8766
        %v8768 = vand.u32 %v8767, 4294901760
        %8769 = vmatpush1.msra.mxu0 %v8768
        %8770 = vmatprep.subr.mxu0 0.0
        %8771 = vmatpush2.msra.mxu0 0.0
        %8772 = vmatprep.subr.mxu0 0.0
        %8773 = vmatpush2.msra.mxu0 0.0
        %8774 = vmatprep.subr.mxu0 0.0
        %8775 = vmatpush2.msra.mxu0 0.0
        %8776 = vmatprep.subr.mxu0 0.0
        %8777 = vmatpush2.msra.mxu0 0.0
        %8778 = vmatprep.subr.mxu0 0.0
        %8779 = vmatpush2.msra.mxu0 0.0
        %8780 = vmatprep.subr.mxu0 0.0
        %8781 = vmatpush2.msra.mxu0 0.0
        %8782 = vmatprep.subr.mxu0 0.0
        %8783 = vmatpush2.msra.mxu0 0.0
        %8784 = vmatprep.subr.mxu0 0.0
        %8785 = vmatpush2.msra.mxu0 0.0
        %8786 = vmatprep.subr.mxu0 0.0
        %8787 = vmatpush2.msra.mxu0 0.0
        %8788 = vmatprep.subr.mxu0 0.0
        %8789 = vmatpush2.msra.mxu0 0.0
        %8790 = vmatprep.subr.mxu0 0.0
        %8791 = vmatpush2.msra.mxu0 0.0
        %8792 = vmatprep.subr.mxu0 0.0
        %8793 = vmatpush2.msra.mxu0 0.0
        %8794 = vmatprep.subr.mxu0 0.0
        %8795 = vmatpush2.msra.mxu0 0.0
        %8796 = vmatprep.subr.mxu0 0.0
        %8797 = vmatpush2.msra.mxu0 0.0
        %8798 = vmatprep.subr.mxu0 0.0
        %8799 = vmatpush2.msra.mxu0 0.0
        %8800 = vmatprep.subr.mxu0 0.0
        %8801 = vmatpush2.msra.mxu0 0.0
        %8802 = vmatprep.mubr.f32.mxu0 0.0
        %v8803 = vand.u32 %v7538, 4294901760
        %8804 = vmatmul.mubr.f32.gmra.mxu0 %v8803
        %v8805 = vpop.f32.mrf.mxu0
        %v8806 = vadd.f32 %v8679, %v8805
        %v8807 = vpop.f32.mrf.mxu0
        %8808 = vmatprep.mubr.f32.mxu0 0.0
        %v8809 = vand.u32 %v7539, 4294901760
        %8810 = vmatmul.mubr.f32.gmra.mxu0 %v8809
        %v8811 = vpop.f32.mrf.mxu0
        %v8812 = vadd.f32 %v8687, %v8811
        %v8813 = vpop.f32.mrf.mxu0
        %8814 = vdwg.mxu0
        %8815 = vmatprep.subr.mxu0 0.0
        %v8816 = vand.u32 %v402, 4294901760
        %8817 = vmatpush1.msra.mxu0 %v8816
        %8818 = vmatprep.subr.mxu0 0.0
        %v8819 = vand.u32 %v401, 4294901760
        %8820 = vmatpush1.msra.mxu0 %v8819
        %8821 = vmatprep.subr.mxu0 0.0
        %v8822 = vand.u32 %v400, 4294901760
        %8823 = vmatpush1.msra.mxu0 %v8822
        %8824 = vmatprep.subr.mxu0 0.0
        %v8825 = vand.u32 %v399, 4294901760
        %8826 = vmatpush1.msra.mxu0 %v8825
        %8827 = vmatprep.subr.mxu0 0.0
        %v8828 = vand.u32 %v398, 4294901760
        %8829 = vmatpush1.msra.mxu0 %v8828
        %8830 = vmatprep.subr.mxu0 0.0
        %v8831 = vand.u32 %v397, 4294901760
        %8832 = vmatpush1.msra.mxu0 %v8831
        %8833 = vmatprep.subr.mxu0 0.0
        %v8834 = vand.u32 %v396, 4294901760
        %8835 = vmatpush1.msra.mxu0 %v8834
        %8836 = vmatprep.subr.mxu0 0.0
        %v8837 = vand.u32 %v395, 4294901760
        %8838 = vmatpush1.msra.mxu0 %v8837
        %8839 = vmatprep.subr.mxu0 0.0
        %v8840 = vand.u32 %v394, 4294901760
        %8841 = vmatpush1.msra.mxu0 %v8840
        %8842 = vmatprep.subr.mxu0 0.0
        %v8843 = vand.u32 %v393, 4294901760
        %8844 = vmatpush1.msra.mxu0 %v8843
        %8845 = vmatprep.subr.mxu0 0.0
        %v8846 = vand.u32 %v392, 4294901760
        %8847 = vmatpush1.msra.mxu0 %v8846
        %8848 = vmatprep.subr.mxu0 0.0
        %v8849 = vand.u32 %v391, 4294901760
        %8850 = vmatpush1.msra.mxu0 %v8849
        %8851 = vmatprep.subr.mxu0 0.0
        %v8852 = vand.u32 %v390, 4294901760
        %8853 = vmatpush1.msra.mxu0 %v8852
        %8854 = vmatprep.subr.mxu0 0.0
        %v8855 = vand.u32 %v389, 4294901760
        %8856 = vmatpush1.msra.mxu0 %v8855
        %8857 = vmatprep.subr.mxu0 0.0
        %v8858 = vand.u32 %v388, 4294901760
        %8859 = vmatpush1.msra.mxu0 %v8858
        %8860 = vmatprep.subr.mxu0 0.0
        %v8861 = vand.u32 %v387, 4294901760
        %8862 = vmatpush1.msra.mxu0 %v8861
        %8863 = vmatprep.subr.mxu0 0.0
        %8864 = vmatpush2.msra.mxu0 0.0
        %8865 = vmatprep.subr.mxu0 0.0
        %8866 = vmatpush2.msra.mxu0 0.0
        %8867 = vmatprep.subr.mxu0 0.0
        %8868 = vmatpush2.msra.mxu0 0.0
        %8869 = vmatprep.subr.mxu0 0.0
        %8870 = vmatpush2.msra.mxu0 0.0
        %8871 = vmatprep.subr.mxu0 0.0
        %8872 = vmatpush2.msra.mxu0 0.0
        %8873 = vmatprep.subr.mxu0 0.0
        %8874 = vmatpush2.msra.mxu0 0.0
        %8875 = vmatprep.subr.mxu0 0.0
        %8876 = vmatpush2.msra.mxu0 0.0
        %8877 = vmatprep.subr.mxu0 0.0
        %8878 = vmatpush2.msra.mxu0 0.0
        %8879 = vmatprep.subr.mxu0 0.0
        %8880 = vmatpush2.msra.mxu0 0.0
        %8881 = vmatprep.subr.mxu0 0.0
        %8882 = vmatpush2.msra.mxu0 0.0
        %8883 = vmatprep.subr.mxu0 0.0
        %8884 = vmatpush2.msra.mxu0 0.0
        %8885 = vmatprep.subr.mxu0 0.0
        %8886 = vmatpush2.msra.mxu0 0.0
        %8887 = vmatprep.subr.mxu0 0.0
        %8888 = vmatpush2.msra.mxu0 0.0
        %8889 = vmatprep.subr.mxu0 0.0
        %8890 = vmatpush2.msra.mxu0 0.0
        %8891 = vmatprep.subr.mxu0 0.0
        %8892 = vmatpush2.msra.mxu0 0.0
        %8893 = vmatprep.subr.mxu0 0.0
        %8894 = vmatpush2.msra.mxu0 0.0
        %8895 = vmatprep.mubr.f32.mxu0 0.0
        %v8896 = vand.u32 %v7538, 4294901760
        %8897 = vmatmul.mubr.f32.gmra.mxu0 %v8896
        %v8898 = vpop.f32.mrf.mxu0
        %v8899 = vadd.f32 %v8806, %v8898
        %v8900 = vpop.f32.mrf.mxu0
        %8901 = vmatprep.mubr.f32.mxu0 0.0
        %v8902 = vand.u32 %v7539, 4294901760
        %8903 = vmatmul.mubr.f32.gmra.mxu0 %v8902
        %v8904 = vpop.f32.mrf.mxu0
        %v8905 = vadd.f32 %v8812, %v8904
        %v8906 = vpop.f32.mrf.mxu0
        %8907 = vdwg.mxu0
        %v8908 = vmul.f32 %v8215, %v8215
        %v8909 = vmul.f32 %v8221, %v8221
        %v8910 = vadd.f32 %v8908, 1e-06
        %v8911 = vadd.f32 %v8909, 1e-06
        %v8912 = vrsqrt.pop %v8910
        %v8913 = vmul.f32 %v8910, %v8912
        %vm8914 = vcmp.eq.f32.partialorder %v8910, inf
        %v8915 = vsel %vm8914, %v8910, %v8913
        %vm8916 = vcmp.eq.f32.partialorder %v8910, 0.0
        %v8917 = vand.u32 %v8910, 2147483648
        %v8918 = vsel %vm8916, %v8917, %v8915
        %v8919 = vrsqrt.pop %v8911
        %v8920 = vmul.f32 %v8911, %v8919
        %vm8921 = vcmp.eq.f32.partialorder %v8911, inf
        %v8922 = vsel %vm8921, %v8911, %v8920
        %vm8923 = vcmp.eq.f32.partialorder %v8911, 0.0
        %v8924 = vand.u32 %v8911, 2147483648
        %v8925 = vsel %vm8923, %v8924, %v8922
        %v8926 = vadd.f32 %v7485, %v8918
        %v8927 = vadd.f32 %v7486, %v8925
        %v8928 = vmul.f32 %v8899, %v8899
        %v8929 = vmul.f32 %v8905, %v8905
        %v8930 = vadd.f32 %v8928, 1e-06
        %v8931 = vadd.f32 %v8929, 1e-06
        %v8932 = vrsqrt.pop %v8930
        %v8933 = vmul.f32 %v8930, %v8932
        %vm8934 = vcmp.eq.f32.partialorder %v8930, inf
        %v8935 = vsel %vm8934, %v8930, %v8933
        %vm8936 = vcmp.eq.f32.partialorder %v8930, 0.0
        %v8937 = vand.u32 %v8930, 2147483648
        %v8938 = vsel %vm8936, %v8937, %v8935
        %v8939 = vrsqrt.pop %v8931
        %v8940 = vmul.f32 %v8931, %v8939
        %vm8941 = vcmp.eq.f32.partialorder %v8931, inf
        %v8942 = vsel %vm8941, %v8931, %v8940
        %vm8943 = vcmp.eq.f32.partialorder %v8931, 0.0
        %v8944 = vand.u32 %v8931, 2147483648
        %v8945 = vsel %vm8943, %v8944, %v8942
        %v8946 = vadd.f32 %v7505, %v8938
        %v8947 = vadd.f32 %v7506, %v8945
        %v8948 = vmul.f32 %v6058, %v8926
        %v8949 = vmul.f32 %v6060, %v8927
        %v8950 = vmul.f32 %v6064, %v8946
        %v8951 = vmul.f32 %v6066, %v8947
        %v8952 = vadd.f32 %v8948, %v8950
        %v8953 = vadd.f32 %v8949, %v8951
        %v8954 = vmul.f32 %v8952, 0.25
        %v8955 = vmul.f32 %v8953, 0.25
        %8956 = vst [vmem:[%s358] sm:$0xff] %v8954
        %8957 = vst [vmem:[%s358 + $0x8] sm:$0xff] %v8955
        %s8958 = sand.u32 %s174, 1
        %s8959 = scalar_lea.sflag [#allocation4], %s8958
        %s8960 = sand.u32 %s174, 1
        %s8961 = smul.addr %s8960, 16
        %s8962 = scalar_lea.vmem [#allocation10], %s8961
        // Predicated region
        $region57: #{tpu_custom_call.1} parent=39 // pred_check
          %p8963 = pneg %p184
        $region58: #{tpu_custom_call.1} parent=39 // pred_check_branch
          %8965 = sbr.rel (%p8963) target = $region60
        $region59: #{tpu_custom_call.1} parent=39 // pred_region
          %s8966 = smul.u32 2, %s31
          %s8968 = ssub.s32 256, 256
          %8969 = vsyncadd %s8959, %s8968
          %s8970 = smul.addr %s30, 2
          %s8971 = sadd.s32 %s8966, %s8970
          %s8972 = smul.addr %s8971, 128
          %s8973 = scalar_lea.hbm %s5, %s8972
          %s8974 = sshll.u32 %s8962, 4
          %s8975 = int_to_ptr.vmem [resolvable:$true] %s8974
          %8980 = dma.vmem_to_hbm [thread:$0]  %s8975, 256, %s8973, %s8959, 128, 128, 8
        $region60: #{tpu_custom_call.1} parent=39 // pred_fallthru
          _
      $region40: #{tpu_custom_call.1} parent=5 // pred_fallthru
        _
      %p8981 = scmp.le.s32.totalorder 2, %s21
      // Predicated region
      $region61: #{tpu_custom_call.1} parent=5 // pred_check
        %p8982 = pneg %p8981
      $region62: #{tpu_custom_call.1} parent=5 // pred_check_branch
        %8984 = sbr.rel (%p8982) target = $region64
      $region63: #{tpu_custom_call.1} parent=5 // pred_region
        %s8985 = ssub.s32 %s21, 2
        // Predicated region
        $region65: #{tpu_custom_call.1} parent=63 // pred_check
          %p8986 = pneg %p190
        $region66: #{tpu_custom_call.1} parent=63 // pred_check_branch
          %8988 = sbr.rel (%p8986) target = $region68
        $region67: #{tpu_custom_call.1} parent=63 // pred_region
          %s8989 = sand.u32 %s175, 1
          %s8990 = scalar_lea.sflag [#allocation4], %s8989
          %s8991 = sand.u32 %s175, 1
          %s8992 = smul.addr %s8991, 16
          %s8993 = scalar_lea.vmem [#allocation10], %s8992
          %8994 = dma.done %s8990, 256
        $region68: #{tpu_custom_call.1} parent=63 // pred_fallthru
          _
      $region64: #{tpu_custom_call.1} parent=5 // pred_fallthru
        _
    $region6: #{tpu_custom_call.1} parent=1 // loop_footer
      %s25 = sadd.s32 1, %s21
    $region7: #{tpu_custom_call.1} parent=1 // loop_footer_branch
      %20 = sbr.rel target = $region3
    $region8: #{tpu_custom_call.1} parent=1 // loop_exit
      _
    %8995 = vsyncpa [#allocation3], 1
    %s8996 = scalar_lea.sflag [#allocation3], 1
    %8997 = vsyncpa %s8996, 1
    %8998 = vsyncpa [#allocation6], 1
    %s8999 = scalar_lea.sflag [#allocation6], 1
    %9000 = vsyncpa %s8999, 1
    %9001 = vsyncpa [#allocation9], 1
    %9002 = vsyncpa [#allocation4], 1
    %s9003 = scalar_lea.sflag [#allocation4], 1
    %9004 = vsyncpa %s9003, 1

</llo_original>
